<compile_context>
chip_gen: v7x
topology: tpu7x:2x2x1
jax: 0.10.0
libtpu: 0.0.40
codegen_flags: <defaults>
</compile_context>

<pallas_src>
import functools

import jax
import jax.numpy as jnp
from jax.experimental import pallas as pl
from jax.experimental.pallas import tpu as pltpu


def _round_up(x, m):
    return (x + m - 1) // m * m


def _vmem_limit_bytes():
    """Scoped-VMEM budget: ~96 MiB on v5e/v6e (128 MiB physical), ~48 MiB on v7x."""
    try:
        cap = int(getattr(pltpu.get_tpu_info(), "vmem_capacity_bytes", 0))
    except Exception:
        cap = 0
    if cap >= 100 * 1024 * 1024:
        return 96 * 1024 * 1024
    return 48 * 1024 * 1024


# ---------------------------------------------------------------------------
# Kernels
# ---------------------------------------------------------------------------
def _proj_kernel(x_ref, w_ref, o_ref):
    """P1[i] = X[i] @ W1  (bf16 inputs, f32 MXU accumulation, bf16 store)."""
    o_ref[...] = jnp.dot(
        x_ref[...], w_ref[...], preferred_element_type=jnp.float32
    ).astype(o_ref.dtype)


def _agg_proj_kernel(a_ref, p_ref, b_ref, w_ref, o_ref):
    """P_{l+1}[i] = relu(A[i, :] @ P_l + b_l) @ W_{l+1}.

    Aggregation of layer l fused with the row-local projection of layer l+1 so
    the output block depends only on this row block of A.
    """
    h = jnp.dot(a_ref[...], p_ref[...], preferred_element_type=jnp.float32)
    h = jnp.maximum(h + b_ref[...], 0.0)                       # f32 VPU work
    o_ref[...] = jnp.dot(
        h.astype(w_ref.dtype), w_ref[...], preferred_element_type=jnp.float32
    ).astype(o_ref.dtype)


def _head_kernel(a_ref, p_ref, b3_ref,
                 wf1_ref, bf1_ref, wf2_ref, bf2_ref, wf3_ref, bf3_ref,
                 o_ref, *, n_classes):
    """h3 = relu(A[i]@P3 + b3); fc1/fc2 (relu); fc3; masked log_softmax."""
    h = jnp.dot(a_ref[...], p_ref[...], preferred_element_type=jnp.float32)
    h = jnp.maximum(h + b3_ref[...], 0.0)

    h = jnp.maximum(
        jnp.dot(h.astype(jnp.bfloat16), wf1_ref[...],
                preferred_element_type=jnp.float32) + bf1_ref[...], 0.0)
    h = jnp.maximum(
        jnp.dot(h.astype(jnp.bfloat16), wf2_ref[...],
                preferred_element_type=jnp.float32) + bf2_ref[...], 0.0)
    z = jnp.dot(h.astype(jnp.bfloat16), wf3_ref[...],
                preferred_element_type=jnp.float32) + bf3_ref[...]

    # Mask padded class lanes before the row max / sum (lane-dense output slab).
    lane = jax.lax.broadcasted_iota(jnp.int32, z.shape, 1)
    z = jnp.where(lane < n_classes, z, -jnp.inf)

    m = jnp.max(z, axis=1, keepdims=True)
    zs = z - m
    lse = jnp.log(jnp.sum(jnp.exp(zs), axis=1, keepdims=True))
    o_ref[...] = zs - lse


# ---------------------------------------------------------------------------
# Wrapper
# ---------------------------------------------------------------------------
@functools.partial(
    jax.jit,
    static_argnames=("n", "n_classes", "block_rows", "single_buffer_invariants"))
def net_forward(a_p, x_p, prepared, *, n, n_classes, block_rows,
                single_buffer_invariants=True):
    """a_p/x_p: already padded + bf16-cast (prepare_inputs); prepared: weights."""
    npad = a_p.shape[0]
    fpad = prepared["w1"].shape[0]
    hpad = prepared["w2"].shape[0]
    cpad = prepared["wf3"].shape[1]
    assert npad % block_rows == 0 and x_p.shape == (npad, fpad)
    grid = (npad // block_rows,)

    cp = pltpu.CompilerParams(
        dimension_semantics=("parallel",),
        vmem_limit_bytes=_vmem_limit_bytes(),
    )

    def row_spec(cols):
        # Streamed operand / output: default double buffering.
        return pl.BlockSpec((block_rows, cols), lambda i: (i, 0))

    if single_buffer_invariants:
        def full_spec(shape):
            # Grid-invariant operand: fetched once, single buffer frees VMEM
            # (the saved headroom goes into larger block_rows, esp. on v7x).
            return pl.BlockSpec(shape, lambda i: (0, 0),
                                pipeline_mode=pl.Buffered(1))
    else:
        def full_spec(shape):
            return pl.BlockSpec(shape, lambda i: (0, 0))

    # --- layer-1 feature projection: P1 = X @ W1 (X streamed row-block-wise) ---
    p1 = pl.pallas_call(
        _proj_kernel,
        out_shape=jax.ShapeDtypeStruct((npad, hpad), jnp.bfloat16),
        grid=grid,
        in_specs=[row_spec(fpad), full_spec((fpad, hpad))],
        out_specs=row_spec(hpad),
        compiler_params=cp,
    )(x_p, prepared["w1"])

    # --- fused aggregation + next projection for GCN layers 1->2 and 2->3 ---
    def agg_proj(p, b, w):
        return pl.pallas_call(
            _agg_proj_kernel,
            out_shape=jax.ShapeDtypeStruct((npad, hpad), jnp.bfloat16),
            grid=grid,
            in_specs=[row_spec(npad),              # A row strip (streamed)
                      full_spec((npad, hpad)),     # full P (resident)
                      full_spec((1, hpad)),        # bias (f32)
                      full_spec((hpad, hpad))],    # next-layer weight
            out_specs=row_spec(hpad),
            compiler_params=cp,
        )(a_p, p, b, w)

    p2 = agg_proj(p1, prepared["b1"], prepared["w2"])
    p3 = agg_proj(p2, prepared["b2"], prepared["w3"])

    # --- GCN layer 3 aggregation + fc1/fc2/fc3 + masked log_softmax ---
    out = pl.pallas_call(
        functools.partial(_head_kernel, n_classes=n_classes),
        out_shape=jax.ShapeDtypeStruct((npad, cpad), jnp.float32),
        grid=grid,
        in_specs=[row_spec(npad),
                  full_spec((npad, hpad)),
                  full_spec((1, hpad)),            # b3
                  full_spec((hpad, hpad)),         # fc1 W
                  full_spec((1, hpad)),            # fc1 b
                  full_spec((hpad, hpad)),         # fc2 W
                  full_spec((1, hpad)),            # fc2 b
                  full_spec((hpad, cpad)),         # fc3 W (class lanes padded)
                  full_spec((1, cpad))],           # fc3 b
        out_specs=row_spec(cpad),
        compiler_params=cp,
    )(a_p, p3, prepared["b3"],
      prepared["wf1"], prepared["bf1"],
      prepared["wf2"], prepared["bf2"],
      prepared["wf3"], prepared["bf3"])

    return out[:n, :n_classes]


# ---------------------------------------------------------------------------
# One-time input preparation (outside jit: pad node/feature dims, cast to bf16)
# ---------------------------------------------------------------------------
def prepare_inputs(a_hat, x, n_features, block_rows):
    n, f = x.shape
    fpad = _round_up(n_features, 128)
    npad = _round_up(n, block_rows)
    x_p = jnp.zeros((npad, fpad), jnp.bfloat16).at[:n, :f].set(
        x.astype(jnp.bfloat16))
    a_p = jnp.zeros((npad, npad), jnp.bfloat16).at[:n, :n].set(
        a_hat.astype(jnp.bfloat16))
    return a_p, x_p


# ---------------------------------------------------------------------------
# One-time parameter preparation (outside jit: transpose, pad, cast)
# ---------------------------------------------------------------------------
def prepare_params(params, n_features, n_hidden, n_classes):
    fpad = _round_up(n_features, 128)
    hpad = _round_up(n_hidden, 128)
    cpad = _round_up(n_classes, 128)

    def w(name, din, dpad_in, dout, dpad_out):
        m = jnp.zeros((dpad_in, dpad_out), jnp.float32)
        m = m.at[:din, :dout].set(params[name].T.astype(jnp.float32))
        return m.astype(jnp.bfloat16)                # MXU operand

    def b(name, d, dpad):
        v = jnp.zeros((1, dpad), jnp.float32)
        return v.at[0, :d].set(params[name].astype(jnp.float32))  # f32 VPU add

    return {
        "w1":  w("conv1_w", n_features, fpad, n_hidden, hpad), "b1": b("conv1_b", n_hidden, hpad),
        "w2":  w("conv2_w", n_hidden, hpad, n_hidden, hpad),   "b2": b("conv2_b", n_hidden, hpad),
        "w3":  w("conv3_w", n_hidden, hpad, n_hidden, hpad),   "b3": b("conv3_b", n_hidden, hpad),
        "wf1": w("fc1_w", n_hidden, hpad, n_hidden, hpad),     "bf1": b("fc1_b", n_hidden, hpad),
        "wf2": w("fc2_w", n_hidden, hpad, n_hidden, hpad),     "bf2": b("fc2_b", n_hidden, hpad),
        "wf3": w("fc3_w", n_hidden, hpad, n_classes, cpad),    "bf3": b("fc3_b", n_classes, cpad),
    }


# ---------------------------------------------------------------------------
# Graph / parameter construction and fp32 reference (plain JAX glue)
# ---------------------------------------------------------------------------
def build_normalized_adjacency(edge_index, num_nodes):
    """Dense GCN-normalized adjacency D^-1/2 (A + I) D^-1/2 (self-loop weight 1,
    even if edge_index already contains self loops, matching PyG gcn_norm)."""
    src, dst = edge_index
    a = jnp.zeros((num_nodes, num_nodes), jnp.float32)
    a = a.at[src, dst].set(1.0)
    a = a.at[dst, src].set(1.0)                      # undirected
    a = jnp.maximum(a, jnp.eye(num_nodes, dtype=jnp.float32))   # self loops
    deg = jnp.sum(a, axis=1)
    d_inv_sqrt = jnp.where(deg > 0, 1.0 / jnp.sqrt(deg), 0.0)
    return a * d_inv_sqrt[:, None] * d_inv_sqrt[None, :]


def init_params(key, n_features, n_hidden, n_classes):
    shapes = {
        "conv1_w": (n_hidden, n_features), "conv1_b": (n_hidden,),
        "conv2_w": (n_hidden, n_hidden),   "conv2_b": (n_hidden,),
        "conv3_w": (n_hidden, n_hidden),   "conv3_b": (n_hidden,),
        "fc1_w": (n_hidden, n_hidden),     "fc1_b": (n_hidden,),
        "fc2_w": (n_hidden, n_hidden),     "fc2_b": (n_hidden,),
        "fc3_w": (n_classes, n_hidden),    "fc3_b": (n_classes,),
    }
    params = {}
    keys = jax.random.split(key, len(shapes))
    for k, (name, shp) in zip(keys, shapes.items()):
        fan_in = shp[-1] if len(shp) == 2 else shp[0]
        scale = 1.0 / jnp.sqrt(jnp.float32(fan_in))
        params[name] = scale * jax.random.normal(k, shp, jnp.float32)
    return params


def reference_forward(a_hat, x, params):
    """Pure-jnp fp32 reference of the original PyTorch forward (TRAIN=False)."""
    h = x
    for i in (1, 2, 3):
        h = jax.nn.relu(a_hat @ (h @ params[f"conv{i}_w"].T) + params[f"conv{i}_b"])
    h = jax.nn.relu(h @ params["fc1_w"].T + params["fc1_b"])
    h = jax.nn.relu(h @ params["fc2_w"].T + params["fc2_b"])
    z = h @ params["fc3_w"].T + params["fc3_b"]
    return jax.nn.log_softmax(z, axis=1)


if __name__ == "__main__":
    # Small synthetic graph standing in for Cora (Cora has 7 classes):
    N_NODES, N_FEATURES, N_HIDDEN, N_CLASSES = 200, 48, 32, 7

    key = jax.random.PRNGKey(0)
    k_x, k_e, k_p = jax.random.split(key, 3)

    x = jax.random.normal(k_x, (N_NODES, N_FEATURES), jnp.float32)

    # deterministic edge set: a ring plus random chords
    ring_src = jnp.arange(N_NODES, dtype=jnp.int32)
    ring_dst = (ring_src + 1) % N_NODES
    rand_edges = jax.random.randint(k_e, (2, 2 * N_NODES), 0, N_NODES, jnp.int32)
    edge_index = jnp.concatenate(
        [jnp.stack([ring_src, ring_dst]), rand_edges], axis=1)

    a_hat = build_normalized_adjacency(edge_index, N_NODES)
    params = init_params(k_p, N_FEATURES, N_HIDDEN, N_CLASSES)

    # block_rows: large row strips amortize per-grid-step overhead; clamp to npad.
    block_rows = min(512, _round_up(N_NODES, 128))

    # One-time (per-graph) preparation: pad + bf16 cast out of the jitted path.
    a_p, x_p = prepare_inputs(a_hat, x, N_FEATURES, block_rows)
    prepared = prepare_params(params, N_FEATURES, N_HIDDEN, N_CLASSES)

    kwargs = dict(n=N_NODES, n_classes=N_CLASSES, block_rows=block_rows)
    try:
        out = jax.block_until_ready(
            net_forward(a_p, x_p, prepared, single_buffer_invariants=True, **kwargs))
    except Exception:
        # Fallback for jax versions without BlockSpec pipeline_mode / Buffered(1).
        out = jax.block_until_ready(
            net_forward(a_p, x_p, prepared, single_buffer_invariants=False, **kwargs))

    ref = reference_forward(a_hat, x, params)
    assert out.shape == (N_NODES, N_CLASSES)
    # bf16 MXU operands => loosened tolerance vs fp32 reference
    assert jnp.allclose(out, ref, atol=1e-1, rtol=1e-1), "mismatch vs jnp reference"
    assert bool(jnp.all(jnp.isfinite(out))), "non-finite values in output"

    print("KERNEL_OK")
</pallas_src>

<mosaic_0001>
module attributes {stable_mosaic.version = 11 : i64} {
  func.func @_agg_proj_kernel(%arg0: i32, %arg1: memref<256x256xbf16, #tpu.memory_space<vmem>>, %arg2: memref<256x128xbf16, #tpu.memory_space<vmem>>, %arg3: memref<1x128xf32, #tpu.memory_space<vmem>>, %arg4: memref<128x128xbf16, #tpu.memory_space<vmem>>, %arg5: memref<256x128xbf16, #tpu.memory_space<vmem>>) attributes {dimension_semantics = [#tpu.dimension_semantics<parallel>], iteration_bounds = array<i64: 1>, scalar_prefetch = 0 : i64, scratch_operands = 0 : i64, tpu.core_type = #tpu.core_type<tc>, window_params = [{transform_indices = @transform_0, window_bounds = array<i64: 256, 256>}, {pipeline_mode = #tpu.pipeline_mode<synchronous>, transform_indices = @transform_1, window_bounds = array<i64: 256, 128>}, {pipeline_mode = #tpu.pipeline_mode<synchronous>, transform_indices = @transform_2, window_bounds = array<i64: 1, 128>}, {pipeline_mode = #tpu.pipeline_mode<synchronous>, transform_indices = @transform_3, window_bounds = array<i64: 128, 128>}, {transform_indices = @transform_4, window_bounds = array<i64: 256, 128>}]} {
    %c0 = arith.constant 0 : index
    %c0_0 = arith.constant 0 : index
    %0 = vector.load %arg1[%c0, %c0_0] : memref<256x256xbf16, #tpu.memory_space<vmem>>, vector<256x256xbf16>
    %c0_1 = arith.constant 0 : index
    %c0_2 = arith.constant 0 : index
    %1 = vector.load %arg2[%c0_1, %c0_2] : memref<256x128xbf16, #tpu.memory_space<vmem>>, vector<256x128xbf16>
    %cst = arith.constant dense<0.000000e+00> : vector<256x128xf32>
    %2 = tpu.matmul %0, %1, %cst {dimension_numbers = #tpu.dot_dimension_numbers<[1], [0], [0], [1], [0, 0, 1, 1], [], []>} : vector<256x256xbf16>, vector<256x128xbf16>, vector<256x128xf32> -> vector<256x128xf32>
    %c0_3 = arith.constant 0 : index
    %c0_4 = arith.constant 0 : index
    %3 = vector.load %arg3[%c0_3, %c0_4] : memref<1x128xf32, #tpu.memory_space<vmem>>, vector<1x128xf32>
    %4 = vector.broadcast %3 : vector<1x128xf32> to vector<256x128xf32>
    %5 = arith.addf %2, %4 : vector<256x128xf32>
    %cst_5 = arith.constant 0.000000e+00 : f32
    %6 = vector.broadcast %cst_5 : f32 to vector<256x128xf32>
    %7 = arith.maximumf %5, %6 : vector<256x128xf32>
    %8 = arith.truncf %7 : vector<256x128xf32> to vector<256x128xbf16>
    %c0_6 = arith.constant 0 : index
    %c0_7 = arith.constant 0 : index
    %9 = vector.load %arg4[%c0_6, %c0_7] : memref<128x128xbf16, #tpu.memory_space<vmem>>, vector<128x128xbf16>
    %cst_8 = arith.constant dense<0.000000e+00> : vector<256x128xf32>
    %10 = tpu.matmul %8, %9, %cst_8 {dimension_numbers = #tpu.dot_dimension_numbers<[1], [0], [0], [1], [0, 0, 1, 1], [], []>} : vector<256x128xbf16>, vector<128x128xbf16>, vector<256x128xf32> -> vector<256x128xf32>
    %11 = arith.truncf %10 : vector<256x128xf32> to vector<256x128xbf16>
    %c0_9 = arith.constant 0 : index
    %c0_10 = arith.constant 0 : index
    %12 = vector.load %arg5[%c0_9, %c0_10] : memref<256x128xbf16, #tpu.memory_space<vmem>>, vector<256x128xbf16>
    tpu.vector_store %arg5[%c0_9, %c0_10], %11 {strides = array<i32>} : memref<256x128xbf16, #tpu.memory_space<vmem>>, vector<256x128xbf16>,
    return
  }
  func.func @transform_0(%arg0: i32) -> (i32, i32) {
    %c0_i32 = arith.constant 0 : i32
    %c0_i32_0 = arith.constant 0 : i32
    return %arg0, %c0_i32 : i32, i32
  }
  func.func @transform_1(%arg0: i32) -> (i32, i32) {
    %c0_i32 = arith.constant 0 : i32
    %c0_i32_0 = arith.constant 0 : i32
    %c0_i32_1 = arith.constant 0 : i32
    return %c0_i32, %c0_i32_0 : i32, i32
  }
  func.func @transform_2(%arg0: i32) -> (i32, i32) {
    %c0_i32 = arith.constant 0 : i32
    %c0_i32_0 = arith.constant 0 : i32
    %c0_i32_1 = arith.constant 0 : i32
    return %c0_i32, %c0_i32_0 : i32, i32
  }
  func.func @transform_3(%arg0: i32) -> (i32, i32) {
    %c0_i32 = arith.constant 0 : i32
    %c0_i32_0 = arith.constant 0 : i32
    %c0_i32_1 = arith.constant 0 : i32
    return %c0_i32, %c0_i32_0 : i32, i32
  }
  func.func @transform_4(%arg0: i32) -> (i32, i32) {
    %c0_i32 = arith.constant 0 : i32
    %c0_i32_0 = arith.constant 0 : i32
    return %arg0, %c0_i32 : i32, i32
  }
}

module attributes {stable_mosaic.version = 11 : i64} {
  func.func @_head_kernel(%arg0: i32, %arg1: memref<256x256xbf16, #tpu.memory_space<vmem>>, %arg2: memref<256x128xbf16, #tpu.memory_space<vmem>>, %arg3: memref<1x128xf32, #tpu.memory_space<vmem>>, %arg4: memref<128x128xbf16, #tpu.memory_space<vmem>>, %arg5: memref<1x128xf32, #tpu.memory_space<vmem>>, %arg6: memref<128x128xbf16, #tpu.memory_space<vmem>>, %arg7: memref<1x128xf32, #tpu.memory_space<vmem>>, %arg8: memref<128x128xbf16, #tpu.memory_space<vmem>>, %arg9: memref<1x128xf32, #tpu.memory_space<vmem>>, %arg10: memref<256x128xf32, #tpu.memory_space<vmem>>) attributes {dimension_semantics = [#tpu.dimension_semantics<parallel>], iteration_bounds = array<i64: 1>, scalar_prefetch = 0 : i64, scratch_operands = 0 : i64, tpu.core_type = #tpu.core_type<tc>, window_params = [{transform_indices = @transform_0, window_bounds = array<i64: 256, 256>}, {pipeline_mode = #tpu.pipeline_mode<synchronous>, transform_indices = @transform_1, window_bounds = array<i64: 256, 128>}, {pipeline_mode = #tpu.pipeline_mode<synchronous>, transform_indices = @transform_2, window_bounds = array<i64: 1, 128>}, {pipeline_mode = #tpu.pipeline_mode<synchronous>, transform_indices = @transform_3, window_bounds = array<i64: 128, 128>}, {pipeline_mode = #tpu.pipeline_mode<synchronous>, transform_indices = @transform_4, window_bounds = array<i64: 1, 128>}, {pipeline_mode = #tpu.pipeline_mode<synchronous>, transform_indices = @transform_5, window_bounds = array<i64: 128, 128>}, {pipeline_mode = #tpu.pipeline_mode<synchronous>, transform_indices = @transform_6, window_bounds = array<i64: 1, 128>}, {pipeline_mode = #tpu.pipeline_mode<synchronous>, transform_indices = @transform_7, window_bounds = array<i64: 128, 128>}, {pipeline_mode = #tpu.pipeline_mode<synchronous>, transform_indices = @transform_8, window_bounds = array<i64: 1, 128>}, {transform_indices = @transform_9, window_bounds = array<i64: 256, 128>}]} {
    %c0 = arith.constant 0 : index
    %c0_0 = arith.constant 0 : index
    %0 = vector.load %arg1[%c0, %c0_0] : memref<256x256xbf16, #tpu.memory_space<vmem>>, vector<256x256xbf16>
    %c0_1 = arith.constant 0 : index
    %c0_2 = arith.constant 0 : index
    %1 = vector.load %arg2[%c0_1, %c0_2] : memref<256x128xbf16, #tpu.memory_space<vmem>>, vector<256x128xbf16>
    %cst = arith.constant dense<0.000000e+00> : vector<256x128xf32>
    %2 = tpu.matmul %0, %1, %cst {dimension_numbers = #tpu.dot_dimension_numbers<[1], [0], [0], [1], [0, 0, 1, 1], [], []>} : vector<256x256xbf16>, vector<256x128xbf16>, vector<256x128xf32> -> vector<256x128xf32>
    %c0_3 = arith.constant 0 : index
    %c0_4 = arith.constant 0 : index
    %3 = vector.load %arg3[%c0_3, %c0_4] : memref<1x128xf32, #tpu.memory_space<vmem>>, vector<1x128xf32>
    %4 = vector.broadcast %3 : vector<1x128xf32> to vector<256x128xf32>
    %5 = arith.addf %2, %4 : vector<256x128xf32>
    %cst_5 = arith.constant 0.000000e+00 : f32
    %6 = vector.broadcast %cst_5 : f32 to vector<256x128xf32>
    %7 = arith.maximumf %5, %6 : vector<256x128xf32>
    %8 = arith.truncf %7 : vector<256x128xf32> to vector<256x128xbf16>
    %c0_6 = arith.constant 0 : index
    %c0_7 = arith.constant 0 : index
    %9 = vector.load %arg4[%c0_6, %c0_7] : memref<128x128xbf16, #tpu.memory_space<vmem>>, vector<128x128xbf16>
    %cst_8 = arith.constant dense<0.000000e+00> : vector<256x128xf32>
    %10 = tpu.matmul %8, %9, %cst_8 {dimension_numbers = #tpu.dot_dimension_numbers<[1], [0], [0], [1], [0, 0, 1, 1], [], []>} : vector<256x128xbf16>, vector<128x128xbf16>, vector<256x128xf32> -> vector<256x128xf32>
    %c0_9 = arith.constant 0 : index
    %c0_10 = arith.constant 0 : index
    %11 = vector.load %arg5[%c0_9, %c0_10] : memref<1x128xf32, #tpu.memory_space<vmem>>, vector<1x128xf32>
    %12 = vector.broadcast %11 : vector<1x128xf32> to vector<256x128xf32>
    %13 = arith.addf %10, %12 : vector<256x128xf32>
    %cst_11 = arith.constant 0.000000e+00 : f32
    %14 = vector.broadcast %cst_11 : f32 to vector<256x128xf32>
    %15 = arith.maximumf %13, %14 : vector<256x128xf32>
    %16 = arith.truncf %15 : vector<256x128xf32> to vector<256x128xbf16>
    %c0_12 = arith.constant 0 : index
    %c0_13 = arith.constant 0 : index
    %17 = vector.load %arg6[%c0_12, %c0_13] : memref<128x128xbf16, #tpu.memory_space<vmem>>, vector<128x128xbf16>
    %cst_14 = arith.constant dense<0.000000e+00> : vector<256x128xf32>
    %18 = tpu.matmul %16, %17, %cst_14 {dimension_numbers = #tpu.dot_dimension_numbers<[1], [0], [0], [1], [0, 0, 1, 1], [], []>} : vector<256x128xbf16>, vector<128x128xbf16>, vector<256x128xf32> -> vector<256x128xf32>
    %c0_15 = arith.constant 0 : index
    %c0_16 = arith.constant 0 : index
    %19 = vector.load %arg7[%c0_15, %c0_16] : memref<1x128xf32, #tpu.memory_space<vmem>>, vector<1x128xf32>
    %20 = vector.broadcast %19 : vector<1x128xf32> to vector<256x128xf32>
    %21 = arith.addf %18, %20 : vector<256x128xf32>
    %cst_17 = arith.constant 0.000000e+00 : f32
    %22 = vector.broadcast %cst_17 : f32 to vector<256x128xf32>
    %23 = arith.maximumf %21, %22 : vector<256x128xf32>
    %24 = arith.truncf %23 : vector<256x128xf32> to vector<256x128xbf16>
    %c0_18 = arith.constant 0 : index
    %c0_19 = arith.constant 0 : index
    %25 = vector.load %arg8[%c0_18, %c0_19] : memref<128x128xbf16, #tpu.memory_space<vmem>>, vector<128x128xbf16>
    %cst_20 = arith.constant dense<0.000000e+00> : vector<256x128xf32>
    %26 = tpu.matmul %24, %25, %cst_20 {dimension_numbers = #tpu.dot_dimension_numbers<[1], [0], [0], [1], [0, 0, 1, 1], [], []>} : vector<256x128xbf16>, vector<128x128xbf16>, vector<256x128xf32> -> vector<256x128xf32>
    %c0_21 = arith.constant 0 : index
    %c0_22 = arith.constant 0 : index
    %27 = vector.load %arg9[%c0_21, %c0_22] : memref<1x128xf32, #tpu.memory_space<vmem>>, vector<1x128xf32>
    %28 = vector.broadcast %27 : vector<1x128xf32> to vector<256x128xf32>
    %29 = arith.addf %26, %28 : vector<256x128xf32>
    %30 = tpu.iota {dimensions = array<i32: 1>} : vector<256x128xi32>
    %c7_i32 = arith.constant 7 : i32
    %31 = vector.broadcast %c7_i32 : i32 to vector<256x128xi32>
    %32 = arith.cmpi slt, %30, %31 : vector<256x128xi32>
    %cst_23 = arith.constant 0xFF800000 : f32
    %33 = vector.broadcast %cst_23 : f32 to vector<256x128xf32>
    %34 = arith.select %32, %29, %33 : vector<256x128xi1>, vector<256x128xf32>
    %cst_24 = arith.constant dense<0xFF800000> : vector<256xf32>
    %35 = vector.multi_reduction <maximumf>, %34, %cst_24 [1] : vector<256x128xf32> to vector<256xf32>
    %36 = vector.shape_cast %35 : vector<256xf32> to vector<256x1xf32>
    %37 = vector.broadcast %36 : vector<256x1xf32> to vector<256x128xf32>
    %38 = arith.subf %34, %37 : vector<256x128xf32>
    %39 = math.exp %38 : vector<256x128xf32>
    %cst_25 = arith.constant dense<0.000000e+00> : vector<256xf32>
    %40 = vector.multi_reduction <add>, %39, %cst_25 [1] : vector<256x128xf32> to vector<256xf32>
    %41 = vector.shape_cast %40 : vector<256xf32> to vector<256x1xf32>
    %42 = math.log %41 : vector<256x1xf32>
    %43 = vector.broadcast %42 : vector<256x1xf32> to vector<256x128xf32>
    %44 = arith.subf %38, %43 : vector<256x128xf32>
    %c0_26 = arith.constant 0 : index
    %c0_27 = arith.constant 0 : index
    %45 = vector.load %arg10[%c0_26, %c0_27] : memref<256x128xf32, #tpu.memory_space<vmem>>, vector<256x128xf32>
    tpu.vector_store %arg10[%c0_26, %c0_27], %44 {strides = array<i32>} : memref<256x128xf32, #tpu.memory_space<vmem>>, vector<256x128xf32>,
    return
  }
  func.func @transform_0(%arg0: i32) -> (i32, i32) {
    %c0_i32 = arith.constant 0 : i32
    %c0_i32_0 = arith.constant 0 : i32
    return %arg0, %c0_i32 : i32, i32
  }
  func.func @transform_1(%arg0: i32) -> (i32, i32) {
    %c0_i32 = arith.constant 0 : i32
    %c0_i32_0 = arith.constant 0 : i32
    %c0_i32_1 = arith.constant 0 : i32
    return %c0_i32, %c0_i32_0 : i32, i32
  }
  func.func @transform_2(%arg0: i32) -> (i32, i32) {
    %c0_i32 = arith.constant 0 : i32
    %c0_i32_0 = arith.constant 0 : i32
    %c0_i32_1 = arith.constant 0 : i32
    return %c0_i32, %c0_i32_0 : i32, i32
  }
  func.func @transform_3(%arg0: i32) -> (i32, i32) {
    %c0_i32 = arith.constant 0 : i32
    %c0_i32_0 = arith.constant 0 : i32
    %c0_i32_1 = arith.constant 0 : i32
    return %c0_i32, %c0_i32_0 : i32, i32
  }
  func.func @transform_4(%arg0: i32) -> (i32, i32) {
    %c0_i32 = arith.constant 0 : i32
    %c0_i32_0 = arith.constant 0 : i32
    %c0_i32_1 = arith.constant 0 : i32
    return %c0_i32, %c0_i32_0 : i32, i32
  }
  func.func @transform_5(%arg0: i32) -> (i32, i32) {
    %c0_i32 = arith.constant 0 : i32
    %c0_i32_0 = arith.constant 0 : i32
    %c0_i32_1 = arith.constant 0 : i32
    return %c0_i32, %c0_i32_0 : i32, i32
  }
  func.func @transform_6(%arg0: i32) -> (i32, i32) {
    %c0_i32 = arith.constant 0 : i32
    %c0_i32_0 = arith.constant 0 : i32
    %c0_i32_1 = arith.constant 0 : i32
    return %c0_i32, %c0_i32_0 : i32, i32
  }
  func.func @transform_7(%arg0: i32) -> (i32, i32) {
    %c0_i32 = arith.constant 0 : i32
    %c0_i32_0 = arith.constant 0 : i32
    %c0_i32_1 = arith.constant 0 : i32
    return %c0_i32, %c0_i32_0 : i32, i32
  }
  func.func @transform_8(%arg0: i32) -> (i32, i32) {
    %c0_i32 = arith.constant 0 : i32
    %c0_i32_0 = arith.constant 0 : i32
    %c0_i32_1 = arith.constant 0 : i32
    return %c0_i32, %c0_i32_0 : i32, i32
  }
  func.func @transform_9(%arg0: i32) -> (i32, i32) {
    %c0_i32 = arith.constant 0 : i32
    %c0_i32_0 = arith.constant 0 : i32
    return %arg0, %c0_i32 : i32, i32
  }
}

module attributes {stable_mosaic.version = 11 : i64} {
  func.func @_proj_kernel(%arg0: i32, %arg1: memref<256x128xbf16, #tpu.memory_space<vmem>>, %arg2: memref<128x128xbf16, #tpu.memory_space<vmem>>, %arg3: memref<256x128xbf16, #tpu.memory_space<vmem>>) attributes {dimension_semantics = [#tpu.dimension_semantics<parallel>], iteration_bounds = array<i64: 1>, scalar_prefetch = 0 : i64, scratch_operands = 0 : i64, tpu.core_type = #tpu.core_type<tc>, window_params = [{transform_indices = @transform_0, window_bounds = array<i64: 256, 128>}, {pipeline_mode = #tpu.pipeline_mode<synchronous>, transform_indices = @transform_1, window_bounds = array<i64: 128, 128>}, {transform_indices = @transform_2, window_bounds = array<i64: 256, 128>}]} {
    %c0 = arith.constant 0 : index
    %c0_0 = arith.constant 0 : index
    %0 = vector.load %arg1[%c0, %c0_0] : memref<256x128xbf16, #tpu.memory_space<vmem>>, vector<256x128xbf16>
    %c0_1 = arith.constant 0 : index
    %c0_2 = arith.constant 0 : index
    %1 = vector.load %arg2[%c0_1, %c0_2] : memref<128x128xbf16, #tpu.memory_space<vmem>>, vector<128x128xbf16>
    %cst = arith.constant dense<0.000000e+00> : vector<256x128xf32>
    %2 = tpu.matmul %0, %1, %cst {dimension_numbers = #tpu.dot_dimension_numbers<[1], [0], [0], [1], [0, 0, 1, 1], [], []>} : vector<256x128xbf16>, vector<128x128xbf16>, vector<256x128xf32> -> vector<256x128xf32>
    %3 = arith.truncf %2 : vector<256x128xf32> to vector<256x128xbf16>
    %c0_3 = arith.constant 0 : index
    %c0_4 = arith.constant 0 : index
    %4 = vector.load %arg3[%c0_3, %c0_4] : memref<256x128xbf16, #tpu.memory_space<vmem>>, vector<256x128xbf16>
    tpu.vector_store %arg3[%c0_3, %c0_4], %3 {strides = array<i32>} : memref<256x128xbf16, #tpu.memory_space<vmem>>, vector<256x128xbf16>,
    return
  }
  func.func @transform_0(%arg0: i32) -> (i32, i32) {
    %c0_i32 = arith.constant 0 : i32
    %c0_i32_0 = arith.constant 0 : i32
    return %arg0, %c0_i32 : i32, i32
  }
  func.func @transform_1(%arg0: i32) -> (i32, i32) {
    %c0_i32 = arith.constant 0 : i32
    %c0_i32_0 = arith.constant 0 : i32
    %c0_i32_1 = arith.constant 0 : i32
    return %c0_i32, %c0_i32_0 : i32, i32
  }
  func.func @transform_2(%arg0: i32) -> (i32, i32) {
    %c0_i32 = arith.constant 0 : i32
    %c0_i32_0 = arith.constant 0 : i32
    return %arg0, %c0_i32 : i32, i32
  }
}

module attributes {stable_mosaic.version = 11 : i64} {
  func.func @_agg_proj_kernel(%arg0: i32, %arg1: memref<256x256xbf16, #tpu.memory_space<vmem>>, %arg2: memref<256x128xbf16, #tpu.memory_space<vmem>>, %arg3: memref<1x128xf32, #tpu.memory_space<vmem>>, %arg4: memref<128x128xbf16, #tpu.memory_space<vmem>>, %arg5: memref<256x128xbf16, #tpu.memory_space<vmem>>) attributes {dimension_semantics = [#tpu.dimension_semantics<parallel>], iteration_bounds = array<i64: 1>, scalar_prefetch = 0 : i64, scratch_operands = 0 : i64, tpu.core_type = #tpu.core_type<tc>, window_params = [{transform_indices = @transform_0, window_bounds = array<i64: 256, 256>}, {pipeline_mode = #tpu.pipeline_mode<synchronous>, transform_indices = @transform_1, window_bounds = array<i64: 256, 128>}, {pipeline_mode = #tpu.pipeline_mode<synchronous>, transform_indices = @transform_2, window_bounds = array<i64: 1, 128>}, {pipeline_mode = #tpu.pipeline_mode<synchronous>, transform_indices = @transform_3, window_bounds = array<i64: 128, 128>}, {transform_indices = @transform_4, window_bounds = array<i64: 256, 128>}]} {
    %c0 = arith.constant 0 : index
    %c0_0 = arith.constant 0 : index
    %0 = vector.load %arg1[%c0, %c0_0] : memref<256x256xbf16, #tpu.memory_space<vmem>>, vector<256x256xbf16>
    %c0_1 = arith.constant 0 : index
    %c0_2 = arith.constant 0 : index
    %1 = vector.load %arg2[%c0_1, %c0_2] : memref<256x128xbf16, #tpu.memory_space<vmem>>, vector<256x128xbf16>
    %cst = arith.constant dense<0.000000e+00> : vector<256x128xf32>
    %2 = tpu.matmul %0, %1, %cst {dimension_numbers = #tpu.dot_dimension_numbers<[1], [0], [0], [1], [0, 0, 1, 1], [], []>} : vector<256x256xbf16>, vector<256x128xbf16>, vector<256x128xf32> -> vector<256x128xf32>
    %c0_3 = arith.constant 0 : index
    %c0_4 = arith.constant 0 : index
    %3 = vector.load %arg3[%c0_3, %c0_4] : memref<1x128xf32, #tpu.memory_space<vmem>>, vector<1x128xf32>
    %4 = vector.broadcast %3 : vector<1x128xf32> to vector<256x128xf32>
    %5 = arith.addf %2, %4 : vector<256x128xf32>
    %cst_5 = arith.constant 0.000000e+00 : f32
    %6 = vector.broadcast %cst_5 : f32 to vector<256x128xf32>
    %7 = arith.maximumf %5, %6 : vector<256x128xf32>
    %8 = arith.truncf %7 : vector<256x128xf32> to vector<256x128xbf16>
    %c0_6 = arith.constant 0 : index
    %c0_7 = arith.constant 0 : index
    %9 = vector.load %arg4[%c0_6, %c0_7] : memref<128x128xbf16, #tpu.memory_space<vmem>>, vector<128x128xbf16>
    %cst_8 = arith.constant dense<0.000000e+00> : vector<256x128xf32>
    %10 = tpu.matmul %8, %9, %cst_8 {dimension_numbers = #tpu.dot_dimension_numbers<[1], [0], [0], [1], [0, 0, 1, 1], [], []>} : vector<256x128xbf16>, vector<128x128xbf16>, vector<256x128xf32> -> vector<256x128xf32>
    %11 = arith.truncf %10 : vector<256x128xf32> to vector<256x128xbf16>
    %c0_9 = arith.constant 0 : index
    %c0_10 = arith.constant 0 : index
    %12 = vector.load %arg5[%c0_9, %c0_10] : memref<256x128xbf16, #tpu.memory_space<vmem>>, vector<256x128xbf16>
    tpu.vector_store %arg5[%c0_9, %c0_10], %11 {strides = array<i32>} : memref<256x128xbf16, #tpu.memory_space<vmem>>, vector<256x128xbf16>,
    return
  }
  func.func @transform_0(%arg0: i32) -> (i32, i32) {
    %c0_i32 = arith.constant 0 : i32
    %c0_i32_0 = arith.constant 0 : i32
    return %arg0, %c0_i32 : i32, i32
  }
  func.func @transform_1(%arg0: i32) -> (i32, i32) {
    %c0_i32 = arith.constant 0 : i32
    %c0_i32_0 = arith.constant 0 : i32
    %c0_i32_1 = arith.constant 0 : i32
    return %c0_i32, %c0_i32_0 : i32, i32
  }
  func.func @transform_2(%arg0: i32) -> (i32, i32) {
    %c0_i32 = arith.constant 0 : i32
    %c0_i32_0 = arith.constant 0 : i32
    %c0_i32_1 = arith.constant 0 : i32
    return %c0_i32, %c0_i32_0 : i32, i32
  }
  func.func @transform_3(%arg0: i32) -> (i32, i32) {
    %c0_i32 = arith.constant 0 : i32
    %c0_i32_0 = arith.constant 0 : i32
    %c0_i32_1 = arith.constant 0 : i32
    return %c0_i32, %c0_i32_0 : i32, i32
  }
  func.func @transform_4(%arg0: i32) -> (i32, i32) {
    %c0_i32 = arith.constant 0 : i32
    %c0_i32_0 = arith.constant 0 : i32
    return %arg0, %c0_i32 : i32, i32
  }
}

module attributes {stable_mosaic.version = 11 : i64} {
  func.func @_proj_kernel(%arg0: i32, %arg1: memref<256x128xbf16, #tpu.memory_space<vmem>>, %arg2: memref<128x128xbf16, #tpu.memory_space<vmem>>, %arg3: memref<256x128xbf16, #tpu.memory_space<vmem>>) attributes {dimension_semantics = [#tpu.dimension_semantics<parallel>], iteration_bounds = array<i64: 1>, scalar_prefetch = 0 : i64, scratch_operands = 0 : i64, tpu.core_type = #tpu.core_type<tc>, window_params = [{transform_indices = @transform_0, window_bounds = array<i64: 256, 128>}, {pipeline_mode = #tpu.pipeline_mode<synchronous>, transform_indices = @transform_1, window_bounds = array<i64: 128, 128>}, {transform_indices = @transform_2, window_bounds = array<i64: 256, 128>}]} {
    %c0 = arith.constant 0 : index
    %c0_0 = arith.constant 0 : index
    %0 = vector.load %arg1[%c0, %c0_0] : memref<256x128xbf16, #tpu.memory_space<vmem>>, vector<256x128xbf16>
    %c0_1 = arith.constant 0 : index
    %c0_2 = arith.constant 0 : index
    %1 = vector.load %arg2[%c0_1, %c0_2] : memref<128x128xbf16, #tpu.memory_space<vmem>>, vector<128x128xbf16>
    %cst = arith.constant dense<0.000000e+00> : vector<256x128xf32>
    %2 = tpu.matmul %0, %1, %cst {dimension_numbers = #tpu.dot_dimension_numbers<[1], [0], [0], [1], [0, 0, 1, 1], [], []>} : vector<256x128xbf16>, vector<128x128xbf16>, vector<256x128xf32> -> vector<256x128xf32>
    %3 = arith.truncf %2 : vector<256x128xf32> to vector<256x128xbf16>
    %c0_3 = arith.constant 0 : index
    %c0_4 = arith.constant 0 : index
    %4 = vector.load %arg3[%c0_3, %c0_4] : memref<256x128xbf16, #tpu.memory_space<vmem>>, vector<256x128xbf16>
    tpu.vector_store %arg3[%c0_3, %c0_4], %3 {strides = array<i32>} : memref<256x128xbf16, #tpu.memory_space<vmem>>, vector<256x128xbf16>,
    return
  }
  func.func @transform_0(%arg0: i32) -> (i32, i32) {
    %c0_i32 = arith.constant 0 : i32
    %c0_i32_0 = arith.constant 0 : i32
    return %arg0, %c0_i32 : i32, i32
  }
  func.func @transform_1(%arg0: i32) -> (i32, i32) {
    %c0_i32 = arith.constant 0 : i32
    %c0_i32_0 = arith.constant 0 : i32
    %c0_i32_1 = arith.constant 0 : i32
    return %c0_i32, %c0_i32_0 : i32, i32
  }
  func.func @transform_2(%arg0: i32) -> (i32, i32) {
    %c0_i32 = arith.constant 0 : i32
    %c0_i32_0 = arith.constant 0 : i32
    return %arg0, %c0_i32 : i32, i32
  }
}

module attributes {stable_mosaic.version = 11 : i64} {
  func.func @_head_kernel(%arg0: i32, %arg1: memref<256x256xbf16, #tpu.memory_space<vmem>>, %arg2: memref<256x128xbf16, #tpu.memory_space<vmem>>, %arg3: memref<1x128xf32, #tpu.memory_space<vmem>>, %arg4: memref<128x128xbf16, #tpu.memory_space<vmem>>, %arg5: memref<1x128xf32, #tpu.memory_space<vmem>>, %arg6: memref<128x128xbf16, #tpu.memory_space<vmem>>, %arg7: memref<1x128xf32, #tpu.memory_space<vmem>>, %arg8: memref<128x128xbf16, #tpu.memory_space<vmem>>, %arg9: memref<1x128xf32, #tpu.memory_space<vmem>>, %arg10: memref<256x128xf32, #tpu.memory_space<vmem>>) attributes {dimension_semantics = [#tpu.dimension_semantics<parallel>], iteration_bounds = array<i64: 1>, scalar_prefetch = 0 : i64, scratch_operands = 0 : i64, tpu.core_type = #tpu.core_type<tc>, window_params = [{transform_indices = @transform_0, window_bounds = array<i64: 256, 256>}, {pipeline_mode = #tpu.pipeline_mode<synchronous>, transform_indices = @transform_1, window_bounds = array<i64: 256, 128>}, {pipeline_mode = #tpu.pipeline_mode<synchronous>, transform_indices = @transform_2, window_bounds = array<i64: 1, 128>}, {pipeline_mode = #tpu.pipeline_mode<synchronous>, transform_indices = @transform_3, window_bounds = array<i64: 128, 128>}, {pipeline_mode = #tpu.pipeline_mode<synchronous>, transform_indices = @transform_4, window_bounds = array<i64: 1, 128>}, {pipeline_mode = #tpu.pipeline_mode<synchronous>, transform_indices = @transform_5, window_bounds = array<i64: 128, 128>}, {pipeline_mode = #tpu.pipeline_mode<synchronous>, transform_indices = @transform_6, window_bounds = array<i64: 1, 128>}, {pipeline_mode = #tpu.pipeline_mode<synchronous>, transform_indices = @transform_7, window_bounds = array<i64: 128, 128>}, {pipeline_mode = #tpu.pipeline_mode<synchronous>, transform_indices = @transform_8, window_bounds = array<i64: 1, 128>}, {transform_indices = @transform_9, window_bounds = array<i64: 256, 128>}]} {
    %c0 = arith.constant 0 : index
    %c0_0 = arith.constant 0 : index
    %0 = vector.load %arg1[%c0, %c0_0] : memref<256x256xbf16, #tpu.memory_space<vmem>>, vector<256x256xbf16>
    %c0_1 = arith.constant 0 : index
    %c0_2 = arith.constant 0 : index
    %1 = vector.load %arg2[%c0_1, %c0_2] : memref<256x128xbf16, #tpu.memory_space<vmem>>, vector<256x128xbf16>
    %cst = arith.constant dense<0.000000e+00> : vector<256x128xf32>
    %2 = tpu.matmul %0, %1, %cst {dimension_numbers = #tpu.dot_dimension_numbers<[1], [0], [0], [1], [0, 0, 1, 1], [], []>} : vector<256x256xbf16>, vector<256x128xbf16>, vector<256x128xf32> -> vector<256x128xf32>
    %c0_3 = arith.constant 0 : index
    %c0_4 = arith.constant 0 : index
    %3 = vector.load %arg3[%c0_3, %c0_4] : memref<1x128xf32, #tpu.memory_space<vmem>>, vector<1x128xf32>
    %4 = vector.broadcast %3 : vector<1x128xf32> to vector<256x128xf32>
    %5 = arith.addf %2, %4 : vector<256x128xf32>
    %cst_5 = arith.constant 0.000000e+00 : f32
    %6 = vector.broadcast %cst_5 : f32 to vector<256x128xf32>
    %7 = arith.maximumf %5, %6 : vector<256x128xf32>
    %8 = arith.truncf %7 : vector<256x128xf32> to vector<256x128xbf16>
    %c0_6 = arith.constant 0 : index
    %c0_7 = arith.constant 0 : index
    %9 = vector.load %arg4[%c0_6, %c0_7] : memref<128x128xbf16, #tpu.memory_space<vmem>>, vector<128x128xbf16>
    %cst_8 = arith.constant dense<0.000000e+00> : vector<256x128xf32>
    %10 = tpu.matmul %8, %9, %cst_8 {dimension_numbers = #tpu.dot_dimension_numbers<[1], [0], [0], [1], [0, 0, 1, 1], [], []>} : vector<256x128xbf16>, vector<128x128xbf16>, vector<256x128xf32> -> vector<256x128xf32>
    %c0_9 = arith.constant 0 : index
    %c0_10 = arith.constant 0 : index
    %11 = vector.load %arg5[%c0_9, %c0_10] : memref<1x128xf32, #tpu.memory_space<vmem>>, vector<1x128xf32>
    %12 = vector.broadcast %11 : vector<1x128xf32> to vector<256x128xf32>
    %13 = arith.addf %10, %12 : vector<256x128xf32>
    %cst_11 = arith.constant 0.000000e+00 : f32
    %14 = vector.broadcast %cst_11 : f32 to vector<256x128xf32>
    %15 = arith.maximumf %13, %14 : vector<256x128xf32>
    %16 = arith.truncf %15 : vector<256x128xf32> to vector<256x128xbf16>
    %c0_12 = arith.constant 0 : index
    %c0_13 = arith.constant 0 : index
    %17 = vector.load %arg6[%c0_12, %c0_13] : memref<128x128xbf16, #tpu.memory_space<vmem>>, vector<128x128xbf16>
    %cst_14 = arith.constant dense<0.000000e+00> : vector<256x128xf32>
    %18 = tpu.matmul %16, %17, %cst_14 {dimension_numbers = #tpu.dot_dimension_numbers<[1], [0], [0], [1], [0, 0, 1, 1], [], []>} : vector<256x128xbf16>, vector<128x128xbf16>, vector<256x128xf32> -> vector<256x128xf32>
    %c0_15 = arith.constant 0 : index
    %c0_16 = arith.constant 0 : index
    %19 = vector.load %arg7[%c0_15, %c0_16] : memref<1x128xf32, #tpu.memory_space<vmem>>, vector<1x128xf32>
    %20 = vector.broadcast %19 : vector<1x128xf32> to vector<256x128xf32>
    %21 = arith.addf %18, %20 : vector<256x128xf32>
    %cst_17 = arith.constant 0.000000e+00 : f32
    %22 = vector.broadcast %cst_17 : f32 to vector<256x128xf32>
    %23 = arith.maximumf %21, %22 : vector<256x128xf32>
    %24 = arith.truncf %23 : vector<256x128xf32> to vector<256x128xbf16>
    %c0_18 = arith.constant 0 : index
    %c0_19 = arith.constant 0 : index
    %25 = vector.load %arg8[%c0_18, %c0_19] : memref<128x128xbf16, #tpu.memory_space<vmem>>, vector<128x128xbf16>
    %cst_20 = arith.constant dense<0.000000e+00> : vector<256x128xf32>
    %26 = tpu.matmul %24, %25, %cst_20 {dimension_numbers = #tpu.dot_dimension_numbers<[1], [0], [0], [1], [0, 0, 1, 1], [], []>} : vector<256x128xbf16>, vector<128x128xbf16>, vector<256x128xf32> -> vector<256x128xf32>
    %c0_21 = arith.constant 0 : index
    %c0_22 = arith.constant 0 : index
    %27 = vector.load %arg9[%c0_21, %c0_22] : memref<1x128xf32, #tpu.memory_space<vmem>>, vector<1x128xf32>
    %28 = vector.broadcast %27 : vector<1x128xf32> to vector<256x128xf32>
    %29 = arith.addf %26, %28 : vector<256x128xf32>
    %30 = tpu.iota {dimensions = array<i32: 1>} : vector<256x128xi32>
    %c7_i32 = arith.constant 7 : i32
    %31 = vector.broadcast %c7_i32 : i32 to vector<256x128xi32>
    %32 = arith.cmpi slt, %30, %31 : vector<256x128xi32>
    %cst_23 = arith.constant 0xFF800000 : f32
    %33 = vector.broadcast %cst_23 : f32 to vector<256x128xf32>
    %34 = arith.select %32, %29, %33 : vector<256x128xi1>, vector<256x128xf32>
    %cst_24 = arith.constant dense<0xFF800000> : vector<256xf32>
    %35 = vector.multi_reduction <maximumf>, %34, %cst_24 [1] : vector<256x128xf32> to vector<256xf32>
    %36 = vector.shape_cast %35 : vector<256xf32> to vector<256x1xf32>
    %37 = vector.broadcast %36 : vector<256x1xf32> to vector<256x128xf32>
    %38 = arith.subf %34, %37 : vector<256x128xf32>
    %39 = math.exp %38 : vector<256x128xf32>
    %cst_25 = arith.constant dense<0.000000e+00> : vector<256xf32>
    %40 = vector.multi_reduction <add>, %39, %cst_25 [1] : vector<256x128xf32> to vector<256xf32>
    %41 = vector.shape_cast %40 : vector<256xf32> to vector<256x1xf32>
    %42 = math.log %41 : vector<256x1xf32>
    %43 = vector.broadcast %42 : vector<256x1xf32> to vector<256x128xf32>
    %44 = arith.subf %38, %43 : vector<256x128xf32>
    %c0_26 = arith.constant 0 : index
    %c0_27 = arith.constant 0 : index
    %45 = vector.load %arg10[%c0_26, %c0_27] : memref<256x128xf32, #tpu.memory_space<vmem>>, vector<256x128xf32>
    tpu.vector_store %arg10[%c0_26, %c0_27], %44 {strides = array<i32>} : memref<256x128xf32, #tpu.memory_space<vmem>>, vector<256x128xf32>,
    return
  }
  func.func @transform_0(%arg0: i32) -> (i32, i32) {
    %c0_i32 = arith.constant 0 : i32
    %c0_i32_0 = arith.constant 0 : i32
    return %arg0, %c0_i32 : i32, i32
  }
  func.func @transform_1(%arg0: i32) -> (i32, i32) {
    %c0_i32 = arith.constant 0 : i32
    %c0_i32_0 = arith.constant 0 : i32
    %c0_i32_1 = arith.constant 0 : i32
    return %c0_i32, %c0_i32_0 : i32, i32
  }
  func.func @transform_2(%arg0: i32) -> (i32, i32) {
    %c0_i32 = arith.constant 0 : i32
    %c0_i32_0 = arith.constant 0 : i32
    %c0_i32_1 = arith.constant 0 : i32
    return %c0_i32, %c0_i32_0 : i32, i32
  }
  func.func @transform_3(%arg0: i32) -> (i32, i32) {
    %c0_i32 = arith.constant 0 : i32
    %c0_i32_0 = arith.constant 0 : i32
    %c0_i32_1 = arith.constant 0 : i32
    return %c0_i32, %c0_i32_0 : i32, i32
  }
  func.func @transform_4(%arg0: i32) -> (i32, i32) {
    %c0_i32 = arith.constant 0 : i32
    %c0_i32_0 = arith.constant 0 : i32
    %c0_i32_1 = arith.constant 0 : i32
    return %c0_i32, %c0_i32_0 : i32, i32
  }
  func.func @transform_5(%arg0: i32) -> (i32, i32) {
    %c0_i32 = arith.constant 0 : i32
    %c0_i32_0 = arith.constant 0 : i32
    %c0_i32_1 = arith.constant 0 : i32
    return %c0_i32, %c0_i32_0 : i32, i32
  }
  func.func @transform_6(%arg0: i32) -> (i32, i32) {
    %c0_i32 = arith.constant 0 : i32
    %c0_i32_0 = arith.constant 0 : i32
    %c0_i32_1 = arith.constant 0 : i32
    return %c0_i32, %c0_i32_0 : i32, i32
  }
  func.func @transform_7(%arg0: i32) -> (i32, i32) {
    %c0_i32 = arith.constant 0 : i32
    %c0_i32_0 = arith.constant 0 : i32
    %c0_i32_1 = arith.constant 0 : i32
    return %c0_i32, %c0_i32_0 : i32, i32
  }
  func.func @transform_8(%arg0: i32) -> (i32, i32) {
    %c0_i32 = arith.constant 0 : i32
    %c0_i32_0 = arith.constant 0 : i32
    %c0_i32_1 = arith.constant 0 : i32
    return %c0_i32, %c0_i32_0 : i32, i32
  }
  func.func @transform_9(%arg0: i32) -> (i32, i32) {
    %c0_i32 = arith.constant 0 : i32
    %c0_i32_0 = arith.constant 0 : i32
    return %arg0, %c0_i32 : i32, i32
  }
}

</mosaic_0001>

<llo_original>
// kernel: net_forward.4
$region0: #{net_forward.4}
  #allocation0 [shape = 'u32[]', space=smem, size = 0x4, offset = 0x4, fixed_abs, tag = 'smem constant byte address 0x4 - core index']
  #allocation1 [shape = 'u32[144,128]{1,0:T(1,128)}', space=vmem, size = 0x12000, scoped, tag = 'internal scratch']
  %s0 = inlined_call_operand.hbm [shape: bf16[256,128], index: 0, kind: input, shape index: {}]
  %s1 = inlined_call_operand.hbm [shape: bf16[128,128], index: 1, kind: input, shape index: {}]
  %s2 = inlined_call_operand.vmem [shape: bf16[256,128], index: 2, kind: output, shape index: {}]
  %s3 = sld [smem:[#allocation0]]
  $region26: #{net_forward.4} parent=0
    _
  %s5 = ssub.s32 1, %s3
  %s6 = scalar_select 0, %s5, %s3
  $region1: #{net_forward.4} parent=0
    #allocation2 [shape = 'u8[65536]{0}', space=vmem, size = 0x10000, scoped, tag = 'input window, operand 0, single buffered']
    #allocation3 [shape = 's32[1]{0}', space=sflag, size = 0x4, scoped, tag = 'scoped memory for net_forward.4']
    #allocation4 [shape = 'u8[32768]{0}', space=vmem, size = 0x8000, scoped, tag = 'input window, operand 1, single buffered']
    #allocation5 [shape = 's32[1]{0}', space=sflag, size = 0x4, scoped, tag = 'scoped memory for net_forward.4']
    %7 = vsyncpa [#allocation3], 0
    %8 = vsyncpa [#allocation5], 0
    // Predicated region
    $region2: #{net_forward.4} parent=1 // pred_check
      _
    $region3: #{net_forward.4} parent=1 // pred_check_branch
      %10 = sbr.rel (0) target = $region5
    $region4: #{net_forward.4} parent=1 // pred_region
      %s12 = ssub.s32 2048, 2048
      %13 = vsyncadd [#allocation3], %s12
      %s14 = sshll.u32 [#allocation2], 4
      %s15 = int_to_ptr.vmem [resolvable:$true] %s14
      %20 = dma.hbm_to_vmem [thread:$0]  %s0, 2048, %s15, [#allocation3], 64, 64, 4
    $region5: #{net_forward.4} parent=1 // pred_fallthru
      _
    // Predicated region
    $region6: #{net_forward.4} parent=1 // pred_check
      _
    $region7: #{net_forward.4} parent=1 // pred_check_branch
      %22 = sbr.rel (0) target = $region9
    $region8: #{net_forward.4} parent=1 // pred_region
      %s24 = ssub.s32 1024, 1024
      %25 = vsyncadd [#allocation5], %s24
      %s26 = sshll.u32 [#allocation4], 4
      %s27 = int_to_ptr.vmem [resolvable:$true] %s26
      %32 = dma.hbm_to_vmem [thread:$0]  %s1, 1024, %s27, [#allocation5], 64, 64, 4
    $region9: #{net_forward.4} parent=1 // pred_fallthru
      _
    // Predicated region
    $region10: #{net_forward.4} parent=1 // pred_check
      _
    $region11: #{net_forward.4} parent=1 // pred_check_branch
      %34 = sbr.rel (0) target = $region13
    $region12: #{net_forward.4} parent=1 // pred_region
      %35 = dma.done [#allocation3], 2048
    $region13: #{net_forward.4} parent=1 // pred_fallthru
      _
    // Predicated region
    $region14: #{net_forward.4} parent=1 // pred_check
      _
    $region15: #{net_forward.4} parent=1 // pred_check_branch
      %37 = sbr.rel (0) target = $region17
    $region16: #{net_forward.4} parent=1 // pred_region
      %38 = dma.done [#allocation5], 1024
    $region17: #{net_forward.4} parent=1 // pred_fallthru
      _
    %v40 = vld [vmem:[#allocation2] sm:$0xf]
    %v41 = vld [vmem:[#allocation2 + $0x4] sm:$0xf]
    %v42 = vld [vmem:[#allocation2 + $0x8] sm:$0xf]
    %v43 = vld [vmem:[#allocation2 + $0xc] sm:$0xf]
    %v44 = vld [vmem:[#allocation2 + $0x10] sm:$0xf]
    %v45 = vld [vmem:[#allocation2 + $0x14] sm:$0xf]
    %v46 = vld [vmem:[#allocation2 + $0x18] sm:$0xf]
    %v47 = vld [vmem:[#allocation2 + $0x1c] sm:$0xf]
    %v48 = vld [vmem:[#allocation2 + $0x20] sm:$0xf]
    %v49 = vld [vmem:[#allocation2 + $0x24] sm:$0xf]
    %v50 = vld [vmem:[#allocation2 + $0x28] sm:$0xf]
    %v51 = vld [vmem:[#allocation2 + $0x2c] sm:$0xf]
    %v52 = vld [vmem:[#allocation2 + $0x30] sm:$0xf]
    %v53 = vld [vmem:[#allocation2 + $0x34] sm:$0xf]
    %v54 = vld [vmem:[#allocation2 + $0x38] sm:$0xf]
    %v55 = vld [vmem:[#allocation2 + $0x3c] sm:$0xf]
    %v56 = vld [vmem:[#allocation2 + $0x40] sm:$0xf]
    %v57 = vld [vmem:[#allocation2 + $0x44] sm:$0xf]
    %v58 = vld [vmem:[#allocation2 + $0x48] sm:$0xf]
    %v59 = vld [vmem:[#allocation2 + $0x4c] sm:$0xf]
    %v60 = vld [vmem:[#allocation2 + $0x50] sm:$0xf]
    %v61 = vld [vmem:[#allocation2 + $0x54] sm:$0xf]
    %v62 = vld [vmem:[#allocation2 + $0x58] sm:$0xf]
    %v63 = vld [vmem:[#allocation2 + $0x5c] sm:$0xf]
    %v64 = vld [vmem:[#allocation2 + $0x60] sm:$0xf]
    %v65 = vld [vmem:[#allocation2 + $0x64] sm:$0xf]
    %v66 = vld [vmem:[#allocation2 + $0x68] sm:$0xf]
    %v67 = vld [vmem:[#allocation2 + $0x6c] sm:$0xf]
    %v68 = vld [vmem:[#allocation2 + $0x70] sm:$0xf]
    %v69 = vld [vmem:[#allocation2 + $0x74] sm:$0xf]
    %v70 = vld [vmem:[#allocation2 + $0x78] sm:$0xf]
    %v71 = vld [vmem:[#allocation2 + $0x7c] sm:$0xf]
    %v72 = vld [vmem:[#allocation4] sm:$0xf]
    %v73 = vld [vmem:[#allocation4 + $0x4] sm:$0xf]
    %v74 = vld [vmem:[#allocation4 + $0x8] sm:$0xf]
    %v75 = vld [vmem:[#allocation4 + $0xc] sm:$0xf]
    %v76 = vld [vmem:[#allocation4 + $0x10] sm:$0xf]
    %v77 = vld [vmem:[#allocation4 + $0x14] sm:$0xf]
    %v78 = vld [vmem:[#allocation4 + $0x18] sm:$0xf]
    %v79 = vld [vmem:[#allocation4 + $0x1c] sm:$0xf]
    %v80 = vld [vmem:[#allocation4 + $0x20] sm:$0xf]
    %v81 = vld [vmem:[#allocation4 + $0x24] sm:$0xf]
    %v82 = vld [vmem:[#allocation4 + $0x28] sm:$0xf]
    %v83 = vld [vmem:[#allocation4 + $0x2c] sm:$0xf]
    %v84 = vld [vmem:[#allocation4 + $0x30] sm:$0xf]
    %v85 = vld [vmem:[#allocation4 + $0x34] sm:$0xf]
    %v86 = vld [vmem:[#allocation4 + $0x38] sm:$0xf]
    %v87 = vld [vmem:[#allocation4 + $0x3c] sm:$0xf]
    %v120 = vunpack.c.l.b16 %v40
    %v121 = vunpack.c.l.b16 %v41
    %v122 = vunpack.c.l.b16 %v42
    %v123 = vunpack.c.l.b16 %v43
    %v124 = vunpack.c.l.b16 %v44
    %v125 = vunpack.c.l.b16 %v45
    %v126 = vunpack.c.l.b16 %v46
    %v127 = vunpack.c.l.b16 %v47
    %v128 = vunpack.c.l.b16 %v48
    %v129 = vunpack.c.l.b16 %v49
    %v130 = vunpack.c.l.b16 %v50
    %v131 = vunpack.c.l.b16 %v51
    %v132 = vunpack.c.l.b16 %v52
    %v133 = vunpack.c.l.b16 %v53
    %v134 = vunpack.c.l.b16 %v54
    %v135 = vunpack.c.l.b16 %v55
    %v136 = vunpack.c.l.b16 %v56
    %v137 = vunpack.c.l.b16 %v57
    %v138 = vunpack.c.l.b16 %v58
    %v139 = vunpack.c.l.b16 %v59
    %v140 = vunpack.c.l.b16 %v60
    %v141 = vunpack.c.l.b16 %v61
    %v142 = vunpack.c.l.b16 %v62
    %v143 = vunpack.c.l.b16 %v63
    %v144 = vunpack.c.l.b16 %v64
    %v145 = vunpack.c.l.b16 %v65
    %v146 = vunpack.c.l.b16 %v66
    %v147 = vunpack.c.l.b16 %v67
    %v148 = vunpack.c.l.b16 %v68
    %v149 = vunpack.c.l.b16 %v69
    %v150 = vunpack.c.l.b16 %v70
    %v151 = vunpack.c.l.b16 %v71
    %v152 = vpack.c.b16 %v121, %v120
    %v153 = vpack.c.b16 %v123, %v122
    %v154 = vpack.c.b16 %v125, %v124
    %v155 = vpack.c.b16 %v127, %v126
    %v156 = vpack.c.b16 %v129, %v128
    %v157 = vpack.c.b16 %v131, %v130
    %v158 = vpack.c.b16 %v133, %v132
    %v159 = vpack.c.b16 %v135, %v134
    %v160 = vpack.c.b16 %v137, %v136
    %v161 = vpack.c.b16 %v139, %v138
    %v162 = vpack.c.b16 %v141, %v140
    %v163 = vpack.c.b16 %v143, %v142
    %v164 = vpack.c.b16 %v145, %v144
    %v165 = vpack.c.b16 %v147, %v146
    %v166 = vpack.c.b16 %v149, %v148
    %v167 = vpack.c.b16 %v151, %v150
    %v200 = vunpack.c.l.b16 %v72
    %v201 = vunpack.c.l.b16 %v73
    %v202 = vunpack.c.l.b16 %v74
    %v203 = vunpack.c.l.b16 %v75
    %v204 = vunpack.c.l.b16 %v76
    %v205 = vunpack.c.l.b16 %v77
    %v206 = vunpack.c.l.b16 %v78
    %v207 = vunpack.c.l.b16 %v79
    %v208 = vunpack.c.l.b16 %v80
    %v209 = vunpack.c.l.b16 %v81
    %v210 = vunpack.c.l.b16 %v82
    %v211 = vunpack.c.l.b16 %v83
    %v212 = vunpack.c.l.b16 %v84
    %v213 = vunpack.c.l.b16 %v85
    %v214 = vunpack.c.l.b16 %v86
    %v215 = vunpack.c.l.b16 %v87
    %v216 = vpack.c.b16 %v201, %v200
    %v217 = vpack.c.b16 %v203, %v202
    %v218 = vpack.c.b16 %v205, %v204
    %v219 = vpack.c.b16 %v207, %v206
    %v220 = vpack.c.b16 %v209, %v208
    %v221 = vpack.c.b16 %v211, %v210
    %v222 = vpack.c.b16 %v213, %v212
    %v223 = vpack.c.b16 %v215, %v214
    %232 = vmatprep.subr.bf16.mxu0 0
    %233 = vmatpush1.bf16.msra.mxu0 %v216
    %234 = vmatprep.subr.bf16.mxu0 0
    %235 = vmatpush1.bf16.msra.mxu0 %v217
    %236 = vmatprep.subr.bf16.mxu0 0
    %237 = vmatpush1.bf16.msra.mxu0 %v218
    %238 = vmatprep.subr.bf16.mxu0 0
    %239 = vmatpush1.bf16.msra.mxu0 %v219
    %240 = vmatprep.subr.bf16.mxu0 0
    %241 = vmatpush1.bf16.msra.mxu0 %v220
    %242 = vmatprep.subr.bf16.mxu0 0
    %243 = vmatpush1.bf16.msra.mxu0 %v221
    %244 = vmatprep.subr.bf16.mxu0 0
    %245 = vmatpush1.bf16.msra.mxu0 %v222
    %246 = vmatprep.subr.bf16.mxu0 0
    %247 = vmatpush1.bf16.msra.mxu0 %v223
    %248 = vmatprep.subr.bf16.mxu0 0
    %249 = vmatpush1.bf16.msra.mxu0 0
    %250 = vmatprep.subr.bf16.mxu0 0
    %251 = vmatpush1.bf16.msra.mxu0 0
    %252 = vmatprep.subr.bf16.mxu0 0
    %253 = vmatpush1.bf16.msra.mxu0 0
    %254 = vmatprep.subr.bf16.mxu0 0
    %255 = vmatpush1.bf16.msra.mxu0 0
    %256 = vmatprep.subr.bf16.mxu0 0
    %257 = vmatpush1.bf16.msra.mxu0 0
    %258 = vmatprep.subr.bf16.mxu0 0
    %259 = vmatpush1.bf16.msra.mxu0 0
    %260 = vmatprep.subr.bf16.mxu0 0
    %261 = vmatpush1.bf16.msra.mxu0 0
    %262 = vmatprep.subr.bf16.mxu0 0
    %263 = vmatpush1.bf16.msra.mxu0 0
    %264 = vmatprep.mubr.bf16.mxu0 0
    %265 = vmatmul.mubr.bf16.gmra.mrb[0].mxu0 %v152
    %v266 = vpop.f32.mrb[0].mxu0
    %v267 = vadd.f32 0.0, %v266
    %v268 = vpop.f32.mrb[0].mxu0
    %v269 = vpop.f32.mrb[0].mxu0
    %v270 = vadd.f32 0.0, %v269
    %v271 = vpop.f32.mrb[0].mxu0
    %272 = vmatprep.mubr.bf16.mxu0 0
    %273 = vmatmul.mubr.bf16.gmra.mrb[0].mxu0 %v153
    %v274 = vpop.f32.mrb[0].mxu0
    %v275 = vadd.f32 0.0, %v274
    %v276 = vpop.f32.mrb[0].mxu0
    %v277 = vpop.f32.mrb[0].mxu0
    %v278 = vadd.f32 0.0, %v277
    %v279 = vpop.f32.mrb[0].mxu0
    %280 = vmatprep.mubr.bf16.mxu0 0
    %281 = vmatmul.mubr.bf16.gmra.mrb[0].mxu0 %v154
    %v282 = vpop.f32.mrb[0].mxu0
    %v283 = vadd.f32 0.0, %v282
    %v284 = vpop.f32.mrb[0].mxu0
    %v285 = vpop.f32.mrb[0].mxu0
    %v286 = vadd.f32 0.0, %v285
    %v287 = vpop.f32.mrb[0].mxu0
    %288 = vmatprep.mubr.bf16.mxu0 0
    %289 = vmatmul.mubr.bf16.gmra.mrb[0].mxu0 %v155
    %v290 = vpop.f32.mrb[0].mxu0
    %v291 = vadd.f32 0.0, %v290
    %v292 = vpop.f32.mrb[0].mxu0
    %v293 = vpop.f32.mrb[0].mxu0
    %v294 = vadd.f32 0.0, %v293
    %v295 = vpop.f32.mrb[0].mxu0
    %296 = vmatprep.mubr.bf16.mxu0 0
    %297 = vmatmul.mubr.bf16.gmra.mrb[0].mxu0 %v156
    %v298 = vpop.f32.mrb[0].mxu0
    %v299 = vadd.f32 0.0, %v298
    %v300 = vpop.f32.mrb[0].mxu0
    %v301 = vpop.f32.mrb[0].mxu0
    %v302 = vadd.f32 0.0, %v301
    %v303 = vpop.f32.mrb[0].mxu0
    %304 = vmatprep.mubr.bf16.mxu0 0
    %305 = vmatmul.mubr.bf16.gmra.mrb[0].mxu0 %v157
    %v306 = vpop.f32.mrb[0].mxu0
    %v307 = vadd.f32 0.0, %v306
    %v308 = vpop.f32.mrb[0].mxu0
    %v309 = vpop.f32.mrb[0].mxu0
    %v310 = vadd.f32 0.0, %v309
    %v311 = vpop.f32.mrb[0].mxu0
    %312 = vmatprep.mubr.bf16.mxu0 0
    %313 = vmatmul.mubr.bf16.gmra.mrb[0].mxu0 %v158
    %v314 = vpop.f32.mrb[0].mxu0
    %v315 = vadd.f32 0.0, %v314
    %v316 = vpop.f32.mrb[0].mxu0
    %v317 = vpop.f32.mrb[0].mxu0
    %v318 = vadd.f32 0.0, %v317
    %v319 = vpop.f32.mrb[0].mxu0
    %320 = vmatprep.mubr.bf16.mxu0 0
    %321 = vmatmul.mubr.bf16.gmra.mrb[0].mxu0 %v159
    %v322 = vpop.f32.mrb[0].mxu0
    %v323 = vadd.f32 0.0, %v322
    %v324 = vpop.f32.mrb[0].mxu0
    %v325 = vpop.f32.mrb[0].mxu0
    %v326 = vadd.f32 0.0, %v325
    %v327 = vpop.f32.mrb[0].mxu0
    %328 = vmatprep.mubr.bf16.mxu0 0
    %329 = vmatmul.mubr.bf16.gmra.mrb[0].mxu0 %v160
    %v330 = vpop.f32.mrb[0].mxu0
    %v331 = vadd.f32 0.0, %v330
    %v332 = vpop.f32.mrb[0].mxu0
    %v333 = vpop.f32.mrb[0].mxu0
    %v334 = vadd.f32 0.0, %v333
    %v335 = vpop.f32.mrb[0].mxu0
    %336 = vmatprep.mubr.bf16.mxu0 0
    %337 = vmatmul.mubr.bf16.gmra.mrb[0].mxu0 %v161
    %v338 = vpop.f32.mrb[0].mxu0
    %v339 = vadd.f32 0.0, %v338
    %v340 = vpop.f32.mrb[0].mxu0
    %v341 = vpop.f32.mrb[0].mxu0
    %v342 = vadd.f32 0.0, %v341
    %v343 = vpop.f32.mrb[0].mxu0
    %344 = vmatprep.mubr.bf16.mxu0 0
    %345 = vmatmul.mubr.bf16.gmra.mrb[0].mxu0 %v162
    %v346 = vpop.f32.mrb[0].mxu0
    %v347 = vadd.f32 0.0, %v346
    %v348 = vpop.f32.mrb[0].mxu0
    %v349 = vpop.f32.mrb[0].mxu0
    %v350 = vadd.f32 0.0, %v349
    %v351 = vpop.f32.mrb[0].mxu0
    %352 = vmatprep.mubr.bf16.mxu0 0
    %353 = vmatmul.mubr.bf16.gmra.mrb[0].mxu0 %v163
    %v354 = vpop.f32.mrb[0].mxu0
    %v355 = vadd.f32 0.0, %v354
    %v356 = vpop.f32.mrb[0].mxu0
    %v357 = vpop.f32.mrb[0].mxu0
    %v358 = vadd.f32 0.0, %v357
    %v359 = vpop.f32.mrb[0].mxu0
    %360 = vmatprep.mubr.bf16.mxu0 0
    %361 = vmatmul.mubr.bf16.gmra.mrb[0].mxu0 %v164
    %v362 = vpop.f32.mrb[0].mxu0
    %v363 = vadd.f32 0.0, %v362
    %v364 = vpop.f32.mrb[0].mxu0
    %v365 = vpop.f32.mrb[0].mxu0
    %v366 = vadd.f32 0.0, %v365
    %v367 = vpop.f32.mrb[0].mxu0
    %368 = vmatprep.mubr.bf16.mxu0 0
    %369 = vmatmul.mubr.bf16.gmra.mrb[0].mxu0 %v165
    %v370 = vpop.f32.mrb[0].mxu0
    %v371 = vadd.f32 0.0, %v370
    %v372 = vpop.f32.mrb[0].mxu0
    %v373 = vpop.f32.mrb[0].mxu0
    %v374 = vadd.f32 0.0, %v373
    %v375 = vpop.f32.mrb[0].mxu0
    %376 = vmatprep.mubr.bf16.mxu0 0
    %377 = vmatmul.mubr.bf16.gmra.mrb[0].mxu0 %v166
    %v378 = vpop.f32.mrb[0].mxu0
    %v379 = vadd.f32 0.0, %v378
    %v380 = vpop.f32.mrb[0].mxu0
    %v381 = vpop.f32.mrb[0].mxu0
    %v382 = vadd.f32 0.0, %v381
    %v383 = vpop.f32.mrb[0].mxu0
    %384 = vmatprep.mubr.bf16.mxu0 0
    %385 = vmatmul.mubr.bf16.gmra.mrb[0].mxu0 %v167
    %v386 = vpop.f32.mrb[0].mxu0
    %v387 = vadd.f32 0.0, %v386
    %v388 = vpop.f32.mrb[0].mxu0
    %v389 = vpop.f32.mrb[0].mxu0
    %v390 = vadd.f32 0.0, %v389
    %v391 = vpop.f32.mrb[0].mxu0
    %392 = vdwg.mxu0
    %v393 = vpack.c.bf16 %v270, %v267
    %v394 = vpack.c.bf16 %v278, %v275
    %v395 = vpack.c.bf16 %v286, %v283
    %v396 = vpack.c.bf16 %v294, %v291
    %v397 = vpack.c.bf16 %v302, %v299
    %v398 = vpack.c.bf16 %v310, %v307
    %v399 = vpack.c.bf16 %v318, %v315
    %v400 = vpack.c.bf16 %v326, %v323
    %v401 = vpack.c.bf16 %v334, %v331
    %v402 = vpack.c.bf16 %v342, %v339
    %v403 = vpack.c.bf16 %v350, %v347
    %v404 = vpack.c.bf16 %v358, %v355
    %v405 = vpack.c.bf16 %v366, %v363
    %v406 = vpack.c.bf16 %v374, %v371
    %v407 = vpack.c.bf16 %v382, %v379
    %v408 = vpack.c.bf16 %v390, %v387
    %v425 = vunpack.c.l.b16 %v393
    %v426 = vunpack.c.h.b16 %v393
    %v427 = vunpack.c.l.b16 %v394
    %v428 = vunpack.c.h.b16 %v394
    %v429 = vunpack.c.l.b16 %v395
    %v430 = vunpack.c.h.b16 %v395
    %v431 = vunpack.c.l.b16 %v396
    %v432 = vunpack.c.h.b16 %v396
    %v433 = vunpack.c.l.b16 %v397
    %v434 = vunpack.c.h.b16 %v397
    %v435 = vunpack.c.l.b16 %v398
    %v436 = vunpack.c.h.b16 %v398
    %v437 = vunpack.c.l.b16 %v399
    %v438 = vunpack.c.h.b16 %v399
    %v439 = vunpack.c.l.b16 %v400
    %v440 = vunpack.c.h.b16 %v400
    %v441 = vunpack.c.l.b16 %v401
    %v442 = vunpack.c.h.b16 %v401
    %v443 = vunpack.c.l.b16 %v402
    %v444 = vunpack.c.h.b16 %v402
    %v445 = vunpack.c.l.b16 %v403
    %v446 = vunpack.c.h.b16 %v403
    %v447 = vunpack.c.l.b16 %v404
    %v448 = vunpack.c.h.b16 %v404
    %v449 = vunpack.c.l.b16 %v405
    %v450 = vunpack.c.h.b16 %v405
    %v451 = vunpack.c.l.b16 %v406
    %v452 = vunpack.c.h.b16 %v406
    %v453 = vunpack.c.l.b16 %v407
    %v454 = vunpack.c.h.b16 %v407
    %v455 = vunpack.c.l.b16 %v408
    %v456 = vunpack.c.h.b16 %v408
    %v457 = vpack.c.b16 %v425, %v425
    %v458 = vpack.c.b16 %v426, %v426
    %v459 = vpack.c.b16 %v427, %v427
    %v460 = vpack.c.b16 %v428, %v428
    %v461 = vpack.c.b16 %v429, %v429
    %v462 = vpack.c.b16 %v430, %v430
    %v463 = vpack.c.b16 %v431, %v431
    %v464 = vpack.c.b16 %v432, %v432
    %v465 = vpack.c.b16 %v433, %v433
    %v466 = vpack.c.b16 %v434, %v434
    %v467 = vpack.c.b16 %v435, %v435
    %v468 = vpack.c.b16 %v436, %v436
    %v469 = vpack.c.b16 %v437, %v437
    %v470 = vpack.c.b16 %v438, %v438
    %v471 = vpack.c.b16 %v439, %v439
    %v472 = vpack.c.b16 %v440, %v440
    %v473 = vpack.c.b16 %v441, %v441
    %v474 = vpack.c.b16 %v442, %v442
    %v475 = vpack.c.b16 %v443, %v443
    %v476 = vpack.c.b16 %v444, %v444
    %v477 = vpack.c.b16 %v445, %v445
    %v478 = vpack.c.b16 %v446, %v446
    %v479 = vpack.c.b16 %v447, %v447
    %v480 = vpack.c.b16 %v448, %v448
    %v481 = vpack.c.b16 %v449, %v449
    %v482 = vpack.c.b16 %v450, %v450
    %v483 = vpack.c.b16 %v451, %v451
    %v484 = vpack.c.b16 %v452, %v452
    %v485 = vpack.c.b16 %v453, %v453
    %v486 = vpack.c.b16 %v454, %v454
    %v487 = vpack.c.b16 %v455, %v455
    %v488 = vpack.c.b16 %v456, %v456
    %521 = vst [vmem:[%s2] sm:$0xf] %v457
    %522 = vst [vmem:[%s2 + $0x4] sm:$0xf] %v458
    %523 = vst [vmem:[%s2 + $0x8] sm:$0xf] %v459
    %524 = vst [vmem:[%s2 + $0xc] sm:$0xf] %v460
    %525 = vst [vmem:[%s2 + $0x10] sm:$0xf] %v461
    %526 = vst [vmem:[%s2 + $0x14] sm:$0xf] %v462
    %527 = vst [vmem:[%s2 + $0x18] sm:$0xf] %v463
    %528 = vst [vmem:[%s2 + $0x1c] sm:$0xf] %v464
    %529 = vst [vmem:[%s2 + $0x20] sm:$0xf] %v465
    %530 = vst [vmem:[%s2 + $0x24] sm:$0xf] %v466
    %531 = vst [vmem:[%s2 + $0x28] sm:$0xf] %v467
    %532 = vst [vmem:[%s2 + $0x2c] sm:$0xf] %v468
    %533 = vst [vmem:[%s2 + $0x30] sm:$0xf] %v469
    %534 = vst [vmem:[%s2 + $0x34] sm:$0xf] %v470
    %535 = vst [vmem:[%s2 + $0x38] sm:$0xf] %v471
    %536 = vst [vmem:[%s2 + $0x3c] sm:$0xf] %v472
    %537 = vst [vmem:[%s2 + $0x40] sm:$0xf] %v473
    %538 = vst [vmem:[%s2 + $0x44] sm:$0xf] %v474
    %539 = vst [vmem:[%s2 + $0x48] sm:$0xf] %v475
    %540 = vst [vmem:[%s2 + $0x4c] sm:$0xf] %v476
    %541 = vst [vmem:[%s2 + $0x50] sm:$0xf] %v477
    %542 = vst [vmem:[%s2 + $0x54] sm:$0xf] %v478
    %543 = vst [vmem:[%s2 + $0x58] sm:$0xf] %v479
    %544 = vst [vmem:[%s2 + $0x5c] sm:$0xf] %v480
    %545 = vst [vmem:[%s2 + $0x60] sm:$0xf] %v481
    %546 = vst [vmem:[%s2 + $0x64] sm:$0xf] %v482
    %547 = vst [vmem:[%s2 + $0x68] sm:$0xf] %v483
    %548 = vst [vmem:[%s2 + $0x6c] sm:$0xf] %v484
    %549 = vst [vmem:[%s2 + $0x70] sm:$0xf] %v485
    %550 = vst [vmem:[%s2 + $0x74] sm:$0xf] %v486
    %551 = vst [vmem:[%s2 + $0x78] sm:$0xf] %v487
    %552 = vst [vmem:[%s2 + $0x7c] sm:$0xf] %v488
    // Predicated region
    $region18: #{net_forward.4} parent=1 // pred_check
      _
    $region19: #{net_forward.4} parent=1 // pred_check_branch
      %554 = sbr.rel (0) target = $region21
    $region20: #{net_forward.4} parent=1 // pred_region
      _
    $region21: #{net_forward.4} parent=1 // pred_fallthru
      _
    // Predicated region
    $region22: #{net_forward.4} parent=1 // pred_check
      _
    $region23: #{net_forward.4} parent=1 // pred_check_branch
      %556 = sbr.rel (0) target = $region25
    $region24: #{net_forward.4} parent=1 // pred_region
      _
    $region25: #{net_forward.4} parent=1 // pred_fallthru
      _
    %557 = vsyncpa [#allocation3], 1
    %558 = vsyncpa [#allocation5], 1

// kernel: net_forward.5
$region0: #{net_forward.5}
  #allocation0 [shape = 'u32[]', space=smem, size = 0x4, offset = 0x4, fixed_abs, tag = 'smem constant byte address 0x4 - core index']
  #allocation1 [shape = 'u32[144,128]{1,0:T(1,128)}', space=vmem, size = 0x12000, scoped, tag = 'internal scratch']
  %s0 = inlined_call_operand.vmem [shape: bf16[256,256], index: 0, kind: input, shape index: {}]
  %s1 = inlined_call_operand.vmem [shape: bf16[256,128], index: 1, kind: input, shape index: {}]
  %s2 = inlined_call_operand.vmem [shape: f32[1,128], index: 2, kind: input, shape index: {}]
  %s3 = inlined_call_operand.vmem [shape: bf16[128,128], index: 3, kind: input, shape index: {}]
  %s4 = inlined_call_operand.vmem [shape: bf16[256,128], index: 4, kind: output, shape index: {}]
  %s5 = sld [smem:[#allocation0]]
  $region26: #{net_forward.5} parent=0
    _
  %s7 = ssub.s32 1, %s5
  %s8 = scalar_select 0, %s7, %s5
  // Predicated region
  $region2: #{net_forward.5} parent=0 // pred_check
    _
  $region3: #{net_forward.5} parent=0 // pred_check_branch
    %10 = sbr.rel (0) target = $region5
  $region4: #{net_forward.5} parent=0 // pred_region
    _
  $region5: #{net_forward.5} parent=0 // pred_fallthru
    _
  // Predicated region
  $region6: #{net_forward.5} parent=0 // pred_check
    _
  $region7: #{net_forward.5} parent=0 // pred_check_branch
    %12 = sbr.rel (0) target = $region9
  $region8: #{net_forward.5} parent=0 // pred_region
    _
  $region9: #{net_forward.5} parent=0 // pred_fallthru
    _
  // Predicated region
  $region10: #{net_forward.5} parent=0 // pred_check
    _
  $region11: #{net_forward.5} parent=0 // pred_check_branch
    %14 = sbr.rel (0) target = $region13
  $region12: #{net_forward.5} parent=0 // pred_region
    _
  $region13: #{net_forward.5} parent=0 // pred_fallthru
    _
  // Predicated region
  $region14: #{net_forward.5} parent=0 // pred_check
    _
  $region15: #{net_forward.5} parent=0 // pred_check_branch
    %16 = sbr.rel (0) target = $region17
  $region16: #{net_forward.5} parent=0 // pred_region
    _
  $region17: #{net_forward.5} parent=0 // pred_fallthru
    _
  %v18 = vld [vmem:[%s0] sm:$0xff]
  %v19 = vld [vmem:[%s0 + $0x8] sm:$0xff]
  %v20 = vld [vmem:[%s0 + $0x10] sm:$0xff]
  %v21 = vld [vmem:[%s0 + $0x18] sm:$0xff]
  %v22 = vld [vmem:[%s0 + $0x20] sm:$0xff]
  %v23 = vld [vmem:[%s0 + $0x28] sm:$0xff]
  %v24 = vld [vmem:[%s0 + $0x30] sm:$0xff]
  %v25 = vld [vmem:[%s0 + $0x38] sm:$0xff]
  %v26 = vld [vmem:[%s0 + $0x40] sm:$0xff]
  %v27 = vld [vmem:[%s0 + $0x48] sm:$0xff]
  %v28 = vld [vmem:[%s0 + $0x50] sm:$0xff]
  %v29 = vld [vmem:[%s0 + $0x58] sm:$0xff]
  %v30 = vld [vmem:[%s0 + $0x60] sm:$0xff]
  %v31 = vld [vmem:[%s0 + $0x68] sm:$0xff]
  %v32 = vld [vmem:[%s0 + $0x70] sm:$0xff]
  %v33 = vld [vmem:[%s0 + $0x78] sm:$0xff]
  %v34 = vld [vmem:[%s0 + $0x80] sm:$0xff]
  %v35 = vld [vmem:[%s0 + $0x88] sm:$0xff]
  %v36 = vld [vmem:[%s0 + $0x90] sm:$0xff]
  %v37 = vld [vmem:[%s0 + $0x98] sm:$0xff]
  %v38 = vld [vmem:[%s0 + $0xa0] sm:$0xff]
  %v39 = vld [vmem:[%s0 + $0xa8] sm:$0xff]
  %v40 = vld [vmem:[%s0 + $0xb0] sm:$0xff]
  %v41 = vld [vmem:[%s0 + $0xb8] sm:$0xff]
  %v42 = vld [vmem:[%s0 + $0xc0] sm:$0xff]
  %v43 = vld [vmem:[%s0 + $0xc8] sm:$0xff]
  %v44 = vld [vmem:[%s0 + $0xd0] sm:$0xff]
  %v45 = vld [vmem:[%s0 + $0xd8] sm:$0xff]
  %v46 = vld [vmem:[%s0 + $0xe0] sm:$0xff]
  %v47 = vld [vmem:[%s0 + $0xe8] sm:$0xff]
  %v48 = vld [vmem:[%s0 + $0xf0] sm:$0xff]
  %v49 = vld [vmem:[%s0 + $0xf8] sm:$0xff]
  %v50 = vld [vmem:[%s1] sm:$0xf]
  %v51 = vld [vmem:[%s1 + $0x4] sm:$0xf]
  %v52 = vld [vmem:[%s1 + $0x8] sm:$0xf]
  %v53 = vld [vmem:[%s1 + $0xc] sm:$0xf]
  %v54 = vld [vmem:[%s1 + $0x10] sm:$0xf]
  %v55 = vld [vmem:[%s1 + $0x14] sm:$0xf]
  %v56 = vld [vmem:[%s1 + $0x18] sm:$0xf]
  %v57 = vld [vmem:[%s1 + $0x1c] sm:$0xf]
  %v58 = vld [vmem:[%s1 + $0x20] sm:$0xf]
  %v59 = vld [vmem:[%s1 + $0x24] sm:$0xf]
  %v60 = vld [vmem:[%s1 + $0x28] sm:$0xf]
  %v61 = vld [vmem:[%s1 + $0x2c] sm:$0xf]
  %v62 = vld [vmem:[%s1 + $0x30] sm:$0xf]
  %v63 = vld [vmem:[%s1 + $0x34] sm:$0xf]
  %v64 = vld [vmem:[%s1 + $0x38] sm:$0xf]
  %v65 = vld [vmem:[%s1 + $0x3c] sm:$0xf]
  %v66 = vld [vmem:[%s1 + $0x40] sm:$0xf]
  %v67 = vld [vmem:[%s1 + $0x44] sm:$0xf]
  %v68 = vld [vmem:[%s1 + $0x48] sm:$0xf]
  %v69 = vld [vmem:[%s1 + $0x4c] sm:$0xf]
  %v70 = vld [vmem:[%s1 + $0x50] sm:$0xf]
  %v71 = vld [vmem:[%s1 + $0x54] sm:$0xf]
  %v72 = vld [vmem:[%s1 + $0x58] sm:$0xf]
  %v73 = vld [vmem:[%s1 + $0x5c] sm:$0xf]
  %v74 = vld [vmem:[%s1 + $0x60] sm:$0xf]
  %v75 = vld [vmem:[%s1 + $0x64] sm:$0xf]
  %v76 = vld [vmem:[%s1 + $0x68] sm:$0xf]
  %v77 = vld [vmem:[%s1 + $0x6c] sm:$0xf]
  %v78 = vld [vmem:[%s1 + $0x70] sm:$0xf]
  %v79 = vld [vmem:[%s1 + $0x74] sm:$0xf]
  %v80 = vld [vmem:[%s1 + $0x78] sm:$0xf]
  %v81 = vld [vmem:[%s1 + $0x7c] sm:$0xf]
  %v82 = vld [vmem:[%s2] sm:$0x1]
  %v84 = vlaneseq
  %v85 = vshrl.u32 %v84, 7
  %v86 = vsub.s32 0, %v85
  %v87 = vrot.slane %v82, %v86
  %v121 = vunpack.c.l.b16 %v18
  %v122 = vunpack.c.h.b16 %v18
  %v123 = vunpack.c.l.b16 %v19
  %v124 = vunpack.c.h.b16 %v19
  %v125 = vunpack.c.l.b16 %v20
  %v126 = vunpack.c.h.b16 %v20
  %v127 = vunpack.c.l.b16 %v21
  %v128 = vunpack.c.h.b16 %v21
  %v129 = vunpack.c.l.b16 %v22
  %v130 = vunpack.c.h.b16 %v22
  %v131 = vunpack.c.l.b16 %v23
  %v132 = vunpack.c.h.b16 %v23
  %v133 = vunpack.c.l.b16 %v24
  %v134 = vunpack.c.h.b16 %v24
  %v135 = vunpack.c.l.b16 %v25
  %v136 = vunpack.c.h.b16 %v25
  %v137 = vunpack.c.l.b16 %v26
  %v138 = vunpack.c.h.b16 %v26
  %v139 = vunpack.c.l.b16 %v27
  %v140 = vunpack.c.h.b16 %v27
  %v141 = vunpack.c.l.b16 %v28
  %v142 = vunpack.c.h.b16 %v28
  %v143 = vunpack.c.l.b16 %v29
  %v144 = vunpack.c.h.b16 %v29
  %v145 = vunpack.c.l.b16 %v30
  %v146 = vunpack.c.h.b16 %v30
  %v147 = vunpack.c.l.b16 %v31
  %v148 = vunpack.c.h.b16 %v31
  %v149 = vunpack.c.l.b16 %v32
  %v150 = vunpack.c.h.b16 %v32
  %v151 = vunpack.c.l.b16 %v33
  %v152 = vunpack.c.h.b16 %v33
  %v153 = vunpack.c.l.b16 %v34
  %v154 = vunpack.c.h.b16 %v34
  %v155 = vunpack.c.l.b16 %v35
  %v156 = vunpack.c.h.b16 %v35
  %v157 = vunpack.c.l.b16 %v36
  %v158 = vunpack.c.h.b16 %v36
  %v159 = vunpack.c.l.b16 %v37
  %v160 = vunpack.c.h.b16 %v37
  %v161 = vunpack.c.l.b16 %v38
  %v162 = vunpack.c.h.b16 %v38
  %v163 = vunpack.c.l.b16 %v39
  %v164 = vunpack.c.h.b16 %v39
  %v165 = vunpack.c.l.b16 %v40
  %v166 = vunpack.c.h.b16 %v40
  %v167 = vunpack.c.l.b16 %v41
  %v168 = vunpack.c.h.b16 %v41
  %v169 = vunpack.c.l.b16 %v42
  %v170 = vunpack.c.h.b16 %v42
  %v171 = vunpack.c.l.b16 %v43
  %v172 = vunpack.c.h.b16 %v43
  %v173 = vunpack.c.l.b16 %v44
  %v174 = vunpack.c.h.b16 %v44
  %v175 = vunpack.c.l.b16 %v45
  %v176 = vunpack.c.h.b16 %v45
  %v177 = vunpack.c.l.b16 %v46
  %v178 = vunpack.c.h.b16 %v46
  %v179 = vunpack.c.l.b16 %v47
  %v180 = vunpack.c.h.b16 %v47
  %v181 = vunpack.c.l.b16 %v48
  %v182 = vunpack.c.h.b16 %v48
  %v183 = vunpack.c.l.b16 %v49
  %v184 = vunpack.c.h.b16 %v49
  %v185 = vpack.c.b16 %v123, %v121
  %v186 = vpack.c.b16 %v124, %v122
  %v187 = vpack.c.b16 %v127, %v125
  %v188 = vpack.c.b16 %v128, %v126
  %v189 = vpack.c.b16 %v131, %v129
  %v190 = vpack.c.b16 %v132, %v130
  %v191 = vpack.c.b16 %v135, %v133
  %v192 = vpack.c.b16 %v136, %v134
  %v193 = vpack.c.b16 %v139, %v137
  %v194 = vpack.c.b16 %v140, %v138
  %v195 = vpack.c.b16 %v143, %v141
  %v196 = vpack.c.b16 %v144, %v142
  %v197 = vpack.c.b16 %v147, %v145
  %v198 = vpack.c.b16 %v148, %v146
  %v199 = vpack.c.b16 %v151, %v149
  %v200 = vpack.c.b16 %v152, %v150
  %v201 = vpack.c.b16 %v155, %v153
  %v202 = vpack.c.b16 %v156, %v154
  %v203 = vpack.c.b16 %v159, %v157
  %v204 = vpack.c.b16 %v160, %v158
  %v205 = vpack.c.b16 %v163, %v161
  %v206 = vpack.c.b16 %v164, %v162
  %v207 = vpack.c.b16 %v167, %v165
  %v208 = vpack.c.b16 %v168, %v166
  %v209 = vpack.c.b16 %v171, %v169
  %v210 = vpack.c.b16 %v172, %v170
  %v211 = vpack.c.b16 %v175, %v173
  %v212 = vpack.c.b16 %v176, %v174
  %v213 = vpack.c.b16 %v179, %v177
  %v214 = vpack.c.b16 %v180, %v178
  %v215 = vpack.c.b16 %v183, %v181
  %v216 = vpack.c.b16 %v184, %v182
  %v281 = vunpack.c.l.b16 %v50
  %v282 = vunpack.c.l.b16 %v51
  %v283 = vunpack.c.l.b16 %v52
  %v284 = vunpack.c.l.b16 %v53
  %v285 = vunpack.c.l.b16 %v54
  %v286 = vunpack.c.l.b16 %v55
  %v287 = vunpack.c.l.b16 %v56
  %v288 = vunpack.c.l.b16 %v57
  %v289 = vunpack.c.l.b16 %v58
  %v290 = vunpack.c.l.b16 %v59
  %v291 = vunpack.c.l.b16 %v60
  %v292 = vunpack.c.l.b16 %v61
  %v293 = vunpack.c.l.b16 %v62
  %v294 = vunpack.c.l.b16 %v63
  %v295 = vunpack.c.l.b16 %v64
  %v296 = vunpack.c.l.b16 %v65
  %v297 = vunpack.c.l.b16 %v66
  %v298 = vunpack.c.l.b16 %v67
  %v299 = vunpack.c.l.b16 %v68
  %v300 = vunpack.c.l.b16 %v69
  %v301 = vunpack.c.l.b16 %v70
  %v302 = vunpack.c.l.b16 %v71
  %v303 = vunpack.c.l.b16 %v72
  %v304 = vunpack.c.l.b16 %v73
  %v305 = vunpack.c.l.b16 %v74
  %v306 = vunpack.c.l.b16 %v75
  %v307 = vunpack.c.l.b16 %v76
  %v308 = vunpack.c.l.b16 %v77
  %v309 = vunpack.c.l.b16 %v78
  %v310 = vunpack.c.l.b16 %v79
  %v311 = vunpack.c.l.b16 %v80
  %v312 = vunpack.c.l.b16 %v81
  %v313 = vpack.c.b16 %v282, %v281
  %v314 = vpack.c.b16 %v284, %v283
  %v315 = vpack.c.b16 %v286, %v285
  %v316 = vpack.c.b16 %v288, %v287
  %v317 = vpack.c.b16 %v290, %v289
  %v318 = vpack.c.b16 %v292, %v291
  %v319 = vpack.c.b16 %v294, %v293
  %v320 = vpack.c.b16 %v296, %v295
  %v321 = vpack.c.b16 %v298, %v297
  %v322 = vpack.c.b16 %v300, %v299
  %v323 = vpack.c.b16 %v302, %v301
  %v324 = vpack.c.b16 %v304, %v303
  %v325 = vpack.c.b16 %v306, %v305
  %v326 = vpack.c.b16 %v308, %v307
  %v327 = vpack.c.b16 %v310, %v309
  %v328 = vpack.c.b16 %v312, %v311
  %345 = vmatprep.subr.bf16.mxu0 0
  %346 = vmatpush1.bf16.msra.mxu0 %v313
  %347 = vmatprep.subr.bf16.mxu0 0
  %348 = vmatpush1.bf16.msra.mxu0 %v314
  %349 = vmatprep.subr.bf16.mxu0 0
  %350 = vmatpush1.bf16.msra.mxu0 %v315
  %351 = vmatprep.subr.bf16.mxu0 0
  %352 = vmatpush1.bf16.msra.mxu0 %v316
  %353 = vmatprep.subr.bf16.mxu0 0
  %354 = vmatpush1.bf16.msra.mxu0 %v317
  %355 = vmatprep.subr.bf16.mxu0 0
  %356 = vmatpush1.bf16.msra.mxu0 %v318
  %357 = vmatprep.subr.bf16.mxu0 0
  %358 = vmatpush1.bf16.msra.mxu0 %v319
  %359 = vmatprep.subr.bf16.mxu0 0
  %360 = vmatpush1.bf16.msra.mxu0 %v320
  %361 = vmatprep.subr.bf16.mxu0 0
  %362 = vmatpush1.bf16.msra.mxu0 %v321
  %363 = vmatprep.subr.bf16.mxu0 0
  %364 = vmatpush1.bf16.msra.mxu0 %v322
  %365 = vmatprep.subr.bf16.mxu0 0
  %366 = vmatpush1.bf16.msra.mxu0 %v323
  %367 = vmatprep.subr.bf16.mxu0 0
  %368 = vmatpush1.bf16.msra.mxu0 %v324
  %369 = vmatprep.subr.bf16.mxu0 0
  %370 = vmatpush1.bf16.msra.mxu0 %v325
  %371 = vmatprep.subr.bf16.mxu0 0
  %372 = vmatpush1.bf16.msra.mxu0 %v326
  %373 = vmatprep.subr.bf16.mxu0 0
  %374 = vmatpush1.bf16.msra.mxu0 %v327
  %375 = vmatprep.subr.bf16.mxu0 0
  %376 = vmatpush1.bf16.msra.mxu0 %v328
  %377 = vmatprep.mubr.bf16.mxu0 %v186
  %378 = vmatmul.mubr.bf16.gmra.mrb[0].mxu0 %v185
  %v379 = vpop.f32.mrb[0].mxu0
  %v380 = vadd.f32 %v87, %v379
  %v381 = vpop.f32.mrb[0].mxu0
  %v382 = vpop.f32.mrb[0].mxu0
  %v383 = vadd.f32 %v87, %v382
  %v384 = vpop.f32.mrb[0].mxu0
  %385 = vmatprep.mubr.bf16.mxu0 %v188
  %386 = vmatmul.mubr.bf16.gmra.mrb[0].mxu0 %v187
  %v387 = vpop.f32.mrb[0].mxu0
  %v388 = vadd.f32 %v87, %v387
  %v389 = vpop.f32.mrb[0].mxu0
  %v390 = vpop.f32.mrb[0].mxu0
  %v391 = vadd.f32 %v87, %v390
  %v392 = vpop.f32.mrb[0].mxu0
  %393 = vmatprep.mubr.bf16.mxu0 %v190
  %394 = vmatmul.mubr.bf16.gmra.mrb[0].mxu0 %v189
  %v395 = vpop.f32.mrb[0].mxu0
  %v396 = vadd.f32 %v87, %v395
  %v397 = vpop.f32.mrb[0].mxu0
  %v398 = vpop.f32.mrb[0].mxu0
  %v399 = vadd.f32 %v87, %v398
  %v400 = vpop.f32.mrb[0].mxu0
  %401 = vmatprep.mubr.bf16.mxu0 %v192
  %402 = vmatmul.mubr.bf16.gmra.mrb[0].mxu0 %v191
  %v403 = vpop.f32.mrb[0].mxu0
  %v404 = vadd.f32 %v87, %v403
  %v405 = vpop.f32.mrb[0].mxu0
  %v406 = vpop.f32.mrb[0].mxu0
  %v407 = vadd.f32 %v87, %v406
  %v408 = vpop.f32.mrb[0].mxu0
  %409 = vmatprep.mubr.bf16.mxu0 %v194
  %410 = vmatmul.mubr.bf16.gmra.mrb[0].mxu0 %v193
  %v411 = vpop.f32.mrb[0].mxu0
  %v412 = vadd.f32 %v87, %v411
  %v413 = vpop.f32.mrb[0].mxu0
  %v414 = vpop.f32.mrb[0].mxu0
  %v415 = vadd.f32 %v87, %v414
  %v416 = vpop.f32.mrb[0].mxu0
  %417 = vmatprep.mubr.bf16.mxu0 %v196
  %418 = vmatmul.mubr.bf16.gmra.mrb[0].mxu0 %v195
  %v419 = vpop.f32.mrb[0].mxu0
  %v420 = vadd.f32 %v87, %v419
  %v421 = vpop.f32.mrb[0].mxu0
  %v422 = vpop.f32.mrb[0].mxu0
  %v423 = vadd.f32 %v87, %v422
  %v424 = vpop.f32.mrb[0].mxu0
  %425 = vmatprep.mubr.bf16.mxu0 %v198
  %426 = vmatmul.mubr.bf16.gmra.mrb[0].mxu0 %v197
  %v427 = vpop.f32.mrb[0].mxu0
  %v428 = vadd.f32 %v87, %v427
  %v429 = vpop.f32.mrb[0].mxu0
  %v430 = vpop.f32.mrb[0].mxu0
  %v431 = vadd.f32 %v87, %v430
  %v432 = vpop.f32.mrb[0].mxu0
  %433 = vmatprep.mubr.bf16.mxu0 %v200
  %434 = vmatmul.mubr.bf16.gmra.mrb[0].mxu0 %v199
  %v435 = vpop.f32.mrb[0].mxu0
  %v436 = vadd.f32 %v87, %v435
  %v437 = vpop.f32.mrb[0].mxu0
  %v438 = vpop.f32.mrb[0].mxu0
  %v439 = vadd.f32 %v87, %v438
  %v440 = vpop.f32.mrb[0].mxu0
  %441 = vmatprep.mubr.bf16.mxu0 %v202
  %442 = vmatmul.mubr.bf16.gmra.mrb[0].mxu0 %v201
  %v443 = vpop.f32.mrb[0].mxu0
  %v444 = vadd.f32 %v87, %v443
  %v445 = vpop.f32.mrb[0].mxu0
  %v446 = vpop.f32.mrb[0].mxu0
  %v447 = vadd.f32 %v87, %v446
  %v448 = vpop.f32.mrb[0].mxu0
  %449 = vmatprep.mubr.bf16.mxu0 %v204
  %450 = vmatmul.mubr.bf16.gmra.mrb[0].mxu0 %v203
  %v451 = vpop.f32.mrb[0].mxu0
  %v452 = vadd.f32 %v87, %v451
  %v453 = vpop.f32.mrb[0].mxu0
  %v454 = vpop.f32.mrb[0].mxu0
  %v455 = vadd.f32 %v87, %v454
  %v456 = vpop.f32.mrb[0].mxu0
  %457 = vmatprep.mubr.bf16.mxu0 %v206
  %458 = vmatmul.mubr.bf16.gmra.mrb[0].mxu0 %v205
  %v459 = vpop.f32.mrb[0].mxu0
  %v460 = vadd.f32 %v87, %v459
  %v461 = vpop.f32.mrb[0].mxu0
  %v462 = vpop.f32.mrb[0].mxu0
  %v463 = vadd.f32 %v87, %v462
  %v464 = vpop.f32.mrb[0].mxu0
  %465 = vmatprep.mubr.bf16.mxu0 %v208
  %466 = vmatmul.mubr.bf16.gmra.mrb[0].mxu0 %v207
  %v467 = vpop.f32.mrb[0].mxu0
  %v468 = vadd.f32 %v87, %v467
  %v469 = vpop.f32.mrb[0].mxu0
  %v470 = vpop.f32.mrb[0].mxu0
  %v471 = vadd.f32 %v87, %v470
  %v472 = vpop.f32.mrb[0].mxu0
  %473 = vmatprep.mubr.bf16.mxu0 %v210
  %474 = vmatmul.mubr.bf16.gmra.mrb[0].mxu0 %v209
  %v475 = vpop.f32.mrb[0].mxu0
  %v476 = vadd.f32 %v87, %v475
  %v477 = vpop.f32.mrb[0].mxu0
  %v478 = vpop.f32.mrb[0].mxu0
  %v479 = vadd.f32 %v87, %v478
  %v480 = vpop.f32.mrb[0].mxu0
  %481 = vmatprep.mubr.bf16.mxu0 %v212
  %482 = vmatmul.mubr.bf16.gmra.mrb[0].mxu0 %v211
  %v483 = vpop.f32.mrb[0].mxu0
  %v484 = vadd.f32 %v87, %v483
  %v485 = vpop.f32.mrb[0].mxu0
  %v486 = vpop.f32.mrb[0].mxu0
  %v487 = vadd.f32 %v87, %v486
  %v488 = vpop.f32.mrb[0].mxu0
  %489 = vmatprep.mubr.bf16.mxu0 %v214
  %490 = vmatmul.mubr.bf16.gmra.mrb[0].mxu0 %v213
  %v491 = vpop.f32.mrb[0].mxu0
  %v492 = vadd.f32 %v87, %v491
  %v493 = vpop.f32.mrb[0].mxu0
  %v494 = vpop.f32.mrb[0].mxu0
  %v495 = vadd.f32 %v87, %v494
  %v496 = vpop.f32.mrb[0].mxu0
  %497 = vmatprep.mubr.bf16.mxu0 %v216
  %498 = vmatmul.mubr.bf16.gmra.mrb[0].mxu0 %v215
  %v499 = vpop.f32.mrb[0].mxu0
  %v500 = vadd.f32 %v87, %v499
  %v501 = vpop.f32.mrb[0].mxu0
  %v502 = vpop.f32.mrb[0].mxu0
  %v503 = vadd.f32 %v87, %v502
  %v504 = vpop.f32.mrb[0].mxu0
  %505 = vdwg.mxu0
  %v506 = vmax.f32 %v380, 0.0
  %v507 = vmax.f32 %v383, 0.0
  %v508 = vmax.f32 %v388, 0.0
  %v509 = vmax.f32 %v391, 0.0
  %v510 = vmax.f32 %v396, 0.0
  %v511 = vmax.f32 %v399, 0.0
  %v512 = vmax.f32 %v404, 0.0
  %v513 = vmax.f32 %v407, 0.0
  %v514 = vmax.f32 %v412, 0.0
  %v515 = vmax.f32 %v415, 0.0
  %v516 = vmax.f32 %v420, 0.0
  %v517 = vmax.f32 %v423, 0.0
  %v518 = vmax.f32 %v428, 0.0
  %v519 = vmax.f32 %v431, 0.0
  %v520 = vmax.f32 %v436, 0.0
  %v521 = vmax.f32 %v439, 0.0
  %v522 = vmax.f32 %v444, 0.0
  %v523 = vmax.f32 %v447, 0.0
  %v524 = vmax.f32 %v452, 0.0
  %v525 = vmax.f32 %v455, 0.0
  %v526 = vmax.f32 %v460, 0.0
  %v527 = vmax.f32 %v463, 0.0
  %v528 = vmax.f32 %v468, 0.0
  %v529 = vmax.f32 %v471, 0.0
  %v530 = vmax.f32 %v476, 0.0
  %v531 = vmax.f32 %v479, 0.0
  %v532 = vmax.f32 %v484, 0.0
  %v533 = vmax.f32 %v487, 0.0
  %v534 = vmax.f32 %v492, 0.0
  %v535 = vmax.f32 %v495, 0.0
  %v536 = vmax.f32 %v500, 0.0
  %v537 = vmax.f32 %v503, 0.0
  %v538 = vpack.c.bf16 %v507, %v506
  %v539 = vpack.c.bf16 %v509, %v508
  %v540 = vpack.c.bf16 %v511, %v510
  %v541 = vpack.c.bf16 %v513, %v512
  %v542 = vpack.c.bf16 %v515, %v514
  %v543 = vpack.c.bf16 %v517, %v516
  %v544 = vpack.c.bf16 %v519, %v518
  %v545 = vpack.c.bf16 %v521, %v520
  %v546 = vpack.c.bf16 %v523, %v522
  %v547 = vpack.c.bf16 %v525, %v524
  %v548 = vpack.c.bf16 %v527, %v526
  %v549 = vpack.c.bf16 %v529, %v528
  %v550 = vpack.c.bf16 %v531, %v530
  %v551 = vpack.c.bf16 %v533, %v532
  %v552 = vpack.c.bf16 %v535, %v534
  %v553 = vpack.c.bf16 %v537, %v536
  %v554 = vld [vmem:[%s3] sm:$0xf]
  %v555 = vld [vmem:[%s3 + $0x4] sm:$0xf]
  %v556 = vld [vmem:[%s3 + $0x8] sm:$0xf]
  %v557 = vld [vmem:[%s3 + $0xc] sm:$0xf]
  %v558 = vld [vmem:[%s3 + $0x10] sm:$0xf]
  %v559 = vld [vmem:[%s3 + $0x14] sm:$0xf]
  %v560 = vld [vmem:[%s3 + $0x18] sm:$0xf]
  %v561 = vld [vmem:[%s3 + $0x1c] sm:$0xf]
  %v562 = vld [vmem:[%s3 + $0x20] sm:$0xf]
  %v563 = vld [vmem:[%s3 + $0x24] sm:$0xf]
  %v564 = vld [vmem:[%s3 + $0x28] sm:$0xf]
  %v565 = vld [vmem:[%s3 + $0x2c] sm:$0xf]
  %v566 = vld [vmem:[%s3 + $0x30] sm:$0xf]
  %v567 = vld [vmem:[%s3 + $0x34] sm:$0xf]
  %v568 = vld [vmem:[%s3 + $0x38] sm:$0xf]
  %v569 = vld [vmem:[%s3 + $0x3c] sm:$0xf]
  %v586 = vunpack.c.l.b16 %v554
  %v587 = vunpack.c.l.b16 %v555
  %v588 = vunpack.c.l.b16 %v556
  %v589 = vunpack.c.l.b16 %v557
  %v590 = vunpack.c.l.b16 %v558
  %v591 = vunpack.c.l.b16 %v559
  %v592 = vunpack.c.l.b16 %v560
  %v593 = vunpack.c.l.b16 %v561
  %v594 = vunpack.c.l.b16 %v562
  %v595 = vunpack.c.l.b16 %v563
  %v596 = vunpack.c.l.b16 %v564
  %v597 = vunpack.c.l.b16 %v565
  %v598 = vunpack.c.l.b16 %v566
  %v599 = vunpack.c.l.b16 %v567
  %v600 = vunpack.c.l.b16 %v568
  %v601 = vunpack.c.l.b16 %v569
  %v602 = vpack.c.b16 %v587, %v586
  %v603 = vpack.c.b16 %v589, %v588
  %v604 = vpack.c.b16 %v591, %v590
  %v605 = vpack.c.b16 %v593, %v592
  %v606 = vpack.c.b16 %v595, %v594
  %v607 = vpack.c.b16 %v597, %v596
  %v608 = vpack.c.b16 %v599, %v598
  %v609 = vpack.c.b16 %v601, %v600
  %618 = vmatprep.subr.bf16.mxu0 0
  %619 = vmatpush1.bf16.msra.mxu0 %v602
  %620 = vmatprep.subr.bf16.mxu0 0
  %621 = vmatpush1.bf16.msra.mxu0 %v603
  %622 = vmatprep.subr.bf16.mxu0 0
  %623 = vmatpush1.bf16.msra.mxu0 %v604
  %624 = vmatprep.subr.bf16.mxu0 0
  %625 = vmatpush1.bf16.msra.mxu0 %v605
  %626 = vmatprep.subr.bf16.mxu0 0
  %627 = vmatpush1.bf16.msra.mxu0 %v606
  %628 = vmatprep.subr.bf16.mxu0 0
  %629 = vmatpush1.bf16.msra.mxu0 %v607
  %630 = vmatprep.subr.bf16.mxu0 0
  %631 = vmatpush1.bf16.msra.mxu0 %v608
  %632 = vmatprep.subr.bf16.mxu0 0
  %633 = vmatpush1.bf16.msra.mxu0 %v609
  %634 = vmatprep.subr.bf16.mxu0 0
  %635 = vmatpush1.bf16.msra.mxu0 0
  %636 = vmatprep.subr.bf16.mxu0 0
  %637 = vmatpush1.bf16.msra.mxu0 0
  %638 = vmatprep.subr.bf16.mxu0 0
  %639 = vmatpush1.bf16.msra.mxu0 0
  %640 = vmatprep.subr.bf16.mxu0 0
  %641 = vmatpush1.bf16.msra.mxu0 0
  %642 = vmatprep.subr.bf16.mxu0 0
  %643 = vmatpush1.bf16.msra.mxu0 0
  %644 = vmatprep.subr.bf16.mxu0 0
  %645 = vmatpush1.bf16.msra.mxu0 0
  %646 = vmatprep.subr.bf16.mxu0 0
  %647 = vmatpush1.bf16.msra.mxu0 0
  %648 = vmatprep.subr.bf16.mxu0 0
  %649 = vmatpush1.bf16.msra.mxu0 0
  %650 = vmatprep.mubr.bf16.mxu0 0
  %651 = vmatmul.mubr.bf16.gmra.mrb[0].mxu0 %v538
  %v652 = vpop.f32.mrb[0].mxu0
  %v653 = vadd.f32 0.0, %v652
  %v654 = vpop.f32.mrb[0].mxu0
  %v655 = vpop.f32.mrb[0].mxu0
  %v656 = vadd.f32 0.0, %v655
  %v657 = vpop.f32.mrb[0].mxu0
  %658 = vmatprep.mubr.bf16.mxu0 0
  %659 = vmatmul.mubr.bf16.gmra.mrb[0].mxu0 %v539
  %v660 = vpop.f32.mrb[0].mxu0
  %v661 = vadd.f32 0.0, %v660
  %v662 = vpop.f32.mrb[0].mxu0
  %v663 = vpop.f32.mrb[0].mxu0
  %v664 = vadd.f32 0.0, %v663
  %v665 = vpop.f32.mrb[0].mxu0
  %666 = vmatprep.mubr.bf16.mxu0 0
  %667 = vmatmul.mubr.bf16.gmra.mrb[0].mxu0 %v540
  %v668 = vpop.f32.mrb[0].mxu0
  %v669 = vadd.f32 0.0, %v668
  %v670 = vpop.f32.mrb[0].mxu0
  %v671 = vpop.f32.mrb[0].mxu0
  %v672 = vadd.f32 0.0, %v671
  %v673 = vpop.f32.mrb[0].mxu0
  %674 = vmatprep.mubr.bf16.mxu0 0
  %675 = vmatmul.mubr.bf16.gmra.mrb[0].mxu0 %v541
  %v676 = vpop.f32.mrb[0].mxu0
  %v677 = vadd.f32 0.0, %v676
  %v678 = vpop.f32.mrb[0].mxu0
  %v679 = vpop.f32.mrb[0].mxu0
  %v680 = vadd.f32 0.0, %v679
  %v681 = vpop.f32.mrb[0].mxu0
  %682 = vmatprep.mubr.bf16.mxu0 0
  %683 = vmatmul.mubr.bf16.gmra.mrb[0].mxu0 %v542
  %v684 = vpop.f32.mrb[0].mxu0
  %v685 = vadd.f32 0.0, %v684
  %v686 = vpop.f32.mrb[0].mxu0
  %v687 = vpop.f32.mrb[0].mxu0
  %v688 = vadd.f32 0.0, %v687
  %v689 = vpop.f32.mrb[0].mxu0
  %690 = vmatprep.mubr.bf16.mxu0 0
  %691 = vmatmul.mubr.bf16.gmra.mrb[0].mxu0 %v543
  %v692 = vpop.f32.mrb[0].mxu0
  %v693 = vadd.f32 0.0, %v692
  %v694 = vpop.f32.mrb[0].mxu0
  %v695 = vpop.f32.mrb[0].mxu0
  %v696 = vadd.f32 0.0, %v695
  %v697 = vpop.f32.mrb[0].mxu0
  %698 = vmatprep.mubr.bf16.mxu0 0
  %699 = vmatmul.mubr.bf16.gmra.mrb[0].mxu0 %v544
  %v700 = vpop.f32.mrb[0].mxu0
  %v701 = vadd.f32 0.0, %v700
  %v702 = vpop.f32.mrb[0].mxu0
  %v703 = vpop.f32.mrb[0].mxu0
  %v704 = vadd.f32 0.0, %v703
  %v705 = vpop.f32.mrb[0].mxu0
  %706 = vmatprep.mubr.bf16.mxu0 0
  %707 = vmatmul.mubr.bf16.gmra.mrb[0].mxu0 %v545
  %v708 = vpop.f32.mrb[0].mxu0
  %v709 = vadd.f32 0.0, %v708
  %v710 = vpop.f32.mrb[0].mxu0
  %v711 = vpop.f32.mrb[0].mxu0
  %v712 = vadd.f32 0.0, %v711
  %v713 = vpop.f32.mrb[0].mxu0
  %714 = vmatprep.mubr.bf16.mxu0 0
  %715 = vmatmul.mubr.bf16.gmra.mrb[0].mxu0 %v546
  %v716 = vpop.f32.mrb[0].mxu0
  %v717 = vadd.f32 0.0, %v716
  %v718 = vpop.f32.mrb[0].mxu0
  %v719 = vpop.f32.mrb[0].mxu0
  %v720 = vadd.f32 0.0, %v719
  %v721 = vpop.f32.mrb[0].mxu0
  %722 = vmatprep.mubr.bf16.mxu0 0
  %723 = vmatmul.mubr.bf16.gmra.mrb[0].mxu0 %v547
  %v724 = vpop.f32.mrb[0].mxu0
  %v725 = vadd.f32 0.0, %v724
  %v726 = vpop.f32.mrb[0].mxu0
  %v727 = vpop.f32.mrb[0].mxu0
  %v728 = vadd.f32 0.0, %v727
  %v729 = vpop.f32.mrb[0].mxu0
  %730 = vmatprep.mubr.bf16.mxu0 0
  %731 = vmatmul.mubr.bf16.gmra.mrb[0].mxu0 %v548
  %v732 = vpop.f32.mrb[0].mxu0
  %v733 = vadd.f32 0.0, %v732
  %v734 = vpop.f32.mrb[0].mxu0
  %v735 = vpop.f32.mrb[0].mxu0
  %v736 = vadd.f32 0.0, %v735
  %v737 = vpop.f32.mrb[0].mxu0
  %738 = vmatprep.mubr.bf16.mxu0 0
  %739 = vmatmul.mubr.bf16.gmra.mrb[0].mxu0 %v549
  %v740 = vpop.f32.mrb[0].mxu0
  %v741 = vadd.f32 0.0, %v740
  %v742 = vpop.f32.mrb[0].mxu0
  %v743 = vpop.f32.mrb[0].mxu0
  %v744 = vadd.f32 0.0, %v743
  %v745 = vpop.f32.mrb[0].mxu0
  %746 = vmatprep.mubr.bf16.mxu0 0
  %747 = vmatmul.mubr.bf16.gmra.mrb[0].mxu0 %v550
  %v748 = vpop.f32.mrb[0].mxu0
  %v749 = vadd.f32 0.0, %v748
  %v750 = vpop.f32.mrb[0].mxu0
  %v751 = vpop.f32.mrb[0].mxu0
  %v752 = vadd.f32 0.0, %v751
  %v753 = vpop.f32.mrb[0].mxu0
  %754 = vmatprep.mubr.bf16.mxu0 0
  %755 = vmatmul.mubr.bf16.gmra.mrb[0].mxu0 %v551
  %v756 = vpop.f32.mrb[0].mxu0
  %v757 = vadd.f32 0.0, %v756
  %v758 = vpop.f32.mrb[0].mxu0
  %v759 = vpop.f32.mrb[0].mxu0
  %v760 = vadd.f32 0.0, %v759
  %v761 = vpop.f32.mrb[0].mxu0
  %762 = vmatprep.mubr.bf16.mxu0 0
  %763 = vmatmul.mubr.bf16.gmra.mrb[0].mxu0 %v552
  %v764 = vpop.f32.mrb[0].mxu0
  %v765 = vadd.f32 0.0, %v764
  %v766 = vpop.f32.mrb[0].mxu0
  %v767 = vpop.f32.mrb[0].mxu0
  %v768 = vadd.f32 0.0, %v767
  %v769 = vpop.f32.mrb[0].mxu0
  %770 = vmatprep.mubr.bf16.mxu0 0
  %771 = vmatmul.mubr.bf16.gmra.mrb[0].mxu0 %v553
  %v772 = vpop.f32.mrb[0].mxu0
  %v773 = vadd.f32 0.0, %v772
  %v774 = vpop.f32.mrb[0].mxu0
  %v775 = vpop.f32.mrb[0].mxu0
  %v776 = vadd.f32 0.0, %v775
  %v777 = vpop.f32.mrb[0].mxu0
  %778 = vdwg.mxu0
  %v779 = vpack.c.bf16 %v656, %v653
  %v780 = vpack.c.bf16 %v664, %v661
  %v781 = vpack.c.bf16 %v672, %v669
  %v782 = vpack.c.bf16 %v680, %v677
  %v783 = vpack.c.bf16 %v688, %v685
  %v784 = vpack.c.bf16 %v696, %v693
  %v785 = vpack.c.bf16 %v704, %v701
  %v786 = vpack.c.bf16 %v712, %v709
  %v787 = vpack.c.bf16 %v720, %v717
  %v788 = vpack.c.bf16 %v728, %v725
  %v789 = vpack.c.bf16 %v736, %v733
  %v790 = vpack.c.bf16 %v744, %v741
  %v791 = vpack.c.bf16 %v752, %v749
  %v792 = vpack.c.bf16 %v760, %v757
  %v793 = vpack.c.bf16 %v768, %v765
  %v794 = vpack.c.bf16 %v776, %v773
  %v811 = vunpack.c.l.b16 %v779
  %v812 = vunpack.c.h.b16 %v779
  %v813 = vunpack.c.l.b16 %v780
  %v814 = vunpack.c.h.b16 %v780
  %v815 = vunpack.c.l.b16 %v781
  %v816 = vunpack.c.h.b16 %v781
  %v817 = vunpack.c.l.b16 %v782
  %v818 = vunpack.c.h.b16 %v782
  %v819 = vunpack.c.l.b16 %v783
  %v820 = vunpack.c.h.b16 %v783
  %v821 = vunpack.c.l.b16 %v784
  %v822 = vunpack.c.h.b16 %v784
  %v823 = vunpack.c.l.b16 %v785
  %v824 = vunpack.c.h.b16 %v785
  %v825 = vunpack.c.l.b16 %v786
  %v826 = vunpack.c.h.b16 %v786
  %v827 = vunpack.c.l.b16 %v787
  %v828 = vunpack.c.h.b16 %v787
  %v829 = vunpack.c.l.b16 %v788
  %v830 = vunpack.c.h.b16 %v788
  %v831 = vunpack.c.l.b16 %v789
  %v832 = vunpack.c.h.b16 %v789
  %v833 = vunpack.c.l.b16 %v790
  %v834 = vunpack.c.h.b16 %v790
  %v835 = vunpack.c.l.b16 %v791
  %v836 = vunpack.c.h.b16 %v791
  %v837 = vunpack.c.l.b16 %v792
  %v838 = vunpack.c.h.b16 %v792
  %v839 = vunpack.c.l.b16 %v793
  %v840 = vunpack.c.h.b16 %v793
  %v841 = vunpack.c.l.b16 %v794
  %v842 = vunpack.c.h.b16 %v794
  %v843 = vpack.c.b16 %v811, %v811
  %v844 = vpack.c.b16 %v812, %v812
  %v845 = vpack.c.b16 %v813, %v813
  %v846 = vpack.c.b16 %v814, %v814
  %v847 = vpack.c.b16 %v815, %v815
  %v848 = vpack.c.b16 %v816, %v816
  %v849 = vpack.c.b16 %v817, %v817
  %v850 = vpack.c.b16 %v818, %v818
  %v851 = vpack.c.b16 %v819, %v819
  %v852 = vpack.c.b16 %v820, %v820
  %v853 = vpack.c.b16 %v821, %v821
  %v854 = vpack.c.b16 %v822, %v822
  %v855 = vpack.c.b16 %v823, %v823
  %v856 = vpack.c.b16 %v824, %v824
  %v857 = vpack.c.b16 %v825, %v825
  %v858 = vpack.c.b16 %v826, %v826
  %v859 = vpack.c.b16 %v827, %v827
  %v860 = vpack.c.b16 %v828, %v828
  %v861 = vpack.c.b16 %v829, %v829
  %v862 = vpack.c.b16 %v830, %v830
  %v863 = vpack.c.b16 %v831, %v831
  %v864 = vpack.c.b16 %v832, %v832
  %v865 = vpack.c.b16 %v833, %v833
  %v866 = vpack.c.b16 %v834, %v834
  %v867 = vpack.c.b16 %v835, %v835
  %v868 = vpack.c.b16 %v836, %v836
  %v869 = vpack.c.b16 %v837, %v837
  %v870 = vpack.c.b16 %v838, %v838
  %v871 = vpack.c.b16 %v839, %v839
  %v872 = vpack.c.b16 %v840, %v840
  %v873 = vpack.c.b16 %v841, %v841
  %v874 = vpack.c.b16 %v842, %v842
  %907 = vst [vmem:[%s4] sm:$0xf] %v843
  %908 = vst [vmem:[%s4 + $0x4] sm:$0xf] %v844
  %909 = vst [vmem:[%s4 + $0x8] sm:$0xf] %v845
  %910 = vst [vmem:[%s4 + $0xc] sm:$0xf] %v846
  %911 = vst [vmem:[%s4 + $0x10] sm:$0xf] %v847
  %912 = vst [vmem:[%s4 + $0x14] sm:$0xf] %v848
  %913 = vst [vmem:[%s4 + $0x18] sm:$0xf] %v849
  %914 = vst [vmem:[%s4 + $0x1c] sm:$0xf] %v850
  %915 = vst [vmem:[%s4 + $0x20] sm:$0xf] %v851
  %916 = vst [vmem:[%s4 + $0x24] sm:$0xf] %v852
  %917 = vst [vmem:[%s4 + $0x28] sm:$0xf] %v853
  %918 = vst [vmem:[%s4 + $0x2c] sm:$0xf] %v854
  %919 = vst [vmem:[%s4 + $0x30] sm:$0xf] %v855
  %920 = vst [vmem:[%s4 + $0x34] sm:$0xf] %v856
  %921 = vst [vmem:[%s4 + $0x38] sm:$0xf] %v857
  %922 = vst [vmem:[%s4 + $0x3c] sm:$0xf] %v858
  %923 = vst [vmem:[%s4 + $0x40] sm:$0xf] %v859
  %924 = vst [vmem:[%s4 + $0x44] sm:$0xf] %v860
  %925 = vst [vmem:[%s4 + $0x48] sm:$0xf] %v861
  %926 = vst [vmem:[%s4 + $0x4c] sm:$0xf] %v862
  %927 = vst [vmem:[%s4 + $0x50] sm:$0xf] %v863
  %928 = vst [vmem:[%s4 + $0x54] sm:$0xf] %v864
  %929 = vst [vmem:[%s4 + $0x58] sm:$0xf] %v865
  %930 = vst [vmem:[%s4 + $0x5c] sm:$0xf] %v866
  %931 = vst [vmem:[%s4 + $0x60] sm:$0xf] %v867
  %932 = vst [vmem:[%s4 + $0x64] sm:$0xf] %v868
  %933 = vst [vmem:[%s4 + $0x68] sm:$0xf] %v869
  %934 = vst [vmem:[%s4 + $0x6c] sm:$0xf] %v870
  %935 = vst [vmem:[%s4 + $0x70] sm:$0xf] %v871
  %936 = vst [vmem:[%s4 + $0x74] sm:$0xf] %v872
  %937 = vst [vmem:[%s4 + $0x78] sm:$0xf] %v873
  %938 = vst [vmem:[%s4 + $0x7c] sm:$0xf] %v874
  // Predicated region
  $region18: #{net_forward.5} parent=0 // pred_check
    _
  $region19: #{net_forward.5} parent=0 // pred_check_branch
    %940 = sbr.rel (0) target = $region21
  $region20: #{net_forward.5} parent=0 // pred_region
    _
  $region21: #{net_forward.5} parent=0 // pred_fallthru
    _
  // Predicated region
  $region22: #{net_forward.5} parent=0 // pred_check
    _
  $region23: #{net_forward.5} parent=0 // pred_check_branch
    %942 = sbr.rel (0) target = $region25
  $region24: #{net_forward.5} parent=0 // pred_region
    _
  $region25: #{net_forward.5} parent=0 // pred_fallthru
    _

// kernel: net_forward.7
$region0: #{net_forward.7}
  #allocation0 [shape = 'u32[]', space=smem, size = 0x4, offset = 0x4, fixed_abs, tag = 'smem constant byte address 0x4 - core index']
  #allocation1 [shape = 'u32[144,128]{1,0:T(1,128)}', space=vmem, size = 0x12000, scoped, tag = 'internal scratch']
  %s0 = inlined_call_operand.vmem [shape: bf16[256,256], index: 0, kind: input, shape index: {}]
  %s1 = inlined_call_operand.vmem [shape: bf16[256,128], index: 1, kind: input, shape index: {}]
  %s2 = inlined_call_operand.vmem [shape: f32[1,128], index: 2, kind: input, shape index: {}]
  %s3 = inlined_call_operand.vmem [shape: bf16[128,128], index: 3, kind: input, shape index: {}]
  %s4 = inlined_call_operand.vmem [shape: f32[1,128], index: 4, kind: input, shape index: {}]
  %s5 = inlined_call_operand.vmem [shape: bf16[128,128], index: 5, kind: input, shape index: {}]
  %s6 = inlined_call_operand.vmem [shape: f32[1,128], index: 6, kind: input, shape index: {}]
  %s7 = inlined_call_operand.vmem [shape: bf16[128,128], index: 7, kind: input, shape index: {}]
  %s8 = inlined_call_operand.vmem [shape: f32[1,128], index: 8, kind: input, shape index: {}]
  %s9 = inlined_call_operand.vmem [shape: f32[256,128], index: 9, kind: output, shape index: {}]
  %s10 = sld [smem:[#allocation0]]
  $region46: #{net_forward.7} parent=0
    _
  %s12 = ssub.s32 1, %s10
  %s13 = scalar_select 0, %s12, %s10
  // Predicated region
  $region2: #{net_forward.7} parent=0 // pred_check
    _
  $region3: #{net_forward.7} parent=0 // pred_check_branch
    %15 = sbr.rel (0) target = $region5
  $region4: #{net_forward.7} parent=0 // pred_region
    _
  $region5: #{net_forward.7} parent=0 // pred_fallthru
    _
  // Predicated region
  $region6: #{net_forward.7} parent=0 // pred_check
    _
  $region7: #{net_forward.7} parent=0 // pred_check_branch
    %17 = sbr.rel (0) target = $region9
  $region8: #{net_forward.7} parent=0 // pred_region
    _
  $region9: #{net_forward.7} parent=0 // pred_fallthru
    _
  // Predicated region
  $region10: #{net_forward.7} parent=0 // pred_check
    _
  $region11: #{net_forward.7} parent=0 // pred_check_branch
    %19 = sbr.rel (0) target = $region13
  $region12: #{net_forward.7} parent=0 // pred_region
    _
  $region13: #{net_forward.7} parent=0 // pred_fallthru
    _
  // Predicated region
  $region14: #{net_forward.7} parent=0 // pred_check
    _
  $region15: #{net_forward.7} parent=0 // pred_check_branch
    %21 = sbr.rel (0) target = $region17
  $region16: #{net_forward.7} parent=0 // pred_region
    _
  $region17: #{net_forward.7} parent=0 // pred_fallthru
    _
  // Predicated region
  $region18: #{net_forward.7} parent=0 // pred_check
    _
  $region19: #{net_forward.7} parent=0 // pred_check_branch
    %23 = sbr.rel (0) target = $region21
  $region20: #{net_forward.7} parent=0 // pred_region
    _
  $region21: #{net_forward.7} parent=0 // pred_fallthru
    _
  // Predicated region
  $region22: #{net_forward.7} parent=0 // pred_check
    _
  $region23: #{net_forward.7} parent=0 // pred_check_branch
    %25 = sbr.rel (0) target = $region25
  $region24: #{net_forward.7} parent=0 // pred_region
    _
  $region25: #{net_forward.7} parent=0 // pred_fallthru
    _
  // Predicated region
  $region26: #{net_forward.7} parent=0 // pred_check
    _
  $region27: #{net_forward.7} parent=0 // pred_check_branch
    %27 = sbr.rel (0) target = $region29
  $region28: #{net_forward.7} parent=0 // pred_region
    _
  $region29: #{net_forward.7} parent=0 // pred_fallthru
    _
  // Predicated region
  $region30: #{net_forward.7} parent=0 // pred_check
    _
  $region31: #{net_forward.7} parent=0 // pred_check_branch
    %29 = sbr.rel (0) target = $region33
  $region32: #{net_forward.7} parent=0 // pred_region
    _
  $region33: #{net_forward.7} parent=0 // pred_fallthru
    _
  // Predicated region
  $region34: #{net_forward.7} parent=0 // pred_check
    _
  $region35: #{net_forward.7} parent=0 // pred_check_branch
    %31 = sbr.rel (0) target = $region37
  $region36: #{net_forward.7} parent=0 // pred_region
    _
  $region37: #{net_forward.7} parent=0 // pred_fallthru
    _
  %v33 = vld [vmem:[%s0] sm:$0xff]
  %v34 = vld [vmem:[%s0 + $0x8] sm:$0xff]
  %v35 = vld [vmem:[%s0 + $0x10] sm:$0xff]
  %v36 = vld [vmem:[%s0 + $0x18] sm:$0xff]
  %v37 = vld [vmem:[%s0 + $0x20] sm:$0xff]
  %v38 = vld [vmem:[%s0 + $0x28] sm:$0xff]
  %v39 = vld [vmem:[%s0 + $0x30] sm:$0xff]
  %v40 = vld [vmem:[%s0 + $0x38] sm:$0xff]
  %v41 = vld [vmem:[%s0 + $0x40] sm:$0xff]
  %v42 = vld [vmem:[%s0 + $0x48] sm:$0xff]
  %v43 = vld [vmem:[%s0 + $0x50] sm:$0xff]
  %v44 = vld [vmem:[%s0 + $0x58] sm:$0xff]
  %v45 = vld [vmem:[%s0 + $0x60] sm:$0xff]
  %v46 = vld [vmem:[%s0 + $0x68] sm:$0xff]
  %v47 = vld [vmem:[%s0 + $0x70] sm:$0xff]
  %v48 = vld [vmem:[%s0 + $0x78] sm:$0xff]
  %v49 = vld [vmem:[%s0 + $0x80] sm:$0xff]
  %v50 = vld [vmem:[%s0 + $0x88] sm:$0xff]
  %v51 = vld [vmem:[%s0 + $0x90] sm:$0xff]
  %v52 = vld [vmem:[%s0 + $0x98] sm:$0xff]
  %v53 = vld [vmem:[%s0 + $0xa0] sm:$0xff]
  %v54 = vld [vmem:[%s0 + $0xa8] sm:$0xff]
  %v55 = vld [vmem:[%s0 + $0xb0] sm:$0xff]
  %v56 = vld [vmem:[%s0 + $0xb8] sm:$0xff]
  %v57 = vld [vmem:[%s0 + $0xc0] sm:$0xff]
  %v58 = vld [vmem:[%s0 + $0xc8] sm:$0xff]
  %v59 = vld [vmem:[%s0 + $0xd0] sm:$0xff]
  %v60 = vld [vmem:[%s0 + $0xd8] sm:$0xff]
  %v61 = vld [vmem:[%s0 + $0xe0] sm:$0xff]
  %v62 = vld [vmem:[%s0 + $0xe8] sm:$0xff]
  %v63 = vld [vmem:[%s0 + $0xf0] sm:$0xff]
  %v64 = vld [vmem:[%s0 + $0xf8] sm:$0xff]
  %v65 = vld [vmem:[%s1] sm:$0xf]
  %v66 = vld [vmem:[%s1 + $0x4] sm:$0xf]
  %v67 = vld [vmem:[%s1 + $0x8] sm:$0xf]
  %v68 = vld [vmem:[%s1 + $0xc] sm:$0xf]
  %v69 = vld [vmem:[%s1 + $0x10] sm:$0xf]
  %v70 = vld [vmem:[%s1 + $0x14] sm:$0xf]
  %v71 = vld [vmem:[%s1 + $0x18] sm:$0xf]
  %v72 = vld [vmem:[%s1 + $0x1c] sm:$0xf]
  %v73 = vld [vmem:[%s1 + $0x20] sm:$0xf]
  %v74 = vld [vmem:[%s1 + $0x24] sm:$0xf]
  %v75 = vld [vmem:[%s1 + $0x28] sm:$0xf]
  %v76 = vld [vmem:[%s1 + $0x2c] sm:$0xf]
  %v77 = vld [vmem:[%s1 + $0x30] sm:$0xf]
  %v78 = vld [vmem:[%s1 + $0x34] sm:$0xf]
  %v79 = vld [vmem:[%s1 + $0x38] sm:$0xf]
  %v80 = vld [vmem:[%s1 + $0x3c] sm:$0xf]
  %v81 = vld [vmem:[%s1 + $0x40] sm:$0xf]
  %v82 = vld [vmem:[%s1 + $0x44] sm:$0xf]
  %v83 = vld [vmem:[%s1 + $0x48] sm:$0xf]
  %v84 = vld [vmem:[%s1 + $0x4c] sm:$0xf]
  %v85 = vld [vmem:[%s1 + $0x50] sm:$0xf]
  %v86 = vld [vmem:[%s1 + $0x54] sm:$0xf]
  %v87 = vld [vmem:[%s1 + $0x58] sm:$0xf]
  %v88 = vld [vmem:[%s1 + $0x5c] sm:$0xf]
  %v89 = vld [vmem:[%s1 + $0x60] sm:$0xf]
  %v90 = vld [vmem:[%s1 + $0x64] sm:$0xf]
  %v91 = vld [vmem:[%s1 + $0x68] sm:$0xf]
  %v92 = vld [vmem:[%s1 + $0x6c] sm:$0xf]
  %v93 = vld [vmem:[%s1 + $0x70] sm:$0xf]
  %v94 = vld [vmem:[%s1 + $0x74] sm:$0xf]
  %v95 = vld [vmem:[%s1 + $0x78] sm:$0xf]
  %v96 = vld [vmem:[%s1 + $0x7c] sm:$0xf]
  %v97 = vld [vmem:[%s2] sm:$0x1]
  %v99 = vlaneseq
  %v100 = vshrl.u32 %v99, 7
  %v101 = vsub.s32 0, %v100
  %v102 = vrot.slane %v97, %v101
  %v136 = vunpack.c.l.b16 %v33
  %v137 = vunpack.c.h.b16 %v33
  %v138 = vunpack.c.l.b16 %v34
  %v139 = vunpack.c.h.b16 %v34
  %v140 = vunpack.c.l.b16 %v35
  %v141 = vunpack.c.h.b16 %v35
  %v142 = vunpack.c.l.b16 %v36
  %v143 = vunpack.c.h.b16 %v36
  %v144 = vunpack.c.l.b16 %v37
  %v145 = vunpack.c.h.b16 %v37
  %v146 = vunpack.c.l.b16 %v38
  %v147 = vunpack.c.h.b16 %v38
  %v148 = vunpack.c.l.b16 %v39
  %v149 = vunpack.c.h.b16 %v39
  %v150 = vunpack.c.l.b16 %v40
  %v151 = vunpack.c.h.b16 %v40
  %v152 = vunpack.c.l.b16 %v41
  %v153 = vunpack.c.h.b16 %v41
  %v154 = vunpack.c.l.b16 %v42
  %v155 = vunpack.c.h.b16 %v42
  %v156 = vunpack.c.l.b16 %v43
  %v157 = vunpack.c.h.b16 %v43
  %v158 = vunpack.c.l.b16 %v44
  %v159 = vunpack.c.h.b16 %v44
  %v160 = vunpack.c.l.b16 %v45
  %v161 = vunpack.c.h.b16 %v45
  %v162 = vunpack.c.l.b16 %v46
  %v163 = vunpack.c.h.b16 %v46
  %v164 = vunpack.c.l.b16 %v47
  %v165 = vunpack.c.h.b16 %v47
  %v166 = vunpack.c.l.b16 %v48
  %v167 = vunpack.c.h.b16 %v48
  %v168 = vunpack.c.l.b16 %v49
  %v169 = vunpack.c.h.b16 %v49
  %v170 = vunpack.c.l.b16 %v50
  %v171 = vunpack.c.h.b16 %v50
  %v172 = vunpack.c.l.b16 %v51
  %v173 = vunpack.c.h.b16 %v51
  %v174 = vunpack.c.l.b16 %v52
  %v175 = vunpack.c.h.b16 %v52
  %v176 = vunpack.c.l.b16 %v53
  %v177 = vunpack.c.h.b16 %v53
  %v178 = vunpack.c.l.b16 %v54
  %v179 = vunpack.c.h.b16 %v54
  %v180 = vunpack.c.l.b16 %v55
  %v181 = vunpack.c.h.b16 %v55
  %v182 = vunpack.c.l.b16 %v56
  %v183 = vunpack.c.h.b16 %v56
  %v184 = vunpack.c.l.b16 %v57
  %v185 = vunpack.c.h.b16 %v57
  %v186 = vunpack.c.l.b16 %v58
  %v187 = vunpack.c.h.b16 %v58
  %v188 = vunpack.c.l.b16 %v59
  %v189 = vunpack.c.h.b16 %v59
  %v190 = vunpack.c.l.b16 %v60
  %v191 = vunpack.c.h.b16 %v60
  %v192 = vunpack.c.l.b16 %v61
  %v193 = vunpack.c.h.b16 %v61
  %v194 = vunpack.c.l.b16 %v62
  %v195 = vunpack.c.h.b16 %v62
  %v196 = vunpack.c.l.b16 %v63
  %v197 = vunpack.c.h.b16 %v63
  %v198 = vunpack.c.l.b16 %v64
  %v199 = vunpack.c.h.b16 %v64
  %v200 = vpack.c.b16 %v138, %v136
  %v201 = vpack.c.b16 %v139, %v137
  %v202 = vpack.c.b16 %v142, %v140
  %v203 = vpack.c.b16 %v143, %v141
  %v204 = vpack.c.b16 %v146, %v144
  %v205 = vpack.c.b16 %v147, %v145
  %v206 = vpack.c.b16 %v150, %v148
  %v207 = vpack.c.b16 %v151, %v149
  %v208 = vpack.c.b16 %v154, %v152
  %v209 = vpack.c.b16 %v155, %v153
  %v210 = vpack.c.b16 %v158, %v156
  %v211 = vpack.c.b16 %v159, %v157
  %v212 = vpack.c.b16 %v162, %v160
  %v213 = vpack.c.b16 %v163, %v161
  %v214 = vpack.c.b16 %v166, %v164
  %v215 = vpack.c.b16 %v167, %v165
  %v216 = vpack.c.b16 %v170, %v168
  %v217 = vpack.c.b16 %v171, %v169
  %v218 = vpack.c.b16 %v174, %v172
  %v219 = vpack.c.b16 %v175, %v173
  %v220 = vpack.c.b16 %v178, %v176
  %v221 = vpack.c.b16 %v179, %v177
  %v222 = vpack.c.b16 %v182, %v180
  %v223 = vpack.c.b16 %v183, %v181
  %v224 = vpack.c.b16 %v186, %v184
  %v225 = vpack.c.b16 %v187, %v185
  %v226 = vpack.c.b16 %v190, %v188
  %v227 = vpack.c.b16 %v191, %v189
  %v228 = vpack.c.b16 %v194, %v192
  %v229 = vpack.c.b16 %v195, %v193
  %v230 = vpack.c.b16 %v198, %v196
  %v231 = vpack.c.b16 %v199, %v197
  %v296 = vunpack.c.l.b16 %v65
  %v297 = vunpack.c.l.b16 %v66
  %v298 = vunpack.c.l.b16 %v67
  %v299 = vunpack.c.l.b16 %v68
  %v300 = vunpack.c.l.b16 %v69
  %v301 = vunpack.c.l.b16 %v70
  %v302 = vunpack.c.l.b16 %v71
  %v303 = vunpack.c.l.b16 %v72
  %v304 = vunpack.c.l.b16 %v73
  %v305 = vunpack.c.l.b16 %v74
  %v306 = vunpack.c.l.b16 %v75
  %v307 = vunpack.c.l.b16 %v76
  %v308 = vunpack.c.l.b16 %v77
  %v309 = vunpack.c.l.b16 %v78
  %v310 = vunpack.c.l.b16 %v79
  %v311 = vunpack.c.l.b16 %v80
  %v312 = vunpack.c.l.b16 %v81
  %v313 = vunpack.c.l.b16 %v82
  %v314 = vunpack.c.l.b16 %v83
  %v315 = vunpack.c.l.b16 %v84
  %v316 = vunpack.c.l.b16 %v85
  %v317 = vunpack.c.l.b16 %v86
  %v318 = vunpack.c.l.b16 %v87
  %v319 = vunpack.c.l.b16 %v88
  %v320 = vunpack.c.l.b16 %v89
  %v321 = vunpack.c.l.b16 %v90
  %v322 = vunpack.c.l.b16 %v91
  %v323 = vunpack.c.l.b16 %v92
  %v324 = vunpack.c.l.b16 %v93
  %v325 = vunpack.c.l.b16 %v94
  %v326 = vunpack.c.l.b16 %v95
  %v327 = vunpack.c.l.b16 %v96
  %v328 = vpack.c.b16 %v297, %v296
  %v329 = vpack.c.b16 %v299, %v298
  %v330 = vpack.c.b16 %v301, %v300
  %v331 = vpack.c.b16 %v303, %v302
  %v332 = vpack.c.b16 %v305, %v304
  %v333 = vpack.c.b16 %v307, %v306
  %v334 = vpack.c.b16 %v309, %v308
  %v335 = vpack.c.b16 %v311, %v310
  %v336 = vpack.c.b16 %v313, %v312
  %v337 = vpack.c.b16 %v315, %v314
  %v338 = vpack.c.b16 %v317, %v316
  %v339 = vpack.c.b16 %v319, %v318
  %v340 = vpack.c.b16 %v321, %v320
  %v341 = vpack.c.b16 %v323, %v322
  %v342 = vpack.c.b16 %v325, %v324
  %v343 = vpack.c.b16 %v327, %v326
  %360 = vmatprep.subr.bf16.mxu0 0
  %361 = vmatpush1.bf16.msra.mxu0 %v328
  %362 = vmatprep.subr.bf16.mxu0 0
  %363 = vmatpush1.bf16.msra.mxu0 %v329
  %364 = vmatprep.subr.bf16.mxu0 0
  %365 = vmatpush1.bf16.msra.mxu0 %v330
  %366 = vmatprep.subr.bf16.mxu0 0
  %367 = vmatpush1.bf16.msra.mxu0 %v331
  %368 = vmatprep.subr.bf16.mxu0 0
  %369 = vmatpush1.bf16.msra.mxu0 %v332
  %370 = vmatprep.subr.bf16.mxu0 0
  %371 = vmatpush1.bf16.msra.mxu0 %v333
  %372 = vmatprep.subr.bf16.mxu0 0
  %373 = vmatpush1.bf16.msra.mxu0 %v334
  %374 = vmatprep.subr.bf16.mxu0 0
  %375 = vmatpush1.bf16.msra.mxu0 %v335
  %376 = vmatprep.subr.bf16.mxu0 0
  %377 = vmatpush1.bf16.msra.mxu0 %v336
  %378 = vmatprep.subr.bf16.mxu0 0
  %379 = vmatpush1.bf16.msra.mxu0 %v337
  %380 = vmatprep.subr.bf16.mxu0 0
  %381 = vmatpush1.bf16.msra.mxu0 %v338
  %382 = vmatprep.subr.bf16.mxu0 0
  %383 = vmatpush1.bf16.msra.mxu0 %v339
  %384 = vmatprep.subr.bf16.mxu0 0
  %385 = vmatpush1.bf16.msra.mxu0 %v340
  %386 = vmatprep.subr.bf16.mxu0 0
  %387 = vmatpush1.bf16.msra.mxu0 %v341
  %388 = vmatprep.subr.bf16.mxu0 0
  %389 = vmatpush1.bf16.msra.mxu0 %v342
  %390 = vmatprep.subr.bf16.mxu0 0
  %391 = vmatpush1.bf16.msra.mxu0 %v343
  %392 = vmatprep.mubr.bf16.mxu0 %v201
  %393 = vmatmul.mubr.bf16.gmra.mrb[0].mxu0 %v200
  %v394 = vpop.f32.mrb[0].mxu0
  %v395 = vadd.f32 %v102, %v394
  %v396 = vpop.f32.mrb[0].mxu0
  %v397 = vpop.f32.mrb[0].mxu0
  %v398 = vadd.f32 %v102, %v397
  %v399 = vpop.f32.mrb[0].mxu0
  %400 = vmatprep.mubr.bf16.mxu0 %v203
  %401 = vmatmul.mubr.bf16.gmra.mrb[0].mxu0 %v202
  %v402 = vpop.f32.mrb[0].mxu0
  %v403 = vadd.f32 %v102, %v402
  %v404 = vpop.f32.mrb[0].mxu0
  %v405 = vpop.f32.mrb[0].mxu0
  %v406 = vadd.f32 %v102, %v405
  %v407 = vpop.f32.mrb[0].mxu0
  %408 = vmatprep.mubr.bf16.mxu0 %v205
  %409 = vmatmul.mubr.bf16.gmra.mrb[0].mxu0 %v204
  %v410 = vpop.f32.mrb[0].mxu0
  %v411 = vadd.f32 %v102, %v410
  %v412 = vpop.f32.mrb[0].mxu0
  %v413 = vpop.f32.mrb[0].mxu0
  %v414 = vadd.f32 %v102, %v413
  %v415 = vpop.f32.mrb[0].mxu0
  %416 = vmatprep.mubr.bf16.mxu0 %v207
  %417 = vmatmul.mubr.bf16.gmra.mrb[0].mxu0 %v206
  %v418 = vpop.f32.mrb[0].mxu0
  %v419 = vadd.f32 %v102, %v418
  %v420 = vpop.f32.mrb[0].mxu0
  %v421 = vpop.f32.mrb[0].mxu0
  %v422 = vadd.f32 %v102, %v421
  %v423 = vpop.f32.mrb[0].mxu0
  %424 = vmatprep.mubr.bf16.mxu0 %v209
  %425 = vmatmul.mubr.bf16.gmra.mrb[0].mxu0 %v208
  %v426 = vpop.f32.mrb[0].mxu0
  %v427 = vadd.f32 %v102, %v426
  %v428 = vpop.f32.mrb[0].mxu0
  %v429 = vpop.f32.mrb[0].mxu0
  %v430 = vadd.f32 %v102, %v429
  %v431 = vpop.f32.mrb[0].mxu0
  %432 = vmatprep.mubr.bf16.mxu0 %v211
  %433 = vmatmul.mubr.bf16.gmra.mrb[0].mxu0 %v210
  %v434 = vpop.f32.mrb[0].mxu0
  %v435 = vadd.f32 %v102, %v434
  %v436 = vpop.f32.mrb[0].mxu0
  %v437 = vpop.f32.mrb[0].mxu0
  %v438 = vadd.f32 %v102, %v437
  %v439 = vpop.f32.mrb[0].mxu0
  %440 = vmatprep.mubr.bf16.mxu0 %v213
  %441 = vmatmul.mubr.bf16.gmra.mrb[0].mxu0 %v212
  %v442 = vpop.f32.mrb[0].mxu0
  %v443 = vadd.f32 %v102, %v442
  %v444 = vpop.f32.mrb[0].mxu0
  %v445 = vpop.f32.mrb[0].mxu0
  %v446 = vadd.f32 %v102, %v445
  %v447 = vpop.f32.mrb[0].mxu0
  %448 = vmatprep.mubr.bf16.mxu0 %v215
  %449 = vmatmul.mubr.bf16.gmra.mrb[0].mxu0 %v214
  %v450 = vpop.f32.mrb[0].mxu0
  %v451 = vadd.f32 %v102, %v450
  %v452 = vpop.f32.mrb[0].mxu0
  %v453 = vpop.f32.mrb[0].mxu0
  %v454 = vadd.f32 %v102, %v453
  %v455 = vpop.f32.mrb[0].mxu0
  %456 = vmatprep.mubr.bf16.mxu0 %v217
  %457 = vmatmul.mubr.bf16.gmra.mrb[0].mxu0 %v216
  %v458 = vpop.f32.mrb[0].mxu0
  %v459 = vadd.f32 %v102, %v458
  %v460 = vpop.f32.mrb[0].mxu0
  %v461 = vpop.f32.mrb[0].mxu0
  %v462 = vadd.f32 %v102, %v461
  %v463 = vpop.f32.mrb[0].mxu0
  %464 = vmatprep.mubr.bf16.mxu0 %v219
  %465 = vmatmul.mubr.bf16.gmra.mrb[0].mxu0 %v218
  %v466 = vpop.f32.mrb[0].mxu0
  %v467 = vadd.f32 %v102, %v466
  %v468 = vpop.f32.mrb[0].mxu0
  %v469 = vpop.f32.mrb[0].mxu0
  %v470 = vadd.f32 %v102, %v469
  %v471 = vpop.f32.mrb[0].mxu0
  %472 = vmatprep.mubr.bf16.mxu0 %v221
  %473 = vmatmul.mubr.bf16.gmra.mrb[0].mxu0 %v220
  %v474 = vpop.f32.mrb[0].mxu0
  %v475 = vadd.f32 %v102, %v474
  %v476 = vpop.f32.mrb[0].mxu0
  %v477 = vpop.f32.mrb[0].mxu0
  %v478 = vadd.f32 %v102, %v477
  %v479 = vpop.f32.mrb[0].mxu0
  %480 = vmatprep.mubr.bf16.mxu0 %v223
  %481 = vmatmul.mubr.bf16.gmra.mrb[0].mxu0 %v222
  %v482 = vpop.f32.mrb[0].mxu0
  %v483 = vadd.f32 %v102, %v482
  %v484 = vpop.f32.mrb[0].mxu0
  %v485 = vpop.f32.mrb[0].mxu0
  %v486 = vadd.f32 %v102, %v485
  %v487 = vpop.f32.mrb[0].mxu0
  %488 = vmatprep.mubr.bf16.mxu0 %v225
  %489 = vmatmul.mubr.bf16.gmra.mrb[0].mxu0 %v224
  %v490 = vpop.f32.mrb[0].mxu0
  %v491 = vadd.f32 %v102, %v490
  %v492 = vpop.f32.mrb[0].mxu0
  %v493 = vpop.f32.mrb[0].mxu0
  %v494 = vadd.f32 %v102, %v493
  %v495 = vpop.f32.mrb[0].mxu0
  %496 = vmatprep.mubr.bf16.mxu0 %v227
  %497 = vmatmul.mubr.bf16.gmra.mrb[0].mxu0 %v226
  %v498 = vpop.f32.mrb[0].mxu0
  %v499 = vadd.f32 %v102, %v498
  %v500 = vpop.f32.mrb[0].mxu0
  %v501 = vpop.f32.mrb[0].mxu0
  %v502 = vadd.f32 %v102, %v501
  %v503 = vpop.f32.mrb[0].mxu0
  %504 = vmatprep.mubr.bf16.mxu0 %v229
  %505 = vmatmul.mubr.bf16.gmra.mrb[0].mxu0 %v228
  %v506 = vpop.f32.mrb[0].mxu0
  %v507 = vadd.f32 %v102, %v506
  %v508 = vpop.f32.mrb[0].mxu0
  %v509 = vpop.f32.mrb[0].mxu0
  %v510 = vadd.f32 %v102, %v509
  %v511 = vpop.f32.mrb[0].mxu0
  %512 = vmatprep.mubr.bf16.mxu0 %v231
  %513 = vmatmul.mubr.bf16.gmra.mrb[0].mxu0 %v230
  %v514 = vpop.f32.mrb[0].mxu0
  %v515 = vadd.f32 %v102, %v514
  %v516 = vpop.f32.mrb[0].mxu0
  %v517 = vpop.f32.mrb[0].mxu0
  %v518 = vadd.f32 %v102, %v517
  %v519 = vpop.f32.mrb[0].mxu0
  %520 = vdwg.mxu0
  %v521 = vmax.f32 %v395, 0.0
  %v522 = vmax.f32 %v398, 0.0
  %v523 = vmax.f32 %v403, 0.0
  %v524 = vmax.f32 %v406, 0.0
  %v525 = vmax.f32 %v411, 0.0
  %v526 = vmax.f32 %v414, 0.0
  %v527 = vmax.f32 %v419, 0.0
  %v528 = vmax.f32 %v422, 0.0
  %v529 = vmax.f32 %v427, 0.0
  %v530 = vmax.f32 %v430, 0.0
  %v531 = vmax.f32 %v435, 0.0
  %v532 = vmax.f32 %v438, 0.0
  %v533 = vmax.f32 %v443, 0.0
  %v534 = vmax.f32 %v446, 0.0
  %v535 = vmax.f32 %v451, 0.0
  %v536 = vmax.f32 %v454, 0.0
  %v537 = vmax.f32 %v459, 0.0
  %v538 = vmax.f32 %v462, 0.0
  %v539 = vmax.f32 %v467, 0.0
  %v540 = vmax.f32 %v470, 0.0
  %v541 = vmax.f32 %v475, 0.0
  %v542 = vmax.f32 %v478, 0.0
  %v543 = vmax.f32 %v483, 0.0
  %v544 = vmax.f32 %v486, 0.0
  %v545 = vmax.f32 %v491, 0.0
  %v546 = vmax.f32 %v494, 0.0
  %v547 = vmax.f32 %v499, 0.0
  %v548 = vmax.f32 %v502, 0.0
  %v549 = vmax.f32 %v507, 0.0
  %v550 = vmax.f32 %v510, 0.0
  %v551 = vmax.f32 %v515, 0.0
  %v552 = vmax.f32 %v518, 0.0
  %v553 = vpack.c.bf16 %v522, %v521
  %v554 = vpack.c.bf16 %v524, %v523
  %v555 = vpack.c.bf16 %v526, %v525
  %v556 = vpack.c.bf16 %v528, %v527
  %v557 = vpack.c.bf16 %v530, %v529
  %v558 = vpack.c.bf16 %v532, %v531
  %v559 = vpack.c.bf16 %v534, %v533
  %v560 = vpack.c.bf16 %v536, %v535
  %v561 = vpack.c.bf16 %v538, %v537
  %v562 = vpack.c.bf16 %v540, %v539
  %v563 = vpack.c.bf16 %v542, %v541
  %v564 = vpack.c.bf16 %v544, %v543
  %v565 = vpack.c.bf16 %v546, %v545
  %v566 = vpack.c.bf16 %v548, %v547
  %v567 = vpack.c.bf16 %v550, %v549
  %v568 = vpack.c.bf16 %v552, %v551
  %v569 = vld [vmem:[%s3] sm:$0xf]
  %v570 = vld [vmem:[%s3 + $0x4] sm:$0xf]
  %v571 = vld [vmem:[%s3 + $0x8] sm:$0xf]
  %v572 = vld [vmem:[%s3 + $0xc] sm:$0xf]
  %v573 = vld [vmem:[%s3 + $0x10] sm:$0xf]
  %v574 = vld [vmem:[%s3 + $0x14] sm:$0xf]
  %v575 = vld [vmem:[%s3 + $0x18] sm:$0xf]
  %v576 = vld [vmem:[%s3 + $0x1c] sm:$0xf]
  %v577 = vld [vmem:[%s3 + $0x20] sm:$0xf]
  %v578 = vld [vmem:[%s3 + $0x24] sm:$0xf]
  %v579 = vld [vmem:[%s3 + $0x28] sm:$0xf]
  %v580 = vld [vmem:[%s3 + $0x2c] sm:$0xf]
  %v581 = vld [vmem:[%s3 + $0x30] sm:$0xf]
  %v582 = vld [vmem:[%s3 + $0x34] sm:$0xf]
  %v583 = vld [vmem:[%s3 + $0x38] sm:$0xf]
  %v584 = vld [vmem:[%s3 + $0x3c] sm:$0xf]
  %v585 = vld [vmem:[%s4] sm:$0x1]
  %v587 = vlaneseq
  %v588 = vshrl.u32 %v587, 7
  %v589 = vsub.s32 0, %v588
  %v590 = vrot.slane %v585, %v589
  %v608 = vunpack.c.l.b16 %v569
  %v609 = vunpack.c.l.b16 %v570
  %v610 = vunpack.c.l.b16 %v571
  %v611 = vunpack.c.l.b16 %v572
  %v612 = vunpack.c.l.b16 %v573
  %v613 = vunpack.c.l.b16 %v574
  %v614 = vunpack.c.l.b16 %v575
  %v615 = vunpack.c.l.b16 %v576
  %v616 = vunpack.c.l.b16 %v577
  %v617 = vunpack.c.l.b16 %v578
  %v618 = vunpack.c.l.b16 %v579
  %v619 = vunpack.c.l.b16 %v580
  %v620 = vunpack.c.l.b16 %v581
  %v621 = vunpack.c.l.b16 %v582
  %v622 = vunpack.c.l.b16 %v583
  %v623 = vunpack.c.l.b16 %v584
  %v624 = vpack.c.b16 %v609, %v608
  %v625 = vpack.c.b16 %v611, %v610
  %v626 = vpack.c.b16 %v613, %v612
  %v627 = vpack.c.b16 %v615, %v614
  %v628 = vpack.c.b16 %v617, %v616
  %v629 = vpack.c.b16 %v619, %v618
  %v630 = vpack.c.b16 %v621, %v620
  %v631 = vpack.c.b16 %v623, %v622
  %640 = vmatprep.subr.bf16.mxu0 0
  %641 = vmatpush1.bf16.msra.mxu0 %v624
  %642 = vmatprep.subr.bf16.mxu0 0
  %643 = vmatpush1.bf16.msra.mxu0 %v625
  %644 = vmatprep.subr.bf16.mxu0 0
  %645 = vmatpush1.bf16.msra.mxu0 %v626
  %646 = vmatprep.subr.bf16.mxu0 0
  %647 = vmatpush1.bf16.msra.mxu0 %v627
  %648 = vmatprep.subr.bf16.mxu0 0
  %649 = vmatpush1.bf16.msra.mxu0 %v628
  %650 = vmatprep.subr.bf16.mxu0 0
  %651 = vmatpush1.bf16.msra.mxu0 %v629
  %652 = vmatprep.subr.bf16.mxu0 0
  %653 = vmatpush1.bf16.msra.mxu0 %v630
  %654 = vmatprep.subr.bf16.mxu0 0
  %655 = vmatpush1.bf16.msra.mxu0 %v631
  %656 = vmatprep.subr.bf16.mxu0 0
  %657 = vmatpush1.bf16.msra.mxu0 0
  %658 = vmatprep.subr.bf16.mxu0 0
  %659 = vmatpush1.bf16.msra.mxu0 0
  %660 = vmatprep.subr.bf16.mxu0 0
  %661 = vmatpush1.bf16.msra.mxu0 0
  %662 = vmatprep.subr.bf16.mxu0 0
  %663 = vmatpush1.bf16.msra.mxu0 0
  %664 = vmatprep.subr.bf16.mxu0 0
  %665 = vmatpush1.bf16.msra.mxu0 0
  %666 = vmatprep.subr.bf16.mxu0 0
  %667 = vmatpush1.bf16.msra.mxu0 0
  %668 = vmatprep.subr.bf16.mxu0 0
  %669 = vmatpush1.bf16.msra.mxu0 0
  %670 = vmatprep.subr.bf16.mxu0 0
  %671 = vmatpush1.bf16.msra.mxu0 0
  %672 = vmatprep.mubr.bf16.mxu0 0
  %673 = vmatmul.mubr.bf16.gmra.mrb[0].mxu0 %v553
  %v674 = vpop.f32.mrb[0].mxu0
  %v675 = vadd.f32 %v590, %v674
  %v676 = vpop.f32.mrb[0].mxu0
  %v677 = vpop.f32.mrb[0].mxu0
  %v678 = vadd.f32 %v590, %v677
  %v679 = vpop.f32.mrb[0].mxu0
  %680 = vmatprep.mubr.bf16.mxu0 0
  %681 = vmatmul.mubr.bf16.gmra.mrb[0].mxu0 %v554
  %v682 = vpop.f32.mrb[0].mxu0
  %v683 = vadd.f32 %v590, %v682
  %v684 = vpop.f32.mrb[0].mxu0
  %v685 = vpop.f32.mrb[0].mxu0
  %v686 = vadd.f32 %v590, %v685
  %v687 = vpop.f32.mrb[0].mxu0
  %688 = vmatprep.mubr.bf16.mxu0 0
  %689 = vmatmul.mubr.bf16.gmra.mrb[0].mxu0 %v555
  %v690 = vpop.f32.mrb[0].mxu0
  %v691 = vadd.f32 %v590, %v690
  %v692 = vpop.f32.mrb[0].mxu0
  %v693 = vpop.f32.mrb[0].mxu0
  %v694 = vadd.f32 %v590, %v693
  %v695 = vpop.f32.mrb[0].mxu0
  %696 = vmatprep.mubr.bf16.mxu0 0
  %697 = vmatmul.mubr.bf16.gmra.mrb[0].mxu0 %v556
  %v698 = vpop.f32.mrb[0].mxu0
  %v699 = vadd.f32 %v590, %v698
  %v700 = vpop.f32.mrb[0].mxu0
  %v701 = vpop.f32.mrb[0].mxu0
  %v702 = vadd.f32 %v590, %v701
  %v703 = vpop.f32.mrb[0].mxu0
  %704 = vmatprep.mubr.bf16.mxu0 0
  %705 = vmatmul.mubr.bf16.gmra.mrb[0].mxu0 %v557
  %v706 = vpop.f32.mrb[0].mxu0
  %v707 = vadd.f32 %v590, %v706
  %v708 = vpop.f32.mrb[0].mxu0
  %v709 = vpop.f32.mrb[0].mxu0
  %v710 = vadd.f32 %v590, %v709
  %v711 = vpop.f32.mrb[0].mxu0
  %712 = vmatprep.mubr.bf16.mxu0 0
  %713 = vmatmul.mubr.bf16.gmra.mrb[0].mxu0 %v558
  %v714 = vpop.f32.mrb[0].mxu0
  %v715 = vadd.f32 %v590, %v714
  %v716 = vpop.f32.mrb[0].mxu0
  %v717 = vpop.f32.mrb[0].mxu0
  %v718 = vadd.f32 %v590, %v717
  %v719 = vpop.f32.mrb[0].mxu0
  %720 = vmatprep.mubr.bf16.mxu0 0
  %721 = vmatmul.mubr.bf16.gmra.mrb[0].mxu0 %v559
  %v722 = vpop.f32.mrb[0].mxu0
  %v723 = vadd.f32 %v590, %v722
  %v724 = vpop.f32.mrb[0].mxu0
  %v725 = vpop.f32.mrb[0].mxu0
  %v726 = vadd.f32 %v590, %v725
  %v727 = vpop.f32.mrb[0].mxu0
  %728 = vmatprep.mubr.bf16.mxu0 0
  %729 = vmatmul.mubr.bf16.gmra.mrb[0].mxu0 %v560
  %v730 = vpop.f32.mrb[0].mxu0
  %v731 = vadd.f32 %v590, %v730
  %v732 = vpop.f32.mrb[0].mxu0
  %v733 = vpop.f32.mrb[0].mxu0
  %v734 = vadd.f32 %v590, %v733
  %v735 = vpop.f32.mrb[0].mxu0
  %736 = vmatprep.mubr.bf16.mxu0 0
  %737 = vmatmul.mubr.bf16.gmra.mrb[0].mxu0 %v561
  %v738 = vpop.f32.mrb[0].mxu0
  %v739 = vadd.f32 %v590, %v738
  %v740 = vpop.f32.mrb[0].mxu0
  %v741 = vpop.f32.mrb[0].mxu0
  %v742 = vadd.f32 %v590, %v741
  %v743 = vpop.f32.mrb[0].mxu0
  %744 = vmatprep.mubr.bf16.mxu0 0
  %745 = vmatmul.mubr.bf16.gmra.mrb[0].mxu0 %v562
  %v746 = vpop.f32.mrb[0].mxu0
  %v747 = vadd.f32 %v590, %v746
  %v748 = vpop.f32.mrb[0].mxu0
  %v749 = vpop.f32.mrb[0].mxu0
  %v750 = vadd.f32 %v590, %v749
  %v751 = vpop.f32.mrb[0].mxu0
  %752 = vmatprep.mubr.bf16.mxu0 0
  %753 = vmatmul.mubr.bf16.gmra.mrb[0].mxu0 %v563
  %v754 = vpop.f32.mrb[0].mxu0
  %v755 = vadd.f32 %v590, %v754
  %v756 = vpop.f32.mrb[0].mxu0
  %v757 = vpop.f32.mrb[0].mxu0
  %v758 = vadd.f32 %v590, %v757
  %v759 = vpop.f32.mrb[0].mxu0
  %760 = vmatprep.mubr.bf16.mxu0 0
  %761 = vmatmul.mubr.bf16.gmra.mrb[0].mxu0 %v564
  %v762 = vpop.f32.mrb[0].mxu0
  %v763 = vadd.f32 %v590, %v762
  %v764 = vpop.f32.mrb[0].mxu0
  %v765 = vpop.f32.mrb[0].mxu0
  %v766 = vadd.f32 %v590, %v765
  %v767 = vpop.f32.mrb[0].mxu0
  %768 = vmatprep.mubr.bf16.mxu0 0
  %769 = vmatmul.mubr.bf16.gmra.mrb[0].mxu0 %v565
  %v770 = vpop.f32.mrb[0].mxu0
  %v771 = vadd.f32 %v590, %v770
  %v772 = vpop.f32.mrb[0].mxu0
  %v773 = vpop.f32.mrb[0].mxu0
  %v774 = vadd.f32 %v590, %v773
  %v775 = vpop.f32.mrb[0].mxu0
  %776 = vmatprep.mubr.bf16.mxu0 0
  %777 = vmatmul.mubr.bf16.gmra.mrb[0].mxu0 %v566
  %v778 = vpop.f32.mrb[0].mxu0
  %v779 = vadd.f32 %v590, %v778
  %v780 = vpop.f32.mrb[0].mxu0
  %v781 = vpop.f32.mrb[0].mxu0
  %v782 = vadd.f32 %v590, %v781
  %v783 = vpop.f32.mrb[0].mxu0
  %784 = vmatprep.mubr.bf16.mxu0 0
  %785 = vmatmul.mubr.bf16.gmra.mrb[0].mxu0 %v567
  %v786 = vpop.f32.mrb[0].mxu0
  %v787 = vadd.f32 %v590, %v786
  %v788 = vpop.f32.mrb[0].mxu0
  %v789 = vpop.f32.mrb[0].mxu0
  %v790 = vadd.f32 %v590, %v789
  %v791 = vpop.f32.mrb[0].mxu0
  %792 = vmatprep.mubr.bf16.mxu0 0
  %793 = vmatmul.mubr.bf16.gmra.mrb[0].mxu0 %v568
  %v794 = vpop.f32.mrb[0].mxu0
  %v795 = vadd.f32 %v590, %v794
  %v796 = vpop.f32.mrb[0].mxu0
  %v797 = vpop.f32.mrb[0].mxu0
  %v798 = vadd.f32 %v590, %v797
  %v799 = vpop.f32.mrb[0].mxu0
  %800 = vdwg.mxu0
  %v801 = vmax.f32 %v675, 0.0
  %v802 = vmax.f32 %v678, 0.0
  %v803 = vmax.f32 %v683, 0.0
  %v804 = vmax.f32 %v686, 0.0
  %v805 = vmax.f32 %v691, 0.0
  %v806 = vmax.f32 %v694, 0.0
  %v807 = vmax.f32 %v699, 0.0
  %v808 = vmax.f32 %v702, 0.0
  %v809 = vmax.f32 %v707, 0.0
  %v810 = vmax.f32 %v710, 0.0
  %v811 = vmax.f32 %v715, 0.0
  %v812 = vmax.f32 %v718, 0.0
  %v813 = vmax.f32 %v723, 0.0
  %v814 = vmax.f32 %v726, 0.0
  %v815 = vmax.f32 %v731, 0.0
  %v816 = vmax.f32 %v734, 0.0
  %v817 = vmax.f32 %v739, 0.0
  %v818 = vmax.f32 %v742, 0.0
  %v819 = vmax.f32 %v747, 0.0
  %v820 = vmax.f32 %v750, 0.0
  %v821 = vmax.f32 %v755, 0.0
  %v822 = vmax.f32 %v758, 0.0
  %v823 = vmax.f32 %v763, 0.0
  %v824 = vmax.f32 %v766, 0.0
  %v825 = vmax.f32 %v771, 0.0
  %v826 = vmax.f32 %v774, 0.0
  %v827 = vmax.f32 %v779, 0.0
  %v828 = vmax.f32 %v782, 0.0
  %v829 = vmax.f32 %v787, 0.0
  %v830 = vmax.f32 %v790, 0.0
  %v831 = vmax.f32 %v795, 0.0
  %v832 = vmax.f32 %v798, 0.0
  %v833 = vpack.c.bf16 %v802, %v801
  %v834 = vpack.c.bf16 %v804, %v803
  %v835 = vpack.c.bf16 %v806, %v805
  %v836 = vpack.c.bf16 %v808, %v807
  %v837 = vpack.c.bf16 %v810, %v809
  %v838 = vpack.c.bf16 %v812, %v811
  %v839 = vpack.c.bf16 %v814, %v813
  %v840 = vpack.c.bf16 %v816, %v815
  %v841 = vpack.c.bf16 %v818, %v817
  %v842 = vpack.c.bf16 %v820, %v819
  %v843 = vpack.c.bf16 %v822, %v821
  %v844 = vpack.c.bf16 %v824, %v823
  %v845 = vpack.c.bf16 %v826, %v825
  %v846 = vpack.c.bf16 %v828, %v827
  %v847 = vpack.c.bf16 %v830, %v829
  %v848 = vpack.c.bf16 %v832, %v831
  %v849 = vld [vmem:[%s5] sm:$0xf]
  %v850 = vld [vmem:[%s5 + $0x4] sm:$0xf]
  %v851 = vld [vmem:[%s5 + $0x8] sm:$0xf]
  %v852 = vld [vmem:[%s5 + $0xc] sm:$0xf]
  %v853 = vld [vmem:[%s5 + $0x10] sm:$0xf]
  %v854 = vld [vmem:[%s5 + $0x14] sm:$0xf]
  %v855 = vld [vmem:[%s5 + $0x18] sm:$0xf]
  %v856 = vld [vmem:[%s5 + $0x1c] sm:$0xf]
  %v857 = vld [vmem:[%s5 + $0x20] sm:$0xf]
  %v858 = vld [vmem:[%s5 + $0x24] sm:$0xf]
  %v859 = vld [vmem:[%s5 + $0x28] sm:$0xf]
  %v860 = vld [vmem:[%s5 + $0x2c] sm:$0xf]
  %v861 = vld [vmem:[%s5 + $0x30] sm:$0xf]
  %v862 = vld [vmem:[%s5 + $0x34] sm:$0xf]
  %v863 = vld [vmem:[%s5 + $0x38] sm:$0xf]
  %v864 = vld [vmem:[%s5 + $0x3c] sm:$0xf]
  %v865 = vld [vmem:[%s6] sm:$0x1]
  %v867 = vlaneseq
  %v868 = vshrl.u32 %v867, 7
  %v869 = vsub.s32 0, %v868
  %v870 = vrot.slane %v865, %v869
  %v888 = vunpack.c.l.b16 %v849
  %v889 = vunpack.c.l.b16 %v850
  %v890 = vunpack.c.l.b16 %v851
  %v891 = vunpack.c.l.b16 %v852
  %v892 = vunpack.c.l.b16 %v853
  %v893 = vunpack.c.l.b16 %v854
  %v894 = vunpack.c.l.b16 %v855
  %v895 = vunpack.c.l.b16 %v856
  %v896 = vunpack.c.l.b16 %v857
  %v897 = vunpack.c.l.b16 %v858
  %v898 = vunpack.c.l.b16 %v859
  %v899 = vunpack.c.l.b16 %v860
  %v900 = vunpack.c.l.b16 %v861
  %v901 = vunpack.c.l.b16 %v862
  %v902 = vunpack.c.l.b16 %v863
  %v903 = vunpack.c.l.b16 %v864
  %v904 = vpack.c.b16 %v889, %v888
  %v905 = vpack.c.b16 %v891, %v890
  %v906 = vpack.c.b16 %v893, %v892
  %v907 = vpack.c.b16 %v895, %v894
  %v908 = vpack.c.b16 %v897, %v896
  %v909 = vpack.c.b16 %v899, %v898
  %v910 = vpack.c.b16 %v901, %v900
  %v911 = vpack.c.b16 %v903, %v902
  %920 = vmatprep.subr.bf16.mxu0 0
  %921 = vmatpush1.bf16.msra.mxu0 %v904
  %922 = vmatprep.subr.bf16.mxu0 0
  %923 = vmatpush1.bf16.msra.mxu0 %v905
  %924 = vmatprep.subr.bf16.mxu0 0
  %925 = vmatpush1.bf16.msra.mxu0 %v906
  %926 = vmatprep.subr.bf16.mxu0 0
  %927 = vmatpush1.bf16.msra.mxu0 %v907
  %928 = vmatprep.subr.bf16.mxu0 0
  %929 = vmatpush1.bf16.msra.mxu0 %v908
  %930 = vmatprep.subr.bf16.mxu0 0
  %931 = vmatpush1.bf16.msra.mxu0 %v909
  %932 = vmatprep.subr.bf16.mxu0 0
  %933 = vmatpush1.bf16.msra.mxu0 %v910
  %934 = vmatprep.subr.bf16.mxu0 0
  %935 = vmatpush1.bf16.msra.mxu0 %v911
  %936 = vmatprep.subr.bf16.mxu0 0
  %937 = vmatpush1.bf16.msra.mxu0 0
  %938 = vmatprep.subr.bf16.mxu0 0
  %939 = vmatpush1.bf16.msra.mxu0 0
  %940 = vmatprep.subr.bf16.mxu0 0
  %941 = vmatpush1.bf16.msra.mxu0 0
  %942 = vmatprep.subr.bf16.mxu0 0
  %943 = vmatpush1.bf16.msra.mxu0 0
  %944 = vmatprep.subr.bf16.mxu0 0
  %945 = vmatpush1.bf16.msra.mxu0 0
  %946 = vmatprep.subr.bf16.mxu0 0
  %947 = vmatpush1.bf16.msra.mxu0 0
  %948 = vmatprep.subr.bf16.mxu0 0
  %949 = vmatpush1.bf16.msra.mxu0 0
  %950 = vmatprep.subr.bf16.mxu0 0
  %951 = vmatpush1.bf16.msra.mxu0 0
  %952 = vmatprep.mubr.bf16.mxu0 0
  %953 = vmatmul.mubr.bf16.gmra.mrb[0].mxu0 %v833
  %v954 = vpop.f32.mrb[0].mxu0
  %v955 = vadd.f32 %v870, %v954
  %v956 = vpop.f32.mrb[0].mxu0
  %v957 = vpop.f32.mrb[0].mxu0
  %v958 = vadd.f32 %v870, %v957
  %v959 = vpop.f32.mrb[0].mxu0
  %960 = vmatprep.mubr.bf16.mxu0 0
  %961 = vmatmul.mubr.bf16.gmra.mrb[0].mxu0 %v834
  %v962 = vpop.f32.mrb[0].mxu0
  %v963 = vadd.f32 %v870, %v962
  %v964 = vpop.f32.mrb[0].mxu0
  %v965 = vpop.f32.mrb[0].mxu0
  %v966 = vadd.f32 %v870, %v965
  %v967 = vpop.f32.mrb[0].mxu0
  %968 = vmatprep.mubr.bf16.mxu0 0
  %969 = vmatmul.mubr.bf16.gmra.mrb[0].mxu0 %v835
  %v970 = vpop.f32.mrb[0].mxu0
  %v971 = vadd.f32 %v870, %v970
  %v972 = vpop.f32.mrb[0].mxu0
  %v973 = vpop.f32.mrb[0].mxu0
  %v974 = vadd.f32 %v870, %v973
  %v975 = vpop.f32.mrb[0].mxu0
  %976 = vmatprep.mubr.bf16.mxu0 0
  %977 = vmatmul.mubr.bf16.gmra.mrb[0].mxu0 %v836
  %v978 = vpop.f32.mrb[0].mxu0
  %v979 = vadd.f32 %v870, %v978
  %v980 = vpop.f32.mrb[0].mxu0
  %v981 = vpop.f32.mrb[0].mxu0
  %v982 = vadd.f32 %v870, %v981
  %v983 = vpop.f32.mrb[0].mxu0
  %984 = vmatprep.mubr.bf16.mxu0 0
  %985 = vmatmul.mubr.bf16.gmra.mrb[0].mxu0 %v837
  %v986 = vpop.f32.mrb[0].mxu0
  %v987 = vadd.f32 %v870, %v986
  %v988 = vpop.f32.mrb[0].mxu0
  %v989 = vpop.f32.mrb[0].mxu0
  %v990 = vadd.f32 %v870, %v989
  %v991 = vpop.f32.mrb[0].mxu0
  %992 = vmatprep.mubr.bf16.mxu0 0
  %993 = vmatmul.mubr.bf16.gmra.mrb[0].mxu0 %v838
  %v994 = vpop.f32.mrb[0].mxu0
  %v995 = vadd.f32 %v870, %v994
  %v996 = vpop.f32.mrb[0].mxu0
  %v997 = vpop.f32.mrb[0].mxu0
  %v998 = vadd.f32 %v870, %v997
  %v999 = vpop.f32.mrb[0].mxu0
  %1000 = vmatprep.mubr.bf16.mxu0 0
  %1001 = vmatmul.mubr.bf16.gmra.mrb[0].mxu0 %v839
  %v1002 = vpop.f32.mrb[0].mxu0
  %v1003 = vadd.f32 %v870, %v1002
  %v1004 = vpop.f32.mrb[0].mxu0
  %v1005 = vpop.f32.mrb[0].mxu0
  %v1006 = vadd.f32 %v870, %v1005
  %v1007 = vpop.f32.mrb[0].mxu0
  %1008 = vmatprep.mubr.bf16.mxu0 0
  %1009 = vmatmul.mubr.bf16.gmra.mrb[0].mxu0 %v840
  %v1010 = vpop.f32.mrb[0].mxu0
  %v1011 = vadd.f32 %v870, %v1010
  %v1012 = vpop.f32.mrb[0].mxu0
  %v1013 = vpop.f32.mrb[0].mxu0
  %v1014 = vadd.f32 %v870, %v1013
  %v1015 = vpop.f32.mrb[0].mxu0
  %1016 = vmatprep.mubr.bf16.mxu0 0
  %1017 = vmatmul.mubr.bf16.gmra.mrb[0].mxu0 %v841
  %v1018 = vpop.f32.mrb[0].mxu0
  %v1019 = vadd.f32 %v870, %v1018
  %v1020 = vpop.f32.mrb[0].mxu0
  %v1021 = vpop.f32.mrb[0].mxu0
  %v1022 = vadd.f32 %v870, %v1021
  %v1023 = vpop.f32.mrb[0].mxu0
  %1024 = vmatprep.mubr.bf16.mxu0 0
  %1025 = vmatmul.mubr.bf16.gmra.mrb[0].mxu0 %v842
  %v1026 = vpop.f32.mrb[0].mxu0
  %v1027 = vadd.f32 %v870, %v1026
  %v1028 = vpop.f32.mrb[0].mxu0
  %v1029 = vpop.f32.mrb[0].mxu0
  %v1030 = vadd.f32 %v870, %v1029
  %v1031 = vpop.f32.mrb[0].mxu0
  %1032 = vmatprep.mubr.bf16.mxu0 0
  %1033 = vmatmul.mubr.bf16.gmra.mrb[0].mxu0 %v843
  %v1034 = vpop.f32.mrb[0].mxu0
  %v1035 = vadd.f32 %v870, %v1034
  %v1036 = vpop.f32.mrb[0].mxu0
  %v1037 = vpop.f32.mrb[0].mxu0
  %v1038 = vadd.f32 %v870, %v1037
  %v1039 = vpop.f32.mrb[0].mxu0
  %1040 = vmatprep.mubr.bf16.mxu0 0
  %1041 = vmatmul.mubr.bf16.gmra.mrb[0].mxu0 %v844
  %v1042 = vpop.f32.mrb[0].mxu0
  %v1043 = vadd.f32 %v870, %v1042
  %v1044 = vpop.f32.mrb[0].mxu0
  %v1045 = vpop.f32.mrb[0].mxu0
  %v1046 = vadd.f32 %v870, %v1045
  %v1047 = vpop.f32.mrb[0].mxu0
  %1048 = vmatprep.mubr.bf16.mxu0 0
  %1049 = vmatmul.mubr.bf16.gmra.mrb[0].mxu0 %v845
  %v1050 = vpop.f32.mrb[0].mxu0
  %v1051 = vadd.f32 %v870, %v1050
  %v1052 = vpop.f32.mrb[0].mxu0
  %v1053 = vpop.f32.mrb[0].mxu0
  %v1054 = vadd.f32 %v870, %v1053
  %v1055 = vpop.f32.mrb[0].mxu0
  %1056 = vmatprep.mubr.bf16.mxu0 0
  %1057 = vmatmul.mubr.bf16.gmra.mrb[0].mxu0 %v846
  %v1058 = vpop.f32.mrb[0].mxu0
  %v1059 = vadd.f32 %v870, %v1058
  %v1060 = vpop.f32.mrb[0].mxu0
  %v1061 = vpop.f32.mrb[0].mxu0
  %v1062 = vadd.f32 %v870, %v1061
  %v1063 = vpop.f32.mrb[0].mxu0
  %1064 = vmatprep.mubr.bf16.mxu0 0
  %1065 = vmatmul.mubr.bf16.gmra.mrb[0].mxu0 %v847
  %v1066 = vpop.f32.mrb[0].mxu0
  %v1067 = vadd.f32 %v870, %v1066
  %v1068 = vpop.f32.mrb[0].mxu0
  %v1069 = vpop.f32.mrb[0].mxu0
  %v1070 = vadd.f32 %v870, %v1069
  %v1071 = vpop.f32.mrb[0].mxu0
  %1072 = vmatprep.mubr.bf16.mxu0 0
  %1073 = vmatmul.mubr.bf16.gmra.mrb[0].mxu0 %v848
  %v1074 = vpop.f32.mrb[0].mxu0
  %v1075 = vadd.f32 %v870, %v1074
  %v1076 = vpop.f32.mrb[0].mxu0
  %v1077 = vpop.f32.mrb[0].mxu0
  %v1078 = vadd.f32 %v870, %v1077
  %v1079 = vpop.f32.mrb[0].mxu0
  %1080 = vdwg.mxu0
  %v1081 = vmax.f32 %v955, 0.0
  %v1082 = vmax.f32 %v958, 0.0
  %v1083 = vmax.f32 %v963, 0.0
  %v1084 = vmax.f32 %v966, 0.0
  %v1085 = vmax.f32 %v971, 0.0
  %v1086 = vmax.f32 %v974, 0.0
  %v1087 = vmax.f32 %v979, 0.0
  %v1088 = vmax.f32 %v982, 0.0
  %v1089 = vmax.f32 %v987, 0.0
  %v1090 = vmax.f32 %v990, 0.0
  %v1091 = vmax.f32 %v995, 0.0
  %v1092 = vmax.f32 %v998, 0.0
  %v1093 = vmax.f32 %v1003, 0.0
  %v1094 = vmax.f32 %v1006, 0.0
  %v1095 = vmax.f32 %v1011, 0.0
  %v1096 = vmax.f32 %v1014, 0.0
  %v1097 = vmax.f32 %v1019, 0.0
  %v1098 = vmax.f32 %v1022, 0.0
  %v1099 = vmax.f32 %v1027, 0.0
  %v1100 = vmax.f32 %v1030, 0.0
  %v1101 = vmax.f32 %v1035, 0.0
  %v1102 = vmax.f32 %v1038, 0.0
  %v1103 = vmax.f32 %v1043, 0.0
  %v1104 = vmax.f32 %v1046, 0.0
  %v1105 = vmax.f32 %v1051, 0.0
  %v1106 = vmax.f32 %v1054, 0.0
  %v1107 = vmax.f32 %v1059, 0.0
  %v1108 = vmax.f32 %v1062, 0.0
  %v1109 = vmax.f32 %v1067, 0.0
  %v1110 = vmax.f32 %v1070, 0.0
  %v1111 = vmax.f32 %v1075, 0.0
  %v1112 = vmax.f32 %v1078, 0.0
  %v1113 = vpack.c.bf16 %v1082, %v1081
  %v1114 = vpack.c.bf16 %v1084, %v1083
  %v1115 = vpack.c.bf16 %v1086, %v1085
  %v1116 = vpack.c.bf16 %v1088, %v1087
  %v1117 = vpack.c.bf16 %v1090, %v1089
  %v1118 = vpack.c.bf16 %v1092, %v1091
  %v1119 = vpack.c.bf16 %v1094, %v1093
  %v1120 = vpack.c.bf16 %v1096, %v1095
  %v1121 = vpack.c.bf16 %v1098, %v1097
  %v1122 = vpack.c.bf16 %v1100, %v1099
  %v1123 = vpack.c.bf16 %v1102, %v1101
  %v1124 = vpack.c.bf16 %v1104, %v1103
  %v1125 = vpack.c.bf16 %v1106, %v1105
  %v1126 = vpack.c.bf16 %v1108, %v1107
  %v1127 = vpack.c.bf16 %v1110, %v1109
  %v1128 = vpack.c.bf16 %v1112, %v1111
  %v1129 = vld [vmem:[%s7] sm:$0xf]
  %v1130 = vld [vmem:[%s7 + $0x4] sm:$0xf]
  %v1131 = vld [vmem:[%s7 + $0x8] sm:$0xf]
  %v1132 = vld [vmem:[%s7 + $0xc] sm:$0xf]
  %v1133 = vld [vmem:[%s7 + $0x10] sm:$0xf]
  %v1134 = vld [vmem:[%s7 + $0x14] sm:$0xf]
  %v1135 = vld [vmem:[%s7 + $0x18] sm:$0xf]
  %v1136 = vld [vmem:[%s7 + $0x1c] sm:$0xf]
  %v1137 = vld [vmem:[%s7 + $0x20] sm:$0xf]
  %v1138 = vld [vmem:[%s7 + $0x24] sm:$0xf]
  %v1139 = vld [vmem:[%s7 + $0x28] sm:$0xf]
  %v1140 = vld [vmem:[%s7 + $0x2c] sm:$0xf]
  %v1141 = vld [vmem:[%s7 + $0x30] sm:$0xf]
  %v1142 = vld [vmem:[%s7 + $0x34] sm:$0xf]
  %v1143 = vld [vmem:[%s7 + $0x38] sm:$0xf]
  %v1144 = vld [vmem:[%s7 + $0x3c] sm:$0xf]
  %v1145 = vld [vmem:[%s8] sm:$0x1]
  %v1147 = vlaneseq
  %v1148 = vshrl.u32 %v1147, 7
  %v1149 = vsub.s32 0, %v1148
  %v1150 = vrot.slane %v1145, %v1149
  %v1168 = vunpack.c.l.b16 %v1129
  %v1169 = vunpack.c.l.b16 %v1130
  %v1170 = vunpack.c.l.b16 %v1131
  %v1171 = vunpack.c.l.b16 %v1132
  %v1172 = vunpack.c.l.b16 %v1133
  %v1173 = vunpack.c.l.b16 %v1134
  %v1174 = vunpack.c.l.b16 %v1135
  %v1175 = vunpack.c.l.b16 %v1136
  %v1176 = vunpack.c.l.b16 %v1137
  %v1177 = vunpack.c.l.b16 %v1138
  %v1178 = vunpack.c.l.b16 %v1139
  %v1179 = vunpack.c.l.b16 %v1140
  %v1180 = vunpack.c.l.b16 %v1141
  %v1181 = vunpack.c.l.b16 %v1142
  %v1182 = vunpack.c.l.b16 %v1143
  %v1183 = vunpack.c.l.b16 %v1144
  %v1184 = vpack.c.b16 %v1169, %v1168
  %v1185 = vpack.c.b16 %v1171, %v1170
  %v1186 = vpack.c.b16 %v1173, %v1172
  %v1187 = vpack.c.b16 %v1175, %v1174
  %v1188 = vpack.c.b16 %v1177, %v1176
  %v1189 = vpack.c.b16 %v1179, %v1178
  %v1190 = vpack.c.b16 %v1181, %v1180
  %v1191 = vpack.c.b16 %v1183, %v1182
  %1200 = vmatprep.subr.bf16.mxu0 0
  %1201 = vmatpush1.bf16.msra.mxu0 %v1184
  %1202 = vmatprep.subr.bf16.mxu0 0
  %1203 = vmatpush1.bf16.msra.mxu0 %v1185
  %1204 = vmatprep.subr.bf16.mxu0 0
  %1205 = vmatpush1.bf16.msra.mxu0 %v1186
  %1206 = vmatprep.subr.bf16.mxu0 0
  %1207 = vmatpush1.bf16.msra.mxu0 %v1187
  %1208 = vmatprep.subr.bf16.mxu0 0
  %1209 = vmatpush1.bf16.msra.mxu0 %v1188
  %1210 = vmatprep.subr.bf16.mxu0 0
  %1211 = vmatpush1.bf16.msra.mxu0 %v1189
  %1212 = vmatprep.subr.bf16.mxu0 0
  %1213 = vmatpush1.bf16.msra.mxu0 %v1190
  %1214 = vmatprep.subr.bf16.mxu0 0
  %1215 = vmatpush1.bf16.msra.mxu0 %v1191
  %1216 = vmatprep.subr.bf16.mxu0 0
  %1217 = vmatpush1.bf16.msra.mxu0 0
  %1218 = vmatprep.subr.bf16.mxu0 0
  %1219 = vmatpush1.bf16.msra.mxu0 0
  %1220 = vmatprep.subr.bf16.mxu0 0
  %1221 = vmatpush1.bf16.msra.mxu0 0
  %1222 = vmatprep.subr.bf16.mxu0 0
  %1223 = vmatpush1.bf16.msra.mxu0 0
  %1224 = vmatprep.subr.bf16.mxu0 0
  %1225 = vmatpush1.bf16.msra.mxu0 0
  %1226 = vmatprep.subr.bf16.mxu0 0
  %1227 = vmatpush1.bf16.msra.mxu0 0
  %1228 = vmatprep.subr.bf16.mxu0 0
  %1229 = vmatpush1.bf16.msra.mxu0 0
  %1230 = vmatprep.subr.bf16.mxu0 0
  %1231 = vmatpush1.bf16.msra.mxu0 0
  %1232 = vmatprep.mubr.bf16.mxu0 0
  %1233 = vmatmul.mubr.bf16.gmra.mrb[0].mxu0 %v1113
  %v1234 = vpop.f32.mrb[0].mxu0
  %v1235 = vadd.f32 %v1150, %v1234
  %v1236 = vpop.f32.mrb[0].mxu0
  %v1237 = vpop.f32.mrb[0].mxu0
  %v1238 = vadd.f32 %v1150, %v1237
  %v1239 = vpop.f32.mrb[0].mxu0
  %1240 = vmatprep.mubr.bf16.mxu0 0
  %1241 = vmatmul.mubr.bf16.gmra.mrb[0].mxu0 %v1114
  %v1242 = vpop.f32.mrb[0].mxu0
  %v1243 = vadd.f32 %v1150, %v1242
  %v1244 = vpop.f32.mrb[0].mxu0
  %v1245 = vpop.f32.mrb[0].mxu0
  %v1246 = vadd.f32 %v1150, %v1245
  %v1247 = vpop.f32.mrb[0].mxu0
  %1248 = vmatprep.mubr.bf16.mxu0 0
  %1249 = vmatmul.mubr.bf16.gmra.mrb[0].mxu0 %v1115
  %v1250 = vpop.f32.mrb[0].mxu0
  %v1251 = vadd.f32 %v1150, %v1250
  %v1252 = vpop.f32.mrb[0].mxu0
  %v1253 = vpop.f32.mrb[0].mxu0
  %v1254 = vadd.f32 %v1150, %v1253
  %v1255 = vpop.f32.mrb[0].mxu0
  %1256 = vmatprep.mubr.bf16.mxu0 0
  %1257 = vmatmul.mubr.bf16.gmra.mrb[0].mxu0 %v1116
  %v1258 = vpop.f32.mrb[0].mxu0
  %v1259 = vadd.f32 %v1150, %v1258
  %v1260 = vpop.f32.mrb[0].mxu0
  %v1261 = vpop.f32.mrb[0].mxu0
  %v1262 = vadd.f32 %v1150, %v1261
  %v1263 = vpop.f32.mrb[0].mxu0
  %1264 = vmatprep.mubr.bf16.mxu0 0
  %1265 = vmatmul.mubr.bf16.gmra.mrb[0].mxu0 %v1117
  %v1266 = vpop.f32.mrb[0].mxu0
  %v1267 = vadd.f32 %v1150, %v1266
  %v1268 = vpop.f32.mrb[0].mxu0
  %v1269 = vpop.f32.mrb[0].mxu0
  %v1270 = vadd.f32 %v1150, %v1269
  %v1271 = vpop.f32.mrb[0].mxu0
  %1272 = vmatprep.mubr.bf16.mxu0 0
  %1273 = vmatmul.mubr.bf16.gmra.mrb[0].mxu0 %v1118
  %v1274 = vpop.f32.mrb[0].mxu0
  %v1275 = vadd.f32 %v1150, %v1274
  %v1276 = vpop.f32.mrb[0].mxu0
  %v1277 = vpop.f32.mrb[0].mxu0
  %v1278 = vadd.f32 %v1150, %v1277
  %v1279 = vpop.f32.mrb[0].mxu0
  %1280 = vmatprep.mubr.bf16.mxu0 0
  %1281 = vmatmul.mubr.bf16.gmra.mrb[0].mxu0 %v1119
  %v1282 = vpop.f32.mrb[0].mxu0
  %v1283 = vadd.f32 %v1150, %v1282
  %v1284 = vpop.f32.mrb[0].mxu0
  %v1285 = vpop.f32.mrb[0].mxu0
  %v1286 = vadd.f32 %v1150, %v1285
  %v1287 = vpop.f32.mrb[0].mxu0
  %1288 = vmatprep.mubr.bf16.mxu0 0
  %1289 = vmatmul.mubr.bf16.gmra.mrb[0].mxu0 %v1120
  %v1290 = vpop.f32.mrb[0].mxu0
  %v1291 = vadd.f32 %v1150, %v1290
  %v1292 = vpop.f32.mrb[0].mxu0
  %v1293 = vpop.f32.mrb[0].mxu0
  %v1294 = vadd.f32 %v1150, %v1293
  %v1295 = vpop.f32.mrb[0].mxu0
  %1296 = vmatprep.mubr.bf16.mxu0 0
  %1297 = vmatmul.mubr.bf16.gmra.mrb[0].mxu0 %v1121
  %v1298 = vpop.f32.mrb[0].mxu0
  %v1299 = vadd.f32 %v1150, %v1298
  %v1300 = vpop.f32.mrb[0].mxu0
  %v1301 = vpop.f32.mrb[0].mxu0
  %v1302 = vadd.f32 %v1150, %v1301
  %v1303 = vpop.f32.mrb[0].mxu0
  %1304 = vmatprep.mubr.bf16.mxu0 0
  %1305 = vmatmul.mubr.bf16.gmra.mrb[0].mxu0 %v1122
  %v1306 = vpop.f32.mrb[0].mxu0
  %v1307 = vadd.f32 %v1150, %v1306
  %v1308 = vpop.f32.mrb[0].mxu0
  %v1309 = vpop.f32.mrb[0].mxu0
  %v1310 = vadd.f32 %v1150, %v1309
  %v1311 = vpop.f32.mrb[0].mxu0
  %1312 = vmatprep.mubr.bf16.mxu0 0
  %1313 = vmatmul.mubr.bf16.gmra.mrb[0].mxu0 %v1123
  %v1314 = vpop.f32.mrb[0].mxu0
  %v1315 = vadd.f32 %v1150, %v1314
  %v1316 = vpop.f32.mrb[0].mxu0
  %v1317 = vpop.f32.mrb[0].mxu0
  %v1318 = vadd.f32 %v1150, %v1317
  %v1319 = vpop.f32.mrb[0].mxu0
  %1320 = vmatprep.mubr.bf16.mxu0 0
  %1321 = vmatmul.mubr.bf16.gmra.mrb[0].mxu0 %v1124
  %v1322 = vpop.f32.mrb[0].mxu0
  %v1323 = vadd.f32 %v1150, %v1322
  %v1324 = vpop.f32.mrb[0].mxu0
  %v1325 = vpop.f32.mrb[0].mxu0
  %v1326 = vadd.f32 %v1150, %v1325
  %v1327 = vpop.f32.mrb[0].mxu0
  %1328 = vmatprep.mubr.bf16.mxu0 0
  %1329 = vmatmul.mubr.bf16.gmra.mrb[0].mxu0 %v1125
  %v1330 = vpop.f32.mrb[0].mxu0
  %v1331 = vadd.f32 %v1150, %v1330
  %v1332 = vpop.f32.mrb[0].mxu0
  %v1333 = vpop.f32.mrb[0].mxu0
  %v1334 = vadd.f32 %v1150, %v1333
  %v1335 = vpop.f32.mrb[0].mxu0
  %1336 = vmatprep.mubr.bf16.mxu0 0
  %1337 = vmatmul.mubr.bf16.gmra.mrb[0].mxu0 %v1126
  %v1338 = vpop.f32.mrb[0].mxu0
  %v1339 = vadd.f32 %v1150, %v1338
  %v1340 = vpop.f32.mrb[0].mxu0
  %v1341 = vpop.f32.mrb[0].mxu0
  %v1342 = vadd.f32 %v1150, %v1341
  %v1343 = vpop.f32.mrb[0].mxu0
  %1344 = vmatprep.mubr.bf16.mxu0 0
  %1345 = vmatmul.mubr.bf16.gmra.mrb[0].mxu0 %v1127
  %v1346 = vpop.f32.mrb[0].mxu0
  %v1347 = vadd.f32 %v1150, %v1346
  %v1348 = vpop.f32.mrb[0].mxu0
  %v1349 = vpop.f32.mrb[0].mxu0
  %v1350 = vadd.f32 %v1150, %v1349
  %v1351 = vpop.f32.mrb[0].mxu0
  %1352 = vmatprep.mubr.bf16.mxu0 0
  %1353 = vmatmul.mubr.bf16.gmra.mrb[0].mxu0 %v1128
  %v1354 = vpop.f32.mrb[0].mxu0
  %v1355 = vadd.f32 %v1150, %v1354
  %v1356 = vpop.f32.mrb[0].mxu0
  %v1357 = vpop.f32.mrb[0].mxu0
  %v1358 = vadd.f32 %v1150, %v1357
  %v1359 = vpop.f32.mrb[0].mxu0
  %1360 = vdwg.mxu0
  %v1361 = vlaneseq
  %v1362 = vand.u32 %v1361, 127
  %vm1363 = vcmp.lt.s32.totalorder %v1362, 7
  %v1364 = vsel %vm1363, %v1235, -inf
  %v1365 = vsel %vm1363, %v1238, -inf
  %v1366 = vsel %vm1363, %v1243, -inf
  %v1367 = vsel %vm1363, %v1246, -inf
  %v1368 = vsel %vm1363, %v1251, -inf
  %v1369 = vsel %vm1363, %v1254, -inf
  %v1370 = vsel %vm1363, %v1259, -inf
  %v1371 = vsel %vm1363, %v1262, -inf
  %v1372 = vsel %vm1363, %v1267, -inf
  %v1373 = vsel %vm1363, %v1270, -inf
  %v1374 = vsel %vm1363, %v1275, -inf
  %v1375 = vsel %vm1363, %v1278, -inf
  %v1376 = vsel %vm1363, %v1283, -inf
  %v1377 = vsel %vm1363, %v1286, -inf
  %v1378 = vsel %vm1363, %v1291, -inf
  %v1379 = vsel %vm1363, %v1294, -inf
  %v1380 = vsel %vm1363, %v1299, -inf
  %v1381 = vsel %vm1363, %v1302, -inf
  %v1382 = vsel %vm1363, %v1307, -inf
  %v1383 = vsel %vm1363, %v1310, -inf
  %v1384 = vsel %vm1363, %v1315, -inf
  %v1385 = vsel %vm1363, %v1318, -inf
  %v1386 = vsel %vm1363, %v1323, -inf
  %v1387 = vsel %vm1363, %v1326, -inf
  %v1388 = vsel %vm1363, %v1331, -inf
  %v1389 = vsel %vm1363, %v1334, -inf
  %v1390 = vsel %vm1363, %v1339, -inf
  %v1391 = vsel %vm1363, %v1342, -inf
  %v1392 = vsel %vm1363, %v1347, -inf
  %v1393 = vsel %vm1363, %v1350, -inf
  %v1394 = vsel %vm1363, %v1355, -inf
  %v1395 = vsel %vm1363, %v1358, -inf
  %1396 = vmax.xlane.f32.xlu0 %v1364
  %v1397 = vpop.xlane.xlu0 %1396
  %1398 = vmax.xlane.f32.xlu0 %v1365
  %v1399 = vpop.xlane.xlu0 %1398
  %1400 = vmax.xlane.f32.xlu0 %v1366
  %v1401 = vpop.xlane.xlu0 %1400
  %1402 = vmax.xlane.f32.xlu0 %v1367
  %v1403 = vpop.xlane.xlu0 %1402
  %1404 = vmax.xlane.f32.xlu0 %v1368
  %v1405 = vpop.xlane.xlu0 %1404
  %1406 = vmax.xlane.f32.xlu0 %v1369
  %v1407 = vpop.xlane.xlu0 %1406
  %1408 = vmax.xlane.f32.xlu0 %v1370
  %v1409 = vpop.xlane.xlu0 %1408
  %1410 = vmax.xlane.f32.xlu0 %v1371
  %v1411 = vpop.xlane.xlu0 %1410
  %1412 = vmax.xlane.f32.xlu0 %v1372
  %v1413 = vpop.xlane.xlu0 %1412
  %1414 = vmax.xlane.f32.xlu0 %v1373
  %v1415 = vpop.xlane.xlu0 %1414
  %1416 = vmax.xlane.f32.xlu0 %v1374
  %v1417 = vpop.xlane.xlu0 %1416
  %1418 = vmax.xlane.f32.xlu0 %v1375
  %v1419 = vpop.xlane.xlu0 %1418
  %1420 = vmax.xlane.f32.xlu0 %v1376
  %v1421 = vpop.xlane.xlu0 %1420
  %1422 = vmax.xlane.f32.xlu0 %v1377
  %v1423 = vpop.xlane.xlu0 %1422
  %1424 = vmax.xlane.f32.xlu0 %v1378
  %v1425 = vpop.xlane.xlu0 %1424
  %1426 = vmax.xlane.f32.xlu0 %v1379
  %v1427 = vpop.xlane.xlu0 %1426
  %1428 = vmax.xlane.f32.xlu0 %v1380
  %v1429 = vpop.xlane.xlu0 %1428
  %1430 = vmax.xlane.f32.xlu0 %v1381
  %v1431 = vpop.xlane.xlu0 %1430
  %1432 = vmax.xlane.f32.xlu0 %v1382
  %v1433 = vpop.xlane.xlu0 %1432
  %1434 = vmax.xlane.f32.xlu0 %v1383
  %v1435 = vpop.xlane.xlu0 %1434
  %1436 = vmax.xlane.f32.xlu0 %v1384
  %v1437 = vpop.xlane.xlu0 %1436
  %1438 = vmax.xlane.f32.xlu0 %v1385
  %v1439 = vpop.xlane.xlu0 %1438
  %1440 = vmax.xlane.f32.xlu0 %v1386
  %v1441 = vpop.xlane.xlu0 %1440
  %1442 = vmax.xlane.f32.xlu0 %v1387
  %v1443 = vpop.xlane.xlu0 %1442
  %1444 = vmax.xlane.f32.xlu0 %v1388
  %v1445 = vpop.xlane.xlu0 %1444
  %1446 = vmax.xlane.f32.xlu0 %v1389
  %v1447 = vpop.xlane.xlu0 %1446
  %1448 = vmax.xlane.f32.xlu0 %v1390
  %v1449 = vpop.xlane.xlu0 %1448
  %1450 = vmax.xlane.f32.xlu0 %v1391
  %v1451 = vpop.xlane.xlu0 %1450
  %1452 = vmax.xlane.f32.xlu0 %v1392
  %v1453 = vpop.xlane.xlu0 %1452
  %1454 = vmax.xlane.f32.xlu0 %v1393
  %v1455 = vpop.xlane.xlu0 %1454
  %1456 = vmax.xlane.f32.xlu0 %v1394
  %v1457 = vpop.xlane.xlu0 %1456
  %1458 = vmax.xlane.f32.xlu0 %v1395
  %v1459 = vpop.xlane.xlu0 %1458
  %v1460 = vsub.f32 %v1364, %v1397
  %v1461 = vsub.f32 %v1365, %v1399
  %v1462 = vsub.f32 %v1366, %v1401
  %v1463 = vsub.f32 %v1367, %v1403
  %v1464 = vsub.f32 %v1368, %v1405
  %v1465 = vsub.f32 %v1369, %v1407
  %v1466 = vsub.f32 %v1370, %v1409
  %v1467 = vsub.f32 %v1371, %v1411
  %v1468 = vsub.f32 %v1372, %v1413
  %v1469 = vsub.f32 %v1373, %v1415
  %v1470 = vsub.f32 %v1374, %v1417
  %v1471 = vsub.f32 %v1375, %v1419
  %v1472 = vsub.f32 %v1376, %v1421
  %v1473 = vsub.f32 %v1377, %v1423
  %v1474 = vsub.f32 %v1378, %v1425
  %v1475 = vsub.f32 %v1379, %v1427
  %v1476 = vsub.f32 %v1380, %v1429
  %v1477 = vsub.f32 %v1381, %v1431
  %v1478 = vsub.f32 %v1382, %v1433
  %v1479 = vsub.f32 %v1383, %v1435
  %v1480 = vsub.f32 %v1384, %v1437
  %v1481 = vsub.f32 %v1385, %v1439
  %v1482 = vsub.f32 %v1386, %v1441
  %v1483 = vsub.f32 %v1387, %v1443
  %v1484 = vsub.f32 %v1388, %v1445
  %v1485 = vsub.f32 %v1389, %v1447
  %v1486 = vsub.f32 %v1390, %v1449
  %v1487 = vsub.f32 %v1391, %v1451
  %v1488 = vsub.f32 %v1392, %v1453
  %v1489 = vsub.f32 %v1393, %v1455
  %v1490 = vsub.f32 %v1394, %v1457
  %v1491 = vsub.f32 %v1395, %v1459
  %v1492 = vmul.f32 %v1460, 1.442695
  %v1493 = vpow.pop %v1492
  %v1494 = vmul.f32 %v1461, 1.442695
  %v1495 = vpow.pop %v1494
  %v1496 = vmul.f32 %v1462, 1.442695
  %v1497 = vpow.pop %v1496
  %v1498 = vmul.f32 %v1463, 1.442695
  %v1499 = vpow.pop %v1498
  %v1500 = vmul.f32 %v1464, 1.442695
  %v1501 = vpow.pop %v1500
  %v1502 = vmul.f32 %v1465, 1.442695
  %v1503 = vpow.pop %v1502
  %v1504 = vmul.f32 %v1466, 1.442695
  %v1505 = vpow.pop %v1504
  %v1506 = vmul.f32 %v1467, 1.442695
  %v1507 = vpow.pop %v1506
  %v1508 = vmul.f32 %v1468, 1.442695
  %v1509 = vpow.pop %v1508
  %v1510 = vmul.f32 %v1469, 1.442695
  %v1511 = vpow.pop %v1510
  %v1512 = vmul.f32 %v1470, 1.442695
  %v1513 = vpow.pop %v1512
  %v1514 = vmul.f32 %v1471, 1.442695
  %v1515 = vpow.pop %v1514
  %v1516 = vmul.f32 %v1472, 1.442695
  %v1517 = vpow.pop %v1516
  %v1518 = vmul.f32 %v1473, 1.442695
  %v1519 = vpow.pop %v1518
  %v1520 = vmul.f32 %v1474, 1.442695
  %v1521 = vpow.pop %v1520
  %v1522 = vmul.f32 %v1475, 1.442695
  %v1523 = vpow.pop %v1522
  %v1524 = vmul.f32 %v1476, 1.442695
  %v1525 = vpow.pop %v1524
  %v1526 = vmul.f32 %v1477, 1.442695
  %v1527 = vpow.pop %v1526
  %v1528 = vmul.f32 %v1478, 1.442695
  %v1529 = vpow.pop %v1528
  %v1530 = vmul.f32 %v1479, 1.442695
  %v1531 = vpow.pop %v1530
  %v1532 = vmul.f32 %v1480, 1.442695
  %v1533 = vpow.pop %v1532
  %v1534 = vmul.f32 %v1481, 1.442695
  %v1535 = vpow.pop %v1534
  %v1536 = vmul.f32 %v1482, 1.442695
  %v1537 = vpow.pop %v1536
  %v1538 = vmul.f32 %v1483, 1.442695
  %v1539 = vpow.pop %v1538
  %v1540 = vmul.f32 %v1484, 1.442695
  %v1541 = vpow.pop %v1540
  %v1542 = vmul.f32 %v1485, 1.442695
  %v1543 = vpow.pop %v1542
  %v1544 = vmul.f32 %v1486, 1.442695
  %v1545 = vpow.pop %v1544
  %v1546 = vmul.f32 %v1487, 1.442695
  %v1547 = vpow.pop %v1546
  %v1548 = vmul.f32 %v1488, 1.442695
  %v1549 = vpow.pop %v1548
  %v1550 = vmul.f32 %v1489, 1.442695
  %v1551 = vpow.pop %v1550
  %v1552 = vmul.f32 %v1490, 1.442695
  %v1553 = vpow.pop %v1552
  %v1554 = vmul.f32 %v1491, 1.442695
  %v1555 = vpow.pop %v1554
  %1556 = vadd.xlane.f32.xlu0 %v1493
  %v1557 = vpop.xlane.xlu0 %1556
  %1558 = vadd.xlane.f32.xlu0 %v1495
  %v1559 = vpop.xlane.xlu0 %1558
  %1560 = vadd.xlane.f32.xlu0 %v1497
  %v1561 = vpop.xlane.xlu0 %1560
  %1562 = vadd.xlane.f32.xlu0 %v1499
  %v1563 = vpop.xlane.xlu0 %1562
  %1564 = vadd.xlane.f32.xlu0 %v1501
  %v1565 = vpop.xlane.xlu0 %1564
  %1566 = vadd.xlane.f32.xlu0 %v1503
  %v1567 = vpop.xlane.xlu0 %1566
  %1568 = vadd.xlane.f32.xlu0 %v1505
  %v1569 = vpop.xlane.xlu0 %1568
  %1570 = vadd.xlane.f32.xlu0 %v1507
  %v1571 = vpop.xlane.xlu0 %1570
  %1572 = vadd.xlane.f32.xlu0 %v1509
  %v1573 = vpop.xlane.xlu0 %1572
  %1574 = vadd.xlane.f32.xlu0 %v1511
  %v1575 = vpop.xlane.xlu0 %1574
  %1576 = vadd.xlane.f32.xlu0 %v1513
  %v1577 = vpop.xlane.xlu0 %1576
  %1578 = vadd.xlane.f32.xlu0 %v1515
  %v1579 = vpop.xlane.xlu0 %1578
  %1580 = vadd.xlane.f32.xlu0 %v1517
  %v1581 = vpop.xlane.xlu0 %1580
  %1582 = vadd.xlane.f32.xlu0 %v1519
  %v1583 = vpop.xlane.xlu0 %1582
  %1584 = vadd.xlane.f32.xlu0 %v1521
  %v1585 = vpop.xlane.xlu0 %1584
  %1586 = vadd.xlane.f32.xlu0 %v1523
  %v1587 = vpop.xlane.xlu0 %1586
  %1588 = vadd.xlane.f32.xlu0 %v1525
  %v1589 = vpop.xlane.xlu0 %1588
  %1590 = vadd.xlane.f32.xlu0 %v1527
  %v1591 = vpop.xlane.xlu0 %1590
  %1592 = vadd.xlane.f32.xlu0 %v1529
  %v1593 = vpop.xlane.xlu0 %1592
  %1594 = vadd.xlane.f32.xlu0 %v1531
  %v1595 = vpop.xlane.xlu0 %1594
  %1596 = vadd.xlane.f32.xlu0 %v1533
  %v1597 = vpop.xlane.xlu0 %1596
  %1598 = vadd.xlane.f32.xlu0 %v1535
  %v1599 = vpop.xlane.xlu0 %1598
  %1600 = vadd.xlane.f32.xlu0 %v1537
  %v1601 = vpop.xlane.xlu0 %1600
  %1602 = vadd.xlane.f32.xlu0 %v1539
  %v1603 = vpop.xlane.xlu0 %1602
  %1604 = vadd.xlane.f32.xlu0 %v1541
  %v1605 = vpop.xlane.xlu0 %1604
  %1606 = vadd.xlane.f32.xlu0 %v1543
  %v1607 = vpop.xlane.xlu0 %1606
  %1608 = vadd.xlane.f32.xlu0 %v1545
  %v1609 = vpop.xlane.xlu0 %1608
  %1610 = vadd.xlane.f32.xlu0 %v1547
  %v1611 = vpop.xlane.xlu0 %1610
  %1612 = vadd.xlane.f32.xlu0 %v1549
  %v1613 = vpop.xlane.xlu0 %1612
  %1614 = vadd.xlane.f32.xlu0 %v1551
  %v1615 = vpop.xlane.xlu0 %1614
  %1616 = vadd.xlane.f32.xlu0 %v1553
  %v1617 = vpop.xlane.xlu0 %1616
  %1618 = vadd.xlane.f32.xlu0 %v1555
  %v1619 = vpop.xlane.xlu0 %1618
  %v1620 = vlog2.pop %v1557
  %v1621 = vmul.f32 %v1620, 0.6931472
  %v1622 = vlog2.pop %v1559
  %v1623 = vmul.f32 %v1622, 0.6931472
  %v1624 = vlog2.pop %v1561
  %v1625 = vmul.f32 %v1624, 0.6931472
  %v1626 = vlog2.pop %v1563
  %v1627 = vmul.f32 %v1626, 0.6931472
  %v1628 = vlog2.pop %v1565
  %v1629 = vmul.f32 %v1628, 0.6931472
  %v1630 = vlog2.pop %v1567
  %v1631 = vmul.f32 %v1630, 0.6931472
  %v1632 = vlog2.pop %v1569
  %v1633 = vmul.f32 %v1632, 0.6931472
  %v1634 = vlog2.pop %v1571
  %v1635 = vmul.f32 %v1634, 0.6931472
  %v1636 = vlog2.pop %v1573
  %v1637 = vmul.f32 %v1636, 0.6931472
  %v1638 = vlog2.pop %v1575
  %v1639 = vmul.f32 %v1638, 0.6931472
  %v1640 = vlog2.pop %v1577
  %v1641 = vmul.f32 %v1640, 0.6931472
  %v1642 = vlog2.pop %v1579
  %v1643 = vmul.f32 %v1642, 0.6931472
  %v1644 = vlog2.pop %v1581
  %v1645 = vmul.f32 %v1644, 0.6931472
  %v1646 = vlog2.pop %v1583
  %v1647 = vmul.f32 %v1646, 0.6931472
  %v1648 = vlog2.pop %v1585
  %v1649 = vmul.f32 %v1648, 0.6931472
  %v1650 = vlog2.pop %v1587
  %v1651 = vmul.f32 %v1650, 0.6931472
  %v1652 = vlog2.pop %v1589
  %v1653 = vmul.f32 %v1652, 0.6931472
  %v1654 = vlog2.pop %v1591
  %v1655 = vmul.f32 %v1654, 0.6931472
  %v1656 = vlog2.pop %v1593
  %v1657 = vmul.f32 %v1656, 0.6931472
  %v1658 = vlog2.pop %v1595
  %v1659 = vmul.f32 %v1658, 0.6931472
  %v1660 = vlog2.pop %v1597
  %v1661 = vmul.f32 %v1660, 0.6931472
  %v1662 = vlog2.pop %v1599
  %v1663 = vmul.f32 %v1662, 0.6931472
  %v1664 = vlog2.pop %v1601
  %v1665 = vmul.f32 %v1664, 0.6931472
  %v1666 = vlog2.pop %v1603
  %v1667 = vmul.f32 %v1666, 0.6931472
  %v1668 = vlog2.pop %v1605
  %v1669 = vmul.f32 %v1668, 0.6931472
  %v1670 = vlog2.pop %v1607
  %v1671 = vmul.f32 %v1670, 0.6931472
  %v1672 = vlog2.pop %v1609
  %v1673 = vmul.f32 %v1672, 0.6931472
  %v1674 = vlog2.pop %v1611
  %v1675 = vmul.f32 %v1674, 0.6931472
  %v1676 = vlog2.pop %v1613
  %v1677 = vmul.f32 %v1676, 0.6931472
  %v1678 = vlog2.pop %v1615
  %v1679 = vmul.f32 %v1678, 0.6931472
  %v1680 = vlog2.pop %v1617
  %v1681 = vmul.f32 %v1680, 0.6931472
  %v1682 = vlog2.pop %v1619
  %v1683 = vmul.f32 %v1682, 0.6931472
  %v1684 = vsub.f32 %v1460, %v1621
  %v1685 = vsub.f32 %v1461, %v1623
  %v1686 = vsub.f32 %v1462, %v1625
  %v1687 = vsub.f32 %v1463, %v1627
  %v1688 = vsub.f32 %v1464, %v1629
  %v1689 = vsub.f32 %v1465, %v1631
  %v1690 = vsub.f32 %v1466, %v1633
  %v1691 = vsub.f32 %v1467, %v1635
  %v1692 = vsub.f32 %v1468, %v1637
  %v1693 = vsub.f32 %v1469, %v1639
  %v1694 = vsub.f32 %v1470, %v1641
  %v1695 = vsub.f32 %v1471, %v1643
  %v1696 = vsub.f32 %v1472, %v1645
  %v1697 = vsub.f32 %v1473, %v1647
  %v1698 = vsub.f32 %v1474, %v1649
  %v1699 = vsub.f32 %v1475, %v1651
  %v1700 = vsub.f32 %v1476, %v1653
  %v1701 = vsub.f32 %v1477, %v1655
  %v1702 = vsub.f32 %v1478, %v1657
  %v1703 = vsub.f32 %v1479, %v1659
  %v1704 = vsub.f32 %v1480, %v1661
  %v1705 = vsub.f32 %v1481, %v1663
  %v1706 = vsub.f32 %v1482, %v1665
  %v1707 = vsub.f32 %v1483, %v1667
  %v1708 = vsub.f32 %v1484, %v1669
  %v1709 = vsub.f32 %v1485, %v1671
  %v1710 = vsub.f32 %v1486, %v1673
  %v1711 = vsub.f32 %v1487, %v1675
  %v1712 = vsub.f32 %v1488, %v1677
  %v1713 = vsub.f32 %v1489, %v1679
  %v1714 = vsub.f32 %v1490, %v1681
  %v1715 = vsub.f32 %v1491, %v1683
  %1716 = vst [vmem:[%s9] sm:$0xff] %v1684
  %1717 = vst [vmem:[%s9 + $0x8] sm:$0xff] %v1685
  %1718 = vst [vmem:[%s9 + $0x10] sm:$0xff] %v1686
  %1719 = vst [vmem:[%s9 + $0x18] sm:$0xff] %v1687
  %1720 = vst [vmem:[%s9 + $0x20] sm:$0xff] %v1688
  %1721 = vst [vmem:[%s9 + $0x28] sm:$0xff] %v1689
  %1722 = vst [vmem:[%s9 + $0x30] sm:$0xff] %v1690
  %1723 = vst [vmem:[%s9 + $0x38] sm:$0xff] %v1691
  %1724 = vst [vmem:[%s9 + $0x40] sm:$0xff] %v1692
  %1725 = vst [vmem:[%s9 + $0x48] sm:$0xff] %v1693
  %1726 = vst [vmem:[%s9 + $0x50] sm:$0xff] %v1694
  %1727 = vst [vmem:[%s9 + $0x58] sm:$0xff] %v1695
  %1728 = vst [vmem:[%s9 + $0x60] sm:$0xff] %v1696
  %1729 = vst [vmem:[%s9 + $0x68] sm:$0xff] %v1697
  %1730 = vst [vmem:[%s9 + $0x70] sm:$0xff] %v1698
  %1731 = vst [vmem:[%s9 + $0x78] sm:$0xff] %v1699
  %1732 = vst [vmem:[%s9 + $0x80] sm:$0xff] %v1700
  %1733 = vst [vmem:[%s9 + $0x88] sm:$0xff] %v1701
  %1734 = vst [vmem:[%s9 + $0x90] sm:$0xff] %v1702
  %1735 = vst [vmem:[%s9 + $0x98] sm:$0xff] %v1703
  %1736 = vst [vmem:[%s9 + $0xa0] sm:$0xff] %v1704
  %1737 = vst [vmem:[%s9 + $0xa8] sm:$0xff] %v1705
  %1738 = vst [vmem:[%s9 + $0xb0] sm:$0xff] %v1706
  %1739 = vst [vmem:[%s9 + $0xb8] sm:$0xff] %v1707
  %1740 = vst [vmem:[%s9 + $0xc0] sm:$0xff] %v1708
  %1741 = vst [vmem:[%s9 + $0xc8] sm:$0xff] %v1709
  %1742 = vst [vmem:[%s9 + $0xd0] sm:$0xff] %v1710
  %1743 = vst [vmem:[%s9 + $0xd8] sm:$0xff] %v1711
  %1744 = vst [vmem:[%s9 + $0xe0] sm:$0xff] %v1712
  %1745 = vst [vmem:[%s9 + $0xe8] sm:$0xff] %v1713
  %1746 = vst [vmem:[%s9 + $0xf0] sm:$0xff] %v1714
  %1747 = vst [vmem:[%s9 + $0xf8] sm:$0xff] %v1715
  // Predicated region
  $region38: #{net_forward.7} parent=0 // pred_check
    _
  $region39: #{net_forward.7} parent=0 // pred_check_branch
    %1749 = sbr.rel (0) target = $region41
  $region40: #{net_forward.7} parent=0 // pred_region
    _
  $region41: #{net_forward.7} parent=0 // pred_fallthru
    _
  // Predicated region
  $region42: #{net_forward.7} parent=0 // pred_check
    _
  $region43: #{net_forward.7} parent=0 // pred_check_branch
    %1751 = sbr.rel (0) target = $region45
  $region44: #{net_forward.7} parent=0 // pred_region
    _
  $region45: #{net_forward.7} parent=0 // pred_fallthru
    _

// kernel: net_forward.4
$region0: #{net_forward.4}
  #allocation0 [shape = 'u32[]', space=smem, size = 0x4, offset = 0x4, fixed_abs, tag = 'smem constant byte address 0x4 - core index']
  #allocation1 [shape = 'u32[144,128]{1,0:T(1,128)}', space=vmem, size = 0x12000, scoped, tag = 'internal scratch']
  %s0 = inlined_call_operand.hbm [shape: bf16[256,128], index: 0, kind: input, shape index: {}]
  %s1 = inlined_call_operand.hbm [shape: bf16[128,128], index: 1, kind: input, shape index: {}]
  %s2 = inlined_call_operand.vmem [shape: bf16[256,128], index: 2, kind: output, shape index: {}]
  %s3 = sld [smem:[#allocation0]]
  $region26: #{net_forward.4} parent=0
    _
  %s5 = ssub.s32 1, %s3
  %s6 = scalar_select 0, %s5, %s3
  $region1: #{net_forward.4} parent=0
    #allocation2 [shape = 'u8[65536]{0}', space=vmem, size = 0x10000, scoped, tag = 'input window, operand 0, single buffered']
    #allocation3 [shape = 's32[1]{0}', space=sflag, size = 0x4, scoped, tag = 'scoped memory for net_forward.4']
    #allocation4 [shape = 'u8[32768]{0}', space=vmem, size = 0x8000, scoped, tag = 'input window, operand 1, single buffered']
    #allocation5 [shape = 's32[1]{0}', space=sflag, size = 0x4, scoped, tag = 'scoped memory for net_forward.4']
    %7 = vsyncpa [#allocation3], 0
    %8 = vsyncpa [#allocation5], 0
    // Predicated region
    $region2: #{net_forward.4} parent=1 // pred_check
      _
    $region3: #{net_forward.4} parent=1 // pred_check_branch
      %10 = sbr.rel (0) target = $region5
    $region4: #{net_forward.4} parent=1 // pred_region
      %s12 = ssub.s32 2048, 2048
      %13 = vsyncadd [#allocation3], %s12
      %s14 = sshll.u32 [#allocation2], 4
      %s15 = int_to_ptr.vmem [resolvable:$true] %s14
      %20 = dma.hbm_to_vmem [thread:$0]  %s0, 2048, %s15, [#allocation3], 64, 64, 4
    $region5: #{net_forward.4} parent=1 // pred_fallthru
      _
    // Predicated region
    $region6: #{net_forward.4} parent=1 // pred_check
      _
    $region7: #{net_forward.4} parent=1 // pred_check_branch
      %22 = sbr.rel (0) target = $region9
    $region8: #{net_forward.4} parent=1 // pred_region
      %s24 = ssub.s32 1024, 1024
      %25 = vsyncadd [#allocation5], %s24
      %s26 = sshll.u32 [#allocation4], 4
      %s27 = int_to_ptr.vmem [resolvable:$true] %s26
      %32 = dma.hbm_to_vmem [thread:$0]  %s1, 1024, %s27, [#allocation5], 64, 64, 4
    $region9: #{net_forward.4} parent=1 // pred_fallthru
      _
    // Predicated region
    $region10: #{net_forward.4} parent=1 // pred_check
      _
    $region11: #{net_forward.4} parent=1 // pred_check_branch
      %34 = sbr.rel (0) target = $region13
    $region12: #{net_forward.4} parent=1 // pred_region
      %35 = dma.done [#allocation3], 2048
    $region13: #{net_forward.4} parent=1 // pred_fallthru
      _
    // Predicated region
    $region14: #{net_forward.4} parent=1 // pred_check
      _
    $region15: #{net_forward.4} parent=1 // pred_check_branch
      %37 = sbr.rel (0) target = $region17
    $region16: #{net_forward.4} parent=1 // pred_region
      %38 = dma.done [#allocation5], 1024
    $region17: #{net_forward.4} parent=1 // pred_fallthru
      _
    %v40 = vld [vmem:[#allocation2] sm:$0xf]
    %v41 = vld [vmem:[#allocation2 + $0x4] sm:$0xf]
    %v42 = vld [vmem:[#allocation2 + $0x8] sm:$0xf]
    %v43 = vld [vmem:[#allocation2 + $0xc] sm:$0xf]
    %v44 = vld [vmem:[#allocation2 + $0x10] sm:$0xf]
    %v45 = vld [vmem:[#allocation2 + $0x14] sm:$0xf]
    %v46 = vld [vmem:[#allocation2 + $0x18] sm:$0xf]
    %v47 = vld [vmem:[#allocation2 + $0x1c] sm:$0xf]
    %v48 = vld [vmem:[#allocation2 + $0x20] sm:$0xf]
    %v49 = vld [vmem:[#allocation2 + $0x24] sm:$0xf]
    %v50 = vld [vmem:[#allocation2 + $0x28] sm:$0xf]
    %v51 = vld [vmem:[#allocation2 + $0x2c] sm:$0xf]
    %v52 = vld [vmem:[#allocation2 + $0x30] sm:$0xf]
    %v53 = vld [vmem:[#allocation2 + $0x34] sm:$0xf]
    %v54 = vld [vmem:[#allocation2 + $0x38] sm:$0xf]
    %v55 = vld [vmem:[#allocation2 + $0x3c] sm:$0xf]
    %v56 = vld [vmem:[#allocation2 + $0x40] sm:$0xf]
    %v57 = vld [vmem:[#allocation2 + $0x44] sm:$0xf]
    %v58 = vld [vmem:[#allocation2 + $0x48] sm:$0xf]
    %v59 = vld [vmem:[#allocation2 + $0x4c] sm:$0xf]
    %v60 = vld [vmem:[#allocation2 + $0x50] sm:$0xf]
    %v61 = vld [vmem:[#allocation2 + $0x54] sm:$0xf]
    %v62 = vld [vmem:[#allocation2 + $0x58] sm:$0xf]
    %v63 = vld [vmem:[#allocation2 + $0x5c] sm:$0xf]
    %v64 = vld [vmem:[#allocation2 + $0x60] sm:$0xf]
    %v65 = vld [vmem:[#allocation2 + $0x64] sm:$0xf]
    %v66 = vld [vmem:[#allocation2 + $0x68] sm:$0xf]
    %v67 = vld [vmem:[#allocation2 + $0x6c] sm:$0xf]
    %v68 = vld [vmem:[#allocation2 + $0x70] sm:$0xf]
    %v69 = vld [vmem:[#allocation2 + $0x74] sm:$0xf]
    %v70 = vld [vmem:[#allocation2 + $0x78] sm:$0xf]
    %v71 = vld [vmem:[#allocation2 + $0x7c] sm:$0xf]
    %v72 = vld [vmem:[#allocation4] sm:$0xf]
    %v73 = vld [vmem:[#allocation4 + $0x4] sm:$0xf]
    %v74 = vld [vmem:[#allocation4 + $0x8] sm:$0xf]
    %v75 = vld [vmem:[#allocation4 + $0xc] sm:$0xf]
    %v76 = vld [vmem:[#allocation4 + $0x10] sm:$0xf]
    %v77 = vld [vmem:[#allocation4 + $0x14] sm:$0xf]
    %v78 = vld [vmem:[#allocation4 + $0x18] sm:$0xf]
    %v79 = vld [vmem:[#allocation4 + $0x1c] sm:$0xf]
    %v80 = vld [vmem:[#allocation4 + $0x20] sm:$0xf]
    %v81 = vld [vmem:[#allocation4 + $0x24] sm:$0xf]
    %v82 = vld [vmem:[#allocation4 + $0x28] sm:$0xf]
    %v83 = vld [vmem:[#allocation4 + $0x2c] sm:$0xf]
    %v84 = vld [vmem:[#allocation4 + $0x30] sm:$0xf]
    %v85 = vld [vmem:[#allocation4 + $0x34] sm:$0xf]
    %v86 = vld [vmem:[#allocation4 + $0x38] sm:$0xf]
    %v87 = vld [vmem:[#allocation4 + $0x3c] sm:$0xf]
    %v120 = vunpack.c.l.b16 %v40
    %v121 = vunpack.c.l.b16 %v41
    %v122 = vunpack.c.l.b16 %v42
    %v123 = vunpack.c.l.b16 %v43
    %v124 = vunpack.c.l.b16 %v44
    %v125 = vunpack.c.l.b16 %v45
    %v126 = vunpack.c.l.b16 %v46
    %v127 = vunpack.c.l.b16 %v47
    %v128 = vunpack.c.l.b16 %v48
    %v129 = vunpack.c.l.b16 %v49
    %v130 = vunpack.c.l.b16 %v50
    %v131 = vunpack.c.l.b16 %v51
    %v132 = vunpack.c.l.b16 %v52
    %v133 = vunpack.c.l.b16 %v53
    %v134 = vunpack.c.l.b16 %v54
    %v135 = vunpack.c.l.b16 %v55
    %v136 = vunpack.c.l.b16 %v56
    %v137 = vunpack.c.l.b16 %v57
    %v138 = vunpack.c.l.b16 %v58
    %v139 = vunpack.c.l.b16 %v59
    %v140 = vunpack.c.l.b16 %v60
    %v141 = vunpack.c.l.b16 %v61
    %v142 = vunpack.c.l.b16 %v62
    %v143 = vunpack.c.l.b16 %v63
    %v144 = vunpack.c.l.b16 %v64
    %v145 = vunpack.c.l.b16 %v65
    %v146 = vunpack.c.l.b16 %v66
    %v147 = vunpack.c.l.b16 %v67
    %v148 = vunpack.c.l.b16 %v68
    %v149 = vunpack.c.l.b16 %v69
    %v150 = vunpack.c.l.b16 %v70
    %v151 = vunpack.c.l.b16 %v71
    %v152 = vpack.c.b16 %v121, %v120
    %v153 = vpack.c.b16 %v123, %v122
    %v154 = vpack.c.b16 %v125, %v124
    %v155 = vpack.c.b16 %v127, %v126
    %v156 = vpack.c.b16 %v129, %v128
    %v157 = vpack.c.b16 %v131, %v130
    %v158 = vpack.c.b16 %v133, %v132
    %v159 = vpack.c.b16 %v135, %v134
    %v160 = vpack.c.b16 %v137, %v136
    %v161 = vpack.c.b16 %v139, %v138
    %v162 = vpack.c.b16 %v141, %v140
    %v163 = vpack.c.b16 %v143, %v142
    %v164 = vpack.c.b16 %v145, %v144
    %v165 = vpack.c.b16 %v147, %v146
    %v166 = vpack.c.b16 %v149, %v148
    %v167 = vpack.c.b16 %v151, %v150
    %v200 = vunpack.c.l.b16 %v72
    %v201 = vunpack.c.l.b16 %v73
    %v202 = vunpack.c.l.b16 %v74
    %v203 = vunpack.c.l.b16 %v75
    %v204 = vunpack.c.l.b16 %v76
    %v205 = vunpack.c.l.b16 %v77
    %v206 = vunpack.c.l.b16 %v78
    %v207 = vunpack.c.l.b16 %v79
    %v208 = vunpack.c.l.b16 %v80
    %v209 = vunpack.c.l.b16 %v81
    %v210 = vunpack.c.l.b16 %v82
    %v211 = vunpack.c.l.b16 %v83
    %v212 = vunpack.c.l.b16 %v84
    %v213 = vunpack.c.l.b16 %v85
    %v214 = vunpack.c.l.b16 %v86
    %v215 = vunpack.c.l.b16 %v87
    %v216 = vpack.c.b16 %v201, %v200
    %v217 = vpack.c.b16 %v203, %v202
    %v218 = vpack.c.b16 %v205, %v204
    %v219 = vpack.c.b16 %v207, %v206
    %v220 = vpack.c.b16 %v209, %v208
    %v221 = vpack.c.b16 %v211, %v210
    %v222 = vpack.c.b16 %v213, %v212
    %v223 = vpack.c.b16 %v215, %v214
    %232 = vmatprep.subr.bf16.mxu0 0
    %233 = vmatpush1.bf16.msra.mxu0 %v216
    %234 = vmatprep.subr.bf16.mxu0 0
    %235 = vmatpush1.bf16.msra.mxu0 %v217
    %236 = vmatprep.subr.bf16.mxu0 0
    %237 = vmatpush1.bf16.msra.mxu0 %v218
    %238 = vmatprep.subr.bf16.mxu0 0
    %239 = vmatpush1.bf16.msra.mxu0 %v219
    %240 = vmatprep.subr.bf16.mxu0 0
    %241 = vmatpush1.bf16.msra.mxu0 %v220
    %242 = vmatprep.subr.bf16.mxu0 0
    %243 = vmatpush1.bf16.msra.mxu0 %v221
    %244 = vmatprep.subr.bf16.mxu0 0
    %245 = vmatpush1.bf16.msra.mxu0 %v222
    %246 = vmatprep.subr.bf16.mxu0 0
    %247 = vmatpush1.bf16.msra.mxu0 %v223
    %248 = vmatprep.subr.bf16.mxu0 0
    %249 = vmatpush1.bf16.msra.mxu0 0
    %250 = vmatprep.subr.bf16.mxu0 0
    %251 = vmatpush1.bf16.msra.mxu0 0
    %252 = vmatprep.subr.bf16.mxu0 0
    %253 = vmatpush1.bf16.msra.mxu0 0
    %254 = vmatprep.subr.bf16.mxu0 0
    %255 = vmatpush1.bf16.msra.mxu0 0
    %256 = vmatprep.subr.bf16.mxu0 0
    %257 = vmatpush1.bf16.msra.mxu0 0
    %258 = vmatprep.subr.bf16.mxu0 0
    %259 = vmatpush1.bf16.msra.mxu0 0
    %260 = vmatprep.subr.bf16.mxu0 0
    %261 = vmatpush1.bf16.msra.mxu0 0
    %262 = vmatprep.subr.bf16.mxu0 0
    %263 = vmatpush1.bf16.msra.mxu0 0
    %264 = vmatprep.mubr.bf16.mxu0 0
    %265 = vmatmul.mubr.bf16.gmra.mrb[0].mxu0 %v152
    %v266 = vpop.f32.mrb[0].mxu0
    %v267 = vadd.f32 0.0, %v266
    %v268 = vpop.f32.mrb[0].mxu0
    %v269 = vpop.f32.mrb[0].mxu0
    %v270 = vadd.f32 0.0, %v269
    %v271 = vpop.f32.mrb[0].mxu0
    %272 = vmatprep.mubr.bf16.mxu0 0
    %273 = vmatmul.mubr.bf16.gmra.mrb[0].mxu0 %v153
    %v274 = vpop.f32.mrb[0].mxu0
    %v275 = vadd.f32 0.0, %v274
    %v276 = vpop.f32.mrb[0].mxu0
    %v277 = vpop.f32.mrb[0].mxu0
    %v278 = vadd.f32 0.0, %v277
    %v279 = vpop.f32.mrb[0].mxu0
    %280 = vmatprep.mubr.bf16.mxu0 0
    %281 = vmatmul.mubr.bf16.gmra.mrb[0].mxu0 %v154
    %v282 = vpop.f32.mrb[0].mxu0
    %v283 = vadd.f32 0.0, %v282
    %v284 = vpop.f32.mrb[0].mxu0
    %v285 = vpop.f32.mrb[0].mxu0
    %v286 = vadd.f32 0.0, %v285
    %v287 = vpop.f32.mrb[0].mxu0
    %288 = vmatprep.mubr.bf16.mxu0 0
    %289 = vmatmul.mubr.bf16.gmra.mrb[0].mxu0 %v155
    %v290 = vpop.f32.mrb[0].mxu0
    %v291 = vadd.f32 0.0, %v290
    %v292 = vpop.f32.mrb[0].mxu0
    %v293 = vpop.f32.mrb[0].mxu0
    %v294 = vadd.f32 0.0, %v293
    %v295 = vpop.f32.mrb[0].mxu0
    %296 = vmatprep.mubr.bf16.mxu0 0
    %297 = vmatmul.mubr.bf16.gmra.mrb[0].mxu0 %v156
    %v298 = vpop.f32.mrb[0].mxu0
    %v299 = vadd.f32 0.0, %v298
    %v300 = vpop.f32.mrb[0].mxu0
    %v301 = vpop.f32.mrb[0].mxu0
    %v302 = vadd.f32 0.0, %v301
    %v303 = vpop.f32.mrb[0].mxu0
    %304 = vmatprep.mubr.bf16.mxu0 0
    %305 = vmatmul.mubr.bf16.gmra.mrb[0].mxu0 %v157
    %v306 = vpop.f32.mrb[0].mxu0
    %v307 = vadd.f32 0.0, %v306
    %v308 = vpop.f32.mrb[0].mxu0
    %v309 = vpop.f32.mrb[0].mxu0
    %v310 = vadd.f32 0.0, %v309
    %v311 = vpop.f32.mrb[0].mxu0
    %312 = vmatprep.mubr.bf16.mxu0 0
    %313 = vmatmul.mubr.bf16.gmra.mrb[0].mxu0 %v158
    %v314 = vpop.f32.mrb[0].mxu0
    %v315 = vadd.f32 0.0, %v314
    %v316 = vpop.f32.mrb[0].mxu0
    %v317 = vpop.f32.mrb[0].mxu0
    %v318 = vadd.f32 0.0, %v317
    %v319 = vpop.f32.mrb[0].mxu0
    %320 = vmatprep.mubr.bf16.mxu0 0
    %321 = vmatmul.mubr.bf16.gmra.mrb[0].mxu0 %v159
    %v322 = vpop.f32.mrb[0].mxu0
    %v323 = vadd.f32 0.0, %v322
    %v324 = vpop.f32.mrb[0].mxu0
    %v325 = vpop.f32.mrb[0].mxu0
    %v326 = vadd.f32 0.0, %v325
    %v327 = vpop.f32.mrb[0].mxu0
    %328 = vmatprep.mubr.bf16.mxu0 0
    %329 = vmatmul.mubr.bf16.gmra.mrb[0].mxu0 %v160
    %v330 = vpop.f32.mrb[0].mxu0
    %v331 = vadd.f32 0.0, %v330
    %v332 = vpop.f32.mrb[0].mxu0
    %v333 = vpop.f32.mrb[0].mxu0
    %v334 = vadd.f32 0.0, %v333
    %v335 = vpop.f32.mrb[0].mxu0
    %336 = vmatprep.mubr.bf16.mxu0 0
    %337 = vmatmul.mubr.bf16.gmra.mrb[0].mxu0 %v161
    %v338 = vpop.f32.mrb[0].mxu0
    %v339 = vadd.f32 0.0, %v338
    %v340 = vpop.f32.mrb[0].mxu0
    %v341 = vpop.f32.mrb[0].mxu0
    %v342 = vadd.f32 0.0, %v341
    %v343 = vpop.f32.mrb[0].mxu0
    %344 = vmatprep.mubr.bf16.mxu0 0
    %345 = vmatmul.mubr.bf16.gmra.mrb[0].mxu0 %v162
    %v346 = vpop.f32.mrb[0].mxu0
    %v347 = vadd.f32 0.0, %v346
    %v348 = vpop.f32.mrb[0].mxu0
    %v349 = vpop.f32.mrb[0].mxu0
    %v350 = vadd.f32 0.0, %v349
    %v351 = vpop.f32.mrb[0].mxu0
    %352 = vmatprep.mubr.bf16.mxu0 0
    %353 = vmatmul.mubr.bf16.gmra.mrb[0].mxu0 %v163
    %v354 = vpop.f32.mrb[0].mxu0
    %v355 = vadd.f32 0.0, %v354
    %v356 = vpop.f32.mrb[0].mxu0
    %v357 = vpop.f32.mrb[0].mxu0
    %v358 = vadd.f32 0.0, %v357
    %v359 = vpop.f32.mrb[0].mxu0
    %360 = vmatprep.mubr.bf16.mxu0 0
    %361 = vmatmul.mubr.bf16.gmra.mrb[0].mxu0 %v164
    %v362 = vpop.f32.mrb[0].mxu0
    %v363 = vadd.f32 0.0, %v362
    %v364 = vpop.f32.mrb[0].mxu0
    %v365 = vpop.f32.mrb[0].mxu0
    %v366 = vadd.f32 0.0, %v365
    %v367 = vpop.f32.mrb[0].mxu0
    %368 = vmatprep.mubr.bf16.mxu0 0
    %369 = vmatmul.mubr.bf16.gmra.mrb[0].mxu0 %v165
    %v370 = vpop.f32.mrb[0].mxu0
    %v371 = vadd.f32 0.0, %v370
    %v372 = vpop.f32.mrb[0].mxu0
    %v373 = vpop.f32.mrb[0].mxu0
    %v374 = vadd.f32 0.0, %v373
    %v375 = vpop.f32.mrb[0].mxu0
    %376 = vmatprep.mubr.bf16.mxu0 0
    %377 = vmatmul.mubr.bf16.gmra.mrb[0].mxu0 %v166
    %v378 = vpop.f32.mrb[0].mxu0
    %v379 = vadd.f32 0.0, %v378
    %v380 = vpop.f32.mrb[0].mxu0
    %v381 = vpop.f32.mrb[0].mxu0
    %v382 = vadd.f32 0.0, %v381
    %v383 = vpop.f32.mrb[0].mxu0
    %384 = vmatprep.mubr.bf16.mxu0 0
    %385 = vmatmul.mubr.bf16.gmra.mrb[0].mxu0 %v167
    %v386 = vpop.f32.mrb[0].mxu0
    %v387 = vadd.f32 0.0, %v386
    %v388 = vpop.f32.mrb[0].mxu0
    %v389 = vpop.f32.mrb[0].mxu0
    %v390 = vadd.f32 0.0, %v389
    %v391 = vpop.f32.mrb[0].mxu0
    %392 = vdwg.mxu0
    %v393 = vpack.c.bf16 %v270, %v267
    %v394 = vpack.c.bf16 %v278, %v275
    %v395 = vpack.c.bf16 %v286, %v283
    %v396 = vpack.c.bf16 %v294, %v291
    %v397 = vpack.c.bf16 %v302, %v299
    %v398 = vpack.c.bf16 %v310, %v307
    %v399 = vpack.c.bf16 %v318, %v315
    %v400 = vpack.c.bf16 %v326, %v323
    %v401 = vpack.c.bf16 %v334, %v331
    %v402 = vpack.c.bf16 %v342, %v339
    %v403 = vpack.c.bf16 %v350, %v347
    %v404 = vpack.c.bf16 %v358, %v355
    %v405 = vpack.c.bf16 %v366, %v363
    %v406 = vpack.c.bf16 %v374, %v371
    %v407 = vpack.c.bf16 %v382, %v379
    %v408 = vpack.c.bf16 %v390, %v387
    %v425 = vunpack.c.l.b16 %v393
    %v426 = vunpack.c.h.b16 %v393
    %v427 = vunpack.c.l.b16 %v394
    %v428 = vunpack.c.h.b16 %v394
    %v429 = vunpack.c.l.b16 %v395
    %v430 = vunpack.c.h.b16 %v395
    %v431 = vunpack.c.l.b16 %v396
    %v432 = vunpack.c.h.b16 %v396
    %v433 = vunpack.c.l.b16 %v397
    %v434 = vunpack.c.h.b16 %v397
    %v435 = vunpack.c.l.b16 %v398
    %v436 = vunpack.c.h.b16 %v398
    %v437 = vunpack.c.l.b16 %v399
    %v438 = vunpack.c.h.b16 %v399
    %v439 = vunpack.c.l.b16 %v400
    %v440 = vunpack.c.h.b16 %v400
    %v441 = vunpack.c.l.b16 %v401
    %v442 = vunpack.c.h.b16 %v401
    %v443 = vunpack.c.l.b16 %v402
    %v444 = vunpack.c.h.b16 %v402
    %v445 = vunpack.c.l.b16 %v403
    %v446 = vunpack.c.h.b16 %v403
    %v447 = vunpack.c.l.b16 %v404
    %v448 = vunpack.c.h.b16 %v404
    %v449 = vunpack.c.l.b16 %v405
    %v450 = vunpack.c.h.b16 %v405
    %v451 = vunpack.c.l.b16 %v406
    %v452 = vunpack.c.h.b16 %v406
    %v453 = vunpack.c.l.b16 %v407
    %v454 = vunpack.c.h.b16 %v407
    %v455 = vunpack.c.l.b16 %v408
    %v456 = vunpack.c.h.b16 %v408
    %v457 = vpack.c.b16 %v425, %v425
    %v458 = vpack.c.b16 %v426, %v426
    %v459 = vpack.c.b16 %v427, %v427
    %v460 = vpack.c.b16 %v428, %v428
    %v461 = vpack.c.b16 %v429, %v429
    %v462 = vpack.c.b16 %v430, %v430
    %v463 = vpack.c.b16 %v431, %v431
    %v464 = vpack.c.b16 %v432, %v432
    %v465 = vpack.c.b16 %v433, %v433
    %v466 = vpack.c.b16 %v434, %v434
    %v467 = vpack.c.b16 %v435, %v435
    %v468 = vpack.c.b16 %v436, %v436
    %v469 = vpack.c.b16 %v437, %v437
    %v470 = vpack.c.b16 %v438, %v438
    %v471 = vpack.c.b16 %v439, %v439
    %v472 = vpack.c.b16 %v440, %v440
    %v473 = vpack.c.b16 %v441, %v441
    %v474 = vpack.c.b16 %v442, %v442
    %v475 = vpack.c.b16 %v443, %v443
    %v476 = vpack.c.b16 %v444, %v444
    %v477 = vpack.c.b16 %v445, %v445
    %v478 = vpack.c.b16 %v446, %v446
    %v479 = vpack.c.b16 %v447, %v447
    %v480 = vpack.c.b16 %v448, %v448
    %v481 = vpack.c.b16 %v449, %v449
    %v482 = vpack.c.b16 %v450, %v450
    %v483 = vpack.c.b16 %v451, %v451
    %v484 = vpack.c.b16 %v452, %v452
    %v485 = vpack.c.b16 %v453, %v453
    %v486 = vpack.c.b16 %v454, %v454
    %v487 = vpack.c.b16 %v455, %v455
    %v488 = vpack.c.b16 %v456, %v456
    %521 = vst [vmem:[%s2] sm:$0xf] %v457
    %522 = vst [vmem:[%s2 + $0x4] sm:$0xf] %v458
    %523 = vst [vmem:[%s2 + $0x8] sm:$0xf] %v459
    %524 = vst [vmem:[%s2 + $0xc] sm:$0xf] %v460
    %525 = vst [vmem:[%s2 + $0x10] sm:$0xf] %v461
    %526 = vst [vmem:[%s2 + $0x14] sm:$0xf] %v462
    %527 = vst [vmem:[%s2 + $0x18] sm:$0xf] %v463
    %528 = vst [vmem:[%s2 + $0x1c] sm:$0xf] %v464
    %529 = vst [vmem:[%s2 + $0x20] sm:$0xf] %v465
    %530 = vst [vmem:[%s2 + $0x24] sm:$0xf] %v466
    %531 = vst [vmem:[%s2 + $0x28] sm:$0xf] %v467
    %532 = vst [vmem:[%s2 + $0x2c] sm:$0xf] %v468
    %533 = vst [vmem:[%s2 + $0x30] sm:$0xf] %v469
    %534 = vst [vmem:[%s2 + $0x34] sm:$0xf] %v470
    %535 = vst [vmem:[%s2 + $0x38] sm:$0xf] %v471
    %536 = vst [vmem:[%s2 + $0x3c] sm:$0xf] %v472
    %537 = vst [vmem:[%s2 + $0x40] sm:$0xf] %v473
    %538 = vst [vmem:[%s2 + $0x44] sm:$0xf] %v474
    %539 = vst [vmem:[%s2 + $0x48] sm:$0xf] %v475
    %540 = vst [vmem:[%s2 + $0x4c] sm:$0xf] %v476
    %541 = vst [vmem:[%s2 + $0x50] sm:$0xf] %v477
    %542 = vst [vmem:[%s2 + $0x54] sm:$0xf] %v478
    %543 = vst [vmem:[%s2 + $0x58] sm:$0xf] %v479
    %544 = vst [vmem:[%s2 + $0x5c] sm:$0xf] %v480
    %545 = vst [vmem:[%s2 + $0x60] sm:$0xf] %v481
    %546 = vst [vmem:[%s2 + $0x64] sm:$0xf] %v482
    %547 = vst [vmem:[%s2 + $0x68] sm:$0xf] %v483
    %548 = vst [vmem:[%s2 + $0x6c] sm:$0xf] %v484
    %549 = vst [vmem:[%s2 + $0x70] sm:$0xf] %v485
    %550 = vst [vmem:[%s2 + $0x74] sm:$0xf] %v486
    %551 = vst [vmem:[%s2 + $0x78] sm:$0xf] %v487
    %552 = vst [vmem:[%s2 + $0x7c] sm:$0xf] %v488
    // Predicated region
    $region18: #{net_forward.4} parent=1 // pred_check
      _
    $region19: #{net_forward.4} parent=1 // pred_check_branch
      %554 = sbr.rel (0) target = $region21
    $region20: #{net_forward.4} parent=1 // pred_region
      _
    $region21: #{net_forward.4} parent=1 // pred_fallthru
      _
    // Predicated region
    $region22: #{net_forward.4} parent=1 // pred_check
      _
    $region23: #{net_forward.4} parent=1 // pred_check_branch
      %556 = sbr.rel (0) target = $region25
    $region24: #{net_forward.4} parent=1 // pred_region
      _
    $region25: #{net_forward.4} parent=1 // pred_fallthru
      _
    %557 = vsyncpa [#allocation3], 1
    %558 = vsyncpa [#allocation5], 1

// kernel: net_forward.5
$region0: #{net_forward.5}
  #allocation0 [shape = 'u32[]', space=smem, size = 0x4, offset = 0x4, fixed_abs, tag = 'smem constant byte address 0x4 - core index']
  #allocation1 [shape = 'u32[144,128]{1,0:T(1,128)}', space=vmem, size = 0x12000, scoped, tag = 'internal scratch']
  %s0 = inlined_call_operand.vmem [shape: bf16[256,256], index: 0, kind: input, shape index: {}]
  %s1 = inlined_call_operand.vmem [shape: bf16[256,128], index: 1, kind: input, shape index: {}]
  %s2 = inlined_call_operand.vmem [shape: f32[1,128], index: 2, kind: input, shape index: {}]
  %s3 = inlined_call_operand.vmem [shape: bf16[128,128], index: 3, kind: input, shape index: {}]
  %s4 = inlined_call_operand.vmem [shape: bf16[256,128], index: 4, kind: output, shape index: {}]
  %s5 = sld [smem:[#allocation0]]
  $region26: #{net_forward.5} parent=0
    _
  %s7 = ssub.s32 1, %s5
  %s8 = scalar_select 0, %s7, %s5
  // Predicated region
  $region2: #{net_forward.5} parent=0 // pred_check
    _
  $region3: #{net_forward.5} parent=0 // pred_check_branch
    %10 = sbr.rel (0) target = $region5
  $region4: #{net_forward.5} parent=0 // pred_region
    _
  $region5: #{net_forward.5} parent=0 // pred_fallthru
    _
  // Predicated region
  $region6: #{net_forward.5} parent=0 // pred_check
    _
  $region7: #{net_forward.5} parent=0 // pred_check_branch
    %12 = sbr.rel (0) target = $region9
  $region8: #{net_forward.5} parent=0 // pred_region
    _
  $region9: #{net_forward.5} parent=0 // pred_fallthru
    _
  // Predicated region
  $region10: #{net_forward.5} parent=0 // pred_check
    _
  $region11: #{net_forward.5} parent=0 // pred_check_branch
    %14 = sbr.rel (0) target = $region13
  $region12: #{net_forward.5} parent=0 // pred_region
    _
  $region13: #{net_forward.5} parent=0 // pred_fallthru
    _
  // Predicated region
  $region14: #{net_forward.5} parent=0 // pred_check
    _
  $region15: #{net_forward.5} parent=0 // pred_check_branch
    %16 = sbr.rel (0) target = $region17
  $region16: #{net_forward.5} parent=0 // pred_region
    _
  $region17: #{net_forward.5} parent=0 // pred_fallthru
    _
  %v18 = vld [vmem:[%s0] sm:$0xff]
  %v19 = vld [vmem:[%s0 + $0x8] sm:$0xff]
  %v20 = vld [vmem:[%s0 + $0x10] sm:$0xff]
  %v21 = vld [vmem:[%s0 + $0x18] sm:$0xff]
  %v22 = vld [vmem:[%s0 + $0x20] sm:$0xff]
  %v23 = vld [vmem:[%s0 + $0x28] sm:$0xff]
  %v24 = vld [vmem:[%s0 + $0x30] sm:$0xff]
  %v25 = vld [vmem:[%s0 + $0x38] sm:$0xff]
  %v26 = vld [vmem:[%s0 + $0x40] sm:$0xff]
  %v27 = vld [vmem:[%s0 + $0x48] sm:$0xff]
  %v28 = vld [vmem:[%s0 + $0x50] sm:$0xff]
  %v29 = vld [vmem:[%s0 + $0x58] sm:$0xff]
  %v30 = vld [vmem:[%s0 + $0x60] sm:$0xff]
  %v31 = vld [vmem:[%s0 + $0x68] sm:$0xff]
  %v32 = vld [vmem:[%s0 + $0x70] sm:$0xff]
  %v33 = vld [vmem:[%s0 + $0x78] sm:$0xff]
  %v34 = vld [vmem:[%s0 + $0x80] sm:$0xff]
  %v35 = vld [vmem:[%s0 + $0x88] sm:$0xff]
  %v36 = vld [vmem:[%s0 + $0x90] sm:$0xff]
  %v37 = vld [vmem:[%s0 + $0x98] sm:$0xff]
  %v38 = vld [vmem:[%s0 + $0xa0] sm:$0xff]
  %v39 = vld [vmem:[%s0 + $0xa8] sm:$0xff]
  %v40 = vld [vmem:[%s0 + $0xb0] sm:$0xff]
  %v41 = vld [vmem:[%s0 + $0xb8] sm:$0xff]
  %v42 = vld [vmem:[%s0 + $0xc0] sm:$0xff]
  %v43 = vld [vmem:[%s0 + $0xc8] sm:$0xff]
  %v44 = vld [vmem:[%s0 + $0xd0] sm:$0xff]
  %v45 = vld [vmem:[%s0 + $0xd8] sm:$0xff]
  %v46 = vld [vmem:[%s0 + $0xe0] sm:$0xff]
  %v47 = vld [vmem:[%s0 + $0xe8] sm:$0xff]
  %v48 = vld [vmem:[%s0 + $0xf0] sm:$0xff]
  %v49 = vld [vmem:[%s0 + $0xf8] sm:$0xff]
  %v50 = vld [vmem:[%s1] sm:$0xf]
  %v51 = vld [vmem:[%s1 + $0x4] sm:$0xf]
  %v52 = vld [vmem:[%s1 + $0x8] sm:$0xf]
  %v53 = vld [vmem:[%s1 + $0xc] sm:$0xf]
  %v54 = vld [vmem:[%s1 + $0x10] sm:$0xf]
  %v55 = vld [vmem:[%s1 + $0x14] sm:$0xf]
  %v56 = vld [vmem:[%s1 + $0x18] sm:$0xf]
  %v57 = vld [vmem:[%s1 + $0x1c] sm:$0xf]
  %v58 = vld [vmem:[%s1 + $0x20] sm:$0xf]
  %v59 = vld [vmem:[%s1 + $0x24] sm:$0xf]
  %v60 = vld [vmem:[%s1 + $0x28] sm:$0xf]
  %v61 = vld [vmem:[%s1 + $0x2c] sm:$0xf]
  %v62 = vld [vmem:[%s1 + $0x30] sm:$0xf]
  %v63 = vld [vmem:[%s1 + $0x34] sm:$0xf]
  %v64 = vld [vmem:[%s1 + $0x38] sm:$0xf]
  %v65 = vld [vmem:[%s1 + $0x3c] sm:$0xf]
  %v66 = vld [vmem:[%s1 + $0x40] sm:$0xf]
  %v67 = vld [vmem:[%s1 + $0x44] sm:$0xf]
  %v68 = vld [vmem:[%s1 + $0x48] sm:$0xf]
  %v69 = vld [vmem:[%s1 + $0x4c] sm:$0xf]
  %v70 = vld [vmem:[%s1 + $0x50] sm:$0xf]
  %v71 = vld [vmem:[%s1 + $0x54] sm:$0xf]
  %v72 = vld [vmem:[%s1 + $0x58] sm:$0xf]
  %v73 = vld [vmem:[%s1 + $0x5c] sm:$0xf]
  %v74 = vld [vmem:[%s1 + $0x60] sm:$0xf]
  %v75 = vld [vmem:[%s1 + $0x64] sm:$0xf]
  %v76 = vld [vmem:[%s1 + $0x68] sm:$0xf]
  %v77 = vld [vmem:[%s1 + $0x6c] sm:$0xf]
  %v78 = vld [vmem:[%s1 + $0x70] sm:$0xf]
  %v79 = vld [vmem:[%s1 + $0x74] sm:$0xf]
  %v80 = vld [vmem:[%s1 + $0x78] sm:$0xf]
  %v81 = vld [vmem:[%s1 + $0x7c] sm:$0xf]
  %v82 = vld [vmem:[%s2] sm:$0x1]
  %v84 = vlaneseq
  %v85 = vshrl.u32 %v84, 7
  %v86 = vsub.s32 0, %v85
  %v87 = vrot.slane %v82, %v86
  %v121 = vunpack.c.l.b16 %v18
  %v122 = vunpack.c.h.b16 %v18
  %v123 = vunpack.c.l.b16 %v19
  %v124 = vunpack.c.h.b16 %v19
  %v125 = vunpack.c.l.b16 %v20
  %v126 = vunpack.c.h.b16 %v20
  %v127 = vunpack.c.l.b16 %v21
  %v128 = vunpack.c.h.b16 %v21
  %v129 = vunpack.c.l.b16 %v22
  %v130 = vunpack.c.h.b16 %v22
  %v131 = vunpack.c.l.b16 %v23
  %v132 = vunpack.c.h.b16 %v23
  %v133 = vunpack.c.l.b16 %v24
  %v134 = vunpack.c.h.b16 %v24
  %v135 = vunpack.c.l.b16 %v25
  %v136 = vunpack.c.h.b16 %v25
  %v137 = vunpack.c.l.b16 %v26
  %v138 = vunpack.c.h.b16 %v26
  %v139 = vunpack.c.l.b16 %v27
  %v140 = vunpack.c.h.b16 %v27
  %v141 = vunpack.c.l.b16 %v28
  %v142 = vunpack.c.h.b16 %v28
  %v143 = vunpack.c.l.b16 %v29
  %v144 = vunpack.c.h.b16 %v29
  %v145 = vunpack.c.l.b16 %v30
  %v146 = vunpack.c.h.b16 %v30
  %v147 = vunpack.c.l.b16 %v31
  %v148 = vunpack.c.h.b16 %v31
  %v149 = vunpack.c.l.b16 %v32
  %v150 = vunpack.c.h.b16 %v32
  %v151 = vunpack.c.l.b16 %v33
  %v152 = vunpack.c.h.b16 %v33
  %v153 = vunpack.c.l.b16 %v34
  %v154 = vunpack.c.h.b16 %v34
  %v155 = vunpack.c.l.b16 %v35
  %v156 = vunpack.c.h.b16 %v35
  %v157 = vunpack.c.l.b16 %v36
  %v158 = vunpack.c.h.b16 %v36
  %v159 = vunpack.c.l.b16 %v37
  %v160 = vunpack.c.h.b16 %v37
  %v161 = vunpack.c.l.b16 %v38
  %v162 = vunpack.c.h.b16 %v38
  %v163 = vunpack.c.l.b16 %v39
  %v164 = vunpack.c.h.b16 %v39
  %v165 = vunpack.c.l.b16 %v40
  %v166 = vunpack.c.h.b16 %v40
  %v167 = vunpack.c.l.b16 %v41
  %v168 = vunpack.c.h.b16 %v41
  %v169 = vunpack.c.l.b16 %v42
  %v170 = vunpack.c.h.b16 %v42
  %v171 = vunpack.c.l.b16 %v43
  %v172 = vunpack.c.h.b16 %v43
  %v173 = vunpack.c.l.b16 %v44
  %v174 = vunpack.c.h.b16 %v44
  %v175 = vunpack.c.l.b16 %v45
  %v176 = vunpack.c.h.b16 %v45
  %v177 = vunpack.c.l.b16 %v46
  %v178 = vunpack.c.h.b16 %v46
  %v179 = vunpack.c.l.b16 %v47
  %v180 = vunpack.c.h.b16 %v47
  %v181 = vunpack.c.l.b16 %v48
  %v182 = vunpack.c.h.b16 %v48
  %v183 = vunpack.c.l.b16 %v49
  %v184 = vunpack.c.h.b16 %v49
  %v185 = vpack.c.b16 %v123, %v121
  %v186 = vpack.c.b16 %v124, %v122
  %v187 = vpack.c.b16 %v127, %v125
  %v188 = vpack.c.b16 %v128, %v126
  %v189 = vpack.c.b16 %v131, %v129
  %v190 = vpack.c.b16 %v132, %v130
  %v191 = vpack.c.b16 %v135, %v133
  %v192 = vpack.c.b16 %v136, %v134
  %v193 = vpack.c.b16 %v139, %v137
  %v194 = vpack.c.b16 %v140, %v138
  %v195 = vpack.c.b16 %v143, %v141
  %v196 = vpack.c.b16 %v144, %v142
  %v197 = vpack.c.b16 %v147, %v145
  %v198 = vpack.c.b16 %v148, %v146
  %v199 = vpack.c.b16 %v151, %v149
  %v200 = vpack.c.b16 %v152, %v150
  %v201 = vpack.c.b16 %v155, %v153
  %v202 = vpack.c.b16 %v156, %v154
  %v203 = vpack.c.b16 %v159, %v157
  %v204 = vpack.c.b16 %v160, %v158
  %v205 = vpack.c.b16 %v163, %v161
  %v206 = vpack.c.b16 %v164, %v162
  %v207 = vpack.c.b16 %v167, %v165
  %v208 = vpack.c.b16 %v168, %v166
  %v209 = vpack.c.b16 %v171, %v169
  %v210 = vpack.c.b16 %v172, %v170
  %v211 = vpack.c.b16 %v175, %v173
  %v212 = vpack.c.b16 %v176, %v174
  %v213 = vpack.c.b16 %v179, %v177
  %v214 = vpack.c.b16 %v180, %v178
  %v215 = vpack.c.b16 %v183, %v181
  %v216 = vpack.c.b16 %v184, %v182
  %v281 = vunpack.c.l.b16 %v50
  %v282 = vunpack.c.l.b16 %v51
  %v283 = vunpack.c.l.b16 %v52
  %v284 = vunpack.c.l.b16 %v53
  %v285 = vunpack.c.l.b16 %v54
  %v286 = vunpack.c.l.b16 %v55
  %v287 = vunpack.c.l.b16 %v56
  %v288 = vunpack.c.l.b16 %v57
  %v289 = vunpack.c.l.b16 %v58
  %v290 = vunpack.c.l.b16 %v59
  %v291 = vunpack.c.l.b16 %v60
  %v292 = vunpack.c.l.b16 %v61
  %v293 = vunpack.c.l.b16 %v62
  %v294 = vunpack.c.l.b16 %v63
  %v295 = vunpack.c.l.b16 %v64
  %v296 = vunpack.c.l.b16 %v65
  %v297 = vunpack.c.l.b16 %v66
  %v298 = vunpack.c.l.b16 %v67
  %v299 = vunpack.c.l.b16 %v68
  %v300 = vunpack.c.l.b16 %v69
  %v301 = vunpack.c.l.b16 %v70
  %v302 = vunpack.c.l.b16 %v71
  %v303 = vunpack.c.l.b16 %v72
  %v304 = vunpack.c.l.b16 %v73
  %v305 = vunpack.c.l.b16 %v74
  %v306 = vunpack.c.l.b16 %v75
  %v307 = vunpack.c.l.b16 %v76
  %v308 = vunpack.c.l.b16 %v77
  %v309 = vunpack.c.l.b16 %v78
  %v310 = vunpack.c.l.b16 %v79
  %v311 = vunpack.c.l.b16 %v80
  %v312 = vunpack.c.l.b16 %v81
  %v313 = vpack.c.b16 %v282, %v281
  %v314 = vpack.c.b16 %v284, %v283
  %v315 = vpack.c.b16 %v286, %v285
  %v316 = vpack.c.b16 %v288, %v287
  %v317 = vpack.c.b16 %v290, %v289
  %v318 = vpack.c.b16 %v292, %v291
  %v319 = vpack.c.b16 %v294, %v293
  %v320 = vpack.c.b16 %v296, %v295
  %v321 = vpack.c.b16 %v298, %v297
  %v322 = vpack.c.b16 %v300, %v299
  %v323 = vpack.c.b16 %v302, %v301
  %v324 = vpack.c.b16 %v304, %v303
  %v325 = vpack.c.b16 %v306, %v305
  %v326 = vpack.c.b16 %v308, %v307
  %v327 = vpack.c.b16 %v310, %v309
  %v328 = vpack.c.b16 %v312, %v311
  %345 = vmatprep.subr.bf16.mxu0 0
  %346 = vmatpush1.bf16.msra.mxu0 %v313
  %347 = vmatprep.subr.bf16.mxu0 0
  %348 = vmatpush1.bf16.msra.mxu0 %v314
  %349 = vmatprep.subr.bf16.mxu0 0
  %350 = vmatpush1.bf16.msra.mxu0 %v315
  %351 = vmatprep.subr.bf16.mxu0 0
  %352 = vmatpush1.bf16.msra.mxu0 %v316
  %353 = vmatprep.subr.bf16.mxu0 0
  %354 = vmatpush1.bf16.msra.mxu0 %v317
  %355 = vmatprep.subr.bf16.mxu0 0
  %356 = vmatpush1.bf16.msra.mxu0 %v318
  %357 = vmatprep.subr.bf16.mxu0 0
  %358 = vmatpush1.bf16.msra.mxu0 %v319
  %359 = vmatprep.subr.bf16.mxu0 0
  %360 = vmatpush1.bf16.msra.mxu0 %v320
  %361 = vmatprep.subr.bf16.mxu0 0
  %362 = vmatpush1.bf16.msra.mxu0 %v321
  %363 = vmatprep.subr.bf16.mxu0 0
  %364 = vmatpush1.bf16.msra.mxu0 %v322
  %365 = vmatprep.subr.bf16.mxu0 0
  %366 = vmatpush1.bf16.msra.mxu0 %v323
  %367 = vmatprep.subr.bf16.mxu0 0
  %368 = vmatpush1.bf16.msra.mxu0 %v324
  %369 = vmatprep.subr.bf16.mxu0 0
  %370 = vmatpush1.bf16.msra.mxu0 %v325
  %371 = vmatprep.subr.bf16.mxu0 0
  %372 = vmatpush1.bf16.msra.mxu0 %v326
  %373 = vmatprep.subr.bf16.mxu0 0
  %374 = vmatpush1.bf16.msra.mxu0 %v327
  %375 = vmatprep.subr.bf16.mxu0 0
  %376 = vmatpush1.bf16.msra.mxu0 %v328
  %377 = vmatprep.mubr.bf16.mxu0 %v186
  %378 = vmatmul.mubr.bf16.gmra.mrb[0].mxu0 %v185
  %v379 = vpop.f32.mrb[0].mxu0
  %v380 = vadd.f32 %v87, %v379
  %v381 = vpop.f32.mrb[0].mxu0
  %v382 = vpop.f32.mrb[0].mxu0
  %v383 = vadd.f32 %v87, %v382
  %v384 = vpop.f32.mrb[0].mxu0
  %385 = vmatprep.mubr.bf16.mxu0 %v188
  %386 = vmatmul.mubr.bf16.gmra.mrb[0].mxu0 %v187
  %v387 = vpop.f32.mrb[0].mxu0
  %v388 = vadd.f32 %v87, %v387
  %v389 = vpop.f32.mrb[0].mxu0
  %v390 = vpop.f32.mrb[0].mxu0
  %v391 = vadd.f32 %v87, %v390
  %v392 = vpop.f32.mrb[0].mxu0
  %393 = vmatprep.mubr.bf16.mxu0 %v190
  %394 = vmatmul.mubr.bf16.gmra.mrb[0].mxu0 %v189
  %v395 = vpop.f32.mrb[0].mxu0
  %v396 = vadd.f32 %v87, %v395
  %v397 = vpop.f32.mrb[0].mxu0
  %v398 = vpop.f32.mrb[0].mxu0
  %v399 = vadd.f32 %v87, %v398
  %v400 = vpop.f32.mrb[0].mxu0
  %401 = vmatprep.mubr.bf16.mxu0 %v192
  %402 = vmatmul.mubr.bf16.gmra.mrb[0].mxu0 %v191
  %v403 = vpop.f32.mrb[0].mxu0
  %v404 = vadd.f32 %v87, %v403
  %v405 = vpop.f32.mrb[0].mxu0
  %v406 = vpop.f32.mrb[0].mxu0
  %v407 = vadd.f32 %v87, %v406
  %v408 = vpop.f32.mrb[0].mxu0
  %409 = vmatprep.mubr.bf16.mxu0 %v194
  %410 = vmatmul.mubr.bf16.gmra.mrb[0].mxu0 %v193
  %v411 = vpop.f32.mrb[0].mxu0
  %v412 = vadd.f32 %v87, %v411
  %v413 = vpop.f32.mrb[0].mxu0
  %v414 = vpop.f32.mrb[0].mxu0
  %v415 = vadd.f32 %v87, %v414
  %v416 = vpop.f32.mrb[0].mxu0
  %417 = vmatprep.mubr.bf16.mxu0 %v196
  %418 = vmatmul.mubr.bf16.gmra.mrb[0].mxu0 %v195
  %v419 = vpop.f32.mrb[0].mxu0
  %v420 = vadd.f32 %v87, %v419
  %v421 = vpop.f32.mrb[0].mxu0
  %v422 = vpop.f32.mrb[0].mxu0
  %v423 = vadd.f32 %v87, %v422
  %v424 = vpop.f32.mrb[0].mxu0
  %425 = vmatprep.mubr.bf16.mxu0 %v198
  %426 = vmatmul.mubr.bf16.gmra.mrb[0].mxu0 %v197
  %v427 = vpop.f32.mrb[0].mxu0
  %v428 = vadd.f32 %v87, %v427
  %v429 = vpop.f32.mrb[0].mxu0
  %v430 = vpop.f32.mrb[0].mxu0
  %v431 = vadd.f32 %v87, %v430
  %v432 = vpop.f32.mrb[0].mxu0
  %433 = vmatprep.mubr.bf16.mxu0 %v200
  %434 = vmatmul.mubr.bf16.gmra.mrb[0].mxu0 %v199
  %v435 = vpop.f32.mrb[0].mxu0
  %v436 = vadd.f32 %v87, %v435
  %v437 = vpop.f32.mrb[0].mxu0
  %v438 = vpop.f32.mrb[0].mxu0
  %v439 = vadd.f32 %v87, %v438
  %v440 = vpop.f32.mrb[0].mxu0
  %441 = vmatprep.mubr.bf16.mxu0 %v202
  %442 = vmatmul.mubr.bf16.gmra.mrb[0].mxu0 %v201
  %v443 = vpop.f32.mrb[0].mxu0
  %v444 = vadd.f32 %v87, %v443
  %v445 = vpop.f32.mrb[0].mxu0
  %v446 = vpop.f32.mrb[0].mxu0
  %v447 = vadd.f32 %v87, %v446
  %v448 = vpop.f32.mrb[0].mxu0
  %449 = vmatprep.mubr.bf16.mxu0 %v204
  %450 = vmatmul.mubr.bf16.gmra.mrb[0].mxu0 %v203
  %v451 = vpop.f32.mrb[0].mxu0
  %v452 = vadd.f32 %v87, %v451
  %v453 = vpop.f32.mrb[0].mxu0
  %v454 = vpop.f32.mrb[0].mxu0
  %v455 = vadd.f32 %v87, %v454
  %v456 = vpop.f32.mrb[0].mxu0
  %457 = vmatprep.mubr.bf16.mxu0 %v206
  %458 = vmatmul.mubr.bf16.gmra.mrb[0].mxu0 %v205
  %v459 = vpop.f32.mrb[0].mxu0
  %v460 = vadd.f32 %v87, %v459
  %v461 = vpop.f32.mrb[0].mxu0
  %v462 = vpop.f32.mrb[0].mxu0
  %v463 = vadd.f32 %v87, %v462
  %v464 = vpop.f32.mrb[0].mxu0
  %465 = vmatprep.mubr.bf16.mxu0 %v208
  %466 = vmatmul.mubr.bf16.gmra.mrb[0].mxu0 %v207
  %v467 = vpop.f32.mrb[0].mxu0
  %v468 = vadd.f32 %v87, %v467
  %v469 = vpop.f32.mrb[0].mxu0
  %v470 = vpop.f32.mrb[0].mxu0
  %v471 = vadd.f32 %v87, %v470
  %v472 = vpop.f32.mrb[0].mxu0
  %473 = vmatprep.mubr.bf16.mxu0 %v210
  %474 = vmatmul.mubr.bf16.gmra.mrb[0].mxu0 %v209
  %v475 = vpop.f32.mrb[0].mxu0
  %v476 = vadd.f32 %v87, %v475
  %v477 = vpop.f32.mrb[0].mxu0
  %v478 = vpop.f32.mrb[0].mxu0
  %v479 = vadd.f32 %v87, %v478
  %v480 = vpop.f32.mrb[0].mxu0
  %481 = vmatprep.mubr.bf16.mxu0 %v212
  %482 = vmatmul.mubr.bf16.gmra.mrb[0].mxu0 %v211
  %v483 = vpop.f32.mrb[0].mxu0
  %v484 = vadd.f32 %v87, %v483
  %v485 = vpop.f32.mrb[0].mxu0
  %v486 = vpop.f32.mrb[0].mxu0
  %v487 = vadd.f32 %v87, %v486
  %v488 = vpop.f32.mrb[0].mxu0
  %489 = vmatprep.mubr.bf16.mxu0 %v214
  %490 = vmatmul.mubr.bf16.gmra.mrb[0].mxu0 %v213
  %v491 = vpop.f32.mrb[0].mxu0
  %v492 = vadd.f32 %v87, %v491
  %v493 = vpop.f32.mrb[0].mxu0
  %v494 = vpop.f32.mrb[0].mxu0
  %v495 = vadd.f32 %v87, %v494
  %v496 = vpop.f32.mrb[0].mxu0
  %497 = vmatprep.mubr.bf16.mxu0 %v216
  %498 = vmatmul.mubr.bf16.gmra.mrb[0].mxu0 %v215
  %v499 = vpop.f32.mrb[0].mxu0
  %v500 = vadd.f32 %v87, %v499
  %v501 = vpop.f32.mrb[0].mxu0
  %v502 = vpop.f32.mrb[0].mxu0
  %v503 = vadd.f32 %v87, %v502
  %v504 = vpop.f32.mrb[0].mxu0
  %505 = vdwg.mxu0
  %v506 = vmax.f32 %v380, 0.0
  %v507 = vmax.f32 %v383, 0.0
  %v508 = vmax.f32 %v388, 0.0
  %v509 = vmax.f32 %v391, 0.0
  %v510 = vmax.f32 %v396, 0.0
  %v511 = vmax.f32 %v399, 0.0
  %v512 = vmax.f32 %v404, 0.0
  %v513 = vmax.f32 %v407, 0.0
  %v514 = vmax.f32 %v412, 0.0
  %v515 = vmax.f32 %v415, 0.0
  %v516 = vmax.f32 %v420, 0.0
  %v517 = vmax.f32 %v423, 0.0
  %v518 = vmax.f32 %v428, 0.0
  %v519 = vmax.f32 %v431, 0.0
  %v520 = vmax.f32 %v436, 0.0
  %v521 = vmax.f32 %v439, 0.0
  %v522 = vmax.f32 %v444, 0.0
  %v523 = vmax.f32 %v447, 0.0
  %v524 = vmax.f32 %v452, 0.0
  %v525 = vmax.f32 %v455, 0.0
  %v526 = vmax.f32 %v460, 0.0
  %v527 = vmax.f32 %v463, 0.0
  %v528 = vmax.f32 %v468, 0.0
  %v529 = vmax.f32 %v471, 0.0
  %v530 = vmax.f32 %v476, 0.0
  %v531 = vmax.f32 %v479, 0.0
  %v532 = vmax.f32 %v484, 0.0
  %v533 = vmax.f32 %v487, 0.0
  %v534 = vmax.f32 %v492, 0.0
  %v535 = vmax.f32 %v495, 0.0
  %v536 = vmax.f32 %v500, 0.0
  %v537 = vmax.f32 %v503, 0.0
  %v538 = vpack.c.bf16 %v507, %v506
  %v539 = vpack.c.bf16 %v509, %v508
  %v540 = vpack.c.bf16 %v511, %v510
  %v541 = vpack.c.bf16 %v513, %v512
  %v542 = vpack.c.bf16 %v515, %v514
  %v543 = vpack.c.bf16 %v517, %v516
  %v544 = vpack.c.bf16 %v519, %v518
  %v545 = vpack.c.bf16 %v521, %v520
  %v546 = vpack.c.bf16 %v523, %v522
  %v547 = vpack.c.bf16 %v525, %v524
  %v548 = vpack.c.bf16 %v527, %v526
  %v549 = vpack.c.bf16 %v529, %v528
  %v550 = vpack.c.bf16 %v531, %v530
  %v551 = vpack.c.bf16 %v533, %v532
  %v552 = vpack.c.bf16 %v535, %v534
  %v553 = vpack.c.bf16 %v537, %v536
  %v554 = vld [vmem:[%s3] sm:$0xf]
  %v555 = vld [vmem:[%s3 + $0x4] sm:$0xf]
  %v556 = vld [vmem:[%s3 + $0x8] sm:$0xf]
  %v557 = vld [vmem:[%s3 + $0xc] sm:$0xf]
  %v558 = vld [vmem:[%s3 + $0x10] sm:$0xf]
  %v559 = vld [vmem:[%s3 + $0x14] sm:$0xf]
  %v560 = vld [vmem:[%s3 + $0x18] sm:$0xf]
  %v561 = vld [vmem:[%s3 + $0x1c] sm:$0xf]
  %v562 = vld [vmem:[%s3 + $0x20] sm:$0xf]
  %v563 = vld [vmem:[%s3 + $0x24] sm:$0xf]
  %v564 = vld [vmem:[%s3 + $0x28] sm:$0xf]
  %v565 = vld [vmem:[%s3 + $0x2c] sm:$0xf]
  %v566 = vld [vmem:[%s3 + $0x30] sm:$0xf]
  %v567 = vld [vmem:[%s3 + $0x34] sm:$0xf]
  %v568 = vld [vmem:[%s3 + $0x38] sm:$0xf]
  %v569 = vld [vmem:[%s3 + $0x3c] sm:$0xf]
  %v586 = vunpack.c.l.b16 %v554
  %v587 = vunpack.c.l.b16 %v555
  %v588 = vunpack.c.l.b16 %v556
  %v589 = vunpack.c.l.b16 %v557
  %v590 = vunpack.c.l.b16 %v558
  %v591 = vunpack.c.l.b16 %v559
  %v592 = vunpack.c.l.b16 %v560
  %v593 = vunpack.c.l.b16 %v561
  %v594 = vunpack.c.l.b16 %v562
  %v595 = vunpack.c.l.b16 %v563
  %v596 = vunpack.c.l.b16 %v564
  %v597 = vunpack.c.l.b16 %v565
  %v598 = vunpack.c.l.b16 %v566
  %v599 = vunpack.c.l.b16 %v567
  %v600 = vunpack.c.l.b16 %v568
  %v601 = vunpack.c.l.b16 %v569
  %v602 = vpack.c.b16 %v587, %v586
  %v603 = vpack.c.b16 %v589, %v588
  %v604 = vpack.c.b16 %v591, %v590
  %v605 = vpack.c.b16 %v593, %v592
  %v606 = vpack.c.b16 %v595, %v594
  %v607 = vpack.c.b16 %v597, %v596
  %v608 = vpack.c.b16 %v599, %v598
  %v609 = vpack.c.b16 %v601, %v600
  %618 = vmatprep.subr.bf16.mxu0 0
  %619 = vmatpush1.bf16.msra.mxu0 %v602
  %620 = vmatprep.subr.bf16.mxu0 0
  %621 = vmatpush1.bf16.msra.mxu0 %v603
  %622 = vmatprep.subr.bf16.mxu0 0
  %623 = vmatpush1.bf16.msra.mxu0 %v604
  %624 = vmatprep.subr.bf16.mxu0 0
  %625 = vmatpush1.bf16.msra.mxu0 %v605
  %626 = vmatprep.subr.bf16.mxu0 0
  %627 = vmatpush1.bf16.msra.mxu0 %v606
  %628 = vmatprep.subr.bf16.mxu0 0
  %629 = vmatpush1.bf16.msra.mxu0 %v607
  %630 = vmatprep.subr.bf16.mxu0 0
  %631 = vmatpush1.bf16.msra.mxu0 %v608
  %632 = vmatprep.subr.bf16.mxu0 0
  %633 = vmatpush1.bf16.msra.mxu0 %v609
  %634 = vmatprep.subr.bf16.mxu0 0
  %635 = vmatpush1.bf16.msra.mxu0 0
  %636 = vmatprep.subr.bf16.mxu0 0
  %637 = vmatpush1.bf16.msra.mxu0 0
  %638 = vmatprep.subr.bf16.mxu0 0
  %639 = vmatpush1.bf16.msra.mxu0 0
  %640 = vmatprep.subr.bf16.mxu0 0
  %641 = vmatpush1.bf16.msra.mxu0 0
  %642 = vmatprep.subr.bf16.mxu0 0
  %643 = vmatpush1.bf16.msra.mxu0 0
  %644 = vmatprep.subr.bf16.mxu0 0
  %645 = vmatpush1.bf16.msra.mxu0 0
  %646 = vmatprep.subr.bf16.mxu0 0
  %647 = vmatpush1.bf16.msra.mxu0 0
  %648 = vmatprep.subr.bf16.mxu0 0
  %649 = vmatpush1.bf16.msra.mxu0 0
  %650 = vmatprep.mubr.bf16.mxu0 0
  %651 = vmatmul.mubr.bf16.gmra.mrb[0].mxu0 %v538
  %v652 = vpop.f32.mrb[0].mxu0
  %v653 = vadd.f32 0.0, %v652
  %v654 = vpop.f32.mrb[0].mxu0
  %v655 = vpop.f32.mrb[0].mxu0
  %v656 = vadd.f32 0.0, %v655
  %v657 = vpop.f32.mrb[0].mxu0
  %658 = vmatprep.mubr.bf16.mxu0 0
  %659 = vmatmul.mubr.bf16.gmra.mrb[0].mxu0 %v539
  %v660 = vpop.f32.mrb[0].mxu0
  %v661 = vadd.f32 0.0, %v660
  %v662 = vpop.f32.mrb[0].mxu0
  %v663 = vpop.f32.mrb[0].mxu0
  %v664 = vadd.f32 0.0, %v663
  %v665 = vpop.f32.mrb[0].mxu0
  %666 = vmatprep.mubr.bf16.mxu0 0
  %667 = vmatmul.mubr.bf16.gmra.mrb[0].mxu0 %v540
  %v668 = vpop.f32.mrb[0].mxu0
  %v669 = vadd.f32 0.0, %v668
  %v670 = vpop.f32.mrb[0].mxu0
  %v671 = vpop.f32.mrb[0].mxu0
  %v672 = vadd.f32 0.0, %v671
  %v673 = vpop.f32.mrb[0].mxu0
  %674 = vmatprep.mubr.bf16.mxu0 0
  %675 = vmatmul.mubr.bf16.gmra.mrb[0].mxu0 %v541
  %v676 = vpop.f32.mrb[0].mxu0
  %v677 = vadd.f32 0.0, %v676
  %v678 = vpop.f32.mrb[0].mxu0
  %v679 = vpop.f32.mrb[0].mxu0
  %v680 = vadd.f32 0.0, %v679
  %v681 = vpop.f32.mrb[0].mxu0
  %682 = vmatprep.mubr.bf16.mxu0 0
  %683 = vmatmul.mubr.bf16.gmra.mrb[0].mxu0 %v542
  %v684 = vpop.f32.mrb[0].mxu0
  %v685 = vadd.f32 0.0, %v684
  %v686 = vpop.f32.mrb[0].mxu0
  %v687 = vpop.f32.mrb[0].mxu0
  %v688 = vadd.f32 0.0, %v687
  %v689 = vpop.f32.mrb[0].mxu0
  %690 = vmatprep.mubr.bf16.mxu0 0
  %691 = vmatmul.mubr.bf16.gmra.mrb[0].mxu0 %v543
  %v692 = vpop.f32.mrb[0].mxu0
  %v693 = vadd.f32 0.0, %v692
  %v694 = vpop.f32.mrb[0].mxu0
  %v695 = vpop.f32.mrb[0].mxu0
  %v696 = vadd.f32 0.0, %v695
  %v697 = vpop.f32.mrb[0].mxu0
  %698 = vmatprep.mubr.bf16.mxu0 0
  %699 = vmatmul.mubr.bf16.gmra.mrb[0].mxu0 %v544
  %v700 = vpop.f32.mrb[0].mxu0
  %v701 = vadd.f32 0.0, %v700
  %v702 = vpop.f32.mrb[0].mxu0
  %v703 = vpop.f32.mrb[0].mxu0
  %v704 = vadd.f32 0.0, %v703
  %v705 = vpop.f32.mrb[0].mxu0
  %706 = vmatprep.mubr.bf16.mxu0 0
  %707 = vmatmul.mubr.bf16.gmra.mrb[0].mxu0 %v545
  %v708 = vpop.f32.mrb[0].mxu0
  %v709 = vadd.f32 0.0, %v708
  %v710 = vpop.f32.mrb[0].mxu0
  %v711 = vpop.f32.mrb[0].mxu0
  %v712 = vadd.f32 0.0, %v711
  %v713 = vpop.f32.mrb[0].mxu0
  %714 = vmatprep.mubr.bf16.mxu0 0
  %715 = vmatmul.mubr.bf16.gmra.mrb[0].mxu0 %v546
  %v716 = vpop.f32.mrb[0].mxu0
  %v717 = vadd.f32 0.0, %v716
  %v718 = vpop.f32.mrb[0].mxu0
  %v719 = vpop.f32.mrb[0].mxu0
  %v720 = vadd.f32 0.0, %v719
  %v721 = vpop.f32.mrb[0].mxu0
  %722 = vmatprep.mubr.bf16.mxu0 0
  %723 = vmatmul.mubr.bf16.gmra.mrb[0].mxu0 %v547
  %v724 = vpop.f32.mrb[0].mxu0
  %v725 = vadd.f32 0.0, %v724
  %v726 = vpop.f32.mrb[0].mxu0
  %v727 = vpop.f32.mrb[0].mxu0
  %v728 = vadd.f32 0.0, %v727
  %v729 = vpop.f32.mrb[0].mxu0
  %730 = vmatprep.mubr.bf16.mxu0 0
  %731 = vmatmul.mubr.bf16.gmra.mrb[0].mxu0 %v548
  %v732 = vpop.f32.mrb[0].mxu0
  %v733 = vadd.f32 0.0, %v732
  %v734 = vpop.f32.mrb[0].mxu0
  %v735 = vpop.f32.mrb[0].mxu0
  %v736 = vadd.f32 0.0, %v735
  %v737 = vpop.f32.mrb[0].mxu0
  %738 = vmatprep.mubr.bf16.mxu0 0
  %739 = vmatmul.mubr.bf16.gmra.mrb[0].mxu0 %v549
  %v740 = vpop.f32.mrb[0].mxu0
  %v741 = vadd.f32 0.0, %v740
  %v742 = vpop.f32.mrb[0].mxu0
  %v743 = vpop.f32.mrb[0].mxu0
  %v744 = vadd.f32 0.0, %v743
  %v745 = vpop.f32.mrb[0].mxu0
  %746 = vmatprep.mubr.bf16.mxu0 0
  %747 = vmatmul.mubr.bf16.gmra.mrb[0].mxu0 %v550
  %v748 = vpop.f32.mrb[0].mxu0
  %v749 = vadd.f32 0.0, %v748
  %v750 = vpop.f32.mrb[0].mxu0
  %v751 = vpop.f32.mrb[0].mxu0
  %v752 = vadd.f32 0.0, %v751
  %v753 = vpop.f32.mrb[0].mxu0
  %754 = vmatprep.mubr.bf16.mxu0 0
  %755 = vmatmul.mubr.bf16.gmra.mrb[0].mxu0 %v551
  %v756 = vpop.f32.mrb[0].mxu0
  %v757 = vadd.f32 0.0, %v756
  %v758 = vpop.f32.mrb[0].mxu0
  %v759 = vpop.f32.mrb[0].mxu0
  %v760 = vadd.f32 0.0, %v759
  %v761 = vpop.f32.mrb[0].mxu0
  %762 = vmatprep.mubr.bf16.mxu0 0
  %763 = vmatmul.mubr.bf16.gmra.mrb[0].mxu0 %v552
  %v764 = vpop.f32.mrb[0].mxu0
  %v765 = vadd.f32 0.0, %v764
  %v766 = vpop.f32.mrb[0].mxu0
  %v767 = vpop.f32.mrb[0].mxu0
  %v768 = vadd.f32 0.0, %v767
  %v769 = vpop.f32.mrb[0].mxu0
  %770 = vmatprep.mubr.bf16.mxu0 0
  %771 = vmatmul.mubr.bf16.gmra.mrb[0].mxu0 %v553
  %v772 = vpop.f32.mrb[0].mxu0
  %v773 = vadd.f32 0.0, %v772
  %v774 = vpop.f32.mrb[0].mxu0
  %v775 = vpop.f32.mrb[0].mxu0
  %v776 = vadd.f32 0.0, %v775
  %v777 = vpop.f32.mrb[0].mxu0
  %778 = vdwg.mxu0
  %v779 = vpack.c.bf16 %v656, %v653
  %v780 = vpack.c.bf16 %v664, %v661
  %v781 = vpack.c.bf16 %v672, %v669
  %v782 = vpack.c.bf16 %v680, %v677
  %v783 = vpack.c.bf16 %v688, %v685
  %v784 = vpack.c.bf16 %v696, %v693
  %v785 = vpack.c.bf16 %v704, %v701
  %v786 = vpack.c.bf16 %v712, %v709
  %v787 = vpack.c.bf16 %v720, %v717
  %v788 = vpack.c.bf16 %v728, %v725
  %v789 = vpack.c.bf16 %v736, %v733
  %v790 = vpack.c.bf16 %v744, %v741
  %v791 = vpack.c.bf16 %v752, %v749
  %v792 = vpack.c.bf16 %v760, %v757
  %v793 = vpack.c.bf16 %v768, %v765
  %v794 = vpack.c.bf16 %v776, %v773
  %v811 = vunpack.c.l.b16 %v779
  %v812 = vunpack.c.h.b16 %v779
  %v813 = vunpack.c.l.b16 %v780
  %v814 = vunpack.c.h.b16 %v780
  %v815 = vunpack.c.l.b16 %v781
  %v816 = vunpack.c.h.b16 %v781
  %v817 = vunpack.c.l.b16 %v782
  %v818 = vunpack.c.h.b16 %v782
  %v819 = vunpack.c.l.b16 %v783
  %v820 = vunpack.c.h.b16 %v783
  %v821 = vunpack.c.l.b16 %v784
  %v822 = vunpack.c.h.b16 %v784
  %v823 = vunpack.c.l.b16 %v785
  %v824 = vunpack.c.h.b16 %v785
  %v825 = vunpack.c.l.b16 %v786
  %v826 = vunpack.c.h.b16 %v786
  %v827 = vunpack.c.l.b16 %v787
  %v828 = vunpack.c.h.b16 %v787
  %v829 = vunpack.c.l.b16 %v788
  %v830 = vunpack.c.h.b16 %v788
  %v831 = vunpack.c.l.b16 %v789
  %v832 = vunpack.c.h.b16 %v789
  %v833 = vunpack.c.l.b16 %v790
  %v834 = vunpack.c.h.b16 %v790
  %v835 = vunpack.c.l.b16 %v791
  %v836 = vunpack.c.h.b16 %v791
  %v837 = vunpack.c.l.b16 %v792
  %v838 = vunpack.c.h.b16 %v792
  %v839 = vunpack.c.l.b16 %v793
  %v840 = vunpack.c.h.b16 %v793
  %v841 = vunpack.c.l.b16 %v794
  %v842 = vunpack.c.h.b16 %v794
  %v843 = vpack.c.b16 %v811, %v811
  %v844 = vpack.c.b16 %v812, %v812
  %v845 = vpack.c.b16 %v813, %v813
  %v846 = vpack.c.b16 %v814, %v814
  %v847 = vpack.c.b16 %v815, %v815
  %v848 = vpack.c.b16 %v816, %v816
  %v849 = vpack.c.b16 %v817, %v817
  %v850 = vpack.c.b16 %v818, %v818
  %v851 = vpack.c.b16 %v819, %v819
  %v852 = vpack.c.b16 %v820, %v820
  %v853 = vpack.c.b16 %v821, %v821
  %v854 = vpack.c.b16 %v822, %v822
  %v855 = vpack.c.b16 %v823, %v823
  %v856 = vpack.c.b16 %v824, %v824
  %v857 = vpack.c.b16 %v825, %v825
  %v858 = vpack.c.b16 %v826, %v826
  %v859 = vpack.c.b16 %v827, %v827
  %v860 = vpack.c.b16 %v828, %v828
  %v861 = vpack.c.b16 %v829, %v829
  %v862 = vpack.c.b16 %v830, %v830
  %v863 = vpack.c.b16 %v831, %v831
  %v864 = vpack.c.b16 %v832, %v832
  %v865 = vpack.c.b16 %v833, %v833
  %v866 = vpack.c.b16 %v834, %v834
  %v867 = vpack.c.b16 %v835, %v835
  %v868 = vpack.c.b16 %v836, %v836
  %v869 = vpack.c.b16 %v837, %v837
  %v870 = vpack.c.b16 %v838, %v838
  %v871 = vpack.c.b16 %v839, %v839
  %v872 = vpack.c.b16 %v840, %v840
  %v873 = vpack.c.b16 %v841, %v841
  %v874 = vpack.c.b16 %v842, %v842
  %907 = vst [vmem:[%s4] sm:$0xf] %v843
  %908 = vst [vmem:[%s4 + $0x4] sm:$0xf] %v844
  %909 = vst [vmem:[%s4 + $0x8] sm:$0xf] %v845
  %910 = vst [vmem:[%s4 + $0xc] sm:$0xf] %v846
  %911 = vst [vmem:[%s4 + $0x10] sm:$0xf] %v847
  %912 = vst [vmem:[%s4 + $0x14] sm:$0xf] %v848
  %913 = vst [vmem:[%s4 + $0x18] sm:$0xf] %v849
  %914 = vst [vmem:[%s4 + $0x1c] sm:$0xf] %v850
  %915 = vst [vmem:[%s4 + $0x20] sm:$0xf] %v851
  %916 = vst [vmem:[%s4 + $0x24] sm:$0xf] %v852
  %917 = vst [vmem:[%s4 + $0x28] sm:$0xf] %v853
  %918 = vst [vmem:[%s4 + $0x2c] sm:$0xf] %v854
  %919 = vst [vmem:[%s4 + $0x30] sm:$0xf] %v855
  %920 = vst [vmem:[%s4 + $0x34] sm:$0xf] %v856
  %921 = vst [vmem:[%s4 + $0x38] sm:$0xf] %v857
  %922 = vst [vmem:[%s4 + $0x3c] sm:$0xf] %v858
  %923 = vst [vmem:[%s4 + $0x40] sm:$0xf] %v859
  %924 = vst [vmem:[%s4 + $0x44] sm:$0xf] %v860
  %925 = vst [vmem:[%s4 + $0x48] sm:$0xf] %v861
  %926 = vst [vmem:[%s4 + $0x4c] sm:$0xf] %v862
  %927 = vst [vmem:[%s4 + $0x50] sm:$0xf] %v863
  %928 = vst [vmem:[%s4 + $0x54] sm:$0xf] %v864
  %929 = vst [vmem:[%s4 + $0x58] sm:$0xf] %v865
  %930 = vst [vmem:[%s4 + $0x5c] sm:$0xf] %v866
  %931 = vst [vmem:[%s4 + $0x60] sm:$0xf] %v867
  %932 = vst [vmem:[%s4 + $0x64] sm:$0xf] %v868
  %933 = vst [vmem:[%s4 + $0x68] sm:$0xf] %v869
  %934 = vst [vmem:[%s4 + $0x6c] sm:$0xf] %v870
  %935 = vst [vmem:[%s4 + $0x70] sm:$0xf] %v871
  %936 = vst [vmem:[%s4 + $0x74] sm:$0xf] %v872
  %937 = vst [vmem:[%s4 + $0x78] sm:$0xf] %v873
  %938 = vst [vmem:[%s4 + $0x7c] sm:$0xf] %v874
  // Predicated region
  $region18: #{net_forward.5} parent=0 // pred_check
    _
  $region19: #{net_forward.5} parent=0 // pred_check_branch
    %940 = sbr.rel (0) target = $region21
  $region20: #{net_forward.5} parent=0 // pred_region
    _
  $region21: #{net_forward.5} parent=0 // pred_fallthru
    _
  // Predicated region
  $region22: #{net_forward.5} parent=0 // pred_check
    _
  $region23: #{net_forward.5} parent=0 // pred_check_branch
    %942 = sbr.rel (0) target = $region25
  $region24: #{net_forward.5} parent=0 // pred_region
    _
  $region25: #{net_forward.5} parent=0 // pred_fallthru
    _

// kernel: net_forward.7
$region0: #{net_forward.7}
  #allocation0 [shape = 'u32[]', space=smem, size = 0x4, offset = 0x4, fixed_abs, tag = 'smem constant byte address 0x4 - core index']
  #allocation1 [shape = 'u32[144,128]{1,0:T(1,128)}', space=vmem, size = 0x12000, scoped, tag = 'internal scratch']
  %s0 = inlined_call_operand.vmem [shape: bf16[256,256], index: 0, kind: input, shape index: {}]
  %s1 = inlined_call_operand.vmem [shape: bf16[256,128], index: 1, kind: input, shape index: {}]
  %s2 = inlined_call_operand.vmem [shape: f32[1,128], index: 2, kind: input, shape index: {}]
  %s3 = inlined_call_operand.vmem [shape: bf16[128,128], index: 3, kind: input, shape index: {}]
  %s4 = inlined_call_operand.vmem [shape: f32[1,128], index: 4, kind: input, shape index: {}]
  %s5 = inlined_call_operand.vmem [shape: bf16[128,128], index: 5, kind: input, shape index: {}]
  %s6 = inlined_call_operand.vmem [shape: f32[1,128], index: 6, kind: input, shape index: {}]
  %s7 = inlined_call_operand.vmem [shape: bf16[128,128], index: 7, kind: input, shape index: {}]
  %s8 = inlined_call_operand.vmem [shape: f32[1,128], index: 8, kind: input, shape index: {}]
  %s9 = inlined_call_operand.vmem [shape: f32[256,128], index: 9, kind: output, shape index: {}]
  %s10 = sld [smem:[#allocation0]]
  $region46: #{net_forward.7} parent=0
    _
  %s12 = ssub.s32 1, %s10
  %s13 = scalar_select 0, %s12, %s10
  // Predicated region
  $region2: #{net_forward.7} parent=0 // pred_check
    _
  $region3: #{net_forward.7} parent=0 // pred_check_branch
    %15 = sbr.rel (0) target = $region5
  $region4: #{net_forward.7} parent=0 // pred_region
    _
  $region5: #{net_forward.7} parent=0 // pred_fallthru
    _
  // Predicated region
  $region6: #{net_forward.7} parent=0 // pred_check
    _
  $region7: #{net_forward.7} parent=0 // pred_check_branch
    %17 = sbr.rel (0) target = $region9
  $region8: #{net_forward.7} parent=0 // pred_region
    _
  $region9: #{net_forward.7} parent=0 // pred_fallthru
    _
  // Predicated region
  $region10: #{net_forward.7} parent=0 // pred_check
    _
  $region11: #{net_forward.7} parent=0 // pred_check_branch
    %19 = sbr.rel (0) target = $region13
  $region12: #{net_forward.7} parent=0 // pred_region
    _
  $region13: #{net_forward.7} parent=0 // pred_fallthru
    _
  // Predicated region
  $region14: #{net_forward.7} parent=0 // pred_check
    _
  $region15: #{net_forward.7} parent=0 // pred_check_branch
    %21 = sbr.rel (0) target = $region17
  $region16: #{net_forward.7} parent=0 // pred_region
    _
  $region17: #{net_forward.7} parent=0 // pred_fallthru
    _
  // Predicated region
  $region18: #{net_forward.7} parent=0 // pred_check
    _
  $region19: #{net_forward.7} parent=0 // pred_check_branch
    %23 = sbr.rel (0) target = $region21
  $region20: #{net_forward.7} parent=0 // pred_region
    _
  $region21: #{net_forward.7} parent=0 // pred_fallthru
    _
  // Predicated region
  $region22: #{net_forward.7} parent=0 // pred_check
    _
  $region23: #{net_forward.7} parent=0 // pred_check_branch
    %25 = sbr.rel (0) target = $region25
  $region24: #{net_forward.7} parent=0 // pred_region
    _
  $region25: #{net_forward.7} parent=0 // pred_fallthru
    _
  // Predicated region
  $region26: #{net_forward.7} parent=0 // pred_check
    _
  $region27: #{net_forward.7} parent=0 // pred_check_branch
    %27 = sbr.rel (0) target = $region29
  $region28: #{net_forward.7} parent=0 // pred_region
    _
  $region29: #{net_forward.7} parent=0 // pred_fallthru
    _
  // Predicated region
  $region30: #{net_forward.7} parent=0 // pred_check
    _
  $region31: #{net_forward.7} parent=0 // pred_check_branch
    %29 = sbr.rel (0) target = $region33
  $region32: #{net_forward.7} parent=0 // pred_region
    _
  $region33: #{net_forward.7} parent=0 // pred_fallthru
    _
  // Predicated region
  $region34: #{net_forward.7} parent=0 // pred_check
    _
  $region35: #{net_forward.7} parent=0 // pred_check_branch
    %31 = sbr.rel (0) target = $region37
  $region36: #{net_forward.7} parent=0 // pred_region
    _
  $region37: #{net_forward.7} parent=0 // pred_fallthru
    _
  %v33 = vld [vmem:[%s0] sm:$0xff]
  %v34 = vld [vmem:[%s0 + $0x8] sm:$0xff]
  %v35 = vld [vmem:[%s0 + $0x10] sm:$0xff]
  %v36 = vld [vmem:[%s0 + $0x18] sm:$0xff]
  %v37 = vld [vmem:[%s0 + $0x20] sm:$0xff]
  %v38 = vld [vmem:[%s0 + $0x28] sm:$0xff]
  %v39 = vld [vmem:[%s0 + $0x30] sm:$0xff]
  %v40 = vld [vmem:[%s0 + $0x38] sm:$0xff]
  %v41 = vld [vmem:[%s0 + $0x40] sm:$0xff]
  %v42 = vld [vmem:[%s0 + $0x48] sm:$0xff]
  %v43 = vld [vmem:[%s0 + $0x50] sm:$0xff]
  %v44 = vld [vmem:[%s0 + $0x58] sm:$0xff]
  %v45 = vld [vmem:[%s0 + $0x60] sm:$0xff]
  %v46 = vld [vmem:[%s0 + $0x68] sm:$0xff]
  %v47 = vld [vmem:[%s0 + $0x70] sm:$0xff]
  %v48 = vld [vmem:[%s0 + $0x78] sm:$0xff]
  %v49 = vld [vmem:[%s0 + $0x80] sm:$0xff]
  %v50 = vld [vmem:[%s0 + $0x88] sm:$0xff]
  %v51 = vld [vmem:[%s0 + $0x90] sm:$0xff]
  %v52 = vld [vmem:[%s0 + $0x98] sm:$0xff]
  %v53 = vld [vmem:[%s0 + $0xa0] sm:$0xff]
  %v54 = vld [vmem:[%s0 + $0xa8] sm:$0xff]
  %v55 = vld [vmem:[%s0 + $0xb0] sm:$0xff]
  %v56 = vld [vmem:[%s0 + $0xb8] sm:$0xff]
  %v57 = vld [vmem:[%s0 + $0xc0] sm:$0xff]
  %v58 = vld [vmem:[%s0 + $0xc8] sm:$0xff]
  %v59 = vld [vmem:[%s0 + $0xd0] sm:$0xff]
  %v60 = vld [vmem:[%s0 + $0xd8] sm:$0xff]
  %v61 = vld [vmem:[%s0 + $0xe0] sm:$0xff]
  %v62 = vld [vmem:[%s0 + $0xe8] sm:$0xff]
  %v63 = vld [vmem:[%s0 + $0xf0] sm:$0xff]
  %v64 = vld [vmem:[%s0 + $0xf8] sm:$0xff]
  %v65 = vld [vmem:[%s1] sm:$0xf]
  %v66 = vld [vmem:[%s1 + $0x4] sm:$0xf]
  %v67 = vld [vmem:[%s1 + $0x8] sm:$0xf]
  %v68 = vld [vmem:[%s1 + $0xc] sm:$0xf]
  %v69 = vld [vmem:[%s1 + $0x10] sm:$0xf]
  %v70 = vld [vmem:[%s1 + $0x14] sm:$0xf]
  %v71 = vld [vmem:[%s1 + $0x18] sm:$0xf]
  %v72 = vld [vmem:[%s1 + $0x1c] sm:$0xf]
  %v73 = vld [vmem:[%s1 + $0x20] sm:$0xf]
  %v74 = vld [vmem:[%s1 + $0x24] sm:$0xf]
  %v75 = vld [vmem:[%s1 + $0x28] sm:$0xf]
  %v76 = vld [vmem:[%s1 + $0x2c] sm:$0xf]
  %v77 = vld [vmem:[%s1 + $0x30] sm:$0xf]
  %v78 = vld [vmem:[%s1 + $0x34] sm:$0xf]
  %v79 = vld [vmem:[%s1 + $0x38] sm:$0xf]
  %v80 = vld [vmem:[%s1 + $0x3c] sm:$0xf]
  %v81 = vld [vmem:[%s1 + $0x40] sm:$0xf]
  %v82 = vld [vmem:[%s1 + $0x44] sm:$0xf]
  %v83 = vld [vmem:[%s1 + $0x48] sm:$0xf]
  %v84 = vld [vmem:[%s1 + $0x4c] sm:$0xf]
  %v85 = vld [vmem:[%s1 + $0x50] sm:$0xf]
  %v86 = vld [vmem:[%s1 + $0x54] sm:$0xf]
  %v87 = vld [vmem:[%s1 + $0x58] sm:$0xf]
  %v88 = vld [vmem:[%s1 + $0x5c] sm:$0xf]
  %v89 = vld [vmem:[%s1 + $0x60] sm:$0xf]
  %v90 = vld [vmem:[%s1 + $0x64] sm:$0xf]
  %v91 = vld [vmem:[%s1 + $0x68] sm:$0xf]
  %v92 = vld [vmem:[%s1 + $0x6c] sm:$0xf]
  %v93 = vld [vmem:[%s1 + $0x70] sm:$0xf]
  %v94 = vld [vmem:[%s1 + $0x74] sm:$0xf]
  %v95 = vld [vmem:[%s1 + $0x78] sm:$0xf]
  %v96 = vld [vmem:[%s1 + $0x7c] sm:$0xf]
  %v97 = vld [vmem:[%s2] sm:$0x1]
  %v99 = vlaneseq
  %v100 = vshrl.u32 %v99, 7
  %v101 = vsub.s32 0, %v100
  %v102 = vrot.slane %v97, %v101
  %v136 = vunpack.c.l.b16 %v33
  %v137 = vunpack.c.h.b16 %v33
  %v138 = vunpack.c.l.b16 %v34
  %v139 = vunpack.c.h.b16 %v34
  %v140 = vunpack.c.l.b16 %v35
  %v141 = vunpack.c.h.b16 %v35
  %v142 = vunpack.c.l.b16 %v36
  %v143 = vunpack.c.h.b16 %v36
  %v144 = vunpack.c.l.b16 %v37
  %v145 = vunpack.c.h.b16 %v37
  %v146 = vunpack.c.l.b16 %v38
  %v147 = vunpack.c.h.b16 %v38
  %v148 = vunpack.c.l.b16 %v39
  %v149 = vunpack.c.h.b16 %v39
  %v150 = vunpack.c.l.b16 %v40
  %v151 = vunpack.c.h.b16 %v40
  %v152 = vunpack.c.l.b16 %v41
  %v153 = vunpack.c.h.b16 %v41
  %v154 = vunpack.c.l.b16 %v42
  %v155 = vunpack.c.h.b16 %v42
  %v156 = vunpack.c.l.b16 %v43
  %v157 = vunpack.c.h.b16 %v43
  %v158 = vunpack.c.l.b16 %v44
  %v159 = vunpack.c.h.b16 %v44
  %v160 = vunpack.c.l.b16 %v45
  %v161 = vunpack.c.h.b16 %v45
  %v162 = vunpack.c.l.b16 %v46
  %v163 = vunpack.c.h.b16 %v46
  %v164 = vunpack.c.l.b16 %v47
  %v165 = vunpack.c.h.b16 %v47
  %v166 = vunpack.c.l.b16 %v48
  %v167 = vunpack.c.h.b16 %v48
  %v168 = vunpack.c.l.b16 %v49
  %v169 = vunpack.c.h.b16 %v49
  %v170 = vunpack.c.l.b16 %v50
  %v171 = vunpack.c.h.b16 %v50
  %v172 = vunpack.c.l.b16 %v51
  %v173 = vunpack.c.h.b16 %v51
  %v174 = vunpack.c.l.b16 %v52
  %v175 = vunpack.c.h.b16 %v52
  %v176 = vunpack.c.l.b16 %v53
  %v177 = vunpack.c.h.b16 %v53
  %v178 = vunpack.c.l.b16 %v54
  %v179 = vunpack.c.h.b16 %v54
  %v180 = vunpack.c.l.b16 %v55
  %v181 = vunpack.c.h.b16 %v55
  %v182 = vunpack.c.l.b16 %v56
  %v183 = vunpack.c.h.b16 %v56
  %v184 = vunpack.c.l.b16 %v57
  %v185 = vunpack.c.h.b16 %v57
  %v186 = vunpack.c.l.b16 %v58
  %v187 = vunpack.c.h.b16 %v58
  %v188 = vunpack.c.l.b16 %v59
  %v189 = vunpack.c.h.b16 %v59
  %v190 = vunpack.c.l.b16 %v60
  %v191 = vunpack.c.h.b16 %v60
  %v192 = vunpack.c.l.b16 %v61
  %v193 = vunpack.c.h.b16 %v61
  %v194 = vunpack.c.l.b16 %v62
  %v195 = vunpack.c.h.b16 %v62
  %v196 = vunpack.c.l.b16 %v63
  %v197 = vunpack.c.h.b16 %v63
  %v198 = vunpack.c.l.b16 %v64
  %v199 = vunpack.c.h.b16 %v64
  %v200 = vpack.c.b16 %v138, %v136
  %v201 = vpack.c.b16 %v139, %v137
  %v202 = vpack.c.b16 %v142, %v140
  %v203 = vpack.c.b16 %v143, %v141
  %v204 = vpack.c.b16 %v146, %v144
  %v205 = vpack.c.b16 %v147, %v145
  %v206 = vpack.c.b16 %v150, %v148
  %v207 = vpack.c.b16 %v151, %v149
  %v208 = vpack.c.b16 %v154, %v152
  %v209 = vpack.c.b16 %v155, %v153
  %v210 = vpack.c.b16 %v158, %v156
  %v211 = vpack.c.b16 %v159, %v157
  %v212 = vpack.c.b16 %v162, %v160
  %v213 = vpack.c.b16 %v163, %v161
  %v214 = vpack.c.b16 %v166, %v164
  %v215 = vpack.c.b16 %v167, %v165
  %v216 = vpack.c.b16 %v170, %v168
  %v217 = vpack.c.b16 %v171, %v169
  %v218 = vpack.c.b16 %v174, %v172
  %v219 = vpack.c.b16 %v175, %v173
  %v220 = vpack.c.b16 %v178, %v176
  %v221 = vpack.c.b16 %v179, %v177
  %v222 = vpack.c.b16 %v182, %v180
  %v223 = vpack.c.b16 %v183, %v181
  %v224 = vpack.c.b16 %v186, %v184
  %v225 = vpack.c.b16 %v187, %v185
  %v226 = vpack.c.b16 %v190, %v188
  %v227 = vpack.c.b16 %v191, %v189
  %v228 = vpack.c.b16 %v194, %v192
  %v229 = vpack.c.b16 %v195, %v193
  %v230 = vpack.c.b16 %v198, %v196
  %v231 = vpack.c.b16 %v199, %v197
  %v296 = vunpack.c.l.b16 %v65
  %v297 = vunpack.c.l.b16 %v66
  %v298 = vunpack.c.l.b16 %v67
  %v299 = vunpack.c.l.b16 %v68
  %v300 = vunpack.c.l.b16 %v69
  %v301 = vunpack.c.l.b16 %v70
  %v302 = vunpack.c.l.b16 %v71
  %v303 = vunpack.c.l.b16 %v72
  %v304 = vunpack.c.l.b16 %v73
  %v305 = vunpack.c.l.b16 %v74
  %v306 = vunpack.c.l.b16 %v75
  %v307 = vunpack.c.l.b16 %v76
  %v308 = vunpack.c.l.b16 %v77
  %v309 = vunpack.c.l.b16 %v78
  %v310 = vunpack.c.l.b16 %v79
  %v311 = vunpack.c.l.b16 %v80
  %v312 = vunpack.c.l.b16 %v81
  %v313 = vunpack.c.l.b16 %v82
  %v314 = vunpack.c.l.b16 %v83
  %v315 = vunpack.c.l.b16 %v84
  %v316 = vunpack.c.l.b16 %v85
  %v317 = vunpack.c.l.b16 %v86
  %v318 = vunpack.c.l.b16 %v87
  %v319 = vunpack.c.l.b16 %v88
  %v320 = vunpack.c.l.b16 %v89
  %v321 = vunpack.c.l.b16 %v90
  %v322 = vunpack.c.l.b16 %v91
  %v323 = vunpack.c.l.b16 %v92
  %v324 = vunpack.c.l.b16 %v93
  %v325 = vunpack.c.l.b16 %v94
  %v326 = vunpack.c.l.b16 %v95
  %v327 = vunpack.c.l.b16 %v96
  %v328 = vpack.c.b16 %v297, %v296
  %v329 = vpack.c.b16 %v299, %v298
  %v330 = vpack.c.b16 %v301, %v300
  %v331 = vpack.c.b16 %v303, %v302
  %v332 = vpack.c.b16 %v305, %v304
  %v333 = vpack.c.b16 %v307, %v306
  %v334 = vpack.c.b16 %v309, %v308
  %v335 = vpack.c.b16 %v311, %v310
  %v336 = vpack.c.b16 %v313, %v312
  %v337 = vpack.c.b16 %v315, %v314
  %v338 = vpack.c.b16 %v317, %v316
  %v339 = vpack.c.b16 %v319, %v318
  %v340 = vpack.c.b16 %v321, %v320
  %v341 = vpack.c.b16 %v323, %v322
  %v342 = vpack.c.b16 %v325, %v324
  %v343 = vpack.c.b16 %v327, %v326
  %360 = vmatprep.subr.bf16.mxu0 0
  %361 = vmatpush1.bf16.msra.mxu0 %v328
  %362 = vmatprep.subr.bf16.mxu0 0
  %363 = vmatpush1.bf16.msra.mxu0 %v329
  %364 = vmatprep.subr.bf16.mxu0 0
  %365 = vmatpush1.bf16.msra.mxu0 %v330
  %366 = vmatprep.subr.bf16.mxu0 0
  %367 = vmatpush1.bf16.msra.mxu0 %v331
  %368 = vmatprep.subr.bf16.mxu0 0
  %369 = vmatpush1.bf16.msra.mxu0 %v332
  %370 = vmatprep.subr.bf16.mxu0 0
  %371 = vmatpush1.bf16.msra.mxu0 %v333
  %372 = vmatprep.subr.bf16.mxu0 0
  %373 = vmatpush1.bf16.msra.mxu0 %v334
  %374 = vmatprep.subr.bf16.mxu0 0
  %375 = vmatpush1.bf16.msra.mxu0 %v335
  %376 = vmatprep.subr.bf16.mxu0 0
  %377 = vmatpush1.bf16.msra.mxu0 %v336
  %378 = vmatprep.subr.bf16.mxu0 0
  %379 = vmatpush1.bf16.msra.mxu0 %v337
  %380 = vmatprep.subr.bf16.mxu0 0
  %381 = vmatpush1.bf16.msra.mxu0 %v338
  %382 = vmatprep.subr.bf16.mxu0 0
  %383 = vmatpush1.bf16.msra.mxu0 %v339
  %384 = vmatprep.subr.bf16.mxu0 0
  %385 = vmatpush1.bf16.msra.mxu0 %v340
  %386 = vmatprep.subr.bf16.mxu0 0
  %387 = vmatpush1.bf16.msra.mxu0 %v341
  %388 = vmatprep.subr.bf16.mxu0 0
  %389 = vmatpush1.bf16.msra.mxu0 %v342
  %390 = vmatprep.subr.bf16.mxu0 0
  %391 = vmatpush1.bf16.msra.mxu0 %v343
  %392 = vmatprep.mubr.bf16.mxu0 %v201
  %393 = vmatmul.mubr.bf16.gmra.mrb[0].mxu0 %v200
  %v394 = vpop.f32.mrb[0].mxu0
  %v395 = vadd.f32 %v102, %v394
  %v396 = vpop.f32.mrb[0].mxu0
  %v397 = vpop.f32.mrb[0].mxu0
  %v398 = vadd.f32 %v102, %v397
  %v399 = vpop.f32.mrb[0].mxu0
  %400 = vmatprep.mubr.bf16.mxu0 %v203
  %401 = vmatmul.mubr.bf16.gmra.mrb[0].mxu0 %v202
  %v402 = vpop.f32.mrb[0].mxu0
  %v403 = vadd.f32 %v102, %v402
  %v404 = vpop.f32.mrb[0].mxu0
  %v405 = vpop.f32.mrb[0].mxu0
  %v406 = vadd.f32 %v102, %v405
  %v407 = vpop.f32.mrb[0].mxu0
  %408 = vmatprep.mubr.bf16.mxu0 %v205
  %409 = vmatmul.mubr.bf16.gmra.mrb[0].mxu0 %v204
  %v410 = vpop.f32.mrb[0].mxu0
  %v411 = vadd.f32 %v102, %v410
  %v412 = vpop.f32.mrb[0].mxu0
  %v413 = vpop.f32.mrb[0].mxu0
  %v414 = vadd.f32 %v102, %v413
  %v415 = vpop.f32.mrb[0].mxu0
  %416 = vmatprep.mubr.bf16.mxu0 %v207
  %417 = vmatmul.mubr.bf16.gmra.mrb[0].mxu0 %v206
  %v418 = vpop.f32.mrb[0].mxu0
  %v419 = vadd.f32 %v102, %v418
  %v420 = vpop.f32.mrb[0].mxu0
  %v421 = vpop.f32.mrb[0].mxu0
  %v422 = vadd.f32 %v102, %v421
  %v423 = vpop.f32.mrb[0].mxu0
  %424 = vmatprep.mubr.bf16.mxu0 %v209
  %425 = vmatmul.mubr.bf16.gmra.mrb[0].mxu0 %v208
  %v426 = vpop.f32.mrb[0].mxu0
  %v427 = vadd.f32 %v102, %v426
  %v428 = vpop.f32.mrb[0].mxu0
  %v429 = vpop.f32.mrb[0].mxu0
  %v430 = vadd.f32 %v102, %v429
  %v431 = vpop.f32.mrb[0].mxu0
  %432 = vmatprep.mubr.bf16.mxu0 %v211
  %433 = vmatmul.mubr.bf16.gmra.mrb[0].mxu0 %v210
  %v434 = vpop.f32.mrb[0].mxu0
  %v435 = vadd.f32 %v102, %v434
  %v436 = vpop.f32.mrb[0].mxu0
  %v437 = vpop.f32.mrb[0].mxu0
  %v438 = vadd.f32 %v102, %v437
  %v439 = vpop.f32.mrb[0].mxu0
  %440 = vmatprep.mubr.bf16.mxu0 %v213
  %441 = vmatmul.mubr.bf16.gmra.mrb[0].mxu0 %v212
  %v442 = vpop.f32.mrb[0].mxu0
  %v443 = vadd.f32 %v102, %v442
  %v444 = vpop.f32.mrb[0].mxu0
  %v445 = vpop.f32.mrb[0].mxu0
  %v446 = vadd.f32 %v102, %v445
  %v447 = vpop.f32.mrb[0].mxu0
  %448 = vmatprep.mubr.bf16.mxu0 %v215
  %449 = vmatmul.mubr.bf16.gmra.mrb[0].mxu0 %v214
  %v450 = vpop.f32.mrb[0].mxu0
  %v451 = vadd.f32 %v102, %v450
  %v452 = vpop.f32.mrb[0].mxu0
  %v453 = vpop.f32.mrb[0].mxu0
  %v454 = vadd.f32 %v102, %v453
  %v455 = vpop.f32.mrb[0].mxu0
  %456 = vmatprep.mubr.bf16.mxu0 %v217
  %457 = vmatmul.mubr.bf16.gmra.mrb[0].mxu0 %v216
  %v458 = vpop.f32.mrb[0].mxu0
  %v459 = vadd.f32 %v102, %v458
  %v460 = vpop.f32.mrb[0].mxu0
  %v461 = vpop.f32.mrb[0].mxu0
  %v462 = vadd.f32 %v102, %v461
  %v463 = vpop.f32.mrb[0].mxu0
  %464 = vmatprep.mubr.bf16.mxu0 %v219
  %465 = vmatmul.mubr.bf16.gmra.mrb[0].mxu0 %v218
  %v466 = vpop.f32.mrb[0].mxu0
  %v467 = vadd.f32 %v102, %v466
  %v468 = vpop.f32.mrb[0].mxu0
  %v469 = vpop.f32.mrb[0].mxu0
  %v470 = vadd.f32 %v102, %v469
  %v471 = vpop.f32.mrb[0].mxu0
  %472 = vmatprep.mubr.bf16.mxu0 %v221
  %473 = vmatmul.mubr.bf16.gmra.mrb[0].mxu0 %v220
  %v474 = vpop.f32.mrb[0].mxu0
  %v475 = vadd.f32 %v102, %v474
  %v476 = vpop.f32.mrb[0].mxu0
  %v477 = vpop.f32.mrb[0].mxu0
  %v478 = vadd.f32 %v102, %v477
  %v479 = vpop.f32.mrb[0].mxu0
  %480 = vmatprep.mubr.bf16.mxu0 %v223
  %481 = vmatmul.mubr.bf16.gmra.mrb[0].mxu0 %v222
  %v482 = vpop.f32.mrb[0].mxu0
  %v483 = vadd.f32 %v102, %v482
  %v484 = vpop.f32.mrb[0].mxu0
  %v485 = vpop.f32.mrb[0].mxu0
  %v486 = vadd.f32 %v102, %v485
  %v487 = vpop.f32.mrb[0].mxu0
  %488 = vmatprep.mubr.bf16.mxu0 %v225
  %489 = vmatmul.mubr.bf16.gmra.mrb[0].mxu0 %v224
  %v490 = vpop.f32.mrb[0].mxu0
  %v491 = vadd.f32 %v102, %v490
  %v492 = vpop.f32.mrb[0].mxu0
  %v493 = vpop.f32.mrb[0].mxu0
  %v494 = vadd.f32 %v102, %v493
  %v495 = vpop.f32.mrb[0].mxu0
  %496 = vmatprep.mubr.bf16.mxu0 %v227
  %497 = vmatmul.mubr.bf16.gmra.mrb[0].mxu0 %v226
  %v498 = vpop.f32.mrb[0].mxu0
  %v499 = vadd.f32 %v102, %v498
  %v500 = vpop.f32.mrb[0].mxu0
  %v501 = vpop.f32.mrb[0].mxu0
  %v502 = vadd.f32 %v102, %v501
  %v503 = vpop.f32.mrb[0].mxu0
  %504 = vmatprep.mubr.bf16.mxu0 %v229
  %505 = vmatmul.mubr.bf16.gmra.mrb[0].mxu0 %v228
  %v506 = vpop.f32.mrb[0].mxu0
  %v507 = vadd.f32 %v102, %v506
  %v508 = vpop.f32.mrb[0].mxu0
  %v509 = vpop.f32.mrb[0].mxu0
  %v510 = vadd.f32 %v102, %v509
  %v511 = vpop.f32.mrb[0].mxu0
  %512 = vmatprep.mubr.bf16.mxu0 %v231
  %513 = vmatmul.mubr.bf16.gmra.mrb[0].mxu0 %v230
  %v514 = vpop.f32.mrb[0].mxu0
  %v515 = vadd.f32 %v102, %v514
  %v516 = vpop.f32.mrb[0].mxu0
  %v517 = vpop.f32.mrb[0].mxu0
  %v518 = vadd.f32 %v102, %v517
  %v519 = vpop.f32.mrb[0].mxu0
  %520 = vdwg.mxu0
  %v521 = vmax.f32 %v395, 0.0
  %v522 = vmax.f32 %v398, 0.0
  %v523 = vmax.f32 %v403, 0.0
  %v524 = vmax.f32 %v406, 0.0
  %v525 = vmax.f32 %v411, 0.0
  %v526 = vmax.f32 %v414, 0.0
  %v527 = vmax.f32 %v419, 0.0
  %v528 = vmax.f32 %v422, 0.0
  %v529 = vmax.f32 %v427, 0.0
  %v530 = vmax.f32 %v430, 0.0
  %v531 = vmax.f32 %v435, 0.0
  %v532 = vmax.f32 %v438, 0.0
  %v533 = vmax.f32 %v443, 0.0
  %v534 = vmax.f32 %v446, 0.0
  %v535 = vmax.f32 %v451, 0.0
  %v536 = vmax.f32 %v454, 0.0
  %v537 = vmax.f32 %v459, 0.0
  %v538 = vmax.f32 %v462, 0.0
  %v539 = vmax.f32 %v467, 0.0
  %v540 = vmax.f32 %v470, 0.0
  %v541 = vmax.f32 %v475, 0.0
  %v542 = vmax.f32 %v478, 0.0
  %v543 = vmax.f32 %v483, 0.0
  %v544 = vmax.f32 %v486, 0.0
  %v545 = vmax.f32 %v491, 0.0
  %v546 = vmax.f32 %v494, 0.0
  %v547 = vmax.f32 %v499, 0.0
  %v548 = vmax.f32 %v502, 0.0
  %v549 = vmax.f32 %v507, 0.0
  %v550 = vmax.f32 %v510, 0.0
  %v551 = vmax.f32 %v515, 0.0
  %v552 = vmax.f32 %v518, 0.0
  %v553 = vpack.c.bf16 %v522, %v521
  %v554 = vpack.c.bf16 %v524, %v523
  %v555 = vpack.c.bf16 %v526, %v525
  %v556 = vpack.c.bf16 %v528, %v527
  %v557 = vpack.c.bf16 %v530, %v529
  %v558 = vpack.c.bf16 %v532, %v531
  %v559 = vpack.c.bf16 %v534, %v533
  %v560 = vpack.c.bf16 %v536, %v535
  %v561 = vpack.c.bf16 %v538, %v537
  %v562 = vpack.c.bf16 %v540, %v539
  %v563 = vpack.c.bf16 %v542, %v541
  %v564 = vpack.c.bf16 %v544, %v543
  %v565 = vpack.c.bf16 %v546, %v545
  %v566 = vpack.c.bf16 %v548, %v547
  %v567 = vpack.c.bf16 %v550, %v549
  %v568 = vpack.c.bf16 %v552, %v551
  %v569 = vld [vmem:[%s3] sm:$0xf]
  %v570 = vld [vmem:[%s3 + $0x4] sm:$0xf]
  %v571 = vld [vmem:[%s3 + $0x8] sm:$0xf]
  %v572 = vld [vmem:[%s3 + $0xc] sm:$0xf]
  %v573 = vld [vmem:[%s3 + $0x10] sm:$0xf]
  %v574 = vld [vmem:[%s3 + $0x14] sm:$0xf]
  %v575 = vld [vmem:[%s3 + $0x18] sm:$0xf]
  %v576 = vld [vmem:[%s3 + $0x1c] sm:$0xf]
  %v577 = vld [vmem:[%s3 + $0x20] sm:$0xf]
  %v578 = vld [vmem:[%s3 + $0x24] sm:$0xf]
  %v579 = vld [vmem:[%s3 + $0x28] sm:$0xf]
  %v580 = vld [vmem:[%s3 + $0x2c] sm:$0xf]
  %v581 = vld [vmem:[%s3 + $0x30] sm:$0xf]
  %v582 = vld [vmem:[%s3 + $0x34] sm:$0xf]
  %v583 = vld [vmem:[%s3 + $0x38] sm:$0xf]
  %v584 = vld [vmem:[%s3 + $0x3c] sm:$0xf]
  %v585 = vld [vmem:[%s4] sm:$0x1]
  %v587 = vlaneseq
  %v588 = vshrl.u32 %v587, 7
  %v589 = vsub.s32 0, %v588
  %v590 = vrot.slane %v585, %v589
  %v608 = vunpack.c.l.b16 %v569
  %v609 = vunpack.c.l.b16 %v570
  %v610 = vunpack.c.l.b16 %v571
  %v611 = vunpack.c.l.b16 %v572
  %v612 = vunpack.c.l.b16 %v573
  %v613 = vunpack.c.l.b16 %v574
  %v614 = vunpack.c.l.b16 %v575
  %v615 = vunpack.c.l.b16 %v576
  %v616 = vunpack.c.l.b16 %v577
  %v617 = vunpack.c.l.b16 %v578
  %v618 = vunpack.c.l.b16 %v579
  %v619 = vunpack.c.l.b16 %v580
  %v620 = vunpack.c.l.b16 %v581
  %v621 = vunpack.c.l.b16 %v582
  %v622 = vunpack.c.l.b16 %v583
  %v623 = vunpack.c.l.b16 %v584
  %v624 = vpack.c.b16 %v609, %v608
  %v625 = vpack.c.b16 %v611, %v610
  %v626 = vpack.c.b16 %v613, %v612
  %v627 = vpack.c.b16 %v615, %v614
  %v628 = vpack.c.b16 %v617, %v616
  %v629 = vpack.c.b16 %v619, %v618
  %v630 = vpack.c.b16 %v621, %v620
  %v631 = vpack.c.b16 %v623, %v622
  %640 = vmatprep.subr.bf16.mxu0 0
  %641 = vmatpush1.bf16.msra.mxu0 %v624
  %642 = vmatprep.subr.bf16.mxu0 0
  %643 = vmatpush1.bf16.msra.mxu0 %v625
  %644 = vmatprep.subr.bf16.mxu0 0
  %645 = vmatpush1.bf16.msra.mxu0 %v626
  %646 = vmatprep.subr.bf16.mxu0 0
  %647 = vmatpush1.bf16.msra.mxu0 %v627
  %648 = vmatprep.subr.bf16.mxu0 0
  %649 = vmatpush1.bf16.msra.mxu0 %v628
  %650 = vmatprep.subr.bf16.mxu0 0
  %651 = vmatpush1.bf16.msra.mxu0 %v629
  %652 = vmatprep.subr.bf16.mxu0 0
  %653 = vmatpush1.bf16.msra.mxu0 %v630
  %654 = vmatprep.subr.bf16.mxu0 0
  %655 = vmatpush1.bf16.msra.mxu0 %v631
  %656 = vmatprep.subr.bf16.mxu0 0
  %657 = vmatpush1.bf16.msra.mxu0 0
  %658 = vmatprep.subr.bf16.mxu0 0
  %659 = vmatpush1.bf16.msra.mxu0 0
  %660 = vmatprep.subr.bf16.mxu0 0
  %661 = vmatpush1.bf16.msra.mxu0 0
  %662 = vmatprep.subr.bf16.mxu0 0
  %663 = vmatpush1.bf16.msra.mxu0 0
  %664 = vmatprep.subr.bf16.mxu0 0
  %665 = vmatpush1.bf16.msra.mxu0 0
  %666 = vmatprep.subr.bf16.mxu0 0
  %667 = vmatpush1.bf16.msra.mxu0 0
  %668 = vmatprep.subr.bf16.mxu0 0
  %669 = vmatpush1.bf16.msra.mxu0 0
  %670 = vmatprep.subr.bf16.mxu0 0
  %671 = vmatpush1.bf16.msra.mxu0 0
  %672 = vmatprep.mubr.bf16.mxu0 0
  %673 = vmatmul.mubr.bf16.gmra.mrb[0].mxu0 %v553
  %v674 = vpop.f32.mrb[0].mxu0
  %v675 = vadd.f32 %v590, %v674
  %v676 = vpop.f32.mrb[0].mxu0
  %v677 = vpop.f32.mrb[0].mxu0
  %v678 = vadd.f32 %v590, %v677
  %v679 = vpop.f32.mrb[0].mxu0
  %680 = vmatprep.mubr.bf16.mxu0 0
  %681 = vmatmul.mubr.bf16.gmra.mrb[0].mxu0 %v554
  %v682 = vpop.f32.mrb[0].mxu0
  %v683 = vadd.f32 %v590, %v682
  %v684 = vpop.f32.mrb[0].mxu0
  %v685 = vpop.f32.mrb[0].mxu0
  %v686 = vadd.f32 %v590, %v685
  %v687 = vpop.f32.mrb[0].mxu0
  %688 = vmatprep.mubr.bf16.mxu0 0
  %689 = vmatmul.mubr.bf16.gmra.mrb[0].mxu0 %v555
  %v690 = vpop.f32.mrb[0].mxu0
  %v691 = vadd.f32 %v590, %v690
  %v692 = vpop.f32.mrb[0].mxu0
  %v693 = vpop.f32.mrb[0].mxu0
  %v694 = vadd.f32 %v590, %v693
  %v695 = vpop.f32.mrb[0].mxu0
  %696 = vmatprep.mubr.bf16.mxu0 0
  %697 = vmatmul.mubr.bf16.gmra.mrb[0].mxu0 %v556
  %v698 = vpop.f32.mrb[0].mxu0
  %v699 = vadd.f32 %v590, %v698
  %v700 = vpop.f32.mrb[0].mxu0
  %v701 = vpop.f32.mrb[0].mxu0
  %v702 = vadd.f32 %v590, %v701
  %v703 = vpop.f32.mrb[0].mxu0
  %704 = vmatprep.mubr.bf16.mxu0 0
  %705 = vmatmul.mubr.bf16.gmra.mrb[0].mxu0 %v557
  %v706 = vpop.f32.mrb[0].mxu0
  %v707 = vadd.f32 %v590, %v706
  %v708 = vpop.f32.mrb[0].mxu0
  %v709 = vpop.f32.mrb[0].mxu0
  %v710 = vadd.f32 %v590, %v709
  %v711 = vpop.f32.mrb[0].mxu0
  %712 = vmatprep.mubr.bf16.mxu0 0
  %713 = vmatmul.mubr.bf16.gmra.mrb[0].mxu0 %v558
  %v714 = vpop.f32.mrb[0].mxu0
  %v715 = vadd.f32 %v590, %v714
  %v716 = vpop.f32.mrb[0].mxu0
  %v717 = vpop.f32.mrb[0].mxu0
  %v718 = vadd.f32 %v590, %v717
  %v719 = vpop.f32.mrb[0].mxu0
  %720 = vmatprep.mubr.bf16.mxu0 0
  %721 = vmatmul.mubr.bf16.gmra.mrb[0].mxu0 %v559
  %v722 = vpop.f32.mrb[0].mxu0
  %v723 = vadd.f32 %v590, %v722
  %v724 = vpop.f32.mrb[0].mxu0
  %v725 = vpop.f32.mrb[0].mxu0
  %v726 = vadd.f32 %v590, %v725
  %v727 = vpop.f32.mrb[0].mxu0
  %728 = vmatprep.mubr.bf16.mxu0 0
  %729 = vmatmul.mubr.bf16.gmra.mrb[0].mxu0 %v560
  %v730 = vpop.f32.mrb[0].mxu0
  %v731 = vadd.f32 %v590, %v730
  %v732 = vpop.f32.mrb[0].mxu0
  %v733 = vpop.f32.mrb[0].mxu0
  %v734 = vadd.f32 %v590, %v733
  %v735 = vpop.f32.mrb[0].mxu0
  %736 = vmatprep.mubr.bf16.mxu0 0
  %737 = vmatmul.mubr.bf16.gmra.mrb[0].mxu0 %v561
  %v738 = vpop.f32.mrb[0].mxu0
  %v739 = vadd.f32 %v590, %v738
  %v740 = vpop.f32.mrb[0].mxu0
  %v741 = vpop.f32.mrb[0].mxu0
  %v742 = vadd.f32 %v590, %v741
  %v743 = vpop.f32.mrb[0].mxu0
  %744 = vmatprep.mubr.bf16.mxu0 0
  %745 = vmatmul.mubr.bf16.gmra.mrb[0].mxu0 %v562
  %v746 = vpop.f32.mrb[0].mxu0
  %v747 = vadd.f32 %v590, %v746
  %v748 = vpop.f32.mrb[0].mxu0
  %v749 = vpop.f32.mrb[0].mxu0
  %v750 = vadd.f32 %v590, %v749
  %v751 = vpop.f32.mrb[0].mxu0
  %752 = vmatprep.mubr.bf16.mxu0 0
  %753 = vmatmul.mubr.bf16.gmra.mrb[0].mxu0 %v563
  %v754 = vpop.f32.mrb[0].mxu0
  %v755 = vadd.f32 %v590, %v754
  %v756 = vpop.f32.mrb[0].mxu0
  %v757 = vpop.f32.mrb[0].mxu0
  %v758 = vadd.f32 %v590, %v757
  %v759 = vpop.f32.mrb[0].mxu0
  %760 = vmatprep.mubr.bf16.mxu0 0
  %761 = vmatmul.mubr.bf16.gmra.mrb[0].mxu0 %v564
  %v762 = vpop.f32.mrb[0].mxu0
  %v763 = vadd.f32 %v590, %v762
  %v764 = vpop.f32.mrb[0].mxu0
  %v765 = vpop.f32.mrb[0].mxu0
  %v766 = vadd.f32 %v590, %v765
  %v767 = vpop.f32.mrb[0].mxu0
  %768 = vmatprep.mubr.bf16.mxu0 0
  %769 = vmatmul.mubr.bf16.gmra.mrb[0].mxu0 %v565
  %v770 = vpop.f32.mrb[0].mxu0
  %v771 = vadd.f32 %v590, %v770
  %v772 = vpop.f32.mrb[0].mxu0
  %v773 = vpop.f32.mrb[0].mxu0
  %v774 = vadd.f32 %v590, %v773
  %v775 = vpop.f32.mrb[0].mxu0
  %776 = vmatprep.mubr.bf16.mxu0 0
  %777 = vmatmul.mubr.bf16.gmra.mrb[0].mxu0 %v566
  %v778 = vpop.f32.mrb[0].mxu0
  %v779 = vadd.f32 %v590, %v778
  %v780 = vpop.f32.mrb[0].mxu0
  %v781 = vpop.f32.mrb[0].mxu0
  %v782 = vadd.f32 %v590, %v781
  %v783 = vpop.f32.mrb[0].mxu0
  %784 = vmatprep.mubr.bf16.mxu0 0
  %785 = vmatmul.mubr.bf16.gmra.mrb[0].mxu0 %v567
  %v786 = vpop.f32.mrb[0].mxu0
  %v787 = vadd.f32 %v590, %v786
  %v788 = vpop.f32.mrb[0].mxu0
  %v789 = vpop.f32.mrb[0].mxu0
  %v790 = vadd.f32 %v590, %v789
  %v791 = vpop.f32.mrb[0].mxu0
  %792 = vmatprep.mubr.bf16.mxu0 0
  %793 = vmatmul.mubr.bf16.gmra.mrb[0].mxu0 %v568
  %v794 = vpop.f32.mrb[0].mxu0
  %v795 = vadd.f32 %v590, %v794
  %v796 = vpop.f32.mrb[0].mxu0
  %v797 = vpop.f32.mrb[0].mxu0
  %v798 = vadd.f32 %v590, %v797
  %v799 = vpop.f32.mrb[0].mxu0
  %800 = vdwg.mxu0
  %v801 = vmax.f32 %v675, 0.0
  %v802 = vmax.f32 %v678, 0.0
  %v803 = vmax.f32 %v683, 0.0
  %v804 = vmax.f32 %v686, 0.0
  %v805 = vmax.f32 %v691, 0.0
  %v806 = vmax.f32 %v694, 0.0
  %v807 = vmax.f32 %v699, 0.0
  %v808 = vmax.f32 %v702, 0.0
  %v809 = vmax.f32 %v707, 0.0
  %v810 = vmax.f32 %v710, 0.0
  %v811 = vmax.f32 %v715, 0.0
  %v812 = vmax.f32 %v718, 0.0
  %v813 = vmax.f32 %v723, 0.0
  %v814 = vmax.f32 %v726, 0.0
  %v815 = vmax.f32 %v731, 0.0
  %v816 = vmax.f32 %v734, 0.0
  %v817 = vmax.f32 %v739, 0.0
  %v818 = vmax.f32 %v742, 0.0
  %v819 = vmax.f32 %v747, 0.0
  %v820 = vmax.f32 %v750, 0.0
  %v821 = vmax.f32 %v755, 0.0
  %v822 = vmax.f32 %v758, 0.0
  %v823 = vmax.f32 %v763, 0.0
  %v824 = vmax.f32 %v766, 0.0
  %v825 = vmax.f32 %v771, 0.0
  %v826 = vmax.f32 %v774, 0.0
  %v827 = vmax.f32 %v779, 0.0
  %v828 = vmax.f32 %v782, 0.0
  %v829 = vmax.f32 %v787, 0.0
  %v830 = vmax.f32 %v790, 0.0
  %v831 = vmax.f32 %v795, 0.0
  %v832 = vmax.f32 %v798, 0.0
  %v833 = vpack.c.bf16 %v802, %v801
  %v834 = vpack.c.bf16 %v804, %v803
  %v835 = vpack.c.bf16 %v806, %v805
  %v836 = vpack.c.bf16 %v808, %v807
  %v837 = vpack.c.bf16 %v810, %v809
  %v838 = vpack.c.bf16 %v812, %v811
  %v839 = vpack.c.bf16 %v814, %v813
  %v840 = vpack.c.bf16 %v816, %v815
  %v841 = vpack.c.bf16 %v818, %v817
  %v842 = vpack.c.bf16 %v820, %v819
  %v843 = vpack.c.bf16 %v822, %v821
  %v844 = vpack.c.bf16 %v824, %v823
  %v845 = vpack.c.bf16 %v826, %v825
  %v846 = vpack.c.bf16 %v828, %v827
  %v847 = vpack.c.bf16 %v830, %v829
  %v848 = vpack.c.bf16 %v832, %v831
  %v849 = vld [vmem:[%s5] sm:$0xf]
  %v850 = vld [vmem:[%s5 + $0x4] sm:$0xf]
  %v851 = vld [vmem:[%s5 + $0x8] sm:$0xf]
  %v852 = vld [vmem:[%s5 + $0xc] sm:$0xf]
  %v853 = vld [vmem:[%s5 + $0x10] sm:$0xf]
  %v854 = vld [vmem:[%s5 + $0x14] sm:$0xf]
  %v855 = vld [vmem:[%s5 + $0x18] sm:$0xf]
  %v856 = vld [vmem:[%s5 + $0x1c] sm:$0xf]
  %v857 = vld [vmem:[%s5 + $0x20] sm:$0xf]
  %v858 = vld [vmem:[%s5 + $0x24] sm:$0xf]
  %v859 = vld [vmem:[%s5 + $0x28] sm:$0xf]
  %v860 = vld [vmem:[%s5 + $0x2c] sm:$0xf]
  %v861 = vld [vmem:[%s5 + $0x30] sm:$0xf]
  %v862 = vld [vmem:[%s5 + $0x34] sm:$0xf]
  %v863 = vld [vmem:[%s5 + $0x38] sm:$0xf]
  %v864 = vld [vmem:[%s5 + $0x3c] sm:$0xf]
  %v865 = vld [vmem:[%s6] sm:$0x1]
  %v867 = vlaneseq
  %v868 = vshrl.u32 %v867, 7
  %v869 = vsub.s32 0, %v868
  %v870 = vrot.slane %v865, %v869
  %v888 = vunpack.c.l.b16 %v849
  %v889 = vunpack.c.l.b16 %v850
  %v890 = vunpack.c.l.b16 %v851
  %v891 = vunpack.c.l.b16 %v852
  %v892 = vunpack.c.l.b16 %v853
  %v893 = vunpack.c.l.b16 %v854
  %v894 = vunpack.c.l.b16 %v855
  %v895 = vunpack.c.l.b16 %v856
  %v896 = vunpack.c.l.b16 %v857
  %v897 = vunpack.c.l.b16 %v858
  %v898 = vunpack.c.l.b16 %v859
  %v899 = vunpack.c.l.b16 %v860
  %v900 = vunpack.c.l.b16 %v861
  %v901 = vunpack.c.l.b16 %v862
  %v902 = vunpack.c.l.b16 %v863
  %v903 = vunpack.c.l.b16 %v864
  %v904 = vpack.c.b16 %v889, %v888
  %v905 = vpack.c.b16 %v891, %v890
  %v906 = vpack.c.b16 %v893, %v892
  %v907 = vpack.c.b16 %v895, %v894
  %v908 = vpack.c.b16 %v897, %v896
  %v909 = vpack.c.b16 %v899, %v898
  %v910 = vpack.c.b16 %v901, %v900
  %v911 = vpack.c.b16 %v903, %v902
  %920 = vmatprep.subr.bf16.mxu0 0
  %921 = vmatpush1.bf16.msra.mxu0 %v904
  %922 = vmatprep.subr.bf16.mxu0 0
  %923 = vmatpush1.bf16.msra.mxu0 %v905
  %924 = vmatprep.subr.bf16.mxu0 0
  %925 = vmatpush1.bf16.msra.mxu0 %v906
  %926 = vmatprep.subr.bf16.mxu0 0
  %927 = vmatpush1.bf16.msra.mxu0 %v907
  %928 = vmatprep.subr.bf16.mxu0 0
  %929 = vmatpush1.bf16.msra.mxu0 %v908
  %930 = vmatprep.subr.bf16.mxu0 0
  %931 = vmatpush1.bf16.msra.mxu0 %v909
  %932 = vmatprep.subr.bf16.mxu0 0
  %933 = vmatpush1.bf16.msra.mxu0 %v910
  %934 = vmatprep.subr.bf16.mxu0 0
  %935 = vmatpush1.bf16.msra.mxu0 %v911
  %936 = vmatprep.subr.bf16.mxu0 0
  %937 = vmatpush1.bf16.msra.mxu0 0
  %938 = vmatprep.subr.bf16.mxu0 0
  %939 = vmatpush1.bf16.msra.mxu0 0
  %940 = vmatprep.subr.bf16.mxu0 0
  %941 = vmatpush1.bf16.msra.mxu0 0
  %942 = vmatprep.subr.bf16.mxu0 0
  %943 = vmatpush1.bf16.msra.mxu0 0
  %944 = vmatprep.subr.bf16.mxu0 0
  %945 = vmatpush1.bf16.msra.mxu0 0
  %946 = vmatprep.subr.bf16.mxu0 0
  %947 = vmatpush1.bf16.msra.mxu0 0
  %948 = vmatprep.subr.bf16.mxu0 0
  %949 = vmatpush1.bf16.msra.mxu0 0
  %950 = vmatprep.subr.bf16.mxu0 0
  %951 = vmatpush1.bf16.msra.mxu0 0
  %952 = vmatprep.mubr.bf16.mxu0 0
  %953 = vmatmul.mubr.bf16.gmra.mrb[0].mxu0 %v833
  %v954 = vpop.f32.mrb[0].mxu0
  %v955 = vadd.f32 %v870, %v954
  %v956 = vpop.f32.mrb[0].mxu0
  %v957 = vpop.f32.mrb[0].mxu0
  %v958 = vadd.f32 %v870, %v957
  %v959 = vpop.f32.mrb[0].mxu0
  %960 = vmatprep.mubr.bf16.mxu0 0
  %961 = vmatmul.mubr.bf16.gmra.mrb[0].mxu0 %v834
  %v962 = vpop.f32.mrb[0].mxu0
  %v963 = vadd.f32 %v870, %v962
  %v964 = vpop.f32.mrb[0].mxu0
  %v965 = vpop.f32.mrb[0].mxu0
  %v966 = vadd.f32 %v870, %v965
  %v967 = vpop.f32.mrb[0].mxu0
  %968 = vmatprep.mubr.bf16.mxu0 0
  %969 = vmatmul.mubr.bf16.gmra.mrb[0].mxu0 %v835
  %v970 = vpop.f32.mrb[0].mxu0
  %v971 = vadd.f32 %v870, %v970
  %v972 = vpop.f32.mrb[0].mxu0
  %v973 = vpop.f32.mrb[0].mxu0
  %v974 = vadd.f32 %v870, %v973
  %v975 = vpop.f32.mrb[0].mxu0
  %976 = vmatprep.mubr.bf16.mxu0 0
  %977 = vmatmul.mubr.bf16.gmra.mrb[0].mxu0 %v836
  %v978 = vpop.f32.mrb[0].mxu0
  %v979 = vadd.f32 %v870, %v978
  %v980 = vpop.f32.mrb[0].mxu0
  %v981 = vpop.f32.mrb[0].mxu0
  %v982 = vadd.f32 %v870, %v981
  %v983 = vpop.f32.mrb[0].mxu0
  %984 = vmatprep.mubr.bf16.mxu0 0
  %985 = vmatmul.mubr.bf16.gmra.mrb[0].mxu0 %v837
  %v986 = vpop.f32.mrb[0].mxu0
  %v987 = vadd.f32 %v870, %v986
  %v988 = vpop.f32.mrb[0].mxu0
  %v989 = vpop.f32.mrb[0].mxu0
  %v990 = vadd.f32 %v870, %v989
  %v991 = vpop.f32.mrb[0].mxu0
  %992 = vmatprep.mubr.bf16.mxu0 0
  %993 = vmatmul.mubr.bf16.gmra.mrb[0].mxu0 %v838
  %v994 = vpop.f32.mrb[0].mxu0
  %v995 = vadd.f32 %v870, %v994
  %v996 = vpop.f32.mrb[0].mxu0
  %v997 = vpop.f32.mrb[0].mxu0
  %v998 = vadd.f32 %v870, %v997
  %v999 = vpop.f32.mrb[0].mxu0
  %1000 = vmatprep.mubr.bf16.mxu0 0
  %1001 = vmatmul.mubr.bf16.gmra.mrb[0].mxu0 %v839
  %v1002 = vpop.f32.mrb[0].mxu0
  %v1003 = vadd.f32 %v870, %v1002
  %v1004 = vpop.f32.mrb[0].mxu0
  %v1005 = vpop.f32.mrb[0].mxu0
  %v1006 = vadd.f32 %v870, %v1005
  %v1007 = vpop.f32.mrb[0].mxu0
  %1008 = vmatprep.mubr.bf16.mxu0 0
  %1009 = vmatmul.mubr.bf16.gmra.mrb[0].mxu0 %v840
  %v1010 = vpop.f32.mrb[0].mxu0
  %v1011 = vadd.f32 %v870, %v1010
  %v1012 = vpop.f32.mrb[0].mxu0
  %v1013 = vpop.f32.mrb[0].mxu0
  %v1014 = vadd.f32 %v870, %v1013
  %v1015 = vpop.f32.mrb[0].mxu0
  %1016 = vmatprep.mubr.bf16.mxu0 0
  %1017 = vmatmul.mubr.bf16.gmra.mrb[0].mxu0 %v841
  %v1018 = vpop.f32.mrb[0].mxu0
  %v1019 = vadd.f32 %v870, %v1018
  %v1020 = vpop.f32.mrb[0].mxu0
  %v1021 = vpop.f32.mrb[0].mxu0
  %v1022 = vadd.f32 %v870, %v1021
  %v1023 = vpop.f32.mrb[0].mxu0
  %1024 = vmatprep.mubr.bf16.mxu0 0
  %1025 = vmatmul.mubr.bf16.gmra.mrb[0].mxu0 %v842
  %v1026 = vpop.f32.mrb[0].mxu0
  %v1027 = vadd.f32 %v870, %v1026
  %v1028 = vpop.f32.mrb[0].mxu0
  %v1029 = vpop.f32.mrb[0].mxu0
  %v1030 = vadd.f32 %v870, %v1029
  %v1031 = vpop.f32.mrb[0].mxu0
  %1032 = vmatprep.mubr.bf16.mxu0 0
  %1033 = vmatmul.mubr.bf16.gmra.mrb[0].mxu0 %v843
  %v1034 = vpop.f32.mrb[0].mxu0
  %v1035 = vadd.f32 %v870, %v1034
  %v1036 = vpop.f32.mrb[0].mxu0
  %v1037 = vpop.f32.mrb[0].mxu0
  %v1038 = vadd.f32 %v870, %v1037
  %v1039 = vpop.f32.mrb[0].mxu0
  %1040 = vmatprep.mubr.bf16.mxu0 0
  %1041 = vmatmul.mubr.bf16.gmra.mrb[0].mxu0 %v844
  %v1042 = vpop.f32.mrb[0].mxu0
  %v1043 = vadd.f32 %v870, %v1042
  %v1044 = vpop.f32.mrb[0].mxu0
  %v1045 = vpop.f32.mrb[0].mxu0
  %v1046 = vadd.f32 %v870, %v1045
  %v1047 = vpop.f32.mrb[0].mxu0
  %1048 = vmatprep.mubr.bf16.mxu0 0
  %1049 = vmatmul.mubr.bf16.gmra.mrb[0].mxu0 %v845
  %v1050 = vpop.f32.mrb[0].mxu0
  %v1051 = vadd.f32 %v870, %v1050
  %v1052 = vpop.f32.mrb[0].mxu0
  %v1053 = vpop.f32.mrb[0].mxu0
  %v1054 = vadd.f32 %v870, %v1053
  %v1055 = vpop.f32.mrb[0].mxu0
  %1056 = vmatprep.mubr.bf16.mxu0 0
  %1057 = vmatmul.mubr.bf16.gmra.mrb[0].mxu0 %v846
  %v1058 = vpop.f32.mrb[0].mxu0
  %v1059 = vadd.f32 %v870, %v1058
  %v1060 = vpop.f32.mrb[0].mxu0
  %v1061 = vpop.f32.mrb[0].mxu0
  %v1062 = vadd.f32 %v870, %v1061
  %v1063 = vpop.f32.mrb[0].mxu0
  %1064 = vmatprep.mubr.bf16.mxu0 0
  %1065 = vmatmul.mubr.bf16.gmra.mrb[0].mxu0 %v847
  %v1066 = vpop.f32.mrb[0].mxu0
  %v1067 = vadd.f32 %v870, %v1066
  %v1068 = vpop.f32.mrb[0].mxu0
  %v1069 = vpop.f32.mrb[0].mxu0
  %v1070 = vadd.f32 %v870, %v1069
  %v1071 = vpop.f32.mrb[0].mxu0
  %1072 = vmatprep.mubr.bf16.mxu0 0
  %1073 = vmatmul.mubr.bf16.gmra.mrb[0].mxu0 %v848
  %v1074 = vpop.f32.mrb[0].mxu0
  %v1075 = vadd.f32 %v870, %v1074
  %v1076 = vpop.f32.mrb[0].mxu0
  %v1077 = vpop.f32.mrb[0].mxu0
  %v1078 = vadd.f32 %v870, %v1077
  %v1079 = vpop.f32.mrb[0].mxu0
  %1080 = vdwg.mxu0
  %v1081 = vmax.f32 %v955, 0.0
  %v1082 = vmax.f32 %v958, 0.0
  %v1083 = vmax.f32 %v963, 0.0
  %v1084 = vmax.f32 %v966, 0.0
  %v1085 = vmax.f32 %v971, 0.0
  %v1086 = vmax.f32 %v974, 0.0
  %v1087 = vmax.f32 %v979, 0.0
  %v1088 = vmax.f32 %v982, 0.0
  %v1089 = vmax.f32 %v987, 0.0
  %v1090 = vmax.f32 %v990, 0.0
  %v1091 = vmax.f32 %v995, 0.0
  %v1092 = vmax.f32 %v998, 0.0
  %v1093 = vmax.f32 %v1003, 0.0
  %v1094 = vmax.f32 %v1006, 0.0
  %v1095 = vmax.f32 %v1011, 0.0
  %v1096 = vmax.f32 %v1014, 0.0
  %v1097 = vmax.f32 %v1019, 0.0
  %v1098 = vmax.f32 %v1022, 0.0
  %v1099 = vmax.f32 %v1027, 0.0
  %v1100 = vmax.f32 %v1030, 0.0
  %v1101 = vmax.f32 %v1035, 0.0
  %v1102 = vmax.f32 %v1038, 0.0
  %v1103 = vmax.f32 %v1043, 0.0
  %v1104 = vmax.f32 %v1046, 0.0
  %v1105 = vmax.f32 %v1051, 0.0
  %v1106 = vmax.f32 %v1054, 0.0
  %v1107 = vmax.f32 %v1059, 0.0
  %v1108 = vmax.f32 %v1062, 0.0
  %v1109 = vmax.f32 %v1067, 0.0
  %v1110 = vmax.f32 %v1070, 0.0
  %v1111 = vmax.f32 %v1075, 0.0
  %v1112 = vmax.f32 %v1078, 0.0
  %v1113 = vpack.c.bf16 %v1082, %v1081
  %v1114 = vpack.c.bf16 %v1084, %v1083
  %v1115 = vpack.c.bf16 %v1086, %v1085
  %v1116 = vpack.c.bf16 %v1088, %v1087
  %v1117 = vpack.c.bf16 %v1090, %v1089
  %v1118 = vpack.c.bf16 %v1092, %v1091
  %v1119 = vpack.c.bf16 %v1094, %v1093
  %v1120 = vpack.c.bf16 %v1096, %v1095
  %v1121 = vpack.c.bf16 %v1098, %v1097
  %v1122 = vpack.c.bf16 %v1100, %v1099
  %v1123 = vpack.c.bf16 %v1102, %v1101
  %v1124 = vpack.c.bf16 %v1104, %v1103
  %v1125 = vpack.c.bf16 %v1106, %v1105
  %v1126 = vpack.c.bf16 %v1108, %v1107
  %v1127 = vpack.c.bf16 %v1110, %v1109
  %v1128 = vpack.c.bf16 %v1112, %v1111
  %v1129 = vld [vmem:[%s7] sm:$0xf]
  %v1130 = vld [vmem:[%s7 + $0x4] sm:$0xf]
  %v1131 = vld [vmem:[%s7 + $0x8] sm:$0xf]
  %v1132 = vld [vmem:[%s7 + $0xc] sm:$0xf]
  %v1133 = vld [vmem:[%s7 + $0x10] sm:$0xf]
  %v1134 = vld [vmem:[%s7 + $0x14] sm:$0xf]
  %v1135 = vld [vmem:[%s7 + $0x18] sm:$0xf]
  %v1136 = vld [vmem:[%s7 + $0x1c] sm:$0xf]
  %v1137 = vld [vmem:[%s7 + $0x20] sm:$0xf]
  %v1138 = vld [vmem:[%s7 + $0x24] sm:$0xf]
  %v1139 = vld [vmem:[%s7 + $0x28] sm:$0xf]
  %v1140 = vld [vmem:[%s7 + $0x2c] sm:$0xf]
  %v1141 = vld [vmem:[%s7 + $0x30] sm:$0xf]
  %v1142 = vld [vmem:[%s7 + $0x34] sm:$0xf]
  %v1143 = vld [vmem:[%s7 + $0x38] sm:$0xf]
  %v1144 = vld [vmem:[%s7 + $0x3c] sm:$0xf]
  %v1145 = vld [vmem:[%s8] sm:$0x1]
  %v1147 = vlaneseq
  %v1148 = vshrl.u32 %v1147, 7
  %v1149 = vsub.s32 0, %v1148
  %v1150 = vrot.slane %v1145, %v1149
  %v1168 = vunpack.c.l.b16 %v1129
  %v1169 = vunpack.c.l.b16 %v1130
  %v1170 = vunpack.c.l.b16 %v1131
  %v1171 = vunpack.c.l.b16 %v1132
  %v1172 = vunpack.c.l.b16 %v1133
  %v1173 = vunpack.c.l.b16 %v1134
  %v1174 = vunpack.c.l.b16 %v1135
  %v1175 = vunpack.c.l.b16 %v1136
  %v1176 = vunpack.c.l.b16 %v1137
  %v1177 = vunpack.c.l.b16 %v1138
  %v1178 = vunpack.c.l.b16 %v1139
  %v1179 = vunpack.c.l.b16 %v1140
  %v1180 = vunpack.c.l.b16 %v1141
  %v1181 = vunpack.c.l.b16 %v1142
  %v1182 = vunpack.c.l.b16 %v1143
  %v1183 = vunpack.c.l.b16 %v1144
  %v1184 = vpack.c.b16 %v1169, %v1168
  %v1185 = vpack.c.b16 %v1171, %v1170
  %v1186 = vpack.c.b16 %v1173, %v1172
  %v1187 = vpack.c.b16 %v1175, %v1174
  %v1188 = vpack.c.b16 %v1177, %v1176
  %v1189 = vpack.c.b16 %v1179, %v1178
  %v1190 = vpack.c.b16 %v1181, %v1180
  %v1191 = vpack.c.b16 %v1183, %v1182
  %1200 = vmatprep.subr.bf16.mxu0 0
  %1201 = vmatpush1.bf16.msra.mxu0 %v1184
  %1202 = vmatprep.subr.bf16.mxu0 0
  %1203 = vmatpush1.bf16.msra.mxu0 %v1185
  %1204 = vmatprep.subr.bf16.mxu0 0
  %1205 = vmatpush1.bf16.msra.mxu0 %v1186
  %1206 = vmatprep.subr.bf16.mxu0 0
  %1207 = vmatpush1.bf16.msra.mxu0 %v1187
  %1208 = vmatprep.subr.bf16.mxu0 0
  %1209 = vmatpush1.bf16.msra.mxu0 %v1188
  %1210 = vmatprep.subr.bf16.mxu0 0
  %1211 = vmatpush1.bf16.msra.mxu0 %v1189
  %1212 = vmatprep.subr.bf16.mxu0 0
  %1213 = vmatpush1.bf16.msra.mxu0 %v1190
  %1214 = vmatprep.subr.bf16.mxu0 0
  %1215 = vmatpush1.bf16.msra.mxu0 %v1191
  %1216 = vmatprep.subr.bf16.mxu0 0
  %1217 = vmatpush1.bf16.msra.mxu0 0
  %1218 = vmatprep.subr.bf16.mxu0 0
  %1219 = vmatpush1.bf16.msra.mxu0 0
  %1220 = vmatprep.subr.bf16.mxu0 0
  %1221 = vmatpush1.bf16.msra.mxu0 0
  %1222 = vmatprep.subr.bf16.mxu0 0
  %1223 = vmatpush1.bf16.msra.mxu0 0
  %1224 = vmatprep.subr.bf16.mxu0 0
  %1225 = vmatpush1.bf16.msra.mxu0 0
  %1226 = vmatprep.subr.bf16.mxu0 0
  %1227 = vmatpush1.bf16.msra.mxu0 0
  %1228 = vmatprep.subr.bf16.mxu0 0
  %1229 = vmatpush1.bf16.msra.mxu0 0
  %1230 = vmatprep.subr.bf16.mxu0 0
  %1231 = vmatpush1.bf16.msra.mxu0 0
  %1232 = vmatprep.mubr.bf16.mxu0 0
  %1233 = vmatmul.mubr.bf16.gmra.mrb[0].mxu0 %v1113
  %v1234 = vpop.f32.mrb[0].mxu0
  %v1235 = vadd.f32 %v1150, %v1234
  %v1236 = vpop.f32.mrb[0].mxu0
  %v1237 = vpop.f32.mrb[0].mxu0
  %v1238 = vadd.f32 %v1150, %v1237
  %v1239 = vpop.f32.mrb[0].mxu0
  %1240 = vmatprep.mubr.bf16.mxu0 0
  %1241 = vmatmul.mubr.bf16.gmra.mrb[0].mxu0 %v1114
  %v1242 = vpop.f32.mrb[0].mxu0
  %v1243 = vadd.f32 %v1150, %v1242
  %v1244 = vpop.f32.mrb[0].mxu0
  %v1245 = vpop.f32.mrb[0].mxu0
  %v1246 = vadd.f32 %v1150, %v1245
  %v1247 = vpop.f32.mrb[0].mxu0
  %1248 = vmatprep.mubr.bf16.mxu0 0
  %1249 = vmatmul.mubr.bf16.gmra.mrb[0].mxu0 %v1115
  %v1250 = vpop.f32.mrb[0].mxu0
  %v1251 = vadd.f32 %v1150, %v1250
  %v1252 = vpop.f32.mrb[0].mxu0
  %v1253 = vpop.f32.mrb[0].mxu0
  %v1254 = vadd.f32 %v1150, %v1253
  %v1255 = vpop.f32.mrb[0].mxu0
  %1256 = vmatprep.mubr.bf16.mxu0 0
  %1257 = vmatmul.mubr.bf16.gmra.mrb[0].mxu0 %v1116
  %v1258 = vpop.f32.mrb[0].mxu0
  %v1259 = vadd.f32 %v1150, %v1258
  %v1260 = vpop.f32.mrb[0].mxu0
  %v1261 = vpop.f32.mrb[0].mxu0
  %v1262 = vadd.f32 %v1150, %v1261
  %v1263 = vpop.f32.mrb[0].mxu0
  %1264 = vmatprep.mubr.bf16.mxu0 0
  %1265 = vmatmul.mubr.bf16.gmra.mrb[0].mxu0 %v1117
  %v1266 = vpop.f32.mrb[0].mxu0
  %v1267 = vadd.f32 %v1150, %v1266
  %v1268 = vpop.f32.mrb[0].mxu0
  %v1269 = vpop.f32.mrb[0].mxu0
  %v1270 = vadd.f32 %v1150, %v1269
  %v1271 = vpop.f32.mrb[0].mxu0
  %1272 = vmatprep.mubr.bf16.mxu0 0
  %1273 = vmatmul.mubr.bf16.gmra.mrb[0].mxu0 %v1118
  %v1274 = vpop.f32.mrb[0].mxu0
  %v1275 = vadd.f32 %v1150, %v1274
  %v1276 = vpop.f32.mrb[0].mxu0
  %v1277 = vpop.f32.mrb[0].mxu0
  %v1278 = vadd.f32 %v1150, %v1277
  %v1279 = vpop.f32.mrb[0].mxu0
  %1280 = vmatprep.mubr.bf16.mxu0 0
  %1281 = vmatmul.mubr.bf16.gmra.mrb[0].mxu0 %v1119
  %v1282 = vpop.f32.mrb[0].mxu0
  %v1283 = vadd.f32 %v1150, %v1282
  %v1284 = vpop.f32.mrb[0].mxu0
  %v1285 = vpop.f32.mrb[0].mxu0
  %v1286 = vadd.f32 %v1150, %v1285
  %v1287 = vpop.f32.mrb[0].mxu0
  %1288 = vmatprep.mubr.bf16.mxu0 0
  %1289 = vmatmul.mubr.bf16.gmra.mrb[0].mxu0 %v1120
  %v1290 = vpop.f32.mrb[0].mxu0
  %v1291 = vadd.f32 %v1150, %v1290
  %v1292 = vpop.f32.mrb[0].mxu0
  %v1293 = vpop.f32.mrb[0].mxu0
  %v1294 = vadd.f32 %v1150, %v1293
  %v1295 = vpop.f32.mrb[0].mxu0
  %1296 = vmatprep.mubr.bf16.mxu0 0
  %1297 = vmatmul.mubr.bf16.gmra.mrb[0].mxu0 %v1121
  %v1298 = vpop.f32.mrb[0].mxu0
  %v1299 = vadd.f32 %v1150, %v1298
  %v1300 = vpop.f32.mrb[0].mxu0
  %v1301 = vpop.f32.mrb[0].mxu0
  %v1302 = vadd.f32 %v1150, %v1301
  %v1303 = vpop.f32.mrb[0].mxu0
  %1304 = vmatprep.mubr.bf16.mxu0 0
  %1305 = vmatmul.mubr.bf16.gmra.mrb[0].mxu0 %v1122
  %v1306 = vpop.f32.mrb[0].mxu0
  %v1307 = vadd.f32 %v1150, %v1306
  %v1308 = vpop.f32.mrb[0].mxu0
  %v1309 = vpop.f32.mrb[0].mxu0
  %v1310 = vadd.f32 %v1150, %v1309
  %v1311 = vpop.f32.mrb[0].mxu0
  %1312 = vmatprep.mubr.bf16.mxu0 0
  %1313 = vmatmul.mubr.bf16.gmra.mrb[0].mxu0 %v1123
  %v1314 = vpop.f32.mrb[0].mxu0
  %v1315 = vadd.f32 %v1150, %v1314
  %v1316 = vpop.f32.mrb[0].mxu0
  %v1317 = vpop.f32.mrb[0].mxu0
  %v1318 = vadd.f32 %v1150, %v1317
  %v1319 = vpop.f32.mrb[0].mxu0
  %1320 = vmatprep.mubr.bf16.mxu0 0
  %1321 = vmatmul.mubr.bf16.gmra.mrb[0].mxu0 %v1124
  %v1322 = vpop.f32.mrb[0].mxu0
  %v1323 = vadd.f32 %v1150, %v1322
  %v1324 = vpop.f32.mrb[0].mxu0
  %v1325 = vpop.f32.mrb[0].mxu0
  %v1326 = vadd.f32 %v1150, %v1325
  %v1327 = vpop.f32.mrb[0].mxu0
  %1328 = vmatprep.mubr.bf16.mxu0 0
  %1329 = vmatmul.mubr.bf16.gmra.mrb[0].mxu0 %v1125
  %v1330 = vpop.f32.mrb[0].mxu0
  %v1331 = vadd.f32 %v1150, %v1330
  %v1332 = vpop.f32.mrb[0].mxu0
  %v1333 = vpop.f32.mrb[0].mxu0
  %v1334 = vadd.f32 %v1150, %v1333
  %v1335 = vpop.f32.mrb[0].mxu0
  %1336 = vmatprep.mubr.bf16.mxu0 0
  %1337 = vmatmul.mubr.bf16.gmra.mrb[0].mxu0 %v1126
  %v1338 = vpop.f32.mrb[0].mxu0
  %v1339 = vadd.f32 %v1150, %v1338
  %v1340 = vpop.f32.mrb[0].mxu0
  %v1341 = vpop.f32.mrb[0].mxu0
  %v1342 = vadd.f32 %v1150, %v1341
  %v1343 = vpop.f32.mrb[0].mxu0
  %1344 = vmatprep.mubr.bf16.mxu0 0
  %1345 = vmatmul.mubr.bf16.gmra.mrb[0].mxu0 %v1127
  %v1346 = vpop.f32.mrb[0].mxu0
  %v1347 = vadd.f32 %v1150, %v1346
  %v1348 = vpop.f32.mrb[0].mxu0
  %v1349 = vpop.f32.mrb[0].mxu0
  %v1350 = vadd.f32 %v1150, %v1349
  %v1351 = vpop.f32.mrb[0].mxu0
  %1352 = vmatprep.mubr.bf16.mxu0 0
  %1353 = vmatmul.mubr.bf16.gmra.mrb[0].mxu0 %v1128
  %v1354 = vpop.f32.mrb[0].mxu0
  %v1355 = vadd.f32 %v1150, %v1354
  %v1356 = vpop.f32.mrb[0].mxu0
  %v1357 = vpop.f32.mrb[0].mxu0
  %v1358 = vadd.f32 %v1150, %v1357
  %v1359 = vpop.f32.mrb[0].mxu0
  %1360 = vdwg.mxu0
  %v1361 = vlaneseq
  %v1362 = vand.u32 %v1361, 127
  %vm1363 = vcmp.lt.s32.totalorder %v1362, 7
  %v1364 = vsel %vm1363, %v1235, -inf
  %v1365 = vsel %vm1363, %v1238, -inf
  %v1366 = vsel %vm1363, %v1243, -inf
  %v1367 = vsel %vm1363, %v1246, -inf
  %v1368 = vsel %vm1363, %v1251, -inf
  %v1369 = vsel %vm1363, %v1254, -inf
  %v1370 = vsel %vm1363, %v1259, -inf
  %v1371 = vsel %vm1363, %v1262, -inf
  %v1372 = vsel %vm1363, %v1267, -inf
  %v1373 = vsel %vm1363, %v1270, -inf
  %v1374 = vsel %vm1363, %v1275, -inf
  %v1375 = vsel %vm1363, %v1278, -inf
  %v1376 = vsel %vm1363, %v1283, -inf
  %v1377 = vsel %vm1363, %v1286, -inf
  %v1378 = vsel %vm1363, %v1291, -inf
  %v1379 = vsel %vm1363, %v1294, -inf
  %v1380 = vsel %vm1363, %v1299, -inf
  %v1381 = vsel %vm1363, %v1302, -inf
  %v1382 = vsel %vm1363, %v1307, -inf
  %v1383 = vsel %vm1363, %v1310, -inf
  %v1384 = vsel %vm1363, %v1315, -inf
  %v1385 = vsel %vm1363, %v1318, -inf
  %v1386 = vsel %vm1363, %v1323, -inf
  %v1387 = vsel %vm1363, %v1326, -inf
  %v1388 = vsel %vm1363, %v1331, -inf
  %v1389 = vsel %vm1363, %v1334, -inf
  %v1390 = vsel %vm1363, %v1339, -inf
  %v1391 = vsel %vm1363, %v1342, -inf
  %v1392 = vsel %vm1363, %v1347, -inf
  %v1393 = vsel %vm1363, %v1350, -inf
  %v1394 = vsel %vm1363, %v1355, -inf
  %v1395 = vsel %vm1363, %v1358, -inf
  %1396 = vmax.xlane.f32.xlu0 %v1364
  %v1397 = vpop.xlane.xlu0 %1396
  %1398 = vmax.xlane.f32.xlu0 %v1365
  %v1399 = vpop.xlane.xlu0 %1398
  %1400 = vmax.xlane.f32.xlu0 %v1366
  %v1401 = vpop.xlane.xlu0 %1400
  %1402 = vmax.xlane.f32.xlu0 %v1367
  %v1403 = vpop.xlane.xlu0 %1402
  %1404 = vmax.xlane.f32.xlu0 %v1368
  %v1405 = vpop.xlane.xlu0 %1404
  %1406 = vmax.xlane.f32.xlu0 %v1369
  %v1407 = vpop.xlane.xlu0 %1406
  %1408 = vmax.xlane.f32.xlu0 %v1370
  %v1409 = vpop.xlane.xlu0 %1408
  %1410 = vmax.xlane.f32.xlu0 %v1371
  %v1411 = vpop.xlane.xlu0 %1410
  %1412 = vmax.xlane.f32.xlu0 %v1372
  %v1413 = vpop.xlane.xlu0 %1412
  %1414 = vmax.xlane.f32.xlu0 %v1373
  %v1415 = vpop.xlane.xlu0 %1414
  %1416 = vmax.xlane.f32.xlu0 %v1374
  %v1417 = vpop.xlane.xlu0 %1416
  %1418 = vmax.xlane.f32.xlu0 %v1375
  %v1419 = vpop.xlane.xlu0 %1418
  %1420 = vmax.xlane.f32.xlu0 %v1376
  %v1421 = vpop.xlane.xlu0 %1420
  %1422 = vmax.xlane.f32.xlu0 %v1377
  %v1423 = vpop.xlane.xlu0 %1422
  %1424 = vmax.xlane.f32.xlu0 %v1378
  %v1425 = vpop.xlane.xlu0 %1424
  %1426 = vmax.xlane.f32.xlu0 %v1379
  %v1427 = vpop.xlane.xlu0 %1426
  %1428 = vmax.xlane.f32.xlu0 %v1380
  %v1429 = vpop.xlane.xlu0 %1428
  %1430 = vmax.xlane.f32.xlu0 %v1381
  %v1431 = vpop.xlane.xlu0 %1430
  %1432 = vmax.xlane.f32.xlu0 %v1382
  %v1433 = vpop.xlane.xlu0 %1432
  %1434 = vmax.xlane.f32.xlu0 %v1383
  %v1435 = vpop.xlane.xlu0 %1434
  %1436 = vmax.xlane.f32.xlu0 %v1384
  %v1437 = vpop.xlane.xlu0 %1436
  %1438 = vmax.xlane.f32.xlu0 %v1385
  %v1439 = vpop.xlane.xlu0 %1438
  %1440 = vmax.xlane.f32.xlu0 %v1386
  %v1441 = vpop.xlane.xlu0 %1440
  %1442 = vmax.xlane.f32.xlu0 %v1387
  %v1443 = vpop.xlane.xlu0 %1442
  %1444 = vmax.xlane.f32.xlu0 %v1388
  %v1445 = vpop.xlane.xlu0 %1444
  %1446 = vmax.xlane.f32.xlu0 %v1389
  %v1447 = vpop.xlane.xlu0 %1446
  %1448 = vmax.xlane.f32.xlu0 %v1390
  %v1449 = vpop.xlane.xlu0 %1448
  %1450 = vmax.xlane.f32.xlu0 %v1391
  %v1451 = vpop.xlane.xlu0 %1450
  %1452 = vmax.xlane.f32.xlu0 %v1392
  %v1453 = vpop.xlane.xlu0 %1452
  %1454 = vmax.xlane.f32.xlu0 %v1393
  %v1455 = vpop.xlane.xlu0 %1454
  %1456 = vmax.xlane.f32.xlu0 %v1394
  %v1457 = vpop.xlane.xlu0 %1456
  %1458 = vmax.xlane.f32.xlu0 %v1395
  %v1459 = vpop.xlane.xlu0 %1458
  %v1460 = vsub.f32 %v1364, %v1397
  %v1461 = vsub.f32 %v1365, %v1399
  %v1462 = vsub.f32 %v1366, %v1401
  %v1463 = vsub.f32 %v1367, %v1403
  %v1464 = vsub.f32 %v1368, %v1405
  %v1465 = vsub.f32 %v1369, %v1407
  %v1466 = vsub.f32 %v1370, %v1409
  %v1467 = vsub.f32 %v1371, %v1411
  %v1468 = vsub.f32 %v1372, %v1413
  %v1469 = vsub.f32 %v1373, %v1415
  %v1470 = vsub.f32 %v1374, %v1417
  %v1471 = vsub.f32 %v1375, %v1419
  %v1472 = vsub.f32 %v1376, %v1421
  %v1473 = vsub.f32 %v1377, %v1423
  %v1474 = vsub.f32 %v1378, %v1425
  %v1475 = vsub.f32 %v1379, %v1427
  %v1476 = vsub.f32 %v1380, %v1429
  %v1477 = vsub.f32 %v1381, %v1431
  %v1478 = vsub.f32 %v1382, %v1433
  %v1479 = vsub.f32 %v1383, %v1435
  %v1480 = vsub.f32 %v1384, %v1437
  %v1481 = vsub.f32 %v1385, %v1439
  %v1482 = vsub.f32 %v1386, %v1441
  %v1483 = vsub.f32 %v1387, %v1443
  %v1484 = vsub.f32 %v1388, %v1445
  %v1485 = vsub.f32 %v1389, %v1447
  %v1486 = vsub.f32 %v1390, %v1449
  %v1487 = vsub.f32 %v1391, %v1451
  %v1488 = vsub.f32 %v1392, %v1453
  %v1489 = vsub.f32 %v1393, %v1455
  %v1490 = vsub.f32 %v1394, %v1457
  %v1491 = vsub.f32 %v1395, %v1459
  %v1492 = vmul.f32 %v1460, 1.442695
  %v1493 = vpow.pop %v1492
  %v1494 = vmul.f32 %v1461, 1.442695
  %v1495 = vpow.pop %v1494
  %v1496 = vmul.f32 %v1462, 1.442695
  %v1497 = vpow.pop %v1496
  %v1498 = vmul.f32 %v1463, 1.442695
  %v1499 = vpow.pop %v1498
  %v1500 = vmul.f32 %v1464, 1.442695
  %v1501 = vpow.pop %v1500
  %v1502 = vmul.f32 %v1465, 1.442695
  %v1503 = vpow.pop %v1502
  %v1504 = vmul.f32 %v1466, 1.442695
  %v1505 = vpow.pop %v1504
  %v1506 = vmul.f32 %v1467, 1.442695
  %v1507 = vpow.pop %v1506
  %v1508 = vmul.f32 %v1468, 1.442695
  %v1509 = vpow.pop %v1508
  %v1510 = vmul.f32 %v1469, 1.442695
  %v1511 = vpow.pop %v1510
  %v1512 = vmul.f32 %v1470, 1.442695
  %v1513 = vpow.pop %v1512
  %v1514 = vmul.f32 %v1471, 1.442695
  %v1515 = vpow.pop %v1514
  %v1516 = vmul.f32 %v1472, 1.442695
  %v1517 = vpow.pop %v1516
  %v1518 = vmul.f32 %v1473, 1.442695
  %v1519 = vpow.pop %v1518
  %v1520 = vmul.f32 %v1474, 1.442695
  %v1521 = vpow.pop %v1520
  %v1522 = vmul.f32 %v1475, 1.442695
  %v1523 = vpow.pop %v1522
  %v1524 = vmul.f32 %v1476, 1.442695
  %v1525 = vpow.pop %v1524
  %v1526 = vmul.f32 %v1477, 1.442695
  %v1527 = vpow.pop %v1526
  %v1528 = vmul.f32 %v1478, 1.442695
  %v1529 = vpow.pop %v1528
  %v1530 = vmul.f32 %v1479, 1.442695
  %v1531 = vpow.pop %v1530
  %v1532 = vmul.f32 %v1480, 1.442695
  %v1533 = vpow.pop %v1532
  %v1534 = vmul.f32 %v1481, 1.442695
  %v1535 = vpow.pop %v1534
  %v1536 = vmul.f32 %v1482, 1.442695
  %v1537 = vpow.pop %v1536
  %v1538 = vmul.f32 %v1483, 1.442695
  %v1539 = vpow.pop %v1538
  %v1540 = vmul.f32 %v1484, 1.442695
  %v1541 = vpow.pop %v1540
  %v1542 = vmul.f32 %v1485, 1.442695
  %v1543 = vpow.pop %v1542
  %v1544 = vmul.f32 %v1486, 1.442695
  %v1545 = vpow.pop %v1544
  %v1546 = vmul.f32 %v1487, 1.442695
  %v1547 = vpow.pop %v1546
  %v1548 = vmul.f32 %v1488, 1.442695
  %v1549 = vpow.pop %v1548
  %v1550 = vmul.f32 %v1489, 1.442695
  %v1551 = vpow.pop %v1550
  %v1552 = vmul.f32 %v1490, 1.442695
  %v1553 = vpow.pop %v1552
  %v1554 = vmul.f32 %v1491, 1.442695
  %v1555 = vpow.pop %v1554
  %1556 = vadd.xlane.f32.xlu0 %v1493
  %v1557 = vpop.xlane.xlu0 %1556
  %1558 = vadd.xlane.f32.xlu0 %v1495
  %v1559 = vpop.xlane.xlu0 %1558
  %1560 = vadd.xlane.f32.xlu0 %v1497
  %v1561 = vpop.xlane.xlu0 %1560
  %1562 = vadd.xlane.f32.xlu0 %v1499
  %v1563 = vpop.xlane.xlu0 %1562
  %1564 = vadd.xlane.f32.xlu0 %v1501
  %v1565 = vpop.xlane.xlu0 %1564
  %1566 = vadd.xlane.f32.xlu0 %v1503
  %v1567 = vpop.xlane.xlu0 %1566
  %1568 = vadd.xlane.f32.xlu0 %v1505
  %v1569 = vpop.xlane.xlu0 %1568
  %1570 = vadd.xlane.f32.xlu0 %v1507
  %v1571 = vpop.xlane.xlu0 %1570
  %1572 = vadd.xlane.f32.xlu0 %v1509
  %v1573 = vpop.xlane.xlu0 %1572
  %1574 = vadd.xlane.f32.xlu0 %v1511
  %v1575 = vpop.xlane.xlu0 %1574
  %1576 = vadd.xlane.f32.xlu0 %v1513
  %v1577 = vpop.xlane.xlu0 %1576
  %1578 = vadd.xlane.f32.xlu0 %v1515
  %v1579 = vpop.xlane.xlu0 %1578
  %1580 = vadd.xlane.f32.xlu0 %v1517
  %v1581 = vpop.xlane.xlu0 %1580
  %1582 = vadd.xlane.f32.xlu0 %v1519
  %v1583 = vpop.xlane.xlu0 %1582
  %1584 = vadd.xlane.f32.xlu0 %v1521
  %v1585 = vpop.xlane.xlu0 %1584
  %1586 = vadd.xlane.f32.xlu0 %v1523
  %v1587 = vpop.xlane.xlu0 %1586
  %1588 = vadd.xlane.f32.xlu0 %v1525
  %v1589 = vpop.xlane.xlu0 %1588
  %1590 = vadd.xlane.f32.xlu0 %v1527
  %v1591 = vpop.xlane.xlu0 %1590
  %1592 = vadd.xlane.f32.xlu0 %v1529
  %v1593 = vpop.xlane.xlu0 %1592
  %1594 = vadd.xlane.f32.xlu0 %v1531
  %v1595 = vpop.xlane.xlu0 %1594
  %1596 = vadd.xlane.f32.xlu0 %v1533
  %v1597 = vpop.xlane.xlu0 %1596
  %1598 = vadd.xlane.f32.xlu0 %v1535
  %v1599 = vpop.xlane.xlu0 %1598
  %1600 = vadd.xlane.f32.xlu0 %v1537
  %v1601 = vpop.xlane.xlu0 %1600
  %1602 = vadd.xlane.f32.xlu0 %v1539
  %v1603 = vpop.xlane.xlu0 %1602
  %1604 = vadd.xlane.f32.xlu0 %v1541
  %v1605 = vpop.xlane.xlu0 %1604
  %1606 = vadd.xlane.f32.xlu0 %v1543
  %v1607 = vpop.xlane.xlu0 %1606
  %1608 = vadd.xlane.f32.xlu0 %v1545
  %v1609 = vpop.xlane.xlu0 %1608
  %1610 = vadd.xlane.f32.xlu0 %v1547
  %v1611 = vpop.xlane.xlu0 %1610
  %1612 = vadd.xlane.f32.xlu0 %v1549
  %v1613 = vpop.xlane.xlu0 %1612
  %1614 = vadd.xlane.f32.xlu0 %v1551
  %v1615 = vpop.xlane.xlu0 %1614
  %1616 = vadd.xlane.f32.xlu0 %v1553
  %v1617 = vpop.xlane.xlu0 %1616
  %1618 = vadd.xlane.f32.xlu0 %v1555
  %v1619 = vpop.xlane.xlu0 %1618
  %v1620 = vlog2.pop %v1557
  %v1621 = vmul.f32 %v1620, 0.6931472
  %v1622 = vlog2.pop %v1559
  %v1623 = vmul.f32 %v1622, 0.6931472
  %v1624 = vlog2.pop %v1561
  %v1625 = vmul.f32 %v1624, 0.6931472
  %v1626 = vlog2.pop %v1563
  %v1627 = vmul.f32 %v1626, 0.6931472
  %v1628 = vlog2.pop %v1565
  %v1629 = vmul.f32 %v1628, 0.6931472
  %v1630 = vlog2.pop %v1567
  %v1631 = vmul.f32 %v1630, 0.6931472
  %v1632 = vlog2.pop %v1569
  %v1633 = vmul.f32 %v1632, 0.6931472
  %v1634 = vlog2.pop %v1571
  %v1635 = vmul.f32 %v1634, 0.6931472
  %v1636 = vlog2.pop %v1573
  %v1637 = vmul.f32 %v1636, 0.6931472
  %v1638 = vlog2.pop %v1575
  %v1639 = vmul.f32 %v1638, 0.6931472
  %v1640 = vlog2.pop %v1577
  %v1641 = vmul.f32 %v1640, 0.6931472
  %v1642 = vlog2.pop %v1579
  %v1643 = vmul.f32 %v1642, 0.6931472
  %v1644 = vlog2.pop %v1581
  %v1645 = vmul.f32 %v1644, 0.6931472
  %v1646 = vlog2.pop %v1583
  %v1647 = vmul.f32 %v1646, 0.6931472
  %v1648 = vlog2.pop %v1585
  %v1649 = vmul.f32 %v1648, 0.6931472
  %v1650 = vlog2.pop %v1587
  %v1651 = vmul.f32 %v1650, 0.6931472
  %v1652 = vlog2.pop %v1589
  %v1653 = vmul.f32 %v1652, 0.6931472
  %v1654 = vlog2.pop %v1591
  %v1655 = vmul.f32 %v1654, 0.6931472
  %v1656 = vlog2.pop %v1593
  %v1657 = vmul.f32 %v1656, 0.6931472
  %v1658 = vlog2.pop %v1595
  %v1659 = vmul.f32 %v1658, 0.6931472
  %v1660 = vlog2.pop %v1597
  %v1661 = vmul.f32 %v1660, 0.6931472
  %v1662 = vlog2.pop %v1599
  %v1663 = vmul.f32 %v1662, 0.6931472
  %v1664 = vlog2.pop %v1601
  %v1665 = vmul.f32 %v1664, 0.6931472
  %v1666 = vlog2.pop %v1603
  %v1667 = vmul.f32 %v1666, 0.6931472
  %v1668 = vlog2.pop %v1605
  %v1669 = vmul.f32 %v1668, 0.6931472
  %v1670 = vlog2.pop %v1607
  %v1671 = vmul.f32 %v1670, 0.6931472
  %v1672 = vlog2.pop %v1609
  %v1673 = vmul.f32 %v1672, 0.6931472
  %v1674 = vlog2.pop %v1611
  %v1675 = vmul.f32 %v1674, 0.6931472
  %v1676 = vlog2.pop %v1613
  %v1677 = vmul.f32 %v1676, 0.6931472
  %v1678 = vlog2.pop %v1615
  %v1679 = vmul.f32 %v1678, 0.6931472
  %v1680 = vlog2.pop %v1617
  %v1681 = vmul.f32 %v1680, 0.6931472
  %v1682 = vlog2.pop %v1619
  %v1683 = vmul.f32 %v1682, 0.6931472
  %v1684 = vsub.f32 %v1460, %v1621
  %v1685 = vsub.f32 %v1461, %v1623
  %v1686 = vsub.f32 %v1462, %v1625
  %v1687 = vsub.f32 %v1463, %v1627
  %v1688 = vsub.f32 %v1464, %v1629
  %v1689 = vsub.f32 %v1465, %v1631
  %v1690 = vsub.f32 %v1466, %v1633
  %v1691 = vsub.f32 %v1467, %v1635
  %v1692 = vsub.f32 %v1468, %v1637
  %v1693 = vsub.f32 %v1469, %v1639
  %v1694 = vsub.f32 %v1470, %v1641
  %v1695 = vsub.f32 %v1471, %v1643
  %v1696 = vsub.f32 %v1472, %v1645
  %v1697 = vsub.f32 %v1473, %v1647
  %v1698 = vsub.f32 %v1474, %v1649
  %v1699 = vsub.f32 %v1475, %v1651
  %v1700 = vsub.f32 %v1476, %v1653
  %v1701 = vsub.f32 %v1477, %v1655
  %v1702 = vsub.f32 %v1478, %v1657
  %v1703 = vsub.f32 %v1479, %v1659
  %v1704 = vsub.f32 %v1480, %v1661
  %v1705 = vsub.f32 %v1481, %v1663
  %v1706 = vsub.f32 %v1482, %v1665
  %v1707 = vsub.f32 %v1483, %v1667
  %v1708 = vsub.f32 %v1484, %v1669
  %v1709 = vsub.f32 %v1485, %v1671
  %v1710 = vsub.f32 %v1486, %v1673
  %v1711 = vsub.f32 %v1487, %v1675
  %v1712 = vsub.f32 %v1488, %v1677
  %v1713 = vsub.f32 %v1489, %v1679
  %v1714 = vsub.f32 %v1490, %v1681
  %v1715 = vsub.f32 %v1491, %v1683
  %1716 = vst [vmem:[%s9] sm:$0xff] %v1684
  %1717 = vst [vmem:[%s9 + $0x8] sm:$0xff] %v1685
  %1718 = vst [vmem:[%s9 + $0x10] sm:$0xff] %v1686
  %1719 = vst [vmem:[%s9 + $0x18] sm:$0xff] %v1687
  %1720 = vst [vmem:[%s9 + $0x20] sm:$0xff] %v1688
  %1721 = vst [vmem:[%s9 + $0x28] sm:$0xff] %v1689
  %1722 = vst [vmem:[%s9 + $0x30] sm:$0xff] %v1690
  %1723 = vst [vmem:[%s9 + $0x38] sm:$0xff] %v1691
  %1724 = vst [vmem:[%s9 + $0x40] sm:$0xff] %v1692
  %1725 = vst [vmem:[%s9 + $0x48] sm:$0xff] %v1693
  %1726 = vst [vmem:[%s9 + $0x50] sm:$0xff] %v1694
  %1727 = vst [vmem:[%s9 + $0x58] sm:$0xff] %v1695
  %1728 = vst [vmem:[%s9 + $0x60] sm:$0xff] %v1696
  %1729 = vst [vmem:[%s9 + $0x68] sm:$0xff] %v1697
  %1730 = vst [vmem:[%s9 + $0x70] sm:$0xff] %v1698
  %1731 = vst [vmem:[%s9 + $0x78] sm:$0xff] %v1699
  %1732 = vst [vmem:[%s9 + $0x80] sm:$0xff] %v1700
  %1733 = vst [vmem:[%s9 + $0x88] sm:$0xff] %v1701
  %1734 = vst [vmem:[%s9 + $0x90] sm:$0xff] %v1702
  %1735 = vst [vmem:[%s9 + $0x98] sm:$0xff] %v1703
  %1736 = vst [vmem:[%s9 + $0xa0] sm:$0xff] %v1704
  %1737 = vst [vmem:[%s9 + $0xa8] sm:$0xff] %v1705
  %1738 = vst [vmem:[%s9 + $0xb0] sm:$0xff] %v1706
  %1739 = vst [vmem:[%s9 + $0xb8] sm:$0xff] %v1707
  %1740 = vst [vmem:[%s9 + $0xc0] sm:$0xff] %v1708
  %1741 = vst [vmem:[%s9 + $0xc8] sm:$0xff] %v1709
  %1742 = vst [vmem:[%s9 + $0xd0] sm:$0xff] %v1710
  %1743 = vst [vmem:[%s9 + $0xd8] sm:$0xff] %v1711
  %1744 = vst [vmem:[%s9 + $0xe0] sm:$0xff] %v1712
  %1745 = vst [vmem:[%s9 + $0xe8] sm:$0xff] %v1713
  %1746 = vst [vmem:[%s9 + $0xf0] sm:$0xff] %v1714
  %1747 = vst [vmem:[%s9 + $0xf8] sm:$0xff] %v1715
  // Predicated region
  $region38: #{net_forward.7} parent=0 // pred_check
    _
  $region39: #{net_forward.7} parent=0 // pred_check_branch
    %1749 = sbr.rel (0) target = $region41
  $region40: #{net_forward.7} parent=0 // pred_region
    _
  $region41: #{net_forward.7} parent=0 // pred_fallthru
    _
  // Predicated region
  $region42: #{net_forward.7} parent=0 // pred_check
    _
  $region43: #{net_forward.7} parent=0 // pred_check_branch
    %1751 = sbr.rel (0) target = $region45
  $region44: #{net_forward.7} parent=0 // pred_region
    _
  $region45: #{net_forward.7} parent=0 // pred_fallthru
    _

</llo_original>
